<compile_context>
chip_gen: v7x
topology: tpu7x:2x2x1
jax: 0.10.0
libtpu: 0.0.40
codegen_flags: <defaults>
</compile_context>

<pallas_src>
import numpy as np
import jax
import jax.numpy as jnp
from jax import lax
from jax.experimental import pallas as pl
from jax.experimental.pallas import tpu as pltpu

EMB_DIM = 64        # emb_dim
HIDDEN = 32         # hidden_dim
T_MAX = 16          # max words per sentence (padded; kernel masks with true length)
S_MAX = 8           # max sentences per document (padded; kernel masks with true length)
N_SENT_PAD = 8      # max total sentences across the batch (padded, multiple of 8)
B_PAD = 8           # padded batch size for the sentence-level GRU (multiple of 8)

_VMEM = pl.BlockSpec(memory_space=pltpu.MemorySpace.VMEM)


# ----------------------------- GRU math (inside the kernel) ------------------

def _gru_gates(h, gi, gh, mask, H):
    """One GRU update on an (N, H) batch of hidden states.

    gi already contains x@W_ih + b_ih + [b_hr, b_hz, 0] (hoisted precompute).
    gh already contains h@W_hh + [0, 0, b_hn] (added before the r-gating, as
    PyTorch does).  mask holds h unchanged past the true sequence end.
    """
    r = jax.nn.sigmoid(gi[:, 0:H] + gh[:, 0:H])
    z = jax.nn.sigmoid(gi[:, H:2 * H] + gh[:, H:2 * H])
    n = jnp.tanh(gi[:, 2 * H:3 * H] + r * gh[:, 2 * H:3 * H])
    h_new = (1.0 - z) * n + z * h
    return jnp.where(mask, h_new, h)


# ----------------------------- fused Pallas kernel ---------------------------

def hier_encoder_kernel(wlens_ref, dlens_ref, x2_ref, scat_ref,
                        wih_w_ref, whh_w_ref, bgi_w_ref, bghn_w_ref,
                        wih_s_ref, whh_s_ref, bgi_s_ref, bghn_s_ref,
                        out_ref, giw_scr, gis_scr):
    """Whole HierEncoderRNN encode for the padded batch.

    wlens_ref: (N_SENT_PAD, 1) int32  true word counts per sentence (0 = pad).
    dlens_ref: (B_PAD, 1) int32       true sentence counts per document.
    x2_ref:    (T_MAX*N_SENT_PAD, 2E) time-major embeddings, cols [x_t | x_{T-1-t}].
    scat_ref:  (S_MAX*B_PAD, N_SENT_PAD) one-hot scatter (sentence -> doc slot).
    wih_w_ref: (2E, 6H) block-diag [W_ih_f | W_ih_b];  whh_w_ref: (2H, 6H) block-diag.
    out_ref:   (B_PAD, H) final document hidden states.
    """
    NS = wlens_ref.shape[0]
    B, H = out_ref.shape
    T = x2_ref.shape[0] // NS
    S = scat_ref.shape[0] // B

    wlens = wlens_ref[...]                                            # (NS, 1)
    dlens = dlens_ref[...]                                            # (B, 1)

    # ---- word-level bidirectional GRU --------------------------------------
    # Hoisted input projection: ONE (T*NS, 2E) @ (2E, 6H) matmul covers both
    # directions (backward half already time-reversed by the wrapper).
    giw_scr[...] = (jnp.dot(x2_ref[...], wih_w_ref[...],
                            preferred_element_type=jnp.float32) + bgi_w_ref[...])

    whh_w = whh_w_ref[...]                                            # (2H, 6H)
    bghn_w = bghn_w_ref[...]                                          # (1, 6H)

    h0 = jnp.zeros((NS, 2 * H), jnp.float32)                          # [h_f | h_b]

    def word_body(t, h):
        tb = T - 1 - t
        row = pl.multiple_of(t * NS, NS)
        gi = giw_scr[pl.ds(row, NS), :]                               # (NS, 6H)
        # ONE matmul drives both recurrence chains (block-diagonal W_hh).
        gh = jnp.dot(h, whh_w, preferred_element_type=jnp.float32) + bghn_w
        h_f = _gru_gates(h[:, 0:H], gi[:, 0:3 * H], gh[:, 0:3 * H], t < wlens, H)
        h_b = _gru_gates(h[:, H:2 * H], gi[:, 3 * H:6 * H], gh[:, 3 * H:6 * H],
                         tb < wlens, H)
        return jnp.concatenate([h_f, h_b], axis=1)

    h_w = lax.fori_loop(0, T, word_body, h0, unroll=True)
    sent_vecs = h_w[:, 0:H] + h_w[:, H:2 * H]                         # sent_vec = h[0] + h[1]

    # ---- scatter sentences into (S*B, H) time-major rows (one-hot matmul) --
    x_sent = jnp.dot(scat_ref[...], sent_vecs, preferred_element_type=jnp.float32)

    # ---- sentence-level GRU -------------------------------------------------
    gis_scr[...] = (jnp.dot(x_sent, wih_s_ref[...],
                            preferred_element_type=jnp.float32) + bgi_s_ref[...])
    whh_s = whh_s_ref[...]
    bghn_s = bghn_s_ref[...]
    hs0 = jnp.zeros((B, H), jnp.float32)

    def sent_body(s, h):
        row = pl.multiple_of(s * B, B)
        gi = gis_scr[pl.ds(row, B), :]
        gh = jnp.dot(h, whh_s, preferred_element_type=jnp.float32) + bghn_s
        return _gru_gates(h, gi, gh, s < dlens, H)

    out_ref[...] = lax.fori_loop(0, S, sent_body, hs0, unroll=True)


# ----------------------------- weight packing (jitted, tiny) -----------------

def _fold_biases(b_ih, b_hh):
    """bgi = b_ih + [b_hr, b_hz, 0]; returns the leftover n-gate b_hh (1, H)."""
    H = HIDDEN
    bgi = b_ih + jnp.concatenate(
        [b_hh[:, :2 * H], jnp.zeros((1, H), jnp.float32)], axis=1)
    return bgi, b_hh[:, 2 * H:]


def _block_diag(a, b):
    za = jnp.zeros((a.shape[0], b.shape[1]), jnp.float32)
    zb = jnp.zeros((b.shape[0], a.shape[1]), jnp.float32)
    return jnp.concatenate([jnp.concatenate([a, za], axis=1),
                            jnp.concatenate([zb, b], axis=1)], axis=0)


def _encode_batch(word_ids, sent_lens, scat, doc_lens, params):
    """word_ids: (N_SENT_PAD, T_MAX) int32; sent_lens: (N_SENT_PAD,) int32;
    scat: (S_MAX*B_PAD, N_SENT_PAD) f32 one-hot scatter; doc_lens: (B_PAD,) int32.
    Returns (B_PAD, HIDDEN) document embeddings."""
    H = HIDDEN

    emb = jnp.take(params["embedding"], word_ids, axis=0)             # (NS, T, E)
    # TODO(synk): nn.Dropout(0.5) is treated as eval-mode identity (no RNG mask).
    emb_t = jnp.transpose(emb, (1, 0, 2))                             # (T, NS, E)
    x_fwd = emb_t.reshape(T_MAX * N_SENT_PAD, EMB_DIM)
    x_bwd = jnp.flip(emb_t, axis=0).reshape(T_MAX * N_SENT_PAD, EMB_DIM)
    x2 = jnp.concatenate([x_fwd, x_bwd], axis=1)                      # (T*NS, 2E)

    bgi_f, bghn_f = _fold_biases(params["b_ih_f"], params["b_hh_f"])
    bgi_b, bghn_b = _fold_biases(params["b_ih_b"], params["b_hh_b"])
    bgi_s, bghn_s = _fold_biases(params["b_ih_s"], params["b_hh_s"])

    wih_w = _block_diag(params["w_ih_f"], params["w_ih_b"])           # (2E, 6H)
    whh_w = _block_diag(params["w_hh_f"], params["w_hh_b"])           # (2H, 6H)
    bgi_w = jnp.concatenate([bgi_f, bgi_b], axis=1)                   # (1, 6H)
    z2h = jnp.zeros((1, 2 * H), jnp.float32)
    bghn_w = jnp.concatenate([z2h, bghn_f, z2h, bghn_b], axis=1)      # (1, 6H)
    bghn_s3 = jnp.concatenate([z2h, bghn_s], axis=1)                  # (1, 3H)

    return pl.pallas_call(
        hier_encoder_kernel,
        out_shape=jax.ShapeDtypeStruct((B_PAD, HIDDEN), jnp.float32),
        in_specs=[_VMEM] * 12,
        out_specs=_VMEM,
        scratch_shapes=[
            pltpu.VMEM((T_MAX * N_SENT_PAD, 6 * HIDDEN), jnp.float32),
            pltpu.VMEM((S_MAX * B_PAD, 3 * HIDDEN), jnp.float32),
        ],
    )(sent_lens.reshape(N_SENT_PAD, 1), doc_lens.reshape(B_PAD, 1), x2, scat,
      wih_w, whh_w, bgi_w, bghn_w,
      params["w_ih_s"], params["w_hh_s"], bgi_s, bghn_s3)


encode_batch = jax.jit(_encode_batch)


# ----------------------------- parameter construction ------------------------

def init_params(key, vocab_size, pad_id):
    ks = jax.random.split(key, 16)
    k = 1.0 / np.sqrt(HIDDEN)

    def u(key, shape):
        return jax.random.uniform(key, shape, jnp.float32, minval=-k, maxval=k)

    emb = 0.1 * jax.random.normal(ks[0], (vocab_size, EMB_DIM), jnp.float32)
    emb = emb.at[pad_id].set(0.0)             # padding_idx row is zero

    return {
        "embedding": emb,
        # word GRU, forward direction (weights transposed to [in, 3H])
        "w_ih_f": u(ks[1], (EMB_DIM, 3 * HIDDEN)),
        "w_hh_f": u(ks[2], (HIDDEN, 3 * HIDDEN)),
        "b_ih_f": u(ks[3], (1, 3 * HIDDEN)),
        "b_hh_f": u(ks[4], (1, 3 * HIDDEN)),
        # word GRU, backward direction
        "w_ih_b": u(ks[5], (EMB_DIM, 3 * HIDDEN)),
        "w_hh_b": u(ks[6], (HIDDEN, 3 * HIDDEN)),
        "b_ih_b": u(ks[7], (1, 3 * HIDDEN)),
        "b_hh_b": u(ks[8], (1, 3 * HIDDEN)),
        # sentence GRU (input dim = HIDDEN)
        "w_ih_s": u(ks[9], (HIDDEN, 3 * HIDDEN)),
        "w_hh_s": u(ks[10], (HIDDEN, 3 * HIDDEN)),
        "b_ih_s": u(ks[11], (1, 3 * HIDDEN)),
        "b_hh_s": u(ks[12], (1, 3 * HIDDEN)),
    }


# ----------------------------- forward (host glue + kernel) ------------------

def hier_encoder_forward(input_seq, params, vocab, inv_vocab):
    """Reproduces HierEncoderRNN.forward. Returns (None, final_hidden) with
    final_hidden of shape (1, batch, hidden_dim)."""
    pad_id = vocab["<pad>"]
    unk_id = vocab["<unk>"]
    input_np = np.asarray(input_seq)
    B = input_np.shape[0]
    assert B <= B_PAD, "increase B_PAD for larger batches"

    word_ids_mat = np.full((N_SENT_PAD, T_MAX), pad_id, dtype=np.int32)
    sent_lens = np.zeros((N_SENT_PAD,), dtype=np.int32)
    scat = np.zeros((S_MAX * B_PAD, N_SENT_PAD), dtype=np.float32)
    doc_lens = np.zeros((B_PAD,), dtype=np.int32)

    n_sent = 0
    for i in range(B):
        seq = input_np[i]
        indices = [int(t) for t in seq if int(t) != pad_id]
        # token ids -> text -> sentences (split on '.'), exactly as the module does
        text = " ".join(inv_vocab.get(tok, "<unk>") for tok in indices)
        sentences = [s.strip() for s in text.split(".") if s.strip()]

        slot = 0
        for s in sentences:
            words = s.split()
            if not words:
                continue
            if slot >= S_MAX or n_sent >= N_SENT_PAD:
                # TODO(synk): fixed-shape buckets (T_MAX/S_MAX/N_SENT_PAD); the
                # reference module has no length caps.
                break
            wids = [vocab.get(w, unk_id) for w in words][:T_MAX]
            L = len(wids)
            word_ids_mat[n_sent, :L] = wids
            sent_lens[n_sent] = L
            scat[slot * B_PAD + i, n_sent] = 1.0      # time-major row = slot*B + doc
            n_sent += 1
            slot += 1
        # empty document -> a single zero sentence vector, as in the reference
        doc_lens[i] = max(slot, 1)

    doc_vecs = encode_batch(
        jnp.asarray(word_ids_mat), jnp.asarray(sent_lens),
        jnp.asarray(scat), jnp.asarray(doc_lens), params)             # (B_PAD, H)

    final_hidden = doc_vecs[:B][None, :, :]                           # (1, B, H)
    return None, final_hidden


# ----------------------------- demo ------------------------------------------

if __name__ == "__main__":
    # Build a tiny deterministic vocabulary (no word contains '.')
    words = ["the", "cat", "sat", "on", "mat", "dog", "ran", "fast",
             "bird", "flew", "high", "fish", "swam", "deep", "sun", "shone"]
    vocab = {"<pad>": 0, "<unk>": 1, ".": 2}
    for w in words:
        vocab[w] = len(vocab)
    inv_vocab = {i: w for w, i in vocab.items()}
    vocab_size = len(vocab)

    key = jax.random.PRNGKey(0)
    k_param, k_tok = jax.random.split(key, 2)
    params = init_params(k_param, vocab_size, vocab["<pad>"])

    # Deterministic synthetic token batch: batch=2, seq_len=20.
    B, L = 2, 20
    toks = jax.random.randint(k_tok, (B, L), 3, vocab_size)        # real words
    toks_np = np.array(toks)                                        # writable host copy
    # sprinkle sentence terminators '.' and trailing <pad>
    toks_np[0, 5] = vocab["."]
    toks_np[0, 11] = vocab["."]
    toks_np[0, 16:] = vocab["<pad>"]
    toks_np[1, 7] = vocab["."]
    toks_np[1, 14] = vocab["."]
    toks_np[1, 18:] = vocab["<pad>"]
    input_seq = jnp.asarray(toks_np, jnp.int32)                    # (2, 20)

    _, final_hidden = hier_encoder_forward(input_seq, params, vocab, inv_vocab)
    final_hidden = jax.block_until_ready(final_hidden)

    assert final_hidden.shape == (1, B, HIDDEN), final_hidden.shape
    assert bool(jnp.all(jnp.isfinite(final_hidden)))
    print("KERNEL_OK")
</pallas_src>

<mosaic_0001>
module attributes {stable_mosaic.version = 11 : i64} {
  func.func @hier_encoder_kernel(%arg0: memref<8x1xi32, #tpu.memory_space<vmem>>, %arg1: memref<8x1xi32, #tpu.memory_space<vmem>>, %arg2: memref<128x128xf32, #tpu.memory_space<vmem>>, %arg3: memref<64x8xf32, #tpu.memory_space<vmem>>, %arg4: memref<128x192xf32, #tpu.memory_space<vmem>>, %arg5: memref<64x192xf32, #tpu.memory_space<vmem>>, %arg6: memref<1x192xf32, #tpu.memory_space<vmem>>, %arg7: memref<1x192xf32, #tpu.memory_space<vmem>>, %arg8: memref<32x96xf32, #tpu.memory_space<vmem>>, %arg9: memref<32x96xf32, #tpu.memory_space<vmem>>, %arg10: memref<1x96xf32, #tpu.memory_space<vmem>>, %arg11: memref<1x96xf32, #tpu.memory_space<vmem>>, %arg12: memref<8x32xf32, #tpu.memory_space<vmem>>, %arg13: memref<128x192xf32, #tpu.memory_space<vmem>>, %arg14: memref<64x96xf32, #tpu.memory_space<vmem>>) attributes {dimension_semantics = [], scalar_prefetch = 0 : i64, scratch_operands = 2 : i64, tpu.core_type = #tpu.core_type<tc>} {
    %c0 = arith.constant 0 : index
    %c0_0 = arith.constant 0 : index
    %0 = vector.load %arg0[%c0, %c0_0] : memref<8x1xi32, #tpu.memory_space<vmem>>, vector<8x1xi32>
    %c0_1 = arith.constant 0 : index
    %c0_2 = arith.constant 0 : index
    %1 = vector.load %arg1[%c0_1, %c0_2] : memref<8x1xi32, #tpu.memory_space<vmem>>, vector<8x1xi32>
    %c0_3 = arith.constant 0 : index
    %c0_4 = arith.constant 0 : index
    %2 = vector.load %arg2[%c0_3, %c0_4] : memref<128x128xf32, #tpu.memory_space<vmem>>, vector<128x128xf32>
    %c0_5 = arith.constant 0 : index
    %c0_6 = arith.constant 0 : index
    %3 = vector.load %arg4[%c0_5, %c0_6] : memref<128x192xf32, #tpu.memory_space<vmem>>, vector<128x192xf32>
    %cst = arith.constant dense<0.000000e+00> : vector<128x192xf32>
    %4 = tpu.matmul %2, %3, %cst {dimension_numbers = #tpu.dot_dimension_numbers<[1], [0], [0], [1], [0, 0, 1, 1], [], []>} : vector<128x128xf32>, vector<128x192xf32>, vector<128x192xf32> -> vector<128x192xf32>
    %c0_7 = arith.constant 0 : index
    %c0_8 = arith.constant 0 : index
    %5 = vector.load %arg6[%c0_7, %c0_8] : memref<1x192xf32, #tpu.memory_space<vmem>>, vector<1x192xf32>
    %6 = vector.broadcast %5 : vector<1x192xf32> to vector<128x192xf32>
    %7 = arith.addf %4, %6 : vector<128x192xf32>
    %c0_9 = arith.constant 0 : index
    %c0_10 = arith.constant 0 : index
    %8 = vector.load %arg13[%c0_9, %c0_10] : memref<128x192xf32, #tpu.memory_space<vmem>>, vector<128x192xf32>
    tpu.vector_store %arg13[%c0_9, %c0_10], %7 {strides = array<i32>} : memref<128x192xf32, #tpu.memory_space<vmem>>, vector<128x192xf32>,
    %c0_11 = arith.constant 0 : index
    %c0_12 = arith.constant 0 : index
    %9 = vector.load %arg5[%c0_11, %c0_12] : memref<64x192xf32, #tpu.memory_space<vmem>>, vector<64x192xf32>
    %c0_13 = arith.constant 0 : index
    %c0_14 = arith.constant 0 : index
    %10 = vector.load %arg7[%c0_13, %c0_14] : memref<1x192xf32, #tpu.memory_space<vmem>>, vector<1x192xf32>
    %cst_15 = arith.constant 0.000000e+00 : f32
    %11 = vector.broadcast %cst_15 : f32 to vector<8x64xf32>
    %c0_i32 = arith.constant 0 : i32
    %c15_i32 = arith.constant 15 : i32
    %12 = arith.subi %c15_i32, %c0_i32 : i32
    %c8_i32 = arith.constant 8 : i32
    %13 = arith.muli %c0_i32, %c8_i32 : i32
    %14 = tpu.assume_multiple %13, 8 : i32
    %15 = arith.index_cast %14 : i32 to index
    %c0_16 = arith.constant 0 : index
    %16 = vector.load %arg13[%15, %c0_16] : memref<128x192xf32, #tpu.memory_space<vmem>>, vector<8x192xf32>
    %cst_17 = arith.constant dense<0.000000e+00> : vector<8x192xf32>
    %17 = tpu.matmul %11, %9, %cst_17 {dimension_numbers = #tpu.dot_dimension_numbers<[1], [0], [0], [1], [0, 0, 1, 1], [], []>} : vector<8x64xf32>, vector<64x192xf32>, vector<8x192xf32> -> vector<8x192xf32>
    %18 = vector.broadcast %10 : vector<1x192xf32> to vector<8x192xf32>
    %19 = arith.addf %17, %18 : vector<8x192xf32>
    %20 = vector.extract_strided_slice %11 {offsets = [0, 0], sizes = [8, 32], strides = [1, 1]} : vector<8x64xf32> to vector<8x32xf32>
    %21 = vector.extract_strided_slice %16 {offsets = [0, 0], sizes = [8, 96], strides = [1, 1]} : vector<8x192xf32> to vector<8x96xf32>
    %22 = vector.extract_strided_slice %19 {offsets = [0, 0], sizes = [8, 96], strides = [1, 1]} : vector<8x192xf32> to vector<8x96xf32>
    %23 = vector.broadcast %c0_i32 : i32 to vector<8x1xi32>
    %24 = arith.cmpi slt, %23, %0 : vector<8x1xi32>
    %25 = vector.extract_strided_slice %21 {offsets = [0, 0], sizes = [8, 32], strides = [1, 1]} : vector<8x96xf32> to vector<8x32xf32>
    %26 = vector.extract_strided_slice %22 {offsets = [0, 0], sizes = [8, 32], strides = [1, 1]} : vector<8x96xf32> to vector<8x32xf32>
    %27 = arith.addf %25, %26 : vector<8x32xf32>
    %28 = arith.negf %27 : vector<8x32xf32>
    %29 = math.exp %28 : vector<8x32xf32>
    %cst_18 = arith.constant 1.000000e+00 : f32
    %30 = vector.broadcast %cst_18 : f32 to vector<8x32xf32>
    %31 = arith.addf %30, %29 : vector<8x32xf32>
    %32 = arith.divf %30, %31 : vector<8x32xf32>
    %33 = vector.extract_strided_slice %21 {offsets = [0, 32], sizes = [8, 32], strides = [1, 1]} : vector<8x96xf32> to vector<8x32xf32>
    %34 = vector.extract_strided_slice %22 {offsets = [0, 32], sizes = [8, 32], strides = [1, 1]} : vector<8x96xf32> to vector<8x32xf32>
    %35 = arith.addf %33, %34 : vector<8x32xf32>
    %36 = arith.negf %35 : vector<8x32xf32>
    %37 = math.exp %36 : vector<8x32xf32>
    %cst_19 = arith.constant 1.000000e+00 : f32
    %38 = vector.broadcast %cst_19 : f32 to vector<8x32xf32>
    %39 = arith.addf %38, %37 : vector<8x32xf32>
    %40 = arith.divf %38, %39 : vector<8x32xf32>
    %41 = vector.extract_strided_slice %21 {offsets = [0, 64], sizes = [8, 32], strides = [1, 1]} : vector<8x96xf32> to vector<8x32xf32>
    %42 = vector.extract_strided_slice %22 {offsets = [0, 64], sizes = [8, 32], strides = [1, 1]} : vector<8x96xf32> to vector<8x32xf32>
    %43 = arith.mulf %32, %42 : vector<8x32xf32>
    %44 = arith.addf %41, %43 : vector<8x32xf32>
    %45 = math.tanh %44 : vector<8x32xf32>
    %cst_20 = arith.constant 1.000000e+00 : f32
    %46 = vector.broadcast %cst_20 : f32 to vector<8x32xf32>
    %47 = arith.subf %46, %40 : vector<8x32xf32>
    %48 = arith.mulf %47, %45 : vector<8x32xf32>
    %49 = arith.mulf %40, %20 : vector<8x32xf32>
    %50 = arith.addf %48, %49 : vector<8x32xf32>
    %51 = vector.shape_cast %24 : vector<8x1xi1> to vector<8x1xi1>
    %52 = vector.broadcast %51 : vector<8x1xi1> to vector<8x32xi1>
    %53 = arith.select %52, %50, %20 : vector<8x32xi1>, vector<8x32xf32>
    %54 = vector.extract_strided_slice %11 {offsets = [0, 32], sizes = [8, 32], strides = [1, 1]} : vector<8x64xf32> to vector<8x32xf32>
    %55 = vector.extract_strided_slice %16 {offsets = [0, 96], sizes = [8, 96], strides = [1, 1]} : vector<8x192xf32> to vector<8x96xf32>
    %56 = vector.extract_strided_slice %19 {offsets = [0, 96], sizes = [8, 96], strides = [1, 1]} : vector<8x192xf32> to vector<8x96xf32>
    %57 = vector.broadcast %12 : i32 to vector<8x1xi32>
    %58 = arith.cmpi slt, %57, %0 : vector<8x1xi32>
    %59 = vector.extract_strided_slice %55 {offsets = [0, 0], sizes = [8, 32], strides = [1, 1]} : vector<8x96xf32> to vector<8x32xf32>
    %60 = vector.extract_strided_slice %56 {offsets = [0, 0], sizes = [8, 32], strides = [1, 1]} : vector<8x96xf32> to vector<8x32xf32>
    %61 = arith.addf %59, %60 : vector<8x32xf32>
    %62 = arith.negf %61 : vector<8x32xf32>
    %63 = math.exp %62 : vector<8x32xf32>
    %cst_21 = arith.constant 1.000000e+00 : f32
    %64 = vector.broadcast %cst_21 : f32 to vector<8x32xf32>
    %65 = arith.addf %64, %63 : vector<8x32xf32>
    %66 = arith.divf %64, %65 : vector<8x32xf32>
    %67 = vector.extract_strided_slice %55 {offsets = [0, 32], sizes = [8, 32], strides = [1, 1]} : vector<8x96xf32> to vector<8x32xf32>
    %68 = vector.extract_strided_slice %56 {offsets = [0, 32], sizes = [8, 32], strides = [1, 1]} : vector<8x96xf32> to vector<8x32xf32>
    %69 = arith.addf %67, %68 : vector<8x32xf32>
    %70 = arith.negf %69 : vector<8x32xf32>
    %71 = math.exp %70 : vector<8x32xf32>
    %cst_22 = arith.constant 1.000000e+00 : f32
    %72 = vector.broadcast %cst_22 : f32 to vector<8x32xf32>
    %73 = arith.addf %72, %71 : vector<8x32xf32>
    %74 = arith.divf %72, %73 : vector<8x32xf32>
    %75 = vector.extract_strided_slice %55 {offsets = [0, 64], sizes = [8, 32], strides = [1, 1]} : vector<8x96xf32> to vector<8x32xf32>
    %76 = vector.extract_strided_slice %56 {offsets = [0, 64], sizes = [8, 32], strides = [1, 1]} : vector<8x96xf32> to vector<8x32xf32>
    %77 = arith.mulf %66, %76 : vector<8x32xf32>
    %78 = arith.addf %75, %77 : vector<8x32xf32>
    %79 = math.tanh %78 : vector<8x32xf32>
    %cst_23 = arith.constant 1.000000e+00 : f32
    %80 = vector.broadcast %cst_23 : f32 to vector<8x32xf32>
    %81 = arith.subf %80, %74 : vector<8x32xf32>
    %82 = arith.mulf %81, %79 : vector<8x32xf32>
    %83 = arith.mulf %74, %54 : vector<8x32xf32>
    %84 = arith.addf %82, %83 : vector<8x32xf32>
    %85 = vector.shape_cast %58 : vector<8x1xi1> to vector<8x1xi1>
    %86 = vector.broadcast %85 : vector<8x1xi1> to vector<8x32xi1>
    %87 = arith.select %86, %84, %54 : vector<8x32xi1>, vector<8x32xf32>
    %88 = tpu.concatenate %53, %87 in 1 : vector<8x32xf32>, vector<8x32xf32> -> vector<8x64xf32>
    %c1_i32 = arith.constant 1 : i32
    %c15_i32_24 = arith.constant 15 : i32
    %89 = arith.subi %c15_i32_24, %c1_i32 : i32
    %c8_i32_25 = arith.constant 8 : i32
    %90 = arith.muli %c1_i32, %c8_i32_25 : i32
    %91 = tpu.assume_multiple %90, 8 : i32
    %92 = arith.index_cast %91 : i32 to index
    %c0_26 = arith.constant 0 : index
    %93 = vector.load %arg13[%92, %c0_26] : memref<128x192xf32, #tpu.memory_space<vmem>>, vector<8x192xf32>
    %cst_27 = arith.constant dense<0.000000e+00> : vector<8x192xf32>
    %94 = tpu.matmul %88, %9, %cst_27 {dimension_numbers = #tpu.dot_dimension_numbers<[1], [0], [0], [1], [0, 0, 1, 1], [], []>} : vector<8x64xf32>, vector<64x192xf32>, vector<8x192xf32> -> vector<8x192xf32>
    %95 = vector.broadcast %10 : vector<1x192xf32> to vector<8x192xf32>
    %96 = arith.addf %94, %95 : vector<8x192xf32>
    %97 = vector.extract_strided_slice %88 {offsets = [0, 0], sizes = [8, 32], strides = [1, 1]} : vector<8x64xf32> to vector<8x32xf32>
    %98 = vector.extract_strided_slice %93 {offsets = [0, 0], sizes = [8, 96], strides = [1, 1]} : vector<8x192xf32> to vector<8x96xf32>
    %99 = vector.extract_strided_slice %96 {offsets = [0, 0], sizes = [8, 96], strides = [1, 1]} : vector<8x192xf32> to vector<8x96xf32>
    %100 = vector.broadcast %c1_i32 : i32 to vector<8x1xi32>
    %101 = arith.cmpi slt, %100, %0 : vector<8x1xi32>
    %102 = vector.extract_strided_slice %98 {offsets = [0, 0], sizes = [8, 32], strides = [1, 1]} : vector<8x96xf32> to vector<8x32xf32>
    %103 = vector.extract_strided_slice %99 {offsets = [0, 0], sizes = [8, 32], strides = [1, 1]} : vector<8x96xf32> to vector<8x32xf32>
    %104 = arith.addf %102, %103 : vector<8x32xf32>
    %105 = arith.negf %104 : vector<8x32xf32>
    %106 = math.exp %105 : vector<8x32xf32>
    %cst_28 = arith.constant 1.000000e+00 : f32
    %107 = vector.broadcast %cst_28 : f32 to vector<8x32xf32>
    %108 = arith.addf %107, %106 : vector<8x32xf32>
    %109 = arith.divf %107, %108 : vector<8x32xf32>
    %110 = vector.extract_strided_slice %98 {offsets = [0, 32], sizes = [8, 32], strides = [1, 1]} : vector<8x96xf32> to vector<8x32xf32>
    %111 = vector.extract_strided_slice %99 {offsets = [0, 32], sizes = [8, 32], strides = [1, 1]} : vector<8x96xf32> to vector<8x32xf32>
    %112 = arith.addf %110, %111 : vector<8x32xf32>
    %113 = arith.negf %112 : vector<8x32xf32>
    %114 = math.exp %113 : vector<8x32xf32>
    %cst_29 = arith.constant 1.000000e+00 : f32
    %115 = vector.broadcast %cst_29 : f32 to vector<8x32xf32>
    %116 = arith.addf %115, %114 : vector<8x32xf32>
    %117 = arith.divf %115, %116 : vector<8x32xf32>
    %118 = vector.extract_strided_slice %98 {offsets = [0, 64], sizes = [8, 32], strides = [1, 1]} : vector<8x96xf32> to vector<8x32xf32>
    %119 = vector.extract_strided_slice %99 {offsets = [0, 64], sizes = [8, 32], strides = [1, 1]} : vector<8x96xf32> to vector<8x32xf32>
    %120 = arith.mulf %109, %119 : vector<8x32xf32>
    %121 = arith.addf %118, %120 : vector<8x32xf32>
    %122 = math.tanh %121 : vector<8x32xf32>
    %cst_30 = arith.constant 1.000000e+00 : f32
    %123 = vector.broadcast %cst_30 : f32 to vector<8x32xf32>
    %124 = arith.subf %123, %117 : vector<8x32xf32>
    %125 = arith.mulf %124, %122 : vector<8x32xf32>
    %126 = arith.mulf %117, %97 : vector<8x32xf32>
    %127 = arith.addf %125, %126 : vector<8x32xf32>
    %128 = vector.shape_cast %101 : vector<8x1xi1> to vector<8x1xi1>
    %129 = vector.broadcast %128 : vector<8x1xi1> to vector<8x32xi1>
    %130 = arith.select %129, %127, %97 : vector<8x32xi1>, vector<8x32xf32>
    %131 = vector.extract_strided_slice %88 {offsets = [0, 32], sizes = [8, 32], strides = [1, 1]} : vector<8x64xf32> to vector<8x32xf32>
    %132 = vector.extract_strided_slice %93 {offsets = [0, 96], sizes = [8, 96], strides = [1, 1]} : vector<8x192xf32> to vector<8x96xf32>
    %133 = vector.extract_strided_slice %96 {offsets = [0, 96], sizes = [8, 96], strides = [1, 1]} : vector<8x192xf32> to vector<8x96xf32>
    %134 = vector.broadcast %89 : i32 to vector<8x1xi32>
    %135 = arith.cmpi slt, %134, %0 : vector<8x1xi32>
    %136 = vector.extract_strided_slice %132 {offsets = [0, 0], sizes = [8, 32], strides = [1, 1]} : vector<8x96xf32> to vector<8x32xf32>
    %137 = vector.extract_strided_slice %133 {offsets = [0, 0], sizes = [8, 32], strides = [1, 1]} : vector<8x96xf32> to vector<8x32xf32>
    %138 = arith.addf %136, %137 : vector<8x32xf32>
    %139 = arith.negf %138 : vector<8x32xf32>
    %140 = math.exp %139 : vector<8x32xf32>
    %cst_31 = arith.constant 1.000000e+00 : f32
    %141 = vector.broadcast %cst_31 : f32 to vector<8x32xf32>
    %142 = arith.addf %141, %140 : vector<8x32xf32>
    %143 = arith.divf %141, %142 : vector<8x32xf32>
    %144 = vector.extract_strided_slice %132 {offsets = [0, 32], sizes = [8, 32], strides = [1, 1]} : vector<8x96xf32> to vector<8x32xf32>
    %145 = vector.extract_strided_slice %133 {offsets = [0, 32], sizes = [8, 32], strides = [1, 1]} : vector<8x96xf32> to vector<8x32xf32>
    %146 = arith.addf %144, %145 : vector<8x32xf32>
    %147 = arith.negf %146 : vector<8x32xf32>
    %148 = math.exp %147 : vector<8x32xf32>
    %cst_32 = arith.constant 1.000000e+00 : f32
    %149 = vector.broadcast %cst_32 : f32 to vector<8x32xf32>
    %150 = arith.addf %149, %148 : vector<8x32xf32>
    %151 = arith.divf %149, %150 : vector<8x32xf32>
    %152 = vector.extract_strided_slice %132 {offsets = [0, 64], sizes = [8, 32], strides = [1, 1]} : vector<8x96xf32> to vector<8x32xf32>
    %153 = vector.extract_strided_slice %133 {offsets = [0, 64], sizes = [8, 32], strides = [1, 1]} : vector<8x96xf32> to vector<8x32xf32>
    %154 = arith.mulf %143, %153 : vector<8x32xf32>
    %155 = arith.addf %152, %154 : vector<8x32xf32>
    %156 = math.tanh %155 : vector<8x32xf32>
    %cst_33 = arith.constant 1.000000e+00 : f32
    %157 = vector.broadcast %cst_33 : f32 to vector<8x32xf32>
    %158 = arith.subf %157, %151 : vector<8x32xf32>
    %159 = arith.mulf %158, %156 : vector<8x32xf32>
    %160 = arith.mulf %151, %131 : vector<8x32xf32>
    %161 = arith.addf %159, %160 : vector<8x32xf32>
    %162 = vector.shape_cast %135 : vector<8x1xi1> to vector<8x1xi1>
    %163 = vector.broadcast %162 : vector<8x1xi1> to vector<8x32xi1>
    %164 = arith.select %163, %161, %131 : vector<8x32xi1>, vector<8x32xf32>
    %165 = tpu.concatenate %130, %164 in 1 : vector<8x32xf32>, vector<8x32xf32> -> vector<8x64xf32>
    %c2_i32 = arith.constant 2 : i32
    %c15_i32_34 = arith.constant 15 : i32
    %166 = arith.subi %c15_i32_34, %c2_i32 : i32
    %c8_i32_35 = arith.constant 8 : i32
    %167 = arith.muli %c2_i32, %c8_i32_35 : i32
    %168 = tpu.assume_multiple %167, 8 : i32
    %169 = arith.index_cast %168 : i32 to index
    %c0_36 = arith.constant 0 : index
    %170 = vector.load %arg13[%169, %c0_36] : memref<128x192xf32, #tpu.memory_space<vmem>>, vector<8x192xf32>
    %cst_37 = arith.constant dense<0.000000e+00> : vector<8x192xf32>
    %171 = tpu.matmul %165, %9, %cst_37 {dimension_numbers = #tpu.dot_dimension_numbers<[1], [0], [0], [1], [0, 0, 1, 1], [], []>} : vector<8x64xf32>, vector<64x192xf32>, vector<8x192xf32> -> vector<8x192xf32>
    %172 = vector.broadcast %10 : vector<1x192xf32> to vector<8x192xf32>
    %173 = arith.addf %171, %172 : vector<8x192xf32>
    %174 = vector.extract_strided_slice %165 {offsets = [0, 0], sizes = [8, 32], strides = [1, 1]} : vector<8x64xf32> to vector<8x32xf32>
    %175 = vector.extract_strided_slice %170 {offsets = [0, 0], sizes = [8, 96], strides = [1, 1]} : vector<8x192xf32> to vector<8x96xf32>
    %176 = vector.extract_strided_slice %173 {offsets = [0, 0], sizes = [8, 96], strides = [1, 1]} : vector<8x192xf32> to vector<8x96xf32>
    %177 = vector.broadcast %c2_i32 : i32 to vector<8x1xi32>
    %178 = arith.cmpi slt, %177, %0 : vector<8x1xi32>
    %179 = vector.extract_strided_slice %175 {offsets = [0, 0], sizes = [8, 32], strides = [1, 1]} : vector<8x96xf32> to vector<8x32xf32>
    %180 = vector.extract_strided_slice %176 {offsets = [0, 0], sizes = [8, 32], strides = [1, 1]} : vector<8x96xf32> to vector<8x32xf32>
    %181 = arith.addf %179, %180 : vector<8x32xf32>
    %182 = arith.negf %181 : vector<8x32xf32>
    %183 = math.exp %182 : vector<8x32xf32>
    %cst_38 = arith.constant 1.000000e+00 : f32
    %184 = vector.broadcast %cst_38 : f32 to vector<8x32xf32>
    %185 = arith.addf %184, %183 : vector<8x32xf32>
    %186 = arith.divf %184, %185 : vector<8x32xf32>
    %187 = vector.extract_strided_slice %175 {offsets = [0, 32], sizes = [8, 32], strides = [1, 1]} : vector<8x96xf32> to vector<8x32xf32>
    %188 = vector.extract_strided_slice %176 {offsets = [0, 32], sizes = [8, 32], strides = [1, 1]} : vector<8x96xf32> to vector<8x32xf32>
    %189 = arith.addf %187, %188 : vector<8x32xf32>
    %190 = arith.negf %189 : vector<8x32xf32>
    %191 = math.exp %190 : vector<8x32xf32>
    %cst_39 = arith.constant 1.000000e+00 : f32
    %192 = vector.broadcast %cst_39 : f32 to vector<8x32xf32>
    %193 = arith.addf %192, %191 : vector<8x32xf32>
    %194 = arith.divf %192, %193 : vector<8x32xf32>
    %195 = vector.extract_strided_slice %175 {offsets = [0, 64], sizes = [8, 32], strides = [1, 1]} : vector<8x96xf32> to vector<8x32xf32>
    %196 = vector.extract_strided_slice %176 {offsets = [0, 64], sizes = [8, 32], strides = [1, 1]} : vector<8x96xf32> to vector<8x32xf32>
    %197 = arith.mulf %186, %196 : vector<8x32xf32>
    %198 = arith.addf %195, %197 : vector<8x32xf32>
    %199 = math.tanh %198 : vector<8x32xf32>
    %cst_40 = arith.constant 1.000000e+00 : f32
    %200 = vector.broadcast %cst_40 : f32 to vector<8x32xf32>
    %201 = arith.subf %200, %194 : vector<8x32xf32>
    %202 = arith.mulf %201, %199 : vector<8x32xf32>
    %203 = arith.mulf %194, %174 : vector<8x32xf32>
    %204 = arith.addf %202, %203 : vector<8x32xf32>
    %205 = vector.shape_cast %178 : vector<8x1xi1> to vector<8x1xi1>
    %206 = vector.broadcast %205 : vector<8x1xi1> to vector<8x32xi1>
    %207 = arith.select %206, %204, %174 : vector<8x32xi1>, vector<8x32xf32>
    %208 = vector.extract_strided_slice %165 {offsets = [0, 32], sizes = [8, 32], strides = [1, 1]} : vector<8x64xf32> to vector<8x32xf32>
    %209 = vector.extract_strided_slice %170 {offsets = [0, 96], sizes = [8, 96], strides = [1, 1]} : vector<8x192xf32> to vector<8x96xf32>
    %210 = vector.extract_strided_slice %173 {offsets = [0, 96], sizes = [8, 96], strides = [1, 1]} : vector<8x192xf32> to vector<8x96xf32>
    %211 = vector.broadcast %166 : i32 to vector<8x1xi32>
    %212 = arith.cmpi slt, %211, %0 : vector<8x1xi32>
    %213 = vector.extract_strided_slice %209 {offsets = [0, 0], sizes = [8, 32], strides = [1, 1]} : vector<8x96xf32> to vector<8x32xf32>
    %214 = vector.extract_strided_slice %210 {offsets = [0, 0], sizes = [8, 32], strides = [1, 1]} : vector<8x96xf32> to vector<8x32xf32>
    %215 = arith.addf %213, %214 : vector<8x32xf32>
    %216 = arith.negf %215 : vector<8x32xf32>
    %217 = math.exp %216 : vector<8x32xf32>
    %cst_41 = arith.constant 1.000000e+00 : f32
    %218 = vector.broadcast %cst_41 : f32 to vector<8x32xf32>
    %219 = arith.addf %218, %217 : vector<8x32xf32>
    %220 = arith.divf %218, %219 : vector<8x32xf32>
    %221 = vector.extract_strided_slice %209 {offsets = [0, 32], sizes = [8, 32], strides = [1, 1]} : vector<8x96xf32> to vector<8x32xf32>
    %222 = vector.extract_strided_slice %210 {offsets = [0, 32], sizes = [8, 32], strides = [1, 1]} : vector<8x96xf32> to vector<8x32xf32>
    %223 = arith.addf %221, %222 : vector<8x32xf32>
    %224 = arith.negf %223 : vector<8x32xf32>
    %225 = math.exp %224 : vector<8x32xf32>
    %cst_42 = arith.constant 1.000000e+00 : f32
    %226 = vector.broadcast %cst_42 : f32 to vector<8x32xf32>
    %227 = arith.addf %226, %225 : vector<8x32xf32>
    %228 = arith.divf %226, %227 : vector<8x32xf32>
    %229 = vector.extract_strided_slice %209 {offsets = [0, 64], sizes = [8, 32], strides = [1, 1]} : vector<8x96xf32> to vector<8x32xf32>
    %230 = vector.extract_strided_slice %210 {offsets = [0, 64], sizes = [8, 32], strides = [1, 1]} : vector<8x96xf32> to vector<8x32xf32>
    %231 = arith.mulf %220, %230 : vector<8x32xf32>
    %232 = arith.addf %229, %231 : vector<8x32xf32>
    %233 = math.tanh %232 : vector<8x32xf32>
    %cst_43 = arith.constant 1.000000e+00 : f32
    %234 = vector.broadcast %cst_43 : f32 to vector<8x32xf32>
    %235 = arith.subf %234, %228 : vector<8x32xf32>
    %236 = arith.mulf %235, %233 : vector<8x32xf32>
    %237 = arith.mulf %228, %208 : vector<8x32xf32>
    %238 = arith.addf %236, %237 : vector<8x32xf32>
    %239 = vector.shape_cast %212 : vector<8x1xi1> to vector<8x1xi1>
    %240 = vector.broadcast %239 : vector<8x1xi1> to vector<8x32xi1>
    %241 = arith.select %240, %238, %208 : vector<8x32xi1>, vector<8x32xf32>
    %242 = tpu.concatenate %207, %241 in 1 : vector<8x32xf32>, vector<8x32xf32> -> vector<8x64xf32>
    %c3_i32 = arith.constant 3 : i32
    %c15_i32_44 = arith.constant 15 : i32
    %243 = arith.subi %c15_i32_44, %c3_i32 : i32
    %c8_i32_45 = arith.constant 8 : i32
    %244 = arith.muli %c3_i32, %c8_i32_45 : i32
    %245 = tpu.assume_multiple %244, 8 : i32
    %246 = arith.index_cast %245 : i32 to index
    %c0_46 = arith.constant 0 : index
    %247 = vector.load %arg13[%246, %c0_46] : memref<128x192xf32, #tpu.memory_space<vmem>>, vector<8x192xf32>
    %cst_47 = arith.constant dense<0.000000e+00> : vector<8x192xf32>
    %248 = tpu.matmul %242, %9, %cst_47 {dimension_numbers = #tpu.dot_dimension_numbers<[1], [0], [0], [1], [0, 0, 1, 1], [], []>} : vector<8x64xf32>, vector<64x192xf32>, vector<8x192xf32> -> vector<8x192xf32>
    %249 = vector.broadcast %10 : vector<1x192xf32> to vector<8x192xf32>
    %250 = arith.addf %248, %249 : vector<8x192xf32>
    %251 = vector.extract_strided_slice %242 {offsets = [0, 0], sizes = [8, 32], strides = [1, 1]} : vector<8x64xf32> to vector<8x32xf32>
    %252 = vector.extract_strided_slice %247 {offsets = [0, 0], sizes = [8, 96], strides = [1, 1]} : vector<8x192xf32> to vector<8x96xf32>
    %253 = vector.extract_strided_slice %250 {offsets = [0, 0], sizes = [8, 96], strides = [1, 1]} : vector<8x192xf32> to vector<8x96xf32>
    %254 = vector.broadcast %c3_i32 : i32 to vector<8x1xi32>
    %255 = arith.cmpi slt, %254, %0 : vector<8x1xi32>
    %256 = vector.extract_strided_slice %252 {offsets = [0, 0], sizes = [8, 32], strides = [1, 1]} : vector<8x96xf32> to vector<8x32xf32>
    %257 = vector.extract_strided_slice %253 {offsets = [0, 0], sizes = [8, 32], strides = [1, 1]} : vector<8x96xf32> to vector<8x32xf32>
    %258 = arith.addf %256, %257 : vector<8x32xf32>
    %259 = arith.negf %258 : vector<8x32xf32>
    %260 = math.exp %259 : vector<8x32xf32>
    %cst_48 = arith.constant 1.000000e+00 : f32
    %261 = vector.broadcast %cst_48 : f32 to vector<8x32xf32>
    %262 = arith.addf %261, %260 : vector<8x32xf32>
    %263 = arith.divf %261, %262 : vector<8x32xf32>
    %264 = vector.extract_strided_slice %252 {offsets = [0, 32], sizes = [8, 32], strides = [1, 1]} : vector<8x96xf32> to vector<8x32xf32>
    %265 = vector.extract_strided_slice %253 {offsets = [0, 32], sizes = [8, 32], strides = [1, 1]} : vector<8x96xf32> to vector<8x32xf32>
    %266 = arith.addf %264, %265 : vector<8x32xf32>
    %267 = arith.negf %266 : vector<8x32xf32>
    %268 = math.exp %267 : vector<8x32xf32>
    %cst_49 = arith.constant 1.000000e+00 : f32
    %269 = vector.broadcast %cst_49 : f32 to vector<8x32xf32>
    %270 = arith.addf %269, %268 : vector<8x32xf32>
    %271 = arith.divf %269, %270 : vector<8x32xf32>
    %272 = vector.extract_strided_slice %252 {offsets = [0, 64], sizes = [8, 32], strides = [1, 1]} : vector<8x96xf32> to vector<8x32xf32>
    %273 = vector.extract_strided_slice %253 {offsets = [0, 64], sizes = [8, 32], strides = [1, 1]} : vector<8x96xf32> to vector<8x32xf32>
    %274 = arith.mulf %263, %273 : vector<8x32xf32>
    %275 = arith.addf %272, %274 : vector<8x32xf32>
    %276 = math.tanh %275 : vector<8x32xf32>
    %cst_50 = arith.constant 1.000000e+00 : f32
    %277 = vector.broadcast %cst_50 : f32 to vector<8x32xf32>
    %278 = arith.subf %277, %271 : vector<8x32xf32>
    %279 = arith.mulf %278, %276 : vector<8x32xf32>
    %280 = arith.mulf %271, %251 : vector<8x32xf32>
    %281 = arith.addf %279, %280 : vector<8x32xf32>
    %282 = vector.shape_cast %255 : vector<8x1xi1> to vector<8x1xi1>
    %283 = vector.broadcast %282 : vector<8x1xi1> to vector<8x32xi1>
    %284 = arith.select %283, %281, %251 : vector<8x32xi1>, vector<8x32xf32>
    %285 = vector.extract_strided_slice %242 {offsets = [0, 32], sizes = [8, 32], strides = [1, 1]} : vector<8x64xf32> to vector<8x32xf32>
    %286 = vector.extract_strided_slice %247 {offsets = [0, 96], sizes = [8, 96], strides = [1, 1]} : vector<8x192xf32> to vector<8x96xf32>
    %287 = vector.extract_strided_slice %250 {offsets = [0, 96], sizes = [8, 96], strides = [1, 1]} : vector<8x192xf32> to vector<8x96xf32>
    %288 = vector.broadcast %243 : i32 to vector<8x1xi32>
    %289 = arith.cmpi slt, %288, %0 : vector<8x1xi32>
    %290 = vector.extract_strided_slice %286 {offsets = [0, 0], sizes = [8, 32], strides = [1, 1]} : vector<8x96xf32> to vector<8x32xf32>
    %291 = vector.extract_strided_slice %287 {offsets = [0, 0], sizes = [8, 32], strides = [1, 1]} : vector<8x96xf32> to vector<8x32xf32>
    %292 = arith.addf %290, %291 : vector<8x32xf32>
    %293 = arith.negf %292 : vector<8x32xf32>
    %294 = math.exp %293 : vector<8x32xf32>
    %cst_51 = arith.constant 1.000000e+00 : f32
    %295 = vector.broadcast %cst_51 : f32 to vector<8x32xf32>
    %296 = arith.addf %295, %294 : vector<8x32xf32>
    %297 = arith.divf %295, %296 : vector<8x32xf32>
    %298 = vector.extract_strided_slice %286 {offsets = [0, 32], sizes = [8, 32], strides = [1, 1]} : vector<8x96xf32> to vector<8x32xf32>
    %299 = vector.extract_strided_slice %287 {offsets = [0, 32], sizes = [8, 32], strides = [1, 1]} : vector<8x96xf32> to vector<8x32xf32>
    %300 = arith.addf %298, %299 : vector<8x32xf32>
    %301 = arith.negf %300 : vector<8x32xf32>
    %302 = math.exp %301 : vector<8x32xf32>
    %cst_52 = arith.constant 1.000000e+00 : f32
    %303 = vector.broadcast %cst_52 : f32 to vector<8x32xf32>
    %304 = arith.addf %303, %302 : vector<8x32xf32>
    %305 = arith.divf %303, %304 : vector<8x32xf32>
    %306 = vector.extract_strided_slice %286 {offsets = [0, 64], sizes = [8, 32], strides = [1, 1]} : vector<8x96xf32> to vector<8x32xf32>
    %307 = vector.extract_strided_slice %287 {offsets = [0, 64], sizes = [8, 32], strides = [1, 1]} : vector<8x96xf32> to vector<8x32xf32>
    %308 = arith.mulf %297, %307 : vector<8x32xf32>
    %309 = arith.addf %306, %308 : vector<8x32xf32>
    %310 = math.tanh %309 : vector<8x32xf32>
    %cst_53 = arith.constant 1.000000e+00 : f32
    %311 = vector.broadcast %cst_53 : f32 to vector<8x32xf32>
    %312 = arith.subf %311, %305 : vector<8x32xf32>
    %313 = arith.mulf %312, %310 : vector<8x32xf32>
    %314 = arith.mulf %305, %285 : vector<8x32xf32>
    %315 = arith.addf %313, %314 : vector<8x32xf32>
    %316 = vector.shape_cast %289 : vector<8x1xi1> to vector<8x1xi1>
    %317 = vector.broadcast %316 : vector<8x1xi1> to vector<8x32xi1>
    %318 = arith.select %317, %315, %285 : vector<8x32xi1>, vector<8x32xf32>
    %319 = tpu.concatenate %284, %318 in 1 : vector<8x32xf32>, vector<8x32xf32> -> vector<8x64xf32>
    %c4_i32 = arith.constant 4 : i32
    %c15_i32_54 = arith.constant 15 : i32
    %320 = arith.subi %c15_i32_54, %c4_i32 : i32
    %c8_i32_55 = arith.constant 8 : i32
    %321 = arith.muli %c4_i32, %c8_i32_55 : i32
    %322 = tpu.assume_multiple %321, 8 : i32
    %323 = arith.index_cast %322 : i32 to index
    %c0_56 = arith.constant 0 : index
    %324 = vector.load %arg13[%323, %c0_56] : memref<128x192xf32, #tpu.memory_space<vmem>>, vector<8x192xf32>
    %cst_57 = arith.constant dense<0.000000e+00> : vector<8x192xf32>
    %325 = tpu.matmul %319, %9, %cst_57 {dimension_numbers = #tpu.dot_dimension_numbers<[1], [0], [0], [1], [0, 0, 1, 1], [], []>} : vector<8x64xf32>, vector<64x192xf32>, vector<8x192xf32> -> vector<8x192xf32>
    %326 = vector.broadcast %10 : vector<1x192xf32> to vector<8x192xf32>
    %327 = arith.addf %325, %326 : vector<8x192xf32>
    %328 = vector.extract_strided_slice %319 {offsets = [0, 0], sizes = [8, 32], strides = [1, 1]} : vector<8x64xf32> to vector<8x32xf32>
    %329 = vector.extract_strided_slice %324 {offsets = [0, 0], sizes = [8, 96], strides = [1, 1]} : vector<8x192xf32> to vector<8x96xf32>
    %330 = vector.extract_strided_slice %327 {offsets = [0, 0], sizes = [8, 96], strides = [1, 1]} : vector<8x192xf32> to vector<8x96xf32>
    %331 = vector.broadcast %c4_i32 : i32 to vector<8x1xi32>
    %332 = arith.cmpi slt, %331, %0 : vector<8x1xi32>
    %333 = vector.extract_strided_slice %329 {offsets = [0, 0], sizes = [8, 32], strides = [1, 1]} : vector<8x96xf32> to vector<8x32xf32>
    %334 = vector.extract_strided_slice %330 {offsets = [0, 0], sizes = [8, 32], strides = [1, 1]} : vector<8x96xf32> to vector<8x32xf32>
    %335 = arith.addf %333, %334 : vector<8x32xf32>
    %336 = arith.negf %335 : vector<8x32xf32>
    %337 = math.exp %336 : vector<8x32xf32>
    %cst_58 = arith.constant 1.000000e+00 : f32
    %338 = vector.broadcast %cst_58 : f32 to vector<8x32xf32>
    %339 = arith.addf %338, %337 : vector<8x32xf32>
    %340 = arith.divf %338, %339 : vector<8x32xf32>
    %341 = vector.extract_strided_slice %329 {offsets = [0, 32], sizes = [8, 32], strides = [1, 1]} : vector<8x96xf32> to vector<8x32xf32>
    %342 = vector.extract_strided_slice %330 {offsets = [0, 32], sizes = [8, 32], strides = [1, 1]} : vector<8x96xf32> to vector<8x32xf32>
    %343 = arith.addf %341, %342 : vector<8x32xf32>
    %344 = arith.negf %343 : vector<8x32xf32>
    %345 = math.exp %344 : vector<8x32xf32>
    %cst_59 = arith.constant 1.000000e+00 : f32
    %346 = vector.broadcast %cst_59 : f32 to vector<8x32xf32>
    %347 = arith.addf %346, %345 : vector<8x32xf32>
    %348 = arith.divf %346, %347 : vector<8x32xf32>
    %349 = vector.extract_strided_slice %329 {offsets = [0, 64], sizes = [8, 32], strides = [1, 1]} : vector<8x96xf32> to vector<8x32xf32>
    %350 = vector.extract_strided_slice %330 {offsets = [0, 64], sizes = [8, 32], strides = [1, 1]} : vector<8x96xf32> to vector<8x32xf32>
    %351 = arith.mulf %340, %350 : vector<8x32xf32>
    %352 = arith.addf %349, %351 : vector<8x32xf32>
    %353 = math.tanh %352 : vector<8x32xf32>
    %cst_60 = arith.constant 1.000000e+00 : f32
    %354 = vector.broadcast %cst_60 : f32 to vector<8x32xf32>
    %355 = arith.subf %354, %348 : vector<8x32xf32>
    %356 = arith.mulf %355, %353 : vector<8x32xf32>
    %357 = arith.mulf %348, %328 : vector<8x32xf32>
    %358 = arith.addf %356, %357 : vector<8x32xf32>
    %359 = vector.shape_cast %332 : vector<8x1xi1> to vector<8x1xi1>
    %360 = vector.broadcast %359 : vector<8x1xi1> to vector<8x32xi1>
    %361 = arith.select %360, %358, %328 : vector<8x32xi1>, vector<8x32xf32>
    %362 = vector.extract_strided_slice %319 {offsets = [0, 32], sizes = [8, 32], strides = [1, 1]} : vector<8x64xf32> to vector<8x32xf32>
    %363 = vector.extract_strided_slice %324 {offsets = [0, 96], sizes = [8, 96], strides = [1, 1]} : vector<8x192xf32> to vector<8x96xf32>
    %364 = vector.extract_strided_slice %327 {offsets = [0, 96], sizes = [8, 96], strides = [1, 1]} : vector<8x192xf32> to vector<8x96xf32>
    %365 = vector.broadcast %320 : i32 to vector<8x1xi32>
    %366 = arith.cmpi slt, %365, %0 : vector<8x1xi32>
    %367 = vector.extract_strided_slice %363 {offsets = [0, 0], sizes = [8, 32], strides = [1, 1]} : vector<8x96xf32> to vector<8x32xf32>
    %368 = vector.extract_strided_slice %364 {offsets = [0, 0], sizes = [8, 32], strides = [1, 1]} : vector<8x96xf32> to vector<8x32xf32>
    %369 = arith.addf %367, %368 : vector<8x32xf32>
    %370 = arith.negf %369 : vector<8x32xf32>
    %371 = math.exp %370 : vector<8x32xf32>
    %cst_61 = arith.constant 1.000000e+00 : f32
    %372 = vector.broadcast %cst_61 : f32 to vector<8x32xf32>
    %373 = arith.addf %372, %371 : vector<8x32xf32>
    %374 = arith.divf %372, %373 : vector<8x32xf32>
    %375 = vector.extract_strided_slice %363 {offsets = [0, 32], sizes = [8, 32], strides = [1, 1]} : vector<8x96xf32> to vector<8x32xf32>
    %376 = vector.extract_strided_slice %364 {offsets = [0, 32], sizes = [8, 32], strides = [1, 1]} : vector<8x96xf32> to vector<8x32xf32>
    %377 = arith.addf %375, %376 : vector<8x32xf32>
    %378 = arith.negf %377 : vector<8x32xf32>
    %379 = math.exp %378 : vector<8x32xf32>
    %cst_62 = arith.constant 1.000000e+00 : f32
    %380 = vector.broadcast %cst_62 : f32 to vector<8x32xf32>
    %381 = arith.addf %380, %379 : vector<8x32xf32>
    %382 = arith.divf %380, %381 : vector<8x32xf32>
    %383 = vector.extract_strided_slice %363 {offsets = [0, 64], sizes = [8, 32], strides = [1, 1]} : vector<8x96xf32> to vector<8x32xf32>
    %384 = vector.extract_strided_slice %364 {offsets = [0, 64], sizes = [8, 32], strides = [1, 1]} : vector<8x96xf32> to vector<8x32xf32>
    %385 = arith.mulf %374, %384 : vector<8x32xf32>
    %386 = arith.addf %383, %385 : vector<8x32xf32>
    %387 = math.tanh %386 : vector<8x32xf32>
    %cst_63 = arith.constant 1.000000e+00 : f32
    %388 = vector.broadcast %cst_63 : f32 to vector<8x32xf32>
    %389 = arith.subf %388, %382 : vector<8x32xf32>
    %390 = arith.mulf %389, %387 : vector<8x32xf32>
    %391 = arith.mulf %382, %362 : vector<8x32xf32>
    %392 = arith.addf %390, %391 : vector<8x32xf32>
    %393 = vector.shape_cast %366 : vector<8x1xi1> to vector<8x1xi1>
    %394 = vector.broadcast %393 : vector<8x1xi1> to vector<8x32xi1>
    %395 = arith.select %394, %392, %362 : vector<8x32xi1>, vector<8x32xf32>
    %396 = tpu.concatenate %361, %395 in 1 : vector<8x32xf32>, vector<8x32xf32> -> vector<8x64xf32>
    %c5_i32 = arith.constant 5 : i32
    %c15_i32_64 = arith.constant 15 : i32
    %397 = arith.subi %c15_i32_64, %c5_i32 : i32
    %c8_i32_65 = arith.constant 8 : i32
    %398 = arith.muli %c5_i32, %c8_i32_65 : i32
    %399 = tpu.assume_multiple %398, 8 : i32
    %400 = arith.index_cast %399 : i32 to index
    %c0_66 = arith.constant 0 : index
    %401 = vector.load %arg13[%400, %c0_66] : memref<128x192xf32, #tpu.memory_space<vmem>>, vector<8x192xf32>
    %cst_67 = arith.constant dense<0.000000e+00> : vector<8x192xf32>
    %402 = tpu.matmul %396, %9, %cst_67 {dimension_numbers = #tpu.dot_dimension_numbers<[1], [0], [0], [1], [0, 0, 1, 1], [], []>} : vector<8x64xf32>, vector<64x192xf32>, vector<8x192xf32> -> vector<8x192xf32>
    %403 = vector.broadcast %10 : vector<1x192xf32> to vector<8x192xf32>
    %404 = arith.addf %402, %403 : vector<8x192xf32>
    %405 = vector.extract_strided_slice %396 {offsets = [0, 0], sizes = [8, 32], strides = [1, 1]} : vector<8x64xf32> to vector<8x32xf32>
    %406 = vector.extract_strided_slice %401 {offsets = [0, 0], sizes = [8, 96], strides = [1, 1]} : vector<8x192xf32> to vector<8x96xf32>
    %407 = vector.extract_strided_slice %404 {offsets = [0, 0], sizes = [8, 96], strides = [1, 1]} : vector<8x192xf32> to vector<8x96xf32>
    %408 = vector.broadcast %c5_i32 : i32 to vector<8x1xi32>
    %409 = arith.cmpi slt, %408, %0 : vector<8x1xi32>
    %410 = vector.extract_strided_slice %406 {offsets = [0, 0], sizes = [8, 32], strides = [1, 1]} : vector<8x96xf32> to vector<8x32xf32>
    %411 = vector.extract_strided_slice %407 {offsets = [0, 0], sizes = [8, 32], strides = [1, 1]} : vector<8x96xf32> to vector<8x32xf32>
    %412 = arith.addf %410, %411 : vector<8x32xf32>
    %413 = arith.negf %412 : vector<8x32xf32>
    %414 = math.exp %413 : vector<8x32xf32>
    %cst_68 = arith.constant 1.000000e+00 : f32
    %415 = vector.broadcast %cst_68 : f32 to vector<8x32xf32>
    %416 = arith.addf %415, %414 : vector<8x32xf32>
    %417 = arith.divf %415, %416 : vector<8x32xf32>
    %418 = vector.extract_strided_slice %406 {offsets = [0, 32], sizes = [8, 32], strides = [1, 1]} : vector<8x96xf32> to vector<8x32xf32>
    %419 = vector.extract_strided_slice %407 {offsets = [0, 32], sizes = [8, 32], strides = [1, 1]} : vector<8x96xf32> to vector<8x32xf32>
    %420 = arith.addf %418, %419 : vector<8x32xf32>
    %421 = arith.negf %420 : vector<8x32xf32>
    %422 = math.exp %421 : vector<8x32xf32>
    %cst_69 = arith.constant 1.000000e+00 : f32
    %423 = vector.broadcast %cst_69 : f32 to vector<8x32xf32>
    %424 = arith.addf %423, %422 : vector<8x32xf32>
    %425 = arith.divf %423, %424 : vector<8x32xf32>
    %426 = vector.extract_strided_slice %406 {offsets = [0, 64], sizes = [8, 32], strides = [1, 1]} : vector<8x96xf32> to vector<8x32xf32>
    %427 = vector.extract_strided_slice %407 {offsets = [0, 64], sizes = [8, 32], strides = [1, 1]} : vector<8x96xf32> to vector<8x32xf32>
    %428 = arith.mulf %417, %427 : vector<8x32xf32>
    %429 = arith.addf %426, %428 : vector<8x32xf32>
    %430 = math.tanh %429 : vector<8x32xf32>
    %cst_70 = arith.constant 1.000000e+00 : f32
    %431 = vector.broadcast %cst_70 : f32 to vector<8x32xf32>
    %432 = arith.subf %431, %425 : vector<8x32xf32>
    %433 = arith.mulf %432, %430 : vector<8x32xf32>
    %434 = arith.mulf %425, %405 : vector<8x32xf32>
    %435 = arith.addf %433, %434 : vector<8x32xf32>
    %436 = vector.shape_cast %409 : vector<8x1xi1> to vector<8x1xi1>
    %437 = vector.broadcast %436 : vector<8x1xi1> to vector<8x32xi1>
    %438 = arith.select %437, %435, %405 : vector<8x32xi1>, vector<8x32xf32>
    %439 = vector.extract_strided_slice %396 {offsets = [0, 32], sizes = [8, 32], strides = [1, 1]} : vector<8x64xf32> to vector<8x32xf32>
    %440 = vector.extract_strided_slice %401 {offsets = [0, 96], sizes = [8, 96], strides = [1, 1]} : vector<8x192xf32> to vector<8x96xf32>
    %441 = vector.extract_strided_slice %404 {offsets = [0, 96], sizes = [8, 96], strides = [1, 1]} : vector<8x192xf32> to vector<8x96xf32>
    %442 = vector.broadcast %397 : i32 to vector<8x1xi32>
    %443 = arith.cmpi slt, %442, %0 : vector<8x1xi32>
    %444 = vector.extract_strided_slice %440 {offsets = [0, 0], sizes = [8, 32], strides = [1, 1]} : vector<8x96xf32> to vector<8x32xf32>
    %445 = vector.extract_strided_slice %441 {offsets = [0, 0], sizes = [8, 32], strides = [1, 1]} : vector<8x96xf32> to vector<8x32xf32>
    %446 = arith.addf %444, %445 : vector<8x32xf32>
    %447 = arith.negf %446 : vector<8x32xf32>
    %448 = math.exp %447 : vector<8x32xf32>
    %cst_71 = arith.constant 1.000000e+00 : f32
    %449 = vector.broadcast %cst_71 : f32 to vector<8x32xf32>
    %450 = arith.addf %449, %448 : vector<8x32xf32>
    %451 = arith.divf %449, %450 : vector<8x32xf32>
    %452 = vector.extract_strided_slice %440 {offsets = [0, 32], sizes = [8, 32], strides = [1, 1]} : vector<8x96xf32> to vector<8x32xf32>
    %453 = vector.extract_strided_slice %441 {offsets = [0, 32], sizes = [8, 32], strides = [1, 1]} : vector<8x96xf32> to vector<8x32xf32>
    %454 = arith.addf %452, %453 : vector<8x32xf32>
    %455 = arith.negf %454 : vector<8x32xf32>
    %456 = math.exp %455 : vector<8x32xf32>
    %cst_72 = arith.constant 1.000000e+00 : f32
    %457 = vector.broadcast %cst_72 : f32 to vector<8x32xf32>
    %458 = arith.addf %457, %456 : vector<8x32xf32>
    %459 = arith.divf %457, %458 : vector<8x32xf32>
    %460 = vector.extract_strided_slice %440 {offsets = [0, 64], sizes = [8, 32], strides = [1, 1]} : vector<8x96xf32> to vector<8x32xf32>
    %461 = vector.extract_strided_slice %441 {offsets = [0, 64], sizes = [8, 32], strides = [1, 1]} : vector<8x96xf32> to vector<8x32xf32>
    %462 = arith.mulf %451, %461 : vector<8x32xf32>
    %463 = arith.addf %460, %462 : vector<8x32xf32>
    %464 = math.tanh %463 : vector<8x32xf32>
    %cst_73 = arith.constant 1.000000e+00 : f32
    %465 = vector.broadcast %cst_73 : f32 to vector<8x32xf32>
    %466 = arith.subf %465, %459 : vector<8x32xf32>
    %467 = arith.mulf %466, %464 : vector<8x32xf32>
    %468 = arith.mulf %459, %439 : vector<8x32xf32>
    %469 = arith.addf %467, %468 : vector<8x32xf32>
    %470 = vector.shape_cast %443 : vector<8x1xi1> to vector<8x1xi1>
    %471 = vector.broadcast %470 : vector<8x1xi1> to vector<8x32xi1>
    %472 = arith.select %471, %469, %439 : vector<8x32xi1>, vector<8x32xf32>
    %473 = tpu.concatenate %438, %472 in 1 : vector<8x32xf32>, vector<8x32xf32> -> vector<8x64xf32>
    %c6_i32 = arith.constant 6 : i32
    %c15_i32_74 = arith.constant 15 : i32
    %474 = arith.subi %c15_i32_74, %c6_i32 : i32
    %c8_i32_75 = arith.constant 8 : i32
    %475 = arith.muli %c6_i32, %c8_i32_75 : i32
    %476 = tpu.assume_multiple %475, 8 : i32
    %477 = arith.index_cast %476 : i32 to index
    %c0_76 = arith.constant 0 : index
    %478 = vector.load %arg13[%477, %c0_76] : memref<128x192xf32, #tpu.memory_space<vmem>>, vector<8x192xf32>
    %cst_77 = arith.constant dense<0.000000e+00> : vector<8x192xf32>
    %479 = tpu.matmul %473, %9, %cst_77 {dimension_numbers = #tpu.dot_dimension_numbers<[1], [0], [0], [1], [0, 0, 1, 1], [], []>} : vector<8x64xf32>, vector<64x192xf32>, vector<8x192xf32> -> vector<8x192xf32>
    %480 = vector.broadcast %10 : vector<1x192xf32> to vector<8x192xf32>
    %481 = arith.addf %479, %480 : vector<8x192xf32>
    %482 = vector.extract_strided_slice %473 {offsets = [0, 0], sizes = [8, 32], strides = [1, 1]} : vector<8x64xf32> to vector<8x32xf32>
    %483 = vector.extract_strided_slice %478 {offsets = [0, 0], sizes = [8, 96], strides = [1, 1]} : vector<8x192xf32> to vector<8x96xf32>
    %484 = vector.extract_strided_slice %481 {offsets = [0, 0], sizes = [8, 96], strides = [1, 1]} : vector<8x192xf32> to vector<8x96xf32>
    %485 = vector.broadcast %c6_i32 : i32 to vector<8x1xi32>
    %486 = arith.cmpi slt, %485, %0 : vector<8x1xi32>
    %487 = vector.extract_strided_slice %483 {offsets = [0, 0], sizes = [8, 32], strides = [1, 1]} : vector<8x96xf32> to vector<8x32xf32>
    %488 = vector.extract_strided_slice %484 {offsets = [0, 0], sizes = [8, 32], strides = [1, 1]} : vector<8x96xf32> to vector<8x32xf32>
    %489 = arith.addf %487, %488 : vector<8x32xf32>
    %490 = arith.negf %489 : vector<8x32xf32>
    %491 = math.exp %490 : vector<8x32xf32>
    %cst_78 = arith.constant 1.000000e+00 : f32
    %492 = vector.broadcast %cst_78 : f32 to vector<8x32xf32>
    %493 = arith.addf %492, %491 : vector<8x32xf32>
    %494 = arith.divf %492, %493 : vector<8x32xf32>
    %495 = vector.extract_strided_slice %483 {offsets = [0, 32], sizes = [8, 32], strides = [1, 1]} : vector<8x96xf32> to vector<8x32xf32>
    %496 = vector.extract_strided_slice %484 {offsets = [0, 32], sizes = [8, 32], strides = [1, 1]} : vector<8x96xf32> to vector<8x32xf32>
    %497 = arith.addf %495, %496 : vector<8x32xf32>
    %498 = arith.negf %497 : vector<8x32xf32>
    %499 = math.exp %498 : vector<8x32xf32>
    %cst_79 = arith.constant 1.000000e+00 : f32
    %500 = vector.broadcast %cst_79 : f32 to vector<8x32xf32>
    %501 = arith.addf %500, %499 : vector<8x32xf32>
    %502 = arith.divf %500, %501 : vector<8x32xf32>
    %503 = vector.extract_strided_slice %483 {offsets = [0, 64], sizes = [8, 32], strides = [1, 1]} : vector<8x96xf32> to vector<8x32xf32>
    %504 = vector.extract_strided_slice %484 {offsets = [0, 64], sizes = [8, 32], strides = [1, 1]} : vector<8x96xf32> to vector<8x32xf32>
    %505 = arith.mulf %494, %504 : vector<8x32xf32>
    %506 = arith.addf %503, %505 : vector<8x32xf32>
    %507 = math.tanh %506 : vector<8x32xf32>
    %cst_80 = arith.constant 1.000000e+00 : f32
    %508 = vector.broadcast %cst_80 : f32 to vector<8x32xf32>
    %509 = arith.subf %508, %502 : vector<8x32xf32>
    %510 = arith.mulf %509, %507 : vector<8x32xf32>
    %511 = arith.mulf %502, %482 : vector<8x32xf32>
    %512 = arith.addf %510, %511 : vector<8x32xf32>
    %513 = vector.shape_cast %486 : vector<8x1xi1> to vector<8x1xi1>
    %514 = vector.broadcast %513 : vector<8x1xi1> to vector<8x32xi1>
    %515 = arith.select %514, %512, %482 : vector<8x32xi1>, vector<8x32xf32>
    %516 = vector.extract_strided_slice %473 {offsets = [0, 32], sizes = [8, 32], strides = [1, 1]} : vector<8x64xf32> to vector<8x32xf32>
    %517 = vector.extract_strided_slice %478 {offsets = [0, 96], sizes = [8, 96], strides = [1, 1]} : vector<8x192xf32> to vector<8x96xf32>
    %518 = vector.extract_strided_slice %481 {offsets = [0, 96], sizes = [8, 96], strides = [1, 1]} : vector<8x192xf32> to vector<8x96xf32>
    %519 = vector.broadcast %474 : i32 to vector<8x1xi32>
    %520 = arith.cmpi slt, %519, %0 : vector<8x1xi32>
    %521 = vector.extract_strided_slice %517 {offsets = [0, 0], sizes = [8, 32], strides = [1, 1]} : vector<8x96xf32> to vector<8x32xf32>
    %522 = vector.extract_strided_slice %518 {offsets = [0, 0], sizes = [8, 32], strides = [1, 1]} : vector<8x96xf32> to vector<8x32xf32>
    %523 = arith.addf %521, %522 : vector<8x32xf32>
    %524 = arith.negf %523 : vector<8x32xf32>
    %525 = math.exp %524 : vector<8x32xf32>
    %cst_81 = arith.constant 1.000000e+00 : f32
    %526 = vector.broadcast %cst_81 : f32 to vector<8x32xf32>
    %527 = arith.addf %526, %525 : vector<8x32xf32>
    %528 = arith.divf %526, %527 : vector<8x32xf32>
    %529 = vector.extract_strided_slice %517 {offsets = [0, 32], sizes = [8, 32], strides = [1, 1]} : vector<8x96xf32> to vector<8x32xf32>
    %530 = vector.extract_strided_slice %518 {offsets = [0, 32], sizes = [8, 32], strides = [1, 1]} : vector<8x96xf32> to vector<8x32xf32>
    %531 = arith.addf %529, %530 : vector<8x32xf32>
    %532 = arith.negf %531 : vector<8x32xf32>
    %533 = math.exp %532 : vector<8x32xf32>
    %cst_82 = arith.constant 1.000000e+00 : f32
    %534 = vector.broadcast %cst_82 : f32 to vector<8x32xf32>
    %535 = arith.addf %534, %533 : vector<8x32xf32>
    %536 = arith.divf %534, %535 : vector<8x32xf32>
    %537 = vector.extract_strided_slice %517 {offsets = [0, 64], sizes = [8, 32], strides = [1, 1]} : vector<8x96xf32> to vector<8x32xf32>
    %538 = vector.extract_strided_slice %518 {offsets = [0, 64], sizes = [8, 32], strides = [1, 1]} : vector<8x96xf32> to vector<8x32xf32>
    %539 = arith.mulf %528, %538 : vector<8x32xf32>
    %540 = arith.addf %537, %539 : vector<8x32xf32>
    %541 = math.tanh %540 : vector<8x32xf32>
    %cst_83 = arith.constant 1.000000e+00 : f32
    %542 = vector.broadcast %cst_83 : f32 to vector<8x32xf32>
    %543 = arith.subf %542, %536 : vector<8x32xf32>
    %544 = arith.mulf %543, %541 : vector<8x32xf32>
    %545 = arith.mulf %536, %516 : vector<8x32xf32>
    %546 = arith.addf %544, %545 : vector<8x32xf32>
    %547 = vector.shape_cast %520 : vector<8x1xi1> to vector<8x1xi1>
    %548 = vector.broadcast %547 : vector<8x1xi1> to vector<8x32xi1>
    %549 = arith.select %548, %546, %516 : vector<8x32xi1>, vector<8x32xf32>
    %550 = tpu.concatenate %515, %549 in 1 : vector<8x32xf32>, vector<8x32xf32> -> vector<8x64xf32>
    %c7_i32 = arith.constant 7 : i32
    %c15_i32_84 = arith.constant 15 : i32
    %551 = arith.subi %c15_i32_84, %c7_i32 : i32
    %c8_i32_85 = arith.constant 8 : i32
    %552 = arith.muli %c7_i32, %c8_i32_85 : i32
    %553 = tpu.assume_multiple %552, 8 : i32
    %554 = arith.index_cast %553 : i32 to index
    %c0_86 = arith.constant 0 : index
    %555 = vector.load %arg13[%554, %c0_86] : memref<128x192xf32, #tpu.memory_space<vmem>>, vector<8x192xf32>
    %cst_87 = arith.constant dense<0.000000e+00> : vector<8x192xf32>
    %556 = tpu.matmul %550, %9, %cst_87 {dimension_numbers = #tpu.dot_dimension_numbers<[1], [0], [0], [1], [0, 0, 1, 1], [], []>} : vector<8x64xf32>, vector<64x192xf32>, vector<8x192xf32> -> vector<8x192xf32>
    %557 = vector.broadcast %10 : vector<1x192xf32> to vector<8x192xf32>
    %558 = arith.addf %556, %557 : vector<8x192xf32>
    %559 = vector.extract_strided_slice %550 {offsets = [0, 0], sizes = [8, 32], strides = [1, 1]} : vector<8x64xf32> to vector<8x32xf32>
    %560 = vector.extract_strided_slice %555 {offsets = [0, 0], sizes = [8, 96], strides = [1, 1]} : vector<8x192xf32> to vector<8x96xf32>
    %561 = vector.extract_strided_slice %558 {offsets = [0, 0], sizes = [8, 96], strides = [1, 1]} : vector<8x192xf32> to vector<8x96xf32>
    %562 = vector.broadcast %c7_i32 : i32 to vector<8x1xi32>
    %563 = arith.cmpi slt, %562, %0 : vector<8x1xi32>
    %564 = vector.extract_strided_slice %560 {offsets = [0, 0], sizes = [8, 32], strides = [1, 1]} : vector<8x96xf32> to vector<8x32xf32>
    %565 = vector.extract_strided_slice %561 {offsets = [0, 0], sizes = [8, 32], strides = [1, 1]} : vector<8x96xf32> to vector<8x32xf32>
    %566 = arith.addf %564, %565 : vector<8x32xf32>
    %567 = arith.negf %566 : vector<8x32xf32>
    %568 = math.exp %567 : vector<8x32xf32>
    %cst_88 = arith.constant 1.000000e+00 : f32
    %569 = vector.broadcast %cst_88 : f32 to vector<8x32xf32>
    %570 = arith.addf %569, %568 : vector<8x32xf32>
    %571 = arith.divf %569, %570 : vector<8x32xf32>
    %572 = vector.extract_strided_slice %560 {offsets = [0, 32], sizes = [8, 32], strides = [1, 1]} : vector<8x96xf32> to vector<8x32xf32>
    %573 = vector.extract_strided_slice %561 {offsets = [0, 32], sizes = [8, 32], strides = [1, 1]} : vector<8x96xf32> to vector<8x32xf32>
    %574 = arith.addf %572, %573 : vector<8x32xf32>
    %575 = arith.negf %574 : vector<8x32xf32>
    %576 = math.exp %575 : vector<8x32xf32>
    %cst_89 = arith.constant 1.000000e+00 : f32
    %577 = vector.broadcast %cst_89 : f32 to vector<8x32xf32>
    %578 = arith.addf %577, %576 : vector<8x32xf32>
    %579 = arith.divf %577, %578 : vector<8x32xf32>
    %580 = vector.extract_strided_slice %560 {offsets = [0, 64], sizes = [8, 32], strides = [1, 1]} : vector<8x96xf32> to vector<8x32xf32>
    %581 = vector.extract_strided_slice %561 {offsets = [0, 64], sizes = [8, 32], strides = [1, 1]} : vector<8x96xf32> to vector<8x32xf32>
    %582 = arith.mulf %571, %581 : vector<8x32xf32>
    %583 = arith.addf %580, %582 : vector<8x32xf32>
    %584 = math.tanh %583 : vector<8x32xf32>
    %cst_90 = arith.constant 1.000000e+00 : f32
    %585 = vector.broadcast %cst_90 : f32 to vector<8x32xf32>
    %586 = arith.subf %585, %579 : vector<8x32xf32>
    %587 = arith.mulf %586, %584 : vector<8x32xf32>
    %588 = arith.mulf %579, %559 : vector<8x32xf32>
    %589 = arith.addf %587, %588 : vector<8x32xf32>
    %590 = vector.shape_cast %563 : vector<8x1xi1> to vector<8x1xi1>
    %591 = vector.broadcast %590 : vector<8x1xi1> to vector<8x32xi1>
    %592 = arith.select %591, %589, %559 : vector<8x32xi1>, vector<8x32xf32>
    %593 = vector.extract_strided_slice %550 {offsets = [0, 32], sizes = [8, 32], strides = [1, 1]} : vector<8x64xf32> to vector<8x32xf32>
    %594 = vector.extract_strided_slice %555 {offsets = [0, 96], sizes = [8, 96], strides = [1, 1]} : vector<8x192xf32> to vector<8x96xf32>
    %595 = vector.extract_strided_slice %558 {offsets = [0, 96], sizes = [8, 96], strides = [1, 1]} : vector<8x192xf32> to vector<8x96xf32>
    %596 = vector.broadcast %551 : i32 to vector<8x1xi32>
    %597 = arith.cmpi slt, %596, %0 : vector<8x1xi32>
    %598 = vector.extract_strided_slice %594 {offsets = [0, 0], sizes = [8, 32], strides = [1, 1]} : vector<8x96xf32> to vector<8x32xf32>
    %599 = vector.extract_strided_slice %595 {offsets = [0, 0], sizes = [8, 32], strides = [1, 1]} : vector<8x96xf32> to vector<8x32xf32>
    %600 = arith.addf %598, %599 : vector<8x32xf32>
    %601 = arith.negf %600 : vector<8x32xf32>
    %602 = math.exp %601 : vector<8x32xf32>
    %cst_91 = arith.constant 1.000000e+00 : f32
    %603 = vector.broadcast %cst_91 : f32 to vector<8x32xf32>
    %604 = arith.addf %603, %602 : vector<8x32xf32>
    %605 = arith.divf %603, %604 : vector<8x32xf32>
    %606 = vector.extract_strided_slice %594 {offsets = [0, 32], sizes = [8, 32], strides = [1, 1]} : vector<8x96xf32> to vector<8x32xf32>
    %607 = vector.extract_strided_slice %595 {offsets = [0, 32], sizes = [8, 32], strides = [1, 1]} : vector<8x96xf32> to vector<8x32xf32>
    %608 = arith.addf %606, %607 : vector<8x32xf32>
    %609 = arith.negf %608 : vector<8x32xf32>
    %610 = math.exp %609 : vector<8x32xf32>
    %cst_92 = arith.constant 1.000000e+00 : f32
    %611 = vector.broadcast %cst_92 : f32 to vector<8x32xf32>
    %612 = arith.addf %611, %610 : vector<8x32xf32>
    %613 = arith.divf %611, %612 : vector<8x32xf32>
    %614 = vector.extract_strided_slice %594 {offsets = [0, 64], sizes = [8, 32], strides = [1, 1]} : vector<8x96xf32> to vector<8x32xf32>
    %615 = vector.extract_strided_slice %595 {offsets = [0, 64], sizes = [8, 32], strides = [1, 1]} : vector<8x96xf32> to vector<8x32xf32>
    %616 = arith.mulf %605, %615 : vector<8x32xf32>
    %617 = arith.addf %614, %616 : vector<8x32xf32>
    %618 = math.tanh %617 : vector<8x32xf32>
    %cst_93 = arith.constant 1.000000e+00 : f32
    %619 = vector.broadcast %cst_93 : f32 to vector<8x32xf32>
    %620 = arith.subf %619, %613 : vector<8x32xf32>
    %621 = arith.mulf %620, %618 : vector<8x32xf32>
    %622 = arith.mulf %613, %593 : vector<8x32xf32>
    %623 = arith.addf %621, %622 : vector<8x32xf32>
    %624 = vector.shape_cast %597 : vector<8x1xi1> to vector<8x1xi1>
    %625 = vector.broadcast %624 : vector<8x1xi1> to vector<8x32xi1>
    %626 = arith.select %625, %623, %593 : vector<8x32xi1>, vector<8x32xf32>
    %627 = tpu.concatenate %592, %626 in 1 : vector<8x32xf32>, vector<8x32xf32> -> vector<8x64xf32>
    %c8_i32_94 = arith.constant 8 : i32
    %c15_i32_95 = arith.constant 15 : i32
    %628 = arith.subi %c15_i32_95, %c8_i32_94 : i32
    %c8_i32_96 = arith.constant 8 : i32
    %629 = arith.muli %c8_i32_94, %c8_i32_96 : i32
    %630 = tpu.assume_multiple %629, 8 : i32
    %631 = arith.index_cast %630 : i32 to index
    %c0_97 = arith.constant 0 : index
    %632 = vector.load %arg13[%631, %c0_97] : memref<128x192xf32, #tpu.memory_space<vmem>>, vector<8x192xf32>
    %cst_98 = arith.constant dense<0.000000e+00> : vector<8x192xf32>
    %633 = tpu.matmul %627, %9, %cst_98 {dimension_numbers = #tpu.dot_dimension_numbers<[1], [0], [0], [1], [0, 0, 1, 1], [], []>} : vector<8x64xf32>, vector<64x192xf32>, vector<8x192xf32> -> vector<8x192xf32>
    %634 = vector.broadcast %10 : vector<1x192xf32> to vector<8x192xf32>
    %635 = arith.addf %633, %634 : vector<8x192xf32>
    %636 = vector.extract_strided_slice %627 {offsets = [0, 0], sizes = [8, 32], strides = [1, 1]} : vector<8x64xf32> to vector<8x32xf32>
    %637 = vector.extract_strided_slice %632 {offsets = [0, 0], sizes = [8, 96], strides = [1, 1]} : vector<8x192xf32> to vector<8x96xf32>
    %638 = vector.extract_strided_slice %635 {offsets = [0, 0], sizes = [8, 96], strides = [1, 1]} : vector<8x192xf32> to vector<8x96xf32>
    %639 = vector.broadcast %c8_i32_94 : i32 to vector<8x1xi32>
    %640 = arith.cmpi slt, %639, %0 : vector<8x1xi32>
    %641 = vector.extract_strided_slice %637 {offsets = [0, 0], sizes = [8, 32], strides = [1, 1]} : vector<8x96xf32> to vector<8x32xf32>
    %642 = vector.extract_strided_slice %638 {offsets = [0, 0], sizes = [8, 32], strides = [1, 1]} : vector<8x96xf32> to vector<8x32xf32>
    %643 = arith.addf %641, %642 : vector<8x32xf32>
    %644 = arith.negf %643 : vector<8x32xf32>
    %645 = math.exp %644 : vector<8x32xf32>
    %cst_99 = arith.constant 1.000000e+00 : f32
    %646 = vector.broadcast %cst_99 : f32 to vector<8x32xf32>
    %647 = arith.addf %646, %645 : vector<8x32xf32>
    %648 = arith.divf %646, %647 : vector<8x32xf32>
    %649 = vector.extract_strided_slice %637 {offsets = [0, 32], sizes = [8, 32], strides = [1, 1]} : vector<8x96xf32> to vector<8x32xf32>
    %650 = vector.extract_strided_slice %638 {offsets = [0, 32], sizes = [8, 32], strides = [1, 1]} : vector<8x96xf32> to vector<8x32xf32>
    %651 = arith.addf %649, %650 : vector<8x32xf32>
    %652 = arith.negf %651 : vector<8x32xf32>
    %653 = math.exp %652 : vector<8x32xf32>
    %cst_100 = arith.constant 1.000000e+00 : f32
    %654 = vector.broadcast %cst_100 : f32 to vector<8x32xf32>
    %655 = arith.addf %654, %653 : vector<8x32xf32>
    %656 = arith.divf %654, %655 : vector<8x32xf32>
    %657 = vector.extract_strided_slice %637 {offsets = [0, 64], sizes = [8, 32], strides = [1, 1]} : vector<8x96xf32> to vector<8x32xf32>
    %658 = vector.extract_strided_slice %638 {offsets = [0, 64], sizes = [8, 32], strides = [1, 1]} : vector<8x96xf32> to vector<8x32xf32>
    %659 = arith.mulf %648, %658 : vector<8x32xf32>
    %660 = arith.addf %657, %659 : vector<8x32xf32>
    %661 = math.tanh %660 : vector<8x32xf32>
    %cst_101 = arith.constant 1.000000e+00 : f32
    %662 = vector.broadcast %cst_101 : f32 to vector<8x32xf32>
    %663 = arith.subf %662, %656 : vector<8x32xf32>
    %664 = arith.mulf %663, %661 : vector<8x32xf32>
    %665 = arith.mulf %656, %636 : vector<8x32xf32>
    %666 = arith.addf %664, %665 : vector<8x32xf32>
    %667 = vector.shape_cast %640 : vector<8x1xi1> to vector<8x1xi1>
    %668 = vector.broadcast %667 : vector<8x1xi1> to vector<8x32xi1>
    %669 = arith.select %668, %666, %636 : vector<8x32xi1>, vector<8x32xf32>
    %670 = vector.extract_strided_slice %627 {offsets = [0, 32], sizes = [8, 32], strides = [1, 1]} : vector<8x64xf32> to vector<8x32xf32>
    %671 = vector.extract_strided_slice %632 {offsets = [0, 96], sizes = [8, 96], strides = [1, 1]} : vector<8x192xf32> to vector<8x96xf32>
    %672 = vector.extract_strided_slice %635 {offsets = [0, 96], sizes = [8, 96], strides = [1, 1]} : vector<8x192xf32> to vector<8x96xf32>
    %673 = vector.broadcast %628 : i32 to vector<8x1xi32>
    %674 = arith.cmpi slt, %673, %0 : vector<8x1xi32>
    %675 = vector.extract_strided_slice %671 {offsets = [0, 0], sizes = [8, 32], strides = [1, 1]} : vector<8x96xf32> to vector<8x32xf32>
    %676 = vector.extract_strided_slice %672 {offsets = [0, 0], sizes = [8, 32], strides = [1, 1]} : vector<8x96xf32> to vector<8x32xf32>
    %677 = arith.addf %675, %676 : vector<8x32xf32>
    %678 = arith.negf %677 : vector<8x32xf32>
    %679 = math.exp %678 : vector<8x32xf32>
    %cst_102 = arith.constant 1.000000e+00 : f32
    %680 = vector.broadcast %cst_102 : f32 to vector<8x32xf32>
    %681 = arith.addf %680, %679 : vector<8x32xf32>
    %682 = arith.divf %680, %681 : vector<8x32xf32>
    %683 = vector.extract_strided_slice %671 {offsets = [0, 32], sizes = [8, 32], strides = [1, 1]} : vector<8x96xf32> to vector<8x32xf32>
    %684 = vector.extract_strided_slice %672 {offsets = [0, 32], sizes = [8, 32], strides = [1, 1]} : vector<8x96xf32> to vector<8x32xf32>
    %685 = arith.addf %683, %684 : vector<8x32xf32>
    %686 = arith.negf %685 : vector<8x32xf32>
    %687 = math.exp %686 : vector<8x32xf32>
    %cst_103 = arith.constant 1.000000e+00 : f32
    %688 = vector.broadcast %cst_103 : f32 to vector<8x32xf32>
    %689 = arith.addf %688, %687 : vector<8x32xf32>
    %690 = arith.divf %688, %689 : vector<8x32xf32>
    %691 = vector.extract_strided_slice %671 {offsets = [0, 64], sizes = [8, 32], strides = [1, 1]} : vector<8x96xf32> to vector<8x32xf32>
    %692 = vector.extract_strided_slice %672 {offsets = [0, 64], sizes = [8, 32], strides = [1, 1]} : vector<8x96xf32> to vector<8x32xf32>
    %693 = arith.mulf %682, %692 : vector<8x32xf32>
    %694 = arith.addf %691, %693 : vector<8x32xf32>
    %695 = math.tanh %694 : vector<8x32xf32>
    %cst_104 = arith.constant 1.000000e+00 : f32
    %696 = vector.broadcast %cst_104 : f32 to vector<8x32xf32>
    %697 = arith.subf %696, %690 : vector<8x32xf32>
    %698 = arith.mulf %697, %695 : vector<8x32xf32>
    %699 = arith.mulf %690, %670 : vector<8x32xf32>
    %700 = arith.addf %698, %699 : vector<8x32xf32>
    %701 = vector.shape_cast %674 : vector<8x1xi1> to vector<8x1xi1>
    %702 = vector.broadcast %701 : vector<8x1xi1> to vector<8x32xi1>
    %703 = arith.select %702, %700, %670 : vector<8x32xi1>, vector<8x32xf32>
    %704 = tpu.concatenate %669, %703 in 1 : vector<8x32xf32>, vector<8x32xf32> -> vector<8x64xf32>
    %c9_i32 = arith.constant 9 : i32
    %c15_i32_105 = arith.constant 15 : i32
    %705 = arith.subi %c15_i32_105, %c9_i32 : i32
    %c8_i32_106 = arith.constant 8 : i32
    %706 = arith.muli %c9_i32, %c8_i32_106 : i32
    %707 = tpu.assume_multiple %706, 8 : i32
    %708 = arith.index_cast %707 : i32 to index
    %c0_107 = arith.constant 0 : index
    %709 = vector.load %arg13[%708, %c0_107] : memref<128x192xf32, #tpu.memory_space<vmem>>, vector<8x192xf32>
    %cst_108 = arith.constant dense<0.000000e+00> : vector<8x192xf32>
    %710 = tpu.matmul %704, %9, %cst_108 {dimension_numbers = #tpu.dot_dimension_numbers<[1], [0], [0], [1], [0, 0, 1, 1], [], []>} : vector<8x64xf32>, vector<64x192xf32>, vector<8x192xf32> -> vector<8x192xf32>
    %711 = vector.broadcast %10 : vector<1x192xf32> to vector<8x192xf32>
    %712 = arith.addf %710, %711 : vector<8x192xf32>
    %713 = vector.extract_strided_slice %704 {offsets = [0, 0], sizes = [8, 32], strides = [1, 1]} : vector<8x64xf32> to vector<8x32xf32>
    %714 = vector.extract_strided_slice %709 {offsets = [0, 0], sizes = [8, 96], strides = [1, 1]} : vector<8x192xf32> to vector<8x96xf32>
    %715 = vector.extract_strided_slice %712 {offsets = [0, 0], sizes = [8, 96], strides = [1, 1]} : vector<8x192xf32> to vector<8x96xf32>
    %716 = vector.broadcast %c9_i32 : i32 to vector<8x1xi32>
    %717 = arith.cmpi slt, %716, %0 : vector<8x1xi32>
    %718 = vector.extract_strided_slice %714 {offsets = [0, 0], sizes = [8, 32], strides = [1, 1]} : vector<8x96xf32> to vector<8x32xf32>
    %719 = vector.extract_strided_slice %715 {offsets = [0, 0], sizes = [8, 32], strides = [1, 1]} : vector<8x96xf32> to vector<8x32xf32>
    %720 = arith.addf %718, %719 : vector<8x32xf32>
    %721 = arith.negf %720 : vector<8x32xf32>
    %722 = math.exp %721 : vector<8x32xf32>
    %cst_109 = arith.constant 1.000000e+00 : f32
    %723 = vector.broadcast %cst_109 : f32 to vector<8x32xf32>
    %724 = arith.addf %723, %722 : vector<8x32xf32>
    %725 = arith.divf %723, %724 : vector<8x32xf32>
    %726 = vector.extract_strided_slice %714 {offsets = [0, 32], sizes = [8, 32], strides = [1, 1]} : vector<8x96xf32> to vector<8x32xf32>
    %727 = vector.extract_strided_slice %715 {offsets = [0, 32], sizes = [8, 32], strides = [1, 1]} : vector<8x96xf32> to vector<8x32xf32>
    %728 = arith.addf %726, %727 : vector<8x32xf32>
    %729 = arith.negf %728 : vector<8x32xf32>
    %730 = math.exp %729 : vector<8x32xf32>
    %cst_110 = arith.constant 1.000000e+00 : f32
    %731 = vector.broadcast %cst_110 : f32 to vector<8x32xf32>
    %732 = arith.addf %731, %730 : vector<8x32xf32>
    %733 = arith.divf %731, %732 : vector<8x32xf32>
    %734 = vector.extract_strided_slice %714 {offsets = [0, 64], sizes = [8, 32], strides = [1, 1]} : vector<8x96xf32> to vector<8x32xf32>
    %735 = vector.extract_strided_slice %715 {offsets = [0, 64], sizes = [8, 32], strides = [1, 1]} : vector<8x96xf32> to vector<8x32xf32>
    %736 = arith.mulf %725, %735 : vector<8x32xf32>
    %737 = arith.addf %734, %736 : vector<8x32xf32>
    %738 = math.tanh %737 : vector<8x32xf32>
    %cst_111 = arith.constant 1.000000e+00 : f32
    %739 = vector.broadcast %cst_111 : f32 to vector<8x32xf32>
    %740 = arith.subf %739, %733 : vector<8x32xf32>
    %741 = arith.mulf %740, %738 : vector<8x32xf32>
    %742 = arith.mulf %733, %713 : vector<8x32xf32>
    %743 = arith.addf %741, %742 : vector<8x32xf32>
    %744 = vector.shape_cast %717 : vector<8x1xi1> to vector<8x1xi1>
    %745 = vector.broadcast %744 : vector<8x1xi1> to vector<8x32xi1>
    %746 = arith.select %745, %743, %713 : vector<8x32xi1>, vector<8x32xf32>
    %747 = vector.extract_strided_slice %704 {offsets = [0, 32], sizes = [8, 32], strides = [1, 1]} : vector<8x64xf32> to vector<8x32xf32>
    %748 = vector.extract_strided_slice %709 {offsets = [0, 96], sizes = [8, 96], strides = [1, 1]} : vector<8x192xf32> to vector<8x96xf32>
    %749 = vector.extract_strided_slice %712 {offsets = [0, 96], sizes = [8, 96], strides = [1, 1]} : vector<8x192xf32> to vector<8x96xf32>
    %750 = vector.broadcast %705 : i32 to vector<8x1xi32>
    %751 = arith.cmpi slt, %750, %0 : vector<8x1xi32>
    %752 = vector.extract_strided_slice %748 {offsets = [0, 0], sizes = [8, 32], strides = [1, 1]} : vector<8x96xf32> to vector<8x32xf32>
    %753 = vector.extract_strided_slice %749 {offsets = [0, 0], sizes = [8, 32], strides = [1, 1]} : vector<8x96xf32> to vector<8x32xf32>
    %754 = arith.addf %752, %753 : vector<8x32xf32>
    %755 = arith.negf %754 : vector<8x32xf32>
    %756 = math.exp %755 : vector<8x32xf32>
    %cst_112 = arith.constant 1.000000e+00 : f32
    %757 = vector.broadcast %cst_112 : f32 to vector<8x32xf32>
    %758 = arith.addf %757, %756 : vector<8x32xf32>
    %759 = arith.divf %757, %758 : vector<8x32xf32>
    %760 = vector.extract_strided_slice %748 {offsets = [0, 32], sizes = [8, 32], strides = [1, 1]} : vector<8x96xf32> to vector<8x32xf32>
    %761 = vector.extract_strided_slice %749 {offsets = [0, 32], sizes = [8, 32], strides = [1, 1]} : vector<8x96xf32> to vector<8x32xf32>
    %762 = arith.addf %760, %761 : vector<8x32xf32>
    %763 = arith.negf %762 : vector<8x32xf32>
    %764 = math.exp %763 : vector<8x32xf32>
    %cst_113 = arith.constant 1.000000e+00 : f32
    %765 = vector.broadcast %cst_113 : f32 to vector<8x32xf32>
    %766 = arith.addf %765, %764 : vector<8x32xf32>
    %767 = arith.divf %765, %766 : vector<8x32xf32>
    %768 = vector.extract_strided_slice %748 {offsets = [0, 64], sizes = [8, 32], strides = [1, 1]} : vector<8x96xf32> to vector<8x32xf32>
    %769 = vector.extract_strided_slice %749 {offsets = [0, 64], sizes = [8, 32], strides = [1, 1]} : vector<8x96xf32> to vector<8x32xf32>
    %770 = arith.mulf %759, %769 : vector<8x32xf32>
    %771 = arith.addf %768, %770 : vector<8x32xf32>
    %772 = math.tanh %771 : vector<8x32xf32>
    %cst_114 = arith.constant 1.000000e+00 : f32
    %773 = vector.broadcast %cst_114 : f32 to vector<8x32xf32>
    %774 = arith.subf %773, %767 : vector<8x32xf32>
    %775 = arith.mulf %774, %772 : vector<8x32xf32>
    %776 = arith.mulf %767, %747 : vector<8x32xf32>
    %777 = arith.addf %775, %776 : vector<8x32xf32>
    %778 = vector.shape_cast %751 : vector<8x1xi1> to vector<8x1xi1>
    %779 = vector.broadcast %778 : vector<8x1xi1> to vector<8x32xi1>
    %780 = arith.select %779, %777, %747 : vector<8x32xi1>, vector<8x32xf32>
    %781 = tpu.concatenate %746, %780 in 1 : vector<8x32xf32>, vector<8x32xf32> -> vector<8x64xf32>
    %c10_i32 = arith.constant 10 : i32
    %c15_i32_115 = arith.constant 15 : i32
    %782 = arith.subi %c15_i32_115, %c10_i32 : i32
    %c8_i32_116 = arith.constant 8 : i32
    %783 = arith.muli %c10_i32, %c8_i32_116 : i32
    %784 = tpu.assume_multiple %783, 8 : i32
    %785 = arith.index_cast %784 : i32 to index
    %c0_117 = arith.constant 0 : index
    %786 = vector.load %arg13[%785, %c0_117] : memref<128x192xf32, #tpu.memory_space<vmem>>, vector<8x192xf32>
    %cst_118 = arith.constant dense<0.000000e+00> : vector<8x192xf32>
    %787 = tpu.matmul %781, %9, %cst_118 {dimension_numbers = #tpu.dot_dimension_numbers<[1], [0], [0], [1], [0, 0, 1, 1], [], []>} : vector<8x64xf32>, vector<64x192xf32>, vector<8x192xf32> -> vector<8x192xf32>
    %788 = vector.broadcast %10 : vector<1x192xf32> to vector<8x192xf32>
    %789 = arith.addf %787, %788 : vector<8x192xf32>
    %790 = vector.extract_strided_slice %781 {offsets = [0, 0], sizes = [8, 32], strides = [1, 1]} : vector<8x64xf32> to vector<8x32xf32>
    %791 = vector.extract_strided_slice %786 {offsets = [0, 0], sizes = [8, 96], strides = [1, 1]} : vector<8x192xf32> to vector<8x96xf32>
    %792 = vector.extract_strided_slice %789 {offsets = [0, 0], sizes = [8, 96], strides = [1, 1]} : vector<8x192xf32> to vector<8x96xf32>
    %793 = vector.broadcast %c10_i32 : i32 to vector<8x1xi32>
    %794 = arith.cmpi slt, %793, %0 : vector<8x1xi32>
    %795 = vector.extract_strided_slice %791 {offsets = [0, 0], sizes = [8, 32], strides = [1, 1]} : vector<8x96xf32> to vector<8x32xf32>
    %796 = vector.extract_strided_slice %792 {offsets = [0, 0], sizes = [8, 32], strides = [1, 1]} : vector<8x96xf32> to vector<8x32xf32>
    %797 = arith.addf %795, %796 : vector<8x32xf32>
    %798 = arith.negf %797 : vector<8x32xf32>
    %799 = math.exp %798 : vector<8x32xf32>
    %cst_119 = arith.constant 1.000000e+00 : f32
    %800 = vector.broadcast %cst_119 : f32 to vector<8x32xf32>
    %801 = arith.addf %800, %799 : vector<8x32xf32>
    %802 = arith.divf %800, %801 : vector<8x32xf32>
    %803 = vector.extract_strided_slice %791 {offsets = [0, 32], sizes = [8, 32], strides = [1, 1]} : vector<8x96xf32> to vector<8x32xf32>
    %804 = vector.extract_strided_slice %792 {offsets = [0, 32], sizes = [8, 32], strides = [1, 1]} : vector<8x96xf32> to vector<8x32xf32>
    %805 = arith.addf %803, %804 : vector<8x32xf32>
    %806 = arith.negf %805 : vector<8x32xf32>
    %807 = math.exp %806 : vector<8x32xf32>
    %cst_120 = arith.constant 1.000000e+00 : f32
    %808 = vector.broadcast %cst_120 : f32 to vector<8x32xf32>
    %809 = arith.addf %808, %807 : vector<8x32xf32>
    %810 = arith.divf %808, %809 : vector<8x32xf32>
    %811 = vector.extract_strided_slice %791 {offsets = [0, 64], sizes = [8, 32], strides = [1, 1]} : vector<8x96xf32> to vector<8x32xf32>
    %812 = vector.extract_strided_slice %792 {offsets = [0, 64], sizes = [8, 32], strides = [1, 1]} : vector<8x96xf32> to vector<8x32xf32>
    %813 = arith.mulf %802, %812 : vector<8x32xf32>
    %814 = arith.addf %811, %813 : vector<8x32xf32>
    %815 = math.tanh %814 : vector<8x32xf32>
    %cst_121 = arith.constant 1.000000e+00 : f32
    %816 = vector.broadcast %cst_121 : f32 to vector<8x32xf32>
    %817 = arith.subf %816, %810 : vector<8x32xf32>
    %818 = arith.mulf %817, %815 : vector<8x32xf32>
    %819 = arith.mulf %810, %790 : vector<8x32xf32>
    %820 = arith.addf %818, %819 : vector<8x32xf32>
    %821 = vector.shape_cast %794 : vector<8x1xi1> to vector<8x1xi1>
    %822 = vector.broadcast %821 : vector<8x1xi1> to vector<8x32xi1>
    %823 = arith.select %822, %820, %790 : vector<8x32xi1>, vector<8x32xf32>
    %824 = vector.extract_strided_slice %781 {offsets = [0, 32], sizes = [8, 32], strides = [1, 1]} : vector<8x64xf32> to vector<8x32xf32>
    %825 = vector.extract_strided_slice %786 {offsets = [0, 96], sizes = [8, 96], strides = [1, 1]} : vector<8x192xf32> to vector<8x96xf32>
    %826 = vector.extract_strided_slice %789 {offsets = [0, 96], sizes = [8, 96], strides = [1, 1]} : vector<8x192xf32> to vector<8x96xf32>
    %827 = vector.broadcast %782 : i32 to vector<8x1xi32>
    %828 = arith.cmpi slt, %827, %0 : vector<8x1xi32>
    %829 = vector.extract_strided_slice %825 {offsets = [0, 0], sizes = [8, 32], strides = [1, 1]} : vector<8x96xf32> to vector<8x32xf32>
    %830 = vector.extract_strided_slice %826 {offsets = [0, 0], sizes = [8, 32], strides = [1, 1]} : vector<8x96xf32> to vector<8x32xf32>
    %831 = arith.addf %829, %830 : vector<8x32xf32>
    %832 = arith.negf %831 : vector<8x32xf32>
    %833 = math.exp %832 : vector<8x32xf32>
    %cst_122 = arith.constant 1.000000e+00 : f32
    %834 = vector.broadcast %cst_122 : f32 to vector<8x32xf32>
    %835 = arith.addf %834, %833 : vector<8x32xf32>
    %836 = arith.divf %834, %835 : vector<8x32xf32>
    %837 = vector.extract_strided_slice %825 {offsets = [0, 32], sizes = [8, 32], strides = [1, 1]} : vector<8x96xf32> to vector<8x32xf32>
    %838 = vector.extract_strided_slice %826 {offsets = [0, 32], sizes = [8, 32], strides = [1, 1]} : vector<8x96xf32> to vector<8x32xf32>
    %839 = arith.addf %837, %838 : vector<8x32xf32>
    %840 = arith.negf %839 : vector<8x32xf32>
    %841 = math.exp %840 : vector<8x32xf32>
    %cst_123 = arith.constant 1.000000e+00 : f32
    %842 = vector.broadcast %cst_123 : f32 to vector<8x32xf32>
    %843 = arith.addf %842, %841 : vector<8x32xf32>
    %844 = arith.divf %842, %843 : vector<8x32xf32>
    %845 = vector.extract_strided_slice %825 {offsets = [0, 64], sizes = [8, 32], strides = [1, 1]} : vector<8x96xf32> to vector<8x32xf32>
    %846 = vector.extract_strided_slice %826 {offsets = [0, 64], sizes = [8, 32], strides = [1, 1]} : vector<8x96xf32> to vector<8x32xf32>
    %847 = arith.mulf %836, %846 : vector<8x32xf32>
    %848 = arith.addf %845, %847 : vector<8x32xf32>
    %849 = math.tanh %848 : vector<8x32xf32>
    %cst_124 = arith.constant 1.000000e+00 : f32
    %850 = vector.broadcast %cst_124 : f32 to vector<8x32xf32>
    %851 = arith.subf %850, %844 : vector<8x32xf32>
    %852 = arith.mulf %851, %849 : vector<8x32xf32>
    %853 = arith.mulf %844, %824 : vector<8x32xf32>
    %854 = arith.addf %852, %853 : vector<8x32xf32>
    %855 = vector.shape_cast %828 : vector<8x1xi1> to vector<8x1xi1>
    %856 = vector.broadcast %855 : vector<8x1xi1> to vector<8x32xi1>
    %857 = arith.select %856, %854, %824 : vector<8x32xi1>, vector<8x32xf32>
    %858 = tpu.concatenate %823, %857 in 1 : vector<8x32xf32>, vector<8x32xf32> -> vector<8x64xf32>
    %c11_i32 = arith.constant 11 : i32
    %c15_i32_125 = arith.constant 15 : i32
    %859 = arith.subi %c15_i32_125, %c11_i32 : i32
    %c8_i32_126 = arith.constant 8 : i32
    %860 = arith.muli %c11_i32, %c8_i32_126 : i32
    %861 = tpu.assume_multiple %860, 8 : i32
    %862 = arith.index_cast %861 : i32 to index
    %c0_127 = arith.constant 0 : index
    %863 = vector.load %arg13[%862, %c0_127] : memref<128x192xf32, #tpu.memory_space<vmem>>, vector<8x192xf32>
    %cst_128 = arith.constant dense<0.000000e+00> : vector<8x192xf32>
    %864 = tpu.matmul %858, %9, %cst_128 {dimension_numbers = #tpu.dot_dimension_numbers<[1], [0], [0], [1], [0, 0, 1, 1], [], []>} : vector<8x64xf32>, vector<64x192xf32>, vector<8x192xf32> -> vector<8x192xf32>
    %865 = vector.broadcast %10 : vector<1x192xf32> to vector<8x192xf32>
    %866 = arith.addf %864, %865 : vector<8x192xf32>
    %867 = vector.extract_strided_slice %858 {offsets = [0, 0], sizes = [8, 32], strides = [1, 1]} : vector<8x64xf32> to vector<8x32xf32>
    %868 = vector.extract_strided_slice %863 {offsets = [0, 0], sizes = [8, 96], strides = [1, 1]} : vector<8x192xf32> to vector<8x96xf32>
    %869 = vector.extract_strided_slice %866 {offsets = [0, 0], sizes = [8, 96], strides = [1, 1]} : vector<8x192xf32> to vector<8x96xf32>
    %870 = vector.broadcast %c11_i32 : i32 to vector<8x1xi32>
    %871 = arith.cmpi slt, %870, %0 : vector<8x1xi32>
    %872 = vector.extract_strided_slice %868 {offsets = [0, 0], sizes = [8, 32], strides = [1, 1]} : vector<8x96xf32> to vector<8x32xf32>
    %873 = vector.extract_strided_slice %869 {offsets = [0, 0], sizes = [8, 32], strides = [1, 1]} : vector<8x96xf32> to vector<8x32xf32>
    %874 = arith.addf %872, %873 : vector<8x32xf32>
    %875 = arith.negf %874 : vector<8x32xf32>
    %876 = math.exp %875 : vector<8x32xf32>
    %cst_129 = arith.constant 1.000000e+00 : f32
    %877 = vector.broadcast %cst_129 : f32 to vector<8x32xf32>
    %878 = arith.addf %877, %876 : vector<8x32xf32>
    %879 = arith.divf %877, %878 : vector<8x32xf32>
    %880 = vector.extract_strided_slice %868 {offsets = [0, 32], sizes = [8, 32], strides = [1, 1]} : vector<8x96xf32> to vector<8x32xf32>
    %881 = vector.extract_strided_slice %869 {offsets = [0, 32], sizes = [8, 32], strides = [1, 1]} : vector<8x96xf32> to vector<8x32xf32>
    %882 = arith.addf %880, %881 : vector<8x32xf32>
    %883 = arith.negf %882 : vector<8x32xf32>
    %884 = math.exp %883 : vector<8x32xf32>
    %cst_130 = arith.constant 1.000000e+00 : f32
    %885 = vector.broadcast %cst_130 : f32 to vector<8x32xf32>
    %886 = arith.addf %885, %884 : vector<8x32xf32>
    %887 = arith.divf %885, %886 : vector<8x32xf32>
    %888 = vector.extract_strided_slice %868 {offsets = [0, 64], sizes = [8, 32], strides = [1, 1]} : vector<8x96xf32> to vector<8x32xf32>
    %889 = vector.extract_strided_slice %869 {offsets = [0, 64], sizes = [8, 32], strides = [1, 1]} : vector<8x96xf32> to vector<8x32xf32>
    %890 = arith.mulf %879, %889 : vector<8x32xf32>
    %891 = arith.addf %888, %890 : vector<8x32xf32>
    %892 = math.tanh %891 : vector<8x32xf32>
    %cst_131 = arith.constant 1.000000e+00 : f32
    %893 = vector.broadcast %cst_131 : f32 to vector<8x32xf32>
    %894 = arith.subf %893, %887 : vector<8x32xf32>
    %895 = arith.mulf %894, %892 : vector<8x32xf32>
    %896 = arith.mulf %887, %867 : vector<8x32xf32>
    %897 = arith.addf %895, %896 : vector<8x32xf32>
    %898 = vector.shape_cast %871 : vector<8x1xi1> to vector<8x1xi1>
    %899 = vector.broadcast %898 : vector<8x1xi1> to vector<8x32xi1>
    %900 = arith.select %899, %897, %867 : vector<8x32xi1>, vector<8x32xf32>
    %901 = vector.extract_strided_slice %858 {offsets = [0, 32], sizes = [8, 32], strides = [1, 1]} : vector<8x64xf32> to vector<8x32xf32>
    %902 = vector.extract_strided_slice %863 {offsets = [0, 96], sizes = [8, 96], strides = [1, 1]} : vector<8x192xf32> to vector<8x96xf32>
    %903 = vector.extract_strided_slice %866 {offsets = [0, 96], sizes = [8, 96], strides = [1, 1]} : vector<8x192xf32> to vector<8x96xf32>
    %904 = vector.broadcast %859 : i32 to vector<8x1xi32>
    %905 = arith.cmpi slt, %904, %0 : vector<8x1xi32>
    %906 = vector.extract_strided_slice %902 {offsets = [0, 0], sizes = [8, 32], strides = [1, 1]} : vector<8x96xf32> to vector<8x32xf32>
    %907 = vector.extract_strided_slice %903 {offsets = [0, 0], sizes = [8, 32], strides = [1, 1]} : vector<8x96xf32> to vector<8x32xf32>
    %908 = arith.addf %906, %907 : vector<8x32xf32>
    %909 = arith.negf %908 : vector<8x32xf32>
    %910 = math.exp %909 : vector<8x32xf32>
    %cst_132 = arith.constant 1.000000e+00 : f32
    %911 = vector.broadcast %cst_132 : f32 to vector<8x32xf32>
    %912 = arith.addf %911, %910 : vector<8x32xf32>
    %913 = arith.divf %911, %912 : vector<8x32xf32>
    %914 = vector.extract_strided_slice %902 {offsets = [0, 32], sizes = [8, 32], strides = [1, 1]} : vector<8x96xf32> to vector<8x32xf32>
    %915 = vector.extract_strided_slice %903 {offsets = [0, 32], sizes = [8, 32], strides = [1, 1]} : vector<8x96xf32> to vector<8x32xf32>
    %916 = arith.addf %914, %915 : vector<8x32xf32>
    %917 = arith.negf %916 : vector<8x32xf32>
    %918 = math.exp %917 : vector<8x32xf32>
    %cst_133 = arith.constant 1.000000e+00 : f32
    %919 = vector.broadcast %cst_133 : f32 to vector<8x32xf32>
    %920 = arith.addf %919, %918 : vector<8x32xf32>
    %921 = arith.divf %919, %920 : vector<8x32xf32>
    %922 = vector.extract_strided_slice %902 {offsets = [0, 64], sizes = [8, 32], strides = [1, 1]} : vector<8x96xf32> to vector<8x32xf32>
    %923 = vector.extract_strided_slice %903 {offsets = [0, 64], sizes = [8, 32], strides = [1, 1]} : vector<8x96xf32> to vector<8x32xf32>
    %924 = arith.mulf %913, %923 : vector<8x32xf32>
    %925 = arith.addf %922, %924 : vector<8x32xf32>
    %926 = math.tanh %925 : vector<8x32xf32>
    %cst_134 = arith.constant 1.000000e+00 : f32
    %927 = vector.broadcast %cst_134 : f32 to vector<8x32xf32>
    %928 = arith.subf %927, %921 : vector<8x32xf32>
    %929 = arith.mulf %928, %926 : vector<8x32xf32>
    %930 = arith.mulf %921, %901 : vector<8x32xf32>
    %931 = arith.addf %929, %930 : vector<8x32xf32>
    %932 = vector.shape_cast %905 : vector<8x1xi1> to vector<8x1xi1>
    %933 = vector.broadcast %932 : vector<8x1xi1> to vector<8x32xi1>
    %934 = arith.select %933, %931, %901 : vector<8x32xi1>, vector<8x32xf32>
    %935 = tpu.concatenate %900, %934 in 1 : vector<8x32xf32>, vector<8x32xf32> -> vector<8x64xf32>
    %c12_i32 = arith.constant 12 : i32
    %c15_i32_135 = arith.constant 15 : i32
    %936 = arith.subi %c15_i32_135, %c12_i32 : i32
    %c8_i32_136 = arith.constant 8 : i32
    %937 = arith.muli %c12_i32, %c8_i32_136 : i32
    %938 = tpu.assume_multiple %937, 8 : i32
    %939 = arith.index_cast %938 : i32 to index
    %c0_137 = arith.constant 0 : index
    %940 = vector.load %arg13[%939, %c0_137] : memref<128x192xf32, #tpu.memory_space<vmem>>, vector<8x192xf32>
    %cst_138 = arith.constant dense<0.000000e+00> : vector<8x192xf32>
    %941 = tpu.matmul %935, %9, %cst_138 {dimension_numbers = #tpu.dot_dimension_numbers<[1], [0], [0], [1], [0, 0, 1, 1], [], []>} : vector<8x64xf32>, vector<64x192xf32>, vector<8x192xf32> -> vector<8x192xf32>
    %942 = vector.broadcast %10 : vector<1x192xf32> to vector<8x192xf32>
    %943 = arith.addf %941, %942 : vector<8x192xf32>
    %944 = vector.extract_strided_slice %935 {offsets = [0, 0], sizes = [8, 32], strides = [1, 1]} : vector<8x64xf32> to vector<8x32xf32>
    %945 = vector.extract_strided_slice %940 {offsets = [0, 0], sizes = [8, 96], strides = [1, 1]} : vector<8x192xf32> to vector<8x96xf32>
    %946 = vector.extract_strided_slice %943 {offsets = [0, 0], sizes = [8, 96], strides = [1, 1]} : vector<8x192xf32> to vector<8x96xf32>
    %947 = vector.broadcast %c12_i32 : i32 to vector<8x1xi32>
    %948 = arith.cmpi slt, %947, %0 : vector<8x1xi32>
    %949 = vector.extract_strided_slice %945 {offsets = [0, 0], sizes = [8, 32], strides = [1, 1]} : vector<8x96xf32> to vector<8x32xf32>
    %950 = vector.extract_strided_slice %946 {offsets = [0, 0], sizes = [8, 32], strides = [1, 1]} : vector<8x96xf32> to vector<8x32xf32>
    %951 = arith.addf %949, %950 : vector<8x32xf32>
    %952 = arith.negf %951 : vector<8x32xf32>
    %953 = math.exp %952 : vector<8x32xf32>
    %cst_139 = arith.constant 1.000000e+00 : f32
    %954 = vector.broadcast %cst_139 : f32 to vector<8x32xf32>
    %955 = arith.addf %954, %953 : vector<8x32xf32>
    %956 = arith.divf %954, %955 : vector<8x32xf32>
    %957 = vector.extract_strided_slice %945 {offsets = [0, 32], sizes = [8, 32], strides = [1, 1]} : vector<8x96xf32> to vector<8x32xf32>
    %958 = vector.extract_strided_slice %946 {offsets = [0, 32], sizes = [8, 32], strides = [1, 1]} : vector<8x96xf32> to vector<8x32xf32>
    %959 = arith.addf %957, %958 : vector<8x32xf32>
    %960 = arith.negf %959 : vector<8x32xf32>
    %961 = math.exp %960 : vector<8x32xf32>
    %cst_140 = arith.constant 1.000000e+00 : f32
    %962 = vector.broadcast %cst_140 : f32 to vector<8x32xf32>
    %963 = arith.addf %962, %961 : vector<8x32xf32>
    %964 = arith.divf %962, %963 : vector<8x32xf32>
    %965 = vector.extract_strided_slice %945 {offsets = [0, 64], sizes = [8, 32], strides = [1, 1]} : vector<8x96xf32> to vector<8x32xf32>
    %966 = vector.extract_strided_slice %946 {offsets = [0, 64], sizes = [8, 32], strides = [1, 1]} : vector<8x96xf32> to vector<8x32xf32>
    %967 = arith.mulf %956, %966 : vector<8x32xf32>
    %968 = arith.addf %965, %967 : vector<8x32xf32>
    %969 = math.tanh %968 : vector<8x32xf32>
    %cst_141 = arith.constant 1.000000e+00 : f32
    %970 = vector.broadcast %cst_141 : f32 to vector<8x32xf32>
    %971 = arith.subf %970, %964 : vector<8x32xf32>
    %972 = arith.mulf %971, %969 : vector<8x32xf32>
    %973 = arith.mulf %964, %944 : vector<8x32xf32>
    %974 = arith.addf %972, %973 : vector<8x32xf32>
    %975 = vector.shape_cast %948 : vector<8x1xi1> to vector<8x1xi1>
    %976 = vector.broadcast %975 : vector<8x1xi1> to vector<8x32xi1>
    %977 = arith.select %976, %974, %944 : vector<8x32xi1>, vector<8x32xf32>
    %978 = vector.extract_strided_slice %935 {offsets = [0, 32], sizes = [8, 32], strides = [1, 1]} : vector<8x64xf32> to vector<8x32xf32>
    %979 = vector.extract_strided_slice %940 {offsets = [0, 96], sizes = [8, 96], strides = [1, 1]} : vector<8x192xf32> to vector<8x96xf32>
    %980 = vector.extract_strided_slice %943 {offsets = [0, 96], sizes = [8, 96], strides = [1, 1]} : vector<8x192xf32> to vector<8x96xf32>
    %981 = vector.broadcast %936 : i32 to vector<8x1xi32>
    %982 = arith.cmpi slt, %981, %0 : vector<8x1xi32>
    %983 = vector.extract_strided_slice %979 {offsets = [0, 0], sizes = [8, 32], strides = [1, 1]} : vector<8x96xf32> to vector<8x32xf32>
    %984 = vector.extract_strided_slice %980 {offsets = [0, 0], sizes = [8, 32], strides = [1, 1]} : vector<8x96xf32> to vector<8x32xf32>
    %985 = arith.addf %983, %984 : vector<8x32xf32>
    %986 = arith.negf %985 : vector<8x32xf32>
    %987 = math.exp %986 : vector<8x32xf32>
    %cst_142 = arith.constant 1.000000e+00 : f32
    %988 = vector.broadcast %cst_142 : f32 to vector<8x32xf32>
    %989 = arith.addf %988, %987 : vector<8x32xf32>
    %990 = arith.divf %988, %989 : vector<8x32xf32>
    %991 = vector.extract_strided_slice %979 {offsets = [0, 32], sizes = [8, 32], strides = [1, 1]} : vector<8x96xf32> to vector<8x32xf32>
    %992 = vector.extract_strided_slice %980 {offsets = [0, 32], sizes = [8, 32], strides = [1, 1]} : vector<8x96xf32> to vector<8x32xf32>
    %993 = arith.addf %991, %992 : vector<8x32xf32>
    %994 = arith.negf %993 : vector<8x32xf32>
    %995 = math.exp %994 : vector<8x32xf32>
    %cst_143 = arith.constant 1.000000e+00 : f32
    %996 = vector.broadcast %cst_143 : f32 to vector<8x32xf32>
    %997 = arith.addf %996, %995 : vector<8x32xf32>
    %998 = arith.divf %996, %997 : vector<8x32xf32>
    %999 = vector.extract_strided_slice %979 {offsets = [0, 64], sizes = [8, 32], strides = [1, 1]} : vector<8x96xf32> to vector<8x32xf32>
    %1000 = vector.extract_strided_slice %980 {offsets = [0, 64], sizes = [8, 32], strides = [1, 1]} : vector<8x96xf32> to vector<8x32xf32>
    %1001 = arith.mulf %990, %1000 : vector<8x32xf32>
    %1002 = arith.addf %999, %1001 : vector<8x32xf32>
    %1003 = math.tanh %1002 : vector<8x32xf32>
    %cst_144 = arith.constant 1.000000e+00 : f32
    %1004 = vector.broadcast %cst_144 : f32 to vector<8x32xf32>
    %1005 = arith.subf %1004, %998 : vector<8x32xf32>
    %1006 = arith.mulf %1005, %1003 : vector<8x32xf32>
    %1007 = arith.mulf %998, %978 : vector<8x32xf32>
    %1008 = arith.addf %1006, %1007 : vector<8x32xf32>
    %1009 = vector.shape_cast %982 : vector<8x1xi1> to vector<8x1xi1>
    %1010 = vector.broadcast %1009 : vector<8x1xi1> to vector<8x32xi1>
    %1011 = arith.select %1010, %1008, %978 : vector<8x32xi1>, vector<8x32xf32>
    %1012 = tpu.concatenate %977, %1011 in 1 : vector<8x32xf32>, vector<8x32xf32> -> vector<8x64xf32>
    %c13_i32 = arith.constant 13 : i32
    %c15_i32_145 = arith.constant 15 : i32
    %1013 = arith.subi %c15_i32_145, %c13_i32 : i32
    %c8_i32_146 = arith.constant 8 : i32
    %1014 = arith.muli %c13_i32, %c8_i32_146 : i32
    %1015 = tpu.assume_multiple %1014, 8 : i32
    %1016 = arith.index_cast %1015 : i32 to index
    %c0_147 = arith.constant 0 : index
    %1017 = vector.load %arg13[%1016, %c0_147] : memref<128x192xf32, #tpu.memory_space<vmem>>, vector<8x192xf32>
    %cst_148 = arith.constant dense<0.000000e+00> : vector<8x192xf32>
    %1018 = tpu.matmul %1012, %9, %cst_148 {dimension_numbers = #tpu.dot_dimension_numbers<[1], [0], [0], [1], [0, 0, 1, 1], [], []>} : vector<8x64xf32>, vector<64x192xf32>, vector<8x192xf32> -> vector<8x192xf32>
    %1019 = vector.broadcast %10 : vector<1x192xf32> to vector<8x192xf32>
    %1020 = arith.addf %1018, %1019 : vector<8x192xf32>
    %1021 = vector.extract_strided_slice %1012 {offsets = [0, 0], sizes = [8, 32], strides = [1, 1]} : vector<8x64xf32> to vector<8x32xf32>
    %1022 = vector.extract_strided_slice %1017 {offsets = [0, 0], sizes = [8, 96], strides = [1, 1]} : vector<8x192xf32> to vector<8x96xf32>
    %1023 = vector.extract_strided_slice %1020 {offsets = [0, 0], sizes = [8, 96], strides = [1, 1]} : vector<8x192xf32> to vector<8x96xf32>
    %1024 = vector.broadcast %c13_i32 : i32 to vector<8x1xi32>
    %1025 = arith.cmpi slt, %1024, %0 : vector<8x1xi32>
    %1026 = vector.extract_strided_slice %1022 {offsets = [0, 0], sizes = [8, 32], strides = [1, 1]} : vector<8x96xf32> to vector<8x32xf32>
    %1027 = vector.extract_strided_slice %1023 {offsets = [0, 0], sizes = [8, 32], strides = [1, 1]} : vector<8x96xf32> to vector<8x32xf32>
    %1028 = arith.addf %1026, %1027 : vector<8x32xf32>
    %1029 = arith.negf %1028 : vector<8x32xf32>
    %1030 = math.exp %1029 : vector<8x32xf32>
    %cst_149 = arith.constant 1.000000e+00 : f32
    %1031 = vector.broadcast %cst_149 : f32 to vector<8x32xf32>
    %1032 = arith.addf %1031, %1030 : vector<8x32xf32>
    %1033 = arith.divf %1031, %1032 : vector<8x32xf32>
    %1034 = vector.extract_strided_slice %1022 {offsets = [0, 32], sizes = [8, 32], strides = [1, 1]} : vector<8x96xf32> to vector<8x32xf32>
    %1035 = vector.extract_strided_slice %1023 {offsets = [0, 32], sizes = [8, 32], strides = [1, 1]} : vector<8x96xf32> to vector<8x32xf32>
    %1036 = arith.addf %1034, %1035 : vector<8x32xf32>
    %1037 = arith.negf %1036 : vector<8x32xf32>
    %1038 = math.exp %1037 : vector<8x32xf32>
    %cst_150 = arith.constant 1.000000e+00 : f32
    %1039 = vector.broadcast %cst_150 : f32 to vector<8x32xf32>
    %1040 = arith.addf %1039, %1038 : vector<8x32xf32>
    %1041 = arith.divf %1039, %1040 : vector<8x32xf32>
    %1042 = vector.extract_strided_slice %1022 {offsets = [0, 64], sizes = [8, 32], strides = [1, 1]} : vector<8x96xf32> to vector<8x32xf32>
    %1043 = vector.extract_strided_slice %1023 {offsets = [0, 64], sizes = [8, 32], strides = [1, 1]} : vector<8x96xf32> to vector<8x32xf32>
    %1044 = arith.mulf %1033, %1043 : vector<8x32xf32>
    %1045 = arith.addf %1042, %1044 : vector<8x32xf32>
    %1046 = math.tanh %1045 : vector<8x32xf32>
    %cst_151 = arith.constant 1.000000e+00 : f32
    %1047 = vector.broadcast %cst_151 : f32 to vector<8x32xf32>
    %1048 = arith.subf %1047, %1041 : vector<8x32xf32>
    %1049 = arith.mulf %1048, %1046 : vector<8x32xf32>
    %1050 = arith.mulf %1041, %1021 : vector<8x32xf32>
    %1051 = arith.addf %1049, %1050 : vector<8x32xf32>
    %1052 = vector.shape_cast %1025 : vector<8x1xi1> to vector<8x1xi1>
    %1053 = vector.broadcast %1052 : vector<8x1xi1> to vector<8x32xi1>
    %1054 = arith.select %1053, %1051, %1021 : vector<8x32xi1>, vector<8x32xf32>
    %1055 = vector.extract_strided_slice %1012 {offsets = [0, 32], sizes = [8, 32], strides = [1, 1]} : vector<8x64xf32> to vector<8x32xf32>
    %1056 = vector.extract_strided_slice %1017 {offsets = [0, 96], sizes = [8, 96], strides = [1, 1]} : vector<8x192xf32> to vector<8x96xf32>
    %1057 = vector.extract_strided_slice %1020 {offsets = [0, 96], sizes = [8, 96], strides = [1, 1]} : vector<8x192xf32> to vector<8x96xf32>
    %1058 = vector.broadcast %1013 : i32 to vector<8x1xi32>
    %1059 = arith.cmpi slt, %1058, %0 : vector<8x1xi32>
    %1060 = vector.extract_strided_slice %1056 {offsets = [0, 0], sizes = [8, 32], strides = [1, 1]} : vector<8x96xf32> to vector<8x32xf32>
    %1061 = vector.extract_strided_slice %1057 {offsets = [0, 0], sizes = [8, 32], strides = [1, 1]} : vector<8x96xf32> to vector<8x32xf32>
    %1062 = arith.addf %1060, %1061 : vector<8x32xf32>
    %1063 = arith.negf %1062 : vector<8x32xf32>
    %1064 = math.exp %1063 : vector<8x32xf32>
    %cst_152 = arith.constant 1.000000e+00 : f32
    %1065 = vector.broadcast %cst_152 : f32 to vector<8x32xf32>
    %1066 = arith.addf %1065, %1064 : vector<8x32xf32>
    %1067 = arith.divf %1065, %1066 : vector<8x32xf32>
    %1068 = vector.extract_strided_slice %1056 {offsets = [0, 32], sizes = [8, 32], strides = [1, 1]} : vector<8x96xf32> to vector<8x32xf32>
    %1069 = vector.extract_strided_slice %1057 {offsets = [0, 32], sizes = [8, 32], strides = [1, 1]} : vector<8x96xf32> to vector<8x32xf32>
    %1070 = arith.addf %1068, %1069 : vector<8x32xf32>
    %1071 = arith.negf %1070 : vector<8x32xf32>
    %1072 = math.exp %1071 : vector<8x32xf32>
    %cst_153 = arith.constant 1.000000e+00 : f32
    %1073 = vector.broadcast %cst_153 : f32 to vector<8x32xf32>
    %1074 = arith.addf %1073, %1072 : vector<8x32xf32>
    %1075 = arith.divf %1073, %1074 : vector<8x32xf32>
    %1076 = vector.extract_strided_slice %1056 {offsets = [0, 64], sizes = [8, 32], strides = [1, 1]} : vector<8x96xf32> to vector<8x32xf32>
    %1077 = vector.extract_strided_slice %1057 {offsets = [0, 64], sizes = [8, 32], strides = [1, 1]} : vector<8x96xf32> to vector<8x32xf32>
    %1078 = arith.mulf %1067, %1077 : vector<8x32xf32>
    %1079 = arith.addf %1076, %1078 : vector<8x32xf32>
    %1080 = math.tanh %1079 : vector<8x32xf32>
    %cst_154 = arith.constant 1.000000e+00 : f32
    %1081 = vector.broadcast %cst_154 : f32 to vector<8x32xf32>
    %1082 = arith.subf %1081, %1075 : vector<8x32xf32>
    %1083 = arith.mulf %1082, %1080 : vector<8x32xf32>
    %1084 = arith.mulf %1075, %1055 : vector<8x32xf32>
    %1085 = arith.addf %1083, %1084 : vector<8x32xf32>
    %1086 = vector.shape_cast %1059 : vector<8x1xi1> to vector<8x1xi1>
    %1087 = vector.broadcast %1086 : vector<8x1xi1> to vector<8x32xi1>
    %1088 = arith.select %1087, %1085, %1055 : vector<8x32xi1>, vector<8x32xf32>
    %1089 = tpu.concatenate %1054, %1088 in 1 : vector<8x32xf32>, vector<8x32xf32> -> vector<8x64xf32>
    %c14_i32 = arith.constant 14 : i32
    %c15_i32_155 = arith.constant 15 : i32
    %1090 = arith.subi %c15_i32_155, %c14_i32 : i32
    %c8_i32_156 = arith.constant 8 : i32
    %1091 = arith.muli %c14_i32, %c8_i32_156 : i32
    %1092 = tpu.assume_multiple %1091, 8 : i32
    %1093 = arith.index_cast %1092 : i32 to index
    %c0_157 = arith.constant 0 : index
    %1094 = vector.load %arg13[%1093, %c0_157] : memref<128x192xf32, #tpu.memory_space<vmem>>, vector<8x192xf32>
    %cst_158 = arith.constant dense<0.000000e+00> : vector<8x192xf32>
    %1095 = tpu.matmul %1089, %9, %cst_158 {dimension_numbers = #tpu.dot_dimension_numbers<[1], [0], [0], [1], [0, 0, 1, 1], [], []>} : vector<8x64xf32>, vector<64x192xf32>, vector<8x192xf32> -> vector<8x192xf32>
    %1096 = vector.broadcast %10 : vector<1x192xf32> to vector<8x192xf32>
    %1097 = arith.addf %1095, %1096 : vector<8x192xf32>
    %1098 = vector.extract_strided_slice %1089 {offsets = [0, 0], sizes = [8, 32], strides = [1, 1]} : vector<8x64xf32> to vector<8x32xf32>
    %1099 = vector.extract_strided_slice %1094 {offsets = [0, 0], sizes = [8, 96], strides = [1, 1]} : vector<8x192xf32> to vector<8x96xf32>
    %1100 = vector.extract_strided_slice %1097 {offsets = [0, 0], sizes = [8, 96], strides = [1, 1]} : vector<8x192xf32> to vector<8x96xf32>
    %1101 = vector.broadcast %c14_i32 : i32 to vector<8x1xi32>
    %1102 = arith.cmpi slt, %1101, %0 : vector<8x1xi32>
    %1103 = vector.extract_strided_slice %1099 {offsets = [0, 0], sizes = [8, 32], strides = [1, 1]} : vector<8x96xf32> to vector<8x32xf32>
    %1104 = vector.extract_strided_slice %1100 {offsets = [0, 0], sizes = [8, 32], strides = [1, 1]} : vector<8x96xf32> to vector<8x32xf32>
    %1105 = arith.addf %1103, %1104 : vector<8x32xf32>
    %1106 = arith.negf %1105 : vector<8x32xf32>
    %1107 = math.exp %1106 : vector<8x32xf32>
    %cst_159 = arith.constant 1.000000e+00 : f32
    %1108 = vector.broadcast %cst_159 : f32 to vector<8x32xf32>
    %1109 = arith.addf %1108, %1107 : vector<8x32xf32>
    %1110 = arith.divf %1108, %1109 : vector<8x32xf32>
    %1111 = vector.extract_strided_slice %1099 {offsets = [0, 32], sizes = [8, 32], strides = [1, 1]} : vector<8x96xf32> to vector<8x32xf32>
    %1112 = vector.extract_strided_slice %1100 {offsets = [0, 32], sizes = [8, 32], strides = [1, 1]} : vector<8x96xf32> to vector<8x32xf32>
    %1113 = arith.addf %1111, %1112 : vector<8x32xf32>
    %1114 = arith.negf %1113 : vector<8x32xf32>
    %1115 = math.exp %1114 : vector<8x32xf32>
    %cst_160 = arith.constant 1.000000e+00 : f32
    %1116 = vector.broadcast %cst_160 : f32 to vector<8x32xf32>
    %1117 = arith.addf %1116, %1115 : vector<8x32xf32>
    %1118 = arith.divf %1116, %1117 : vector<8x32xf32>
    %1119 = vector.extract_strided_slice %1099 {offsets = [0, 64], sizes = [8, 32], strides = [1, 1]} : vector<8x96xf32> to vector<8x32xf32>
    %1120 = vector.extract_strided_slice %1100 {offsets = [0, 64], sizes = [8, 32], strides = [1, 1]} : vector<8x96xf32> to vector<8x32xf32>
    %1121 = arith.mulf %1110, %1120 : vector<8x32xf32>
    %1122 = arith.addf %1119, %1121 : vector<8x32xf32>
    %1123 = math.tanh %1122 : vector<8x32xf32>
    %cst_161 = arith.constant 1.000000e+00 : f32
    %1124 = vector.broadcast %cst_161 : f32 to vector<8x32xf32>
    %1125 = arith.subf %1124, %1118 : vector<8x32xf32>
    %1126 = arith.mulf %1125, %1123 : vector<8x32xf32>
    %1127 = arith.mulf %1118, %1098 : vector<8x32xf32>
    %1128 = arith.addf %1126, %1127 : vector<8x32xf32>
    %1129 = vector.shape_cast %1102 : vector<8x1xi1> to vector<8x1xi1>
    %1130 = vector.broadcast %1129 : vector<8x1xi1> to vector<8x32xi1>
    %1131 = arith.select %1130, %1128, %1098 : vector<8x32xi1>, vector<8x32xf32>
    %1132 = vector.extract_strided_slice %1089 {offsets = [0, 32], sizes = [8, 32], strides = [1, 1]} : vector<8x64xf32> to vector<8x32xf32>
    %1133 = vector.extract_strided_slice %1094 {offsets = [0, 96], sizes = [8, 96], strides = [1, 1]} : vector<8x192xf32> to vector<8x96xf32>
    %1134 = vector.extract_strided_slice %1097 {offsets = [0, 96], sizes = [8, 96], strides = [1, 1]} : vector<8x192xf32> to vector<8x96xf32>
    %1135 = vector.broadcast %1090 : i32 to vector<8x1xi32>
    %1136 = arith.cmpi slt, %1135, %0 : vector<8x1xi32>
    %1137 = vector.extract_strided_slice %1133 {offsets = [0, 0], sizes = [8, 32], strides = [1, 1]} : vector<8x96xf32> to vector<8x32xf32>
    %1138 = vector.extract_strided_slice %1134 {offsets = [0, 0], sizes = [8, 32], strides = [1, 1]} : vector<8x96xf32> to vector<8x32xf32>
    %1139 = arith.addf %1137, %1138 : vector<8x32xf32>
    %1140 = arith.negf %1139 : vector<8x32xf32>
    %1141 = math.exp %1140 : vector<8x32xf32>
    %cst_162 = arith.constant 1.000000e+00 : f32
    %1142 = vector.broadcast %cst_162 : f32 to vector<8x32xf32>
    %1143 = arith.addf %1142, %1141 : vector<8x32xf32>
    %1144 = arith.divf %1142, %1143 : vector<8x32xf32>
    %1145 = vector.extract_strided_slice %1133 {offsets = [0, 32], sizes = [8, 32], strides = [1, 1]} : vector<8x96xf32> to vector<8x32xf32>
    %1146 = vector.extract_strided_slice %1134 {offsets = [0, 32], sizes = [8, 32], strides = [1, 1]} : vector<8x96xf32> to vector<8x32xf32>
    %1147 = arith.addf %1145, %1146 : vector<8x32xf32>
    %1148 = arith.negf %1147 : vector<8x32xf32>
    %1149 = math.exp %1148 : vector<8x32xf32>
    %cst_163 = arith.constant 1.000000e+00 : f32
    %1150 = vector.broadcast %cst_163 : f32 to vector<8x32xf32>
    %1151 = arith.addf %1150, %1149 : vector<8x32xf32>
    %1152 = arith.divf %1150, %1151 : vector<8x32xf32>
    %1153 = vector.extract_strided_slice %1133 {offsets = [0, 64], sizes = [8, 32], strides = [1, 1]} : vector<8x96xf32> to vector<8x32xf32>
    %1154 = vector.extract_strided_slice %1134 {offsets = [0, 64], sizes = [8, 32], strides = [1, 1]} : vector<8x96xf32> to vector<8x32xf32>
    %1155 = arith.mulf %1144, %1154 : vector<8x32xf32>
    %1156 = arith.addf %1153, %1155 : vector<8x32xf32>
    %1157 = math.tanh %1156 : vector<8x32xf32>
    %cst_164 = arith.constant 1.000000e+00 : f32
    %1158 = vector.broadcast %cst_164 : f32 to vector<8x32xf32>
    %1159 = arith.subf %1158, %1152 : vector<8x32xf32>
    %1160 = arith.mulf %1159, %1157 : vector<8x32xf32>
    %1161 = arith.mulf %1152, %1132 : vector<8x32xf32>
    %1162 = arith.addf %1160, %1161 : vector<8x32xf32>
    %1163 = vector.shape_cast %1136 : vector<8x1xi1> to vector<8x1xi1>
    %1164 = vector.broadcast %1163 : vector<8x1xi1> to vector<8x32xi1>
    %1165 = arith.select %1164, %1162, %1132 : vector<8x32xi1>, vector<8x32xf32>
    %1166 = tpu.concatenate %1131, %1165 in 1 : vector<8x32xf32>, vector<8x32xf32> -> vector<8x64xf32>
    %c15_i32_165 = arith.constant 15 : i32
    %c15_i32_166 = arith.constant 15 : i32
    %1167 = arith.subi %c15_i32_166, %c15_i32_165 : i32
    %c8_i32_167 = arith.constant 8 : i32
    %1168 = arith.muli %c15_i32_165, %c8_i32_167 : i32
    %1169 = tpu.assume_multiple %1168, 8 : i32
    %1170 = arith.index_cast %1169 : i32 to index
    %c0_168 = arith.constant 0 : index
    %1171 = vector.load %arg13[%1170, %c0_168] : memref<128x192xf32, #tpu.memory_space<vmem>>, vector<8x192xf32>
    %cst_169 = arith.constant dense<0.000000e+00> : vector<8x192xf32>
    %1172 = tpu.matmul %1166, %9, %cst_169 {dimension_numbers = #tpu.dot_dimension_numbers<[1], [0], [0], [1], [0, 0, 1, 1], [], []>} : vector<8x64xf32>, vector<64x192xf32>, vector<8x192xf32> -> vector<8x192xf32>
    %1173 = vector.broadcast %10 : vector<1x192xf32> to vector<8x192xf32>
    %1174 = arith.addf %1172, %1173 : vector<8x192xf32>
    %1175 = vector.extract_strided_slice %1166 {offsets = [0, 0], sizes = [8, 32], strides = [1, 1]} : vector<8x64xf32> to vector<8x32xf32>
    %1176 = vector.extract_strided_slice %1171 {offsets = [0, 0], sizes = [8, 96], strides = [1, 1]} : vector<8x192xf32> to vector<8x96xf32>
    %1177 = vector.extract_strided_slice %1174 {offsets = [0, 0], sizes = [8, 96], strides = [1, 1]} : vector<8x192xf32> to vector<8x96xf32>
    %1178 = vector.broadcast %c15_i32_165 : i32 to vector<8x1xi32>
    %1179 = arith.cmpi slt, %1178, %0 : vector<8x1xi32>
    %1180 = vector.extract_strided_slice %1176 {offsets = [0, 0], sizes = [8, 32], strides = [1, 1]} : vector<8x96xf32> to vector<8x32xf32>
    %1181 = vector.extract_strided_slice %1177 {offsets = [0, 0], sizes = [8, 32], strides = [1, 1]} : vector<8x96xf32> to vector<8x32xf32>
    %1182 = arith.addf %1180, %1181 : vector<8x32xf32>
    %1183 = arith.negf %1182 : vector<8x32xf32>
    %1184 = math.exp %1183 : vector<8x32xf32>
    %cst_170 = arith.constant 1.000000e+00 : f32
    %1185 = vector.broadcast %cst_170 : f32 to vector<8x32xf32>
    %1186 = arith.addf %1185, %1184 : vector<8x32xf32>
    %1187 = arith.divf %1185, %1186 : vector<8x32xf32>
    %1188 = vector.extract_strided_slice %1176 {offsets = [0, 32], sizes = [8, 32], strides = [1, 1]} : vector<8x96xf32> to vector<8x32xf32>
    %1189 = vector.extract_strided_slice %1177 {offsets = [0, 32], sizes = [8, 32], strides = [1, 1]} : vector<8x96xf32> to vector<8x32xf32>
    %1190 = arith.addf %1188, %1189 : vector<8x32xf32>
    %1191 = arith.negf %1190 : vector<8x32xf32>
    %1192 = math.exp %1191 : vector<8x32xf32>
    %cst_171 = arith.constant 1.000000e+00 : f32
    %1193 = vector.broadcast %cst_171 : f32 to vector<8x32xf32>
    %1194 = arith.addf %1193, %1192 : vector<8x32xf32>
    %1195 = arith.divf %1193, %1194 : vector<8x32xf32>
    %1196 = vector.extract_strided_slice %1176 {offsets = [0, 64], sizes = [8, 32], strides = [1, 1]} : vector<8x96xf32> to vector<8x32xf32>
    %1197 = vector.extract_strided_slice %1177 {offsets = [0, 64], sizes = [8, 32], strides = [1, 1]} : vector<8x96xf32> to vector<8x32xf32>
    %1198 = arith.mulf %1187, %1197 : vector<8x32xf32>
    %1199 = arith.addf %1196, %1198 : vector<8x32xf32>
    %1200 = math.tanh %1199 : vector<8x32xf32>
    %cst_172 = arith.constant 1.000000e+00 : f32
    %1201 = vector.broadcast %cst_172 : f32 to vector<8x32xf32>
    %1202 = arith.subf %1201, %1195 : vector<8x32xf32>
    %1203 = arith.mulf %1202, %1200 : vector<8x32xf32>
    %1204 = arith.mulf %1195, %1175 : vector<8x32xf32>
    %1205 = arith.addf %1203, %1204 : vector<8x32xf32>
    %1206 = vector.shape_cast %1179 : vector<8x1xi1> to vector<8x1xi1>
    %1207 = vector.broadcast %1206 : vector<8x1xi1> to vector<8x32xi1>
    %1208 = arith.select %1207, %1205, %1175 : vector<8x32xi1>, vector<8x32xf32>
    %1209 = vector.extract_strided_slice %1166 {offsets = [0, 32], sizes = [8, 32], strides = [1, 1]} : vector<8x64xf32> to vector<8x32xf32>
    %1210 = vector.extract_strided_slice %1171 {offsets = [0, 96], sizes = [8, 96], strides = [1, 1]} : vector<8x192xf32> to vector<8x96xf32>
    %1211 = vector.extract_strided_slice %1174 {offsets = [0, 96], sizes = [8, 96], strides = [1, 1]} : vector<8x192xf32> to vector<8x96xf32>
    %1212 = vector.broadcast %1167 : i32 to vector<8x1xi32>
    %1213 = arith.cmpi slt, %1212, %0 : vector<8x1xi32>
    %1214 = vector.extract_strided_slice %1210 {offsets = [0, 0], sizes = [8, 32], strides = [1, 1]} : vector<8x96xf32> to vector<8x32xf32>
    %1215 = vector.extract_strided_slice %1211 {offsets = [0, 0], sizes = [8, 32], strides = [1, 1]} : vector<8x96xf32> to vector<8x32xf32>
    %1216 = arith.addf %1214, %1215 : vector<8x32xf32>
    %1217 = arith.negf %1216 : vector<8x32xf32>
    %1218 = math.exp %1217 : vector<8x32xf32>
    %cst_173 = arith.constant 1.000000e+00 : f32
    %1219 = vector.broadcast %cst_173 : f32 to vector<8x32xf32>
    %1220 = arith.addf %1219, %1218 : vector<8x32xf32>
    %1221 = arith.divf %1219, %1220 : vector<8x32xf32>
    %1222 = vector.extract_strided_slice %1210 {offsets = [0, 32], sizes = [8, 32], strides = [1, 1]} : vector<8x96xf32> to vector<8x32xf32>
    %1223 = vector.extract_strided_slice %1211 {offsets = [0, 32], sizes = [8, 32], strides = [1, 1]} : vector<8x96xf32> to vector<8x32xf32>
    %1224 = arith.addf %1222, %1223 : vector<8x32xf32>
    %1225 = arith.negf %1224 : vector<8x32xf32>
    %1226 = math.exp %1225 : vector<8x32xf32>
    %cst_174 = arith.constant 1.000000e+00 : f32
    %1227 = vector.broadcast %cst_174 : f32 to vector<8x32xf32>
    %1228 = arith.addf %1227, %1226 : vector<8x32xf32>
    %1229 = arith.divf %1227, %1228 : vector<8x32xf32>
    %1230 = vector.extract_strided_slice %1210 {offsets = [0, 64], sizes = [8, 32], strides = [1, 1]} : vector<8x96xf32> to vector<8x32xf32>
    %1231 = vector.extract_strided_slice %1211 {offsets = [0, 64], sizes = [8, 32], strides = [1, 1]} : vector<8x96xf32> to vector<8x32xf32>
    %1232 = arith.mulf %1221, %1231 : vector<8x32xf32>
    %1233 = arith.addf %1230, %1232 : vector<8x32xf32>
    %1234 = math.tanh %1233 : vector<8x32xf32>
    %cst_175 = arith.constant 1.000000e+00 : f32
    %1235 = vector.broadcast %cst_175 : f32 to vector<8x32xf32>
    %1236 = arith.subf %1235, %1229 : vector<8x32xf32>
    %1237 = arith.mulf %1236, %1234 : vector<8x32xf32>
    %1238 = arith.mulf %1229, %1209 : vector<8x32xf32>
    %1239 = arith.addf %1237, %1238 : vector<8x32xf32>
    %1240 = vector.shape_cast %1213 : vector<8x1xi1> to vector<8x1xi1>
    %1241 = vector.broadcast %1240 : vector<8x1xi1> to vector<8x32xi1>
    %1242 = arith.select %1241, %1239, %1209 : vector<8x32xi1>, vector<8x32xf32>
    %1243 = tpu.concatenate %1208, %1242 in 1 : vector<8x32xf32>, vector<8x32xf32> -> vector<8x64xf32>
    %c16_i32 = arith.constant 16 : i32
    %1244 = vector.extract_strided_slice %1243 {offsets = [0, 0], sizes = [8, 32], strides = [1, 1]} : vector<8x64xf32> to vector<8x32xf32>
    %1245 = vector.extract_strided_slice %1243 {offsets = [0, 32], sizes = [8, 32], strides = [1, 1]} : vector<8x64xf32> to vector<8x32xf32>
    %1246 = arith.addf %1244, %1245 : vector<8x32xf32>
    %c0_176 = arith.constant 0 : index
    %c0_177 = arith.constant 0 : index
    %1247 = vector.load %arg3[%c0_176, %c0_177] : memref<64x8xf32, #tpu.memory_space<vmem>>, vector<64x8xf32>
    %cst_178 = arith.constant dense<0.000000e+00> : vector<64x32xf32>
    %1248 = tpu.matmul %1247, %1246, %cst_178 {dimension_numbers = #tpu.dot_dimension_numbers<[1], [0], [0], [1], [0, 0, 1, 1], [], []>} : vector<64x8xf32>, vector<8x32xf32>, vector<64x32xf32> -> vector<64x32xf32>
    %c0_179 = arith.constant 0 : index
    %c0_180 = arith.constant 0 : index
    %1249 = vector.load %arg8[%c0_179, %c0_180] : memref<32x96xf32, #tpu.memory_space<vmem>>, vector<32x96xf32>
    %cst_181 = arith.constant dense<0.000000e+00> : vector<64x96xf32>
    %1250 = tpu.matmul %1248, %1249, %cst_181 {dimension_numbers = #tpu.dot_dimension_numbers<[1], [0], [0], [1], [0, 0, 1, 1], [], []>} : vector<64x32xf32>, vector<32x96xf32>, vector<64x96xf32> -> vector<64x96xf32>
    %c0_182 = arith.constant 0 : index
    %c0_183 = arith.constant 0 : index
    %1251 = vector.load %arg10[%c0_182, %c0_183] : memref<1x96xf32, #tpu.memory_space<vmem>>, vector<1x96xf32>
    %1252 = vector.broadcast %1251 : vector<1x96xf32> to vector<64x96xf32>
    %1253 = arith.addf %1250, %1252 : vector<64x96xf32>
    %c0_184 = arith.constant 0 : index
    %c0_185 = arith.constant 0 : index
    %1254 = vector.load %arg14[%c0_184, %c0_185] : memref<64x96xf32, #tpu.memory_space<vmem>>, vector<64x96xf32>
    tpu.vector_store %arg14[%c0_184, %c0_185], %1253 {strides = array<i32>} : memref<64x96xf32, #tpu.memory_space<vmem>>, vector<64x96xf32>,
    %c0_186 = arith.constant 0 : index
    %c0_187 = arith.constant 0 : index
    %1255 = vector.load %arg9[%c0_186, %c0_187] : memref<32x96xf32, #tpu.memory_space<vmem>>, vector<32x96xf32>
    %c0_188 = arith.constant 0 : index
    %c0_189 = arith.constant 0 : index
    %1256 = vector.load %arg11[%c0_188, %c0_189] : memref<1x96xf32, #tpu.memory_space<vmem>>, vector<1x96xf32>
    %cst_190 = arith.constant 0.000000e+00 : f32
    %1257 = vector.broadcast %cst_190 : f32 to vector<8x32xf32>
    %c0_i32_191 = arith.constant 0 : i32
    %c8_i32_192 = arith.constant 8 : i32
    %1258 = arith.muli %c0_i32_191, %c8_i32_192 : i32
    %1259 = tpu.assume_multiple %1258, 8 : i32
    %1260 = arith.index_cast %1259 : i32 to index
    %c0_193 = arith.constant 0 : index
    %1261 = vector.load %arg14[%1260, %c0_193] : memref<64x96xf32, #tpu.memory_space<vmem>>, vector<8x96xf32>
    %cst_194 = arith.constant dense<0.000000e+00> : vector<8x96xf32>
    %1262 = tpu.matmul %1257, %1255, %cst_194 {dimension_numbers = #tpu.dot_dimension_numbers<[1], [0], [0], [1], [0, 0, 1, 1], [], []>} : vector<8x32xf32>, vector<32x96xf32>, vector<8x96xf32> -> vector<8x96xf32>
    %1263 = vector.broadcast %1256 : vector<1x96xf32> to vector<8x96xf32>
    %1264 = arith.addf %1262, %1263 : vector<8x96xf32>
    %1265 = vector.broadcast %c0_i32_191 : i32 to vector<8x1xi32>
    %1266 = arith.cmpi slt, %1265, %1 : vector<8x1xi32>
    %1267 = vector.extract_strided_slice %1261 {offsets = [0, 0], sizes = [8, 32], strides = [1, 1]} : vector<8x96xf32> to vector<8x32xf32>
    %1268 = vector.extract_strided_slice %1264 {offsets = [0, 0], sizes = [8, 32], strides = [1, 1]} : vector<8x96xf32> to vector<8x32xf32>
    %1269 = arith.addf %1267, %1268 : vector<8x32xf32>
    %1270 = arith.negf %1269 : vector<8x32xf32>
    %1271 = math.exp %1270 : vector<8x32xf32>
    %cst_195 = arith.constant 1.000000e+00 : f32
    %1272 = vector.broadcast %cst_195 : f32 to vector<8x32xf32>
    %1273 = arith.addf %1272, %1271 : vector<8x32xf32>
    %1274 = arith.divf %1272, %1273 : vector<8x32xf32>
    %1275 = vector.extract_strided_slice %1261 {offsets = [0, 32], sizes = [8, 32], strides = [1, 1]} : vector<8x96xf32> to vector<8x32xf32>
    %1276 = vector.extract_strided_slice %1264 {offsets = [0, 32], sizes = [8, 32], strides = [1, 1]} : vector<8x96xf32> to vector<8x32xf32>
    %1277 = arith.addf %1275, %1276 : vector<8x32xf32>
    %1278 = arith.negf %1277 : vector<8x32xf32>
    %1279 = math.exp %1278 : vector<8x32xf32>
    %cst_196 = arith.constant 1.000000e+00 : f32
    %1280 = vector.broadcast %cst_196 : f32 to vector<8x32xf32>
    %1281 = arith.addf %1280, %1279 : vector<8x32xf32>
    %1282 = arith.divf %1280, %1281 : vector<8x32xf32>
    %1283 = vector.extract_strided_slice %1261 {offsets = [0, 64], sizes = [8, 32], strides = [1, 1]} : vector<8x96xf32> to vector<8x32xf32>
    %1284 = vector.extract_strided_slice %1264 {offsets = [0, 64], sizes = [8, 32], strides = [1, 1]} : vector<8x96xf32> to vector<8x32xf32>
    %1285 = arith.mulf %1274, %1284 : vector<8x32xf32>
    %1286 = arith.addf %1283, %1285 : vector<8x32xf32>
    %1287 = math.tanh %1286 : vector<8x32xf32>
    %cst_197 = arith.constant 1.000000e+00 : f32
    %1288 = vector.broadcast %cst_197 : f32 to vector<8x32xf32>
    %1289 = arith.subf %1288, %1282 : vector<8x32xf32>
    %1290 = arith.mulf %1289, %1287 : vector<8x32xf32>
    %1291 = arith.mulf %1282, %1257 : vector<8x32xf32>
    %1292 = arith.addf %1290, %1291 : vector<8x32xf32>
    %1293 = vector.shape_cast %1266 : vector<8x1xi1> to vector<8x1xi1>
    %1294 = vector.broadcast %1293 : vector<8x1xi1> to vector<8x32xi1>
    %1295 = arith.select %1294, %1292, %1257 : vector<8x32xi1>, vector<8x32xf32>
    %c1_i32_198 = arith.constant 1 : i32
    %c8_i32_199 = arith.constant 8 : i32
    %1296 = arith.muli %c1_i32_198, %c8_i32_199 : i32
    %1297 = tpu.assume_multiple %1296, 8 : i32
    %1298 = arith.index_cast %1297 : i32 to index
    %c0_200 = arith.constant 0 : index
    %1299 = vector.load %arg14[%1298, %c0_200] : memref<64x96xf32, #tpu.memory_space<vmem>>, vector<8x96xf32>
    %cst_201 = arith.constant dense<0.000000e+00> : vector<8x96xf32>
    %1300 = tpu.matmul %1295, %1255, %cst_201 {dimension_numbers = #tpu.dot_dimension_numbers<[1], [0], [0], [1], [0, 0, 1, 1], [], []>} : vector<8x32xf32>, vector<32x96xf32>, vector<8x96xf32> -> vector<8x96xf32>
    %1301 = vector.broadcast %1256 : vector<1x96xf32> to vector<8x96xf32>
    %1302 = arith.addf %1300, %1301 : vector<8x96xf32>
    %1303 = vector.broadcast %c1_i32_198 : i32 to vector<8x1xi32>
    %1304 = arith.cmpi slt, %1303, %1 : vector<8x1xi32>
    %1305 = vector.extract_strided_slice %1299 {offsets = [0, 0], sizes = [8, 32], strides = [1, 1]} : vector<8x96xf32> to vector<8x32xf32>
    %1306 = vector.extract_strided_slice %1302 {offsets = [0, 0], sizes = [8, 32], strides = [1, 1]} : vector<8x96xf32> to vector<8x32xf32>
    %1307 = arith.addf %1305, %1306 : vector<8x32xf32>
    %1308 = arith.negf %1307 : vector<8x32xf32>
    %1309 = math.exp %1308 : vector<8x32xf32>
    %cst_202 = arith.constant 1.000000e+00 : f32
    %1310 = vector.broadcast %cst_202 : f32 to vector<8x32xf32>
    %1311 = arith.addf %1310, %1309 : vector<8x32xf32>
    %1312 = arith.divf %1310, %1311 : vector<8x32xf32>
    %1313 = vector.extract_strided_slice %1299 {offsets = [0, 32], sizes = [8, 32], strides = [1, 1]} : vector<8x96xf32> to vector<8x32xf32>
    %1314 = vector.extract_strided_slice %1302 {offsets = [0, 32], sizes = [8, 32], strides = [1, 1]} : vector<8x96xf32> to vector<8x32xf32>
    %1315 = arith.addf %1313, %1314 : vector<8x32xf32>
    %1316 = arith.negf %1315 : vector<8x32xf32>
    %1317 = math.exp %1316 : vector<8x32xf32>
    %cst_203 = arith.constant 1.000000e+00 : f32
    %1318 = vector.broadcast %cst_203 : f32 to vector<8x32xf32>
    %1319 = arith.addf %1318, %1317 : vector<8x32xf32>
    %1320 = arith.divf %1318, %1319 : vector<8x32xf32>
    %1321 = vector.extract_strided_slice %1299 {offsets = [0, 64], sizes = [8, 32], strides = [1, 1]} : vector<8x96xf32> to vector<8x32xf32>
    %1322 = vector.extract_strided_slice %1302 {offsets = [0, 64], sizes = [8, 32], strides = [1, 1]} : vector<8x96xf32> to vector<8x32xf32>
    %1323 = arith.mulf %1312, %1322 : vector<8x32xf32>
    %1324 = arith.addf %1321, %1323 : vector<8x32xf32>
    %1325 = math.tanh %1324 : vector<8x32xf32>
    %cst_204 = arith.constant 1.000000e+00 : f32
    %1326 = vector.broadcast %cst_204 : f32 to vector<8x32xf32>
    %1327 = arith.subf %1326, %1320 : vector<8x32xf32>
    %1328 = arith.mulf %1327, %1325 : vector<8x32xf32>
    %1329 = arith.mulf %1320, %1295 : vector<8x32xf32>
    %1330 = arith.addf %1328, %1329 : vector<8x32xf32>
    %1331 = vector.shape_cast %1304 : vector<8x1xi1> to vector<8x1xi1>
    %1332 = vector.broadcast %1331 : vector<8x1xi1> to vector<8x32xi1>
    %1333 = arith.select %1332, %1330, %1295 : vector<8x32xi1>, vector<8x32xf32>
    %c2_i32_205 = arith.constant 2 : i32
    %c8_i32_206 = arith.constant 8 : i32
    %1334 = arith.muli %c2_i32_205, %c8_i32_206 : i32
    %1335 = tpu.assume_multiple %1334, 8 : i32
    %1336 = arith.index_cast %1335 : i32 to index
    %c0_207 = arith.constant 0 : index
    %1337 = vector.load %arg14[%1336, %c0_207] : memref<64x96xf32, #tpu.memory_space<vmem>>, vector<8x96xf32>
    %cst_208 = arith.constant dense<0.000000e+00> : vector<8x96xf32>
    %1338 = tpu.matmul %1333, %1255, %cst_208 {dimension_numbers = #tpu.dot_dimension_numbers<[1], [0], [0], [1], [0, 0, 1, 1], [], []>} : vector<8x32xf32>, vector<32x96xf32>, vector<8x96xf32> -> vector<8x96xf32>
    %1339 = vector.broadcast %1256 : vector<1x96xf32> to vector<8x96xf32>
    %1340 = arith.addf %1338, %1339 : vector<8x96xf32>
    %1341 = vector.broadcast %c2_i32_205 : i32 to vector<8x1xi32>
    %1342 = arith.cmpi slt, %1341, %1 : vector<8x1xi32>
    %1343 = vector.extract_strided_slice %1337 {offsets = [0, 0], sizes = [8, 32], strides = [1, 1]} : vector<8x96xf32> to vector<8x32xf32>
    %1344 = vector.extract_strided_slice %1340 {offsets = [0, 0], sizes = [8, 32], strides = [1, 1]} : vector<8x96xf32> to vector<8x32xf32>
    %1345 = arith.addf %1343, %1344 : vector<8x32xf32>
    %1346 = arith.negf %1345 : vector<8x32xf32>
    %1347 = math.exp %1346 : vector<8x32xf32>
    %cst_209 = arith.constant 1.000000e+00 : f32
    %1348 = vector.broadcast %cst_209 : f32 to vector<8x32xf32>
    %1349 = arith.addf %1348, %1347 : vector<8x32xf32>
    %1350 = arith.divf %1348, %1349 : vector<8x32xf32>
    %1351 = vector.extract_strided_slice %1337 {offsets = [0, 32], sizes = [8, 32], strides = [1, 1]} : vector<8x96xf32> to vector<8x32xf32>
    %1352 = vector.extract_strided_slice %1340 {offsets = [0, 32], sizes = [8, 32], strides = [1, 1]} : vector<8x96xf32> to vector<8x32xf32>
    %1353 = arith.addf %1351, %1352 : vector<8x32xf32>
    %1354 = arith.negf %1353 : vector<8x32xf32>
    %1355 = math.exp %1354 : vector<8x32xf32>
    %cst_210 = arith.constant 1.000000e+00 : f32
    %1356 = vector.broadcast %cst_210 : f32 to vector<8x32xf32>
    %1357 = arith.addf %1356, %1355 : vector<8x32xf32>
    %1358 = arith.divf %1356, %1357 : vector<8x32xf32>
    %1359 = vector.extract_strided_slice %1337 {offsets = [0, 64], sizes = [8, 32], strides = [1, 1]} : vector<8x96xf32> to vector<8x32xf32>
    %1360 = vector.extract_strided_slice %1340 {offsets = [0, 64], sizes = [8, 32], strides = [1, 1]} : vector<8x96xf32> to vector<8x32xf32>
    %1361 = arith.mulf %1350, %1360 : vector<8x32xf32>
    %1362 = arith.addf %1359, %1361 : vector<8x32xf32>
    %1363 = math.tanh %1362 : vector<8x32xf32>
    %cst_211 = arith.constant 1.000000e+00 : f32
    %1364 = vector.broadcast %cst_211 : f32 to vector<8x32xf32>
    %1365 = arith.subf %1364, %1358 : vector<8x32xf32>
    %1366 = arith.mulf %1365, %1363 : vector<8x32xf32>
    %1367 = arith.mulf %1358, %1333 : vector<8x32xf32>
    %1368 = arith.addf %1366, %1367 : vector<8x32xf32>
    %1369 = vector.shape_cast %1342 : vector<8x1xi1> to vector<8x1xi1>
    %1370 = vector.broadcast %1369 : vector<8x1xi1> to vector<8x32xi1>
    %1371 = arith.select %1370, %1368, %1333 : vector<8x32xi1>, vector<8x32xf32>
    %c3_i32_212 = arith.constant 3 : i32
    %c8_i32_213 = arith.constant 8 : i32
    %1372 = arith.muli %c3_i32_212, %c8_i32_213 : i32
    %1373 = tpu.assume_multiple %1372, 8 : i32
    %1374 = arith.index_cast %1373 : i32 to index
    %c0_214 = arith.constant 0 : index
    %1375 = vector.load %arg14[%1374, %c0_214] : memref<64x96xf32, #tpu.memory_space<vmem>>, vector<8x96xf32>
    %cst_215 = arith.constant dense<0.000000e+00> : vector<8x96xf32>
    %1376 = tpu.matmul %1371, %1255, %cst_215 {dimension_numbers = #tpu.dot_dimension_numbers<[1], [0], [0], [1], [0, 0, 1, 1], [], []>} : vector<8x32xf32>, vector<32x96xf32>, vector<8x96xf32> -> vector<8x96xf32>
    %1377 = vector.broadcast %1256 : vector<1x96xf32> to vector<8x96xf32>
    %1378 = arith.addf %1376, %1377 : vector<8x96xf32>
    %1379 = vector.broadcast %c3_i32_212 : i32 to vector<8x1xi32>
    %1380 = arith.cmpi slt, %1379, %1 : vector<8x1xi32>
    %1381 = vector.extract_strided_slice %1375 {offsets = [0, 0], sizes = [8, 32], strides = [1, 1]} : vector<8x96xf32> to vector<8x32xf32>
    %1382 = vector.extract_strided_slice %1378 {offsets = [0, 0], sizes = [8, 32], strides = [1, 1]} : vector<8x96xf32> to vector<8x32xf32>
    %1383 = arith.addf %1381, %1382 : vector<8x32xf32>
    %1384 = arith.negf %1383 : vector<8x32xf32>
    %1385 = math.exp %1384 : vector<8x32xf32>
    %cst_216 = arith.constant 1.000000e+00 : f32
    %1386 = vector.broadcast %cst_216 : f32 to vector<8x32xf32>
    %1387 = arith.addf %1386, %1385 : vector<8x32xf32>
    %1388 = arith.divf %1386, %1387 : vector<8x32xf32>
    %1389 = vector.extract_strided_slice %1375 {offsets = [0, 32], sizes = [8, 32], strides = [1, 1]} : vector<8x96xf32> to vector<8x32xf32>
    %1390 = vector.extract_strided_slice %1378 {offsets = [0, 32], sizes = [8, 32], strides = [1, 1]} : vector<8x96xf32> to vector<8x32xf32>
    %1391 = arith.addf %1389, %1390 : vector<8x32xf32>
    %1392 = arith.negf %1391 : vector<8x32xf32>
    %1393 = math.exp %1392 : vector<8x32xf32>
    %cst_217 = arith.constant 1.000000e+00 : f32
    %1394 = vector.broadcast %cst_217 : f32 to vector<8x32xf32>
    %1395 = arith.addf %1394, %1393 : vector<8x32xf32>
    %1396 = arith.divf %1394, %1395 : vector<8x32xf32>
    %1397 = vector.extract_strided_slice %1375 {offsets = [0, 64], sizes = [8, 32], strides = [1, 1]} : vector<8x96xf32> to vector<8x32xf32>
    %1398 = vector.extract_strided_slice %1378 {offsets = [0, 64], sizes = [8, 32], strides = [1, 1]} : vector<8x96xf32> to vector<8x32xf32>
    %1399 = arith.mulf %1388, %1398 : vector<8x32xf32>
    %1400 = arith.addf %1397, %1399 : vector<8x32xf32>
    %1401 = math.tanh %1400 : vector<8x32xf32>
    %cst_218 = arith.constant 1.000000e+00 : f32
    %1402 = vector.broadcast %cst_218 : f32 to vector<8x32xf32>
    %1403 = arith.subf %1402, %1396 : vector<8x32xf32>
    %1404 = arith.mulf %1403, %1401 : vector<8x32xf32>
    %1405 = arith.mulf %1396, %1371 : vector<8x32xf32>
    %1406 = arith.addf %1404, %1405 : vector<8x32xf32>
    %1407 = vector.shape_cast %1380 : vector<8x1xi1> to vector<8x1xi1>
    %1408 = vector.broadcast %1407 : vector<8x1xi1> to vector<8x32xi1>
    %1409 = arith.select %1408, %1406, %1371 : vector<8x32xi1>, vector<8x32xf32>
    %c4_i32_219 = arith.constant 4 : i32
    %c8_i32_220 = arith.constant 8 : i32
    %1410 = arith.muli %c4_i32_219, %c8_i32_220 : i32
    %1411 = tpu.assume_multiple %1410, 8 : i32
    %1412 = arith.index_cast %1411 : i32 to index
    %c0_221 = arith.constant 0 : index
    %1413 = vector.load %arg14[%1412, %c0_221] : memref<64x96xf32, #tpu.memory_space<vmem>>, vector<8x96xf32>
    %cst_222 = arith.constant dense<0.000000e+00> : vector<8x96xf32>
    %1414 = tpu.matmul %1409, %1255, %cst_222 {dimension_numbers = #tpu.dot_dimension_numbers<[1], [0], [0], [1], [0, 0, 1, 1], [], []>} : vector<8x32xf32>, vector<32x96xf32>, vector<8x96xf32> -> vector<8x96xf32>
    %1415 = vector.broadcast %1256 : vector<1x96xf32> to vector<8x96xf32>
    %1416 = arith.addf %1414, %1415 : vector<8x96xf32>
    %1417 = vector.broadcast %c4_i32_219 : i32 to vector<8x1xi32>
    %1418 = arith.cmpi slt, %1417, %1 : vector<8x1xi32>
    %1419 = vector.extract_strided_slice %1413 {offsets = [0, 0], sizes = [8, 32], strides = [1, 1]} : vector<8x96xf32> to vector<8x32xf32>
    %1420 = vector.extract_strided_slice %1416 {offsets = [0, 0], sizes = [8, 32], strides = [1, 1]} : vector<8x96xf32> to vector<8x32xf32>
    %1421 = arith.addf %1419, %1420 : vector<8x32xf32>
    %1422 = arith.negf %1421 : vector<8x32xf32>
    %1423 = math.exp %1422 : vector<8x32xf32>
    %cst_223 = arith.constant 1.000000e+00 : f32
    %1424 = vector.broadcast %cst_223 : f32 to vector<8x32xf32>
    %1425 = arith.addf %1424, %1423 : vector<8x32xf32>
    %1426 = arith.divf %1424, %1425 : vector<8x32xf32>
    %1427 = vector.extract_strided_slice %1413 {offsets = [0, 32], sizes = [8, 32], strides = [1, 1]} : vector<8x96xf32> to vector<8x32xf32>
    %1428 = vector.extract_strided_slice %1416 {offsets = [0, 32], sizes = [8, 32], strides = [1, 1]} : vector<8x96xf32> to vector<8x32xf32>
    %1429 = arith.addf %1427, %1428 : vector<8x32xf32>
    %1430 = arith.negf %1429 : vector<8x32xf32>
    %1431 = math.exp %1430 : vector<8x32xf32>
    %cst_224 = arith.constant 1.000000e+00 : f32
    %1432 = vector.broadcast %cst_224 : f32 to vector<8x32xf32>
    %1433 = arith.addf %1432, %1431 : vector<8x32xf32>
    %1434 = arith.divf %1432, %1433 : vector<8x32xf32>
    %1435 = vector.extract_strided_slice %1413 {offsets = [0, 64], sizes = [8, 32], strides = [1, 1]} : vector<8x96xf32> to vector<8x32xf32>
    %1436 = vector.extract_strided_slice %1416 {offsets = [0, 64], sizes = [8, 32], strides = [1, 1]} : vector<8x96xf32> to vector<8x32xf32>
    %1437 = arith.mulf %1426, %1436 : vector<8x32xf32>
    %1438 = arith.addf %1435, %1437 : vector<8x32xf32>
    %1439 = math.tanh %1438 : vector<8x32xf32>
    %cst_225 = arith.constant 1.000000e+00 : f32
    %1440 = vector.broadcast %cst_225 : f32 to vector<8x32xf32>
    %1441 = arith.subf %1440, %1434 : vector<8x32xf32>
    %1442 = arith.mulf %1441, %1439 : vector<8x32xf32>
    %1443 = arith.mulf %1434, %1409 : vector<8x32xf32>
    %1444 = arith.addf %1442, %1443 : vector<8x32xf32>
    %1445 = vector.shape_cast %1418 : vector<8x1xi1> to vector<8x1xi1>
    %1446 = vector.broadcast %1445 : vector<8x1xi1> to vector<8x32xi1>
    %1447 = arith.select %1446, %1444, %1409 : vector<8x32xi1>, vector<8x32xf32>
    %c5_i32_226 = arith.constant 5 : i32
    %c8_i32_227 = arith.constant 8 : i32
    %1448 = arith.muli %c5_i32_226, %c8_i32_227 : i32
    %1449 = tpu.assume_multiple %1448, 8 : i32
    %1450 = arith.index_cast %1449 : i32 to index
    %c0_228 = arith.constant 0 : index
    %1451 = vector.load %arg14[%1450, %c0_228] : memref<64x96xf32, #tpu.memory_space<vmem>>, vector<8x96xf32>
    %cst_229 = arith.constant dense<0.000000e+00> : vector<8x96xf32>
    %1452 = tpu.matmul %1447, %1255, %cst_229 {dimension_numbers = #tpu.dot_dimension_numbers<[1], [0], [0], [1], [0, 0, 1, 1], [], []>} : vector<8x32xf32>, vector<32x96xf32>, vector<8x96xf32> -> vector<8x96xf32>
    %1453 = vector.broadcast %1256 : vector<1x96xf32> to vector<8x96xf32>
    %1454 = arith.addf %1452, %1453 : vector<8x96xf32>
    %1455 = vector.broadcast %c5_i32_226 : i32 to vector<8x1xi32>
    %1456 = arith.cmpi slt, %1455, %1 : vector<8x1xi32>
    %1457 = vector.extract_strided_slice %1451 {offsets = [0, 0], sizes = [8, 32], strides = [1, 1]} : vector<8x96xf32> to vector<8x32xf32>
    %1458 = vector.extract_strided_slice %1454 {offsets = [0, 0], sizes = [8, 32], strides = [1, 1]} : vector<8x96xf32> to vector<8x32xf32>
    %1459 = arith.addf %1457, %1458 : vector<8x32xf32>
    %1460 = arith.negf %1459 : vector<8x32xf32>
    %1461 = math.exp %1460 : vector<8x32xf32>
    %cst_230 = arith.constant 1.000000e+00 : f32
    %1462 = vector.broadcast %cst_230 : f32 to vector<8x32xf32>
    %1463 = arith.addf %1462, %1461 : vector<8x32xf32>
    %1464 = arith.divf %1462, %1463 : vector<8x32xf32>
    %1465 = vector.extract_strided_slice %1451 {offsets = [0, 32], sizes = [8, 32], strides = [1, 1]} : vector<8x96xf32> to vector<8x32xf32>
    %1466 = vector.extract_strided_slice %1454 {offsets = [0, 32], sizes = [8, 32], strides = [1, 1]} : vector<8x96xf32> to vector<8x32xf32>
    %1467 = arith.addf %1465, %1466 : vector<8x32xf32>
    %1468 = arith.negf %1467 : vector<8x32xf32>
    %1469 = math.exp %1468 : vector<8x32xf32>
    %cst_231 = arith.constant 1.000000e+00 : f32
    %1470 = vector.broadcast %cst_231 : f32 to vector<8x32xf32>
    %1471 = arith.addf %1470, %1469 : vector<8x32xf32>
    %1472 = arith.divf %1470, %1471 : vector<8x32xf32>
    %1473 = vector.extract_strided_slice %1451 {offsets = [0, 64], sizes = [8, 32], strides = [1, 1]} : vector<8x96xf32> to vector<8x32xf32>
    %1474 = vector.extract_strided_slice %1454 {offsets = [0, 64], sizes = [8, 32], strides = [1, 1]} : vector<8x96xf32> to vector<8x32xf32>
    %1475 = arith.mulf %1464, %1474 : vector<8x32xf32>
    %1476 = arith.addf %1473, %1475 : vector<8x32xf32>
    %1477 = math.tanh %1476 : vector<8x32xf32>
    %cst_232 = arith.constant 1.000000e+00 : f32
    %1478 = vector.broadcast %cst_232 : f32 to vector<8x32xf32>
    %1479 = arith.subf %1478, %1472 : vector<8x32xf32>
    %1480 = arith.mulf %1479, %1477 : vector<8x32xf32>
    %1481 = arith.mulf %1472, %1447 : vector<8x32xf32>
    %1482 = arith.addf %1480, %1481 : vector<8x32xf32>
    %1483 = vector.shape_cast %1456 : vector<8x1xi1> to vector<8x1xi1>
    %1484 = vector.broadcast %1483 : vector<8x1xi1> to vector<8x32xi1>
    %1485 = arith.select %1484, %1482, %1447 : vector<8x32xi1>, vector<8x32xf32>
    %c6_i32_233 = arith.constant 6 : i32
    %c8_i32_234 = arith.constant 8 : i32
    %1486 = arith.muli %c6_i32_233, %c8_i32_234 : i32
    %1487 = tpu.assume_multiple %1486, 8 : i32
    %1488 = arith.index_cast %1487 : i32 to index
    %c0_235 = arith.constant 0 : index
    %1489 = vector.load %arg14[%1488, %c0_235] : memref<64x96xf32, #tpu.memory_space<vmem>>, vector<8x96xf32>
    %cst_236 = arith.constant dense<0.000000e+00> : vector<8x96xf32>
    %1490 = tpu.matmul %1485, %1255, %cst_236 {dimension_numbers = #tpu.dot_dimension_numbers<[1], [0], [0], [1], [0, 0, 1, 1], [], []>} : vector<8x32xf32>, vector<32x96xf32>, vector<8x96xf32> -> vector<8x96xf32>
    %1491 = vector.broadcast %1256 : vector<1x96xf32> to vector<8x96xf32>
    %1492 = arith.addf %1490, %1491 : vector<8x96xf32>
    %1493 = vector.broadcast %c6_i32_233 : i32 to vector<8x1xi32>
    %1494 = arith.cmpi slt, %1493, %1 : vector<8x1xi32>
    %1495 = vector.extract_strided_slice %1489 {offsets = [0, 0], sizes = [8, 32], strides = [1, 1]} : vector<8x96xf32> to vector<8x32xf32>
    %1496 = vector.extract_strided_slice %1492 {offsets = [0, 0], sizes = [8, 32], strides = [1, 1]} : vector<8x96xf32> to vector<8x32xf32>
    %1497 = arith.addf %1495, %1496 : vector<8x32xf32>
    %1498 = arith.negf %1497 : vector<8x32xf32>
    %1499 = math.exp %1498 : vector<8x32xf32>
    %cst_237 = arith.constant 1.000000e+00 : f32
    %1500 = vector.broadcast %cst_237 : f32 to vector<8x32xf32>
    %1501 = arith.addf %1500, %1499 : vector<8x32xf32>
    %1502 = arith.divf %1500, %1501 : vector<8x32xf32>
    %1503 = vector.extract_strided_slice %1489 {offsets = [0, 32], sizes = [8, 32], strides = [1, 1]} : vector<8x96xf32> to vector<8x32xf32>
    %1504 = vector.extract_strided_slice %1492 {offsets = [0, 32], sizes = [8, 32], strides = [1, 1]} : vector<8x96xf32> to vector<8x32xf32>
    %1505 = arith.addf %1503, %1504 : vector<8x32xf32>
    %1506 = arith.negf %1505 : vector<8x32xf32>
    %1507 = math.exp %1506 : vector<8x32xf32>
    %cst_238 = arith.constant 1.000000e+00 : f32
    %1508 = vector.broadcast %cst_238 : f32 to vector<8x32xf32>
    %1509 = arith.addf %1508, %1507 : vector<8x32xf32>
    %1510 = arith.divf %1508, %1509 : vector<8x32xf32>
    %1511 = vector.extract_strided_slice %1489 {offsets = [0, 64], sizes = [8, 32], strides = [1, 1]} : vector<8x96xf32> to vector<8x32xf32>
    %1512 = vector.extract_strided_slice %1492 {offsets = [0, 64], sizes = [8, 32], strides = [1, 1]} : vector<8x96xf32> to vector<8x32xf32>
    %1513 = arith.mulf %1502, %1512 : vector<8x32xf32>
    %1514 = arith.addf %1511, %1513 : vector<8x32xf32>
    %1515 = math.tanh %1514 : vector<8x32xf32>
    %cst_239 = arith.constant 1.000000e+00 : f32
    %1516 = vector.broadcast %cst_239 : f32 to vector<8x32xf32>
    %1517 = arith.subf %1516, %1510 : vector<8x32xf32>
    %1518 = arith.mulf %1517, %1515 : vector<8x32xf32>
    %1519 = arith.mulf %1510, %1485 : vector<8x32xf32>
    %1520 = arith.addf %1518, %1519 : vector<8x32xf32>
    %1521 = vector.shape_cast %1494 : vector<8x1xi1> to vector<8x1xi1>
    %1522 = vector.broadcast %1521 : vector<8x1xi1> to vector<8x32xi1>
    %1523 = arith.select %1522, %1520, %1485 : vector<8x32xi1>, vector<8x32xf32>
    %c7_i32_240 = arith.constant 7 : i32
    %c8_i32_241 = arith.constant 8 : i32
    %1524 = arith.muli %c7_i32_240, %c8_i32_241 : i32
    %1525 = tpu.assume_multiple %1524, 8 : i32
    %1526 = arith.index_cast %1525 : i32 to index
    %c0_242 = arith.constant 0 : index
    %1527 = vector.load %arg14[%1526, %c0_242] : memref<64x96xf32, #tpu.memory_space<vmem>>, vector<8x96xf32>
    %cst_243 = arith.constant dense<0.000000e+00> : vector<8x96xf32>
    %1528 = tpu.matmul %1523, %1255, %cst_243 {dimension_numbers = #tpu.dot_dimension_numbers<[1], [0], [0], [1], [0, 0, 1, 1], [], []>} : vector<8x32xf32>, vector<32x96xf32>, vector<8x96xf32> -> vector<8x96xf32>
    %1529 = vector.broadcast %1256 : vector<1x96xf32> to vector<8x96xf32>
    %1530 = arith.addf %1528, %1529 : vector<8x96xf32>
    %1531 = vector.broadcast %c7_i32_240 : i32 to vector<8x1xi32>
    %1532 = arith.cmpi slt, %1531, %1 : vector<8x1xi32>
    %1533 = vector.extract_strided_slice %1527 {offsets = [0, 0], sizes = [8, 32], strides = [1, 1]} : vector<8x96xf32> to vector<8x32xf32>
    %1534 = vector.extract_strided_slice %1530 {offsets = [0, 0], sizes = [8, 32], strides = [1, 1]} : vector<8x96xf32> to vector<8x32xf32>
    %1535 = arith.addf %1533, %1534 : vector<8x32xf32>
    %1536 = arith.negf %1535 : vector<8x32xf32>
    %1537 = math.exp %1536 : vector<8x32xf32>
    %cst_244 = arith.constant 1.000000e+00 : f32
    %1538 = vector.broadcast %cst_244 : f32 to vector<8x32xf32>
    %1539 = arith.addf %1538, %1537 : vector<8x32xf32>
    %1540 = arith.divf %1538, %1539 : vector<8x32xf32>
    %1541 = vector.extract_strided_slice %1527 {offsets = [0, 32], sizes = [8, 32], strides = [1, 1]} : vector<8x96xf32> to vector<8x32xf32>
    %1542 = vector.extract_strided_slice %1530 {offsets = [0, 32], sizes = [8, 32], strides = [1, 1]} : vector<8x96xf32> to vector<8x32xf32>
    %1543 = arith.addf %1541, %1542 : vector<8x32xf32>
    %1544 = arith.negf %1543 : vector<8x32xf32>
    %1545 = math.exp %1544 : vector<8x32xf32>
    %cst_245 = arith.constant 1.000000e+00 : f32
    %1546 = vector.broadcast %cst_245 : f32 to vector<8x32xf32>
    %1547 = arith.addf %1546, %1545 : vector<8x32xf32>
    %1548 = arith.divf %1546, %1547 : vector<8x32xf32>
    %1549 = vector.extract_strided_slice %1527 {offsets = [0, 64], sizes = [8, 32], strides = [1, 1]} : vector<8x96xf32> to vector<8x32xf32>
    %1550 = vector.extract_strided_slice %1530 {offsets = [0, 64], sizes = [8, 32], strides = [1, 1]} : vector<8x96xf32> to vector<8x32xf32>
    %1551 = arith.mulf %1540, %1550 : vector<8x32xf32>
    %1552 = arith.addf %1549, %1551 : vector<8x32xf32>
    %1553 = math.tanh %1552 : vector<8x32xf32>
    %cst_246 = arith.constant 1.000000e+00 : f32
    %1554 = vector.broadcast %cst_246 : f32 to vector<8x32xf32>
    %1555 = arith.subf %1554, %1548 : vector<8x32xf32>
    %1556 = arith.mulf %1555, %1553 : vector<8x32xf32>
    %1557 = arith.mulf %1548, %1523 : vector<8x32xf32>
    %1558 = arith.addf %1556, %1557 : vector<8x32xf32>
    %1559 = vector.shape_cast %1532 : vector<8x1xi1> to vector<8x1xi1>
    %1560 = vector.broadcast %1559 : vector<8x1xi1> to vector<8x32xi1>
    %1561 = arith.select %1560, %1558, %1523 : vector<8x32xi1>, vector<8x32xf32>
    %c8_i32_247 = arith.constant 8 : i32
    %c0_248 = arith.constant 0 : index
    %c0_249 = arith.constant 0 : index
    %1562 = vector.load %arg12[%c0_248, %c0_249] : memref<8x32xf32, #tpu.memory_space<vmem>>, vector<8x32xf32>
    tpu.vector_store %arg12[%c0_248, %c0_249], %1561 {strides = array<i32>} : memref<8x32xf32, #tpu.memory_space<vmem>>, vector<8x32xf32>,
    return
  }
}

</mosaic_0001>

<llo_original>
// kernel: _encode_batch.1
$region0: #{_encode_batch.1}
  #allocation0 [shape = 'u32[]', space=smem, size = 0x4, offset = 0x4, fixed_abs, tag = 'smem constant byte address 0x4 - core index']
  #allocation1 [shape = 'u32[144,128]{1,0:T(1,128)}', space=vmem, size = 0x12000, scoped, tag = 'internal scratch']
  #allocation2 [shape = 'f32[128,192]{1,0:T(8,128)}', space=vmem, size = 0x20000, scoped, tag = 'scratch operand']
  #allocation3 [shape = 'f32[64,96]{1,0:T(8,128)}', space=vmem, size = 0x8000, scoped, tag = 'scratch operand']
  %s0 = inlined_call_operand.vmem [shape: s32[8,1], index: 0, kind: input, shape index: {}]
  %s1 = inlined_call_operand.vmem [shape: s32[8,1], index: 1, kind: input, shape index: {}]
  %s2 = inlined_call_operand.vmem [shape: f32[128,128], index: 2, kind: input, shape index: {}]
  %s3 = inlined_call_operand.vmem [shape: f32[64,8], index: 3, kind: input, shape index: {}]
  %s4 = inlined_call_operand.vmem [shape: f32[128,192], index: 4, kind: input, shape index: {}]
  %s5 = inlined_call_operand.vmem [shape: f32[64,192], index: 5, kind: input, shape index: {}]
  %s6 = inlined_call_operand.vmem [shape: f32[1,192], index: 6, kind: input, shape index: {}]
  %s7 = inlined_call_operand.vmem [shape: f32[1,192], index: 7, kind: input, shape index: {}]
  %s8 = inlined_call_operand.vmem [shape: f32[32,96], index: 8, kind: input, shape index: {}]
  %s9 = inlined_call_operand.vmem [shape: f32[32,96], index: 9, kind: input, shape index: {}]
  %s10 = inlined_call_operand.vmem [shape: f32[1,96], index: 10, kind: input, shape index: {}]
  %s11 = inlined_call_operand.vmem [shape: f32[1,96], index: 11, kind: input, shape index: {}]
  %s12 = inlined_call_operand.hbm [shape: f32[8,32], index: 12, kind: output, shape index: {}]
  %s13 = sld [smem:[#allocation0]]
  $region58: #{_encode_batch.1} parent=0
    _
  %s15 = ssub.s32 1, %s13
  %s16 = scalar_select 0, %s15, %s13
  $region1: #{_encode_batch.1} parent=0
    #allocation4 [shape = 'u8[4096]{0}', space=vmem, size = 0x1000, scoped, tag = 'output window, operand 0, single buffered']
    #allocation5 [shape = 's32[1]{0}', space=sflag, size = 0x4, scoped, tag = 'scoped memory for _encode_batch.1']
    %17 = vsyncpa [#allocation5], 0
    // Predicated region
    $region2: #{_encode_batch.1} parent=1 // pred_check
      _
    $region3: #{_encode_batch.1} parent=1 // pred_check_branch
      %19 = sbr.rel (0) target = $region5
    $region4: #{_encode_batch.1} parent=1 // pred_region
      _
    $region5: #{_encode_batch.1} parent=1 // pred_fallthru
      _
    // Predicated region
    $region6: #{_encode_batch.1} parent=1 // pred_check
      _
    $region7: #{_encode_batch.1} parent=1 // pred_check_branch
      %21 = sbr.rel (0) target = $region9
    $region8: #{_encode_batch.1} parent=1 // pred_region
      _
    $region9: #{_encode_batch.1} parent=1 // pred_fallthru
      _
    // Predicated region
    $region10: #{_encode_batch.1} parent=1 // pred_check
      _
    $region11: #{_encode_batch.1} parent=1 // pred_check_branch
      %23 = sbr.rel (0) target = $region13
    $region12: #{_encode_batch.1} parent=1 // pred_region
      _
    $region13: #{_encode_batch.1} parent=1 // pred_fallthru
      _
    // Predicated region
    $region14: #{_encode_batch.1} parent=1 // pred_check
      _
    $region15: #{_encode_batch.1} parent=1 // pred_check_branch
      %25 = sbr.rel (0) target = $region17
    $region16: #{_encode_batch.1} parent=1 // pred_region
      _
    $region17: #{_encode_batch.1} parent=1 // pred_fallthru
      _
    // Predicated region
    $region18: #{_encode_batch.1} parent=1 // pred_check
      _
    $region19: #{_encode_batch.1} parent=1 // pred_check_branch
      %27 = sbr.rel (0) target = $region21
    $region20: #{_encode_batch.1} parent=1 // pred_region
      _
    $region21: #{_encode_batch.1} parent=1 // pred_fallthru
      _
    // Predicated region
    $region22: #{_encode_batch.1} parent=1 // pred_check
      _
    $region23: #{_encode_batch.1} parent=1 // pred_check_branch
      %29 = sbr.rel (0) target = $region25
    $region24: #{_encode_batch.1} parent=1 // pred_region
      _
    $region25: #{_encode_batch.1} parent=1 // pred_fallthru
      _
    // Predicated region
    $region26: #{_encode_batch.1} parent=1 // pred_check
      _
    $region27: #{_encode_batch.1} parent=1 // pred_check_branch
      %31 = sbr.rel (0) target = $region29
    $region28: #{_encode_batch.1} parent=1 // pred_region
      _
    $region29: #{_encode_batch.1} parent=1 // pred_fallthru
      _
    // Predicated region
    $region30: #{_encode_batch.1} parent=1 // pred_check
      _
    $region31: #{_encode_batch.1} parent=1 // pred_check_branch
      %33 = sbr.rel (0) target = $region33
    $region32: #{_encode_batch.1} parent=1 // pred_region
      _
    $region33: #{_encode_batch.1} parent=1 // pred_fallthru
      _
    // Predicated region
    $region34: #{_encode_batch.1} parent=1 // pred_check
      _
    $region35: #{_encode_batch.1} parent=1 // pred_check_branch
      %35 = sbr.rel (0) target = $region37
    $region36: #{_encode_batch.1} parent=1 // pred_region
      _
    $region37: #{_encode_batch.1} parent=1 // pred_fallthru
      _
    // Predicated region
    $region38: #{_encode_batch.1} parent=1 // pred_check
      _
    $region39: #{_encode_batch.1} parent=1 // pred_check_branch
      %37 = sbr.rel (0) target = $region41
    $region40: #{_encode_batch.1} parent=1 // pred_region
      _
    $region41: #{_encode_batch.1} parent=1 // pred_fallthru
      _
    // Predicated region
    $region42: #{_encode_batch.1} parent=1 // pred_check
      _
    $region43: #{_encode_batch.1} parent=1 // pred_check_branch
      %39 = sbr.rel (0) target = $region45
    $region44: #{_encode_batch.1} parent=1 // pred_region
      _
    $region45: #{_encode_batch.1} parent=1 // pred_fallthru
      _
    // Predicated region
    $region46: #{_encode_batch.1} parent=1 // pred_check
      _
    $region47: #{_encode_batch.1} parent=1 // pred_check_branch
      %41 = sbr.rel (0) target = $region49
    $region48: #{_encode_batch.1} parent=1 // pred_region
      _
    $region49: #{_encode_batch.1} parent=1 // pred_fallthru
      _
    %v42 = vld [vmem:[%s0] sm:$0xff]
    %v43 = vld [vmem:[%s1] sm:$0xff]
    %v44 = vld [vmem:[%s2] sm:$0xff]
    %v45 = vld [vmem:[%s2 + $0x8] sm:$0xff]
    %v46 = vld [vmem:[%s2 + $0x10] sm:$0xff]
    %v47 = vld [vmem:[%s2 + $0x18] sm:$0xff]
    %v48 = vld [vmem:[%s2 + $0x20] sm:$0xff]
    %v49 = vld [vmem:[%s2 + $0x28] sm:$0xff]
    %v50 = vld [vmem:[%s2 + $0x30] sm:$0xff]
    %v51 = vld [vmem:[%s2 + $0x38] sm:$0xff]
    %v52 = vld [vmem:[%s2 + $0x40] sm:$0xff]
    %v53 = vld [vmem:[%s2 + $0x48] sm:$0xff]
    %v54 = vld [vmem:[%s2 + $0x50] sm:$0xff]
    %v55 = vld [vmem:[%s2 + $0x58] sm:$0xff]
    %v56 = vld [vmem:[%s2 + $0x60] sm:$0xff]
    %v57 = vld [vmem:[%s2 + $0x68] sm:$0xff]
    %v58 = vld [vmem:[%s2 + $0x70] sm:$0xff]
    %v59 = vld [vmem:[%s2 + $0x78] sm:$0xff]
    %v60 = vld [vmem:[%s4] sm:$0xff]
    %v61 = vld [vmem:[%s4 + $0x8] sm:$0xff]
    %v62 = vld [vmem:[%s4 + $0x10] sm:$0xff]
    %v63 = vld [vmem:[%s4 + $0x18] sm:$0xff]
    %v64 = vld [vmem:[%s4 + $0x20] sm:$0xff]
    %v65 = vld [vmem:[%s4 + $0x28] sm:$0xff]
    %v66 = vld [vmem:[%s4 + $0x30] sm:$0xff]
    %v67 = vld [vmem:[%s4 + $0x38] sm:$0xff]
    %v68 = vld [vmem:[%s4 + $0x40] sm:$0xff]
    %v69 = vld [vmem:[%s4 + $0x48] sm:$0xff]
    %v70 = vld [vmem:[%s4 + $0x50] sm:$0xff]
    %v71 = vld [vmem:[%s4 + $0x58] sm:$0xff]
    %v72 = vld [vmem:[%s4 + $0x60] sm:$0xff]
    %v73 = vld [vmem:[%s4 + $0x68] sm:$0xff]
    %v74 = vld [vmem:[%s4 + $0x70] sm:$0xff]
    %v75 = vld [vmem:[%s4 + $0x78] sm:$0xff]
    %v76 = vld [vmem:[%s4 + $0x80] sm:$0xff]
    %v77 = vld [vmem:[%s4 + $0x88] sm:$0xff]
    %v78 = vld [vmem:[%s4 + $0x90] sm:$0xff]
    %v79 = vld [vmem:[%s4 + $0x98] sm:$0xff]
    %v80 = vld [vmem:[%s4 + $0xa0] sm:$0xff]
    %v81 = vld [vmem:[%s4 + $0xa8] sm:$0xff]
    %v82 = vld [vmem:[%s4 + $0xb0] sm:$0xff]
    %v83 = vld [vmem:[%s4 + $0xb8] sm:$0xff]
    %v84 = vld [vmem:[%s4 + $0xc0] sm:$0xff]
    %v85 = vld [vmem:[%s4 + $0xc8] sm:$0xff]
    %v86 = vld [vmem:[%s4 + $0xd0] sm:$0xff]
    %v87 = vld [vmem:[%s4 + $0xd8] sm:$0xff]
    %v88 = vld [vmem:[%s4 + $0xe0] sm:$0xff]
    %v89 = vld [vmem:[%s4 + $0xe8] sm:$0xff]
    %v90 = vld [vmem:[%s4 + $0xf0] sm:$0xff]
    %v91 = vld [vmem:[%s4 + $0xf8] sm:$0xff]
    %v92 = vld [vmem:[%s6] sm:$0x3]
    %v94 = vlaneseq
    %v95 = vshrl.u32 %v94, 7
    %v96 = vsub.s32 0, %v95
    %v97 = vrot.slane %v92, %v96
    %v98 = vlaneseq
    %v99 = vshrl.u32 %v98, 7
    %v100 = vsub.s32 1, %v99
    %v101 = vrot.slane %v92, %v100
    %104 = vmatprep.subr.mxu0 %v61
    %105 = vmatpush1.msra.mxu0 %v60
    %106 = vmatprep.subr.mxu0 %v63
    %107 = vmatpush1.msra.mxu0 %v62
    %108 = vmatprep.subr.mxu0 %v65
    %109 = vmatpush1.msra.mxu0 %v64
    %110 = vmatprep.subr.mxu0 %v67
    %111 = vmatpush1.msra.mxu0 %v66
    %112 = vmatprep.subr.mxu0 %v69
    %113 = vmatpush1.msra.mxu0 %v68
    %114 = vmatprep.subr.mxu0 %v71
    %115 = vmatpush1.msra.mxu0 %v70
    %116 = vmatprep.subr.mxu0 %v73
    %117 = vmatpush1.msra.mxu0 %v72
    %118 = vmatprep.subr.mxu0 %v75
    %119 = vmatpush1.msra.mxu0 %v74
    %120 = vmatprep.subr.mxu0 %v77
    %121 = vmatpush1.msra.mxu0 %v76
    %122 = vmatprep.subr.mxu0 %v79
    %123 = vmatpush1.msra.mxu0 %v78
    %124 = vmatprep.subr.mxu0 %v81
    %125 = vmatpush1.msra.mxu0 %v80
    %126 = vmatprep.subr.mxu0 %v83
    %127 = vmatpush1.msra.mxu0 %v82
    %128 = vmatprep.subr.mxu0 %v85
    %129 = vmatpush1.msra.mxu0 %v84
    %130 = vmatprep.subr.mxu0 %v87
    %131 = vmatpush1.msra.mxu0 %v86
    %132 = vmatprep.subr.mxu0 %v89
    %133 = vmatpush1.msra.mxu0 %v88
    %134 = vmatprep.subr.mxu0 %v91
    %135 = vmatpush1.msra.mxu0 %v90
    %136 = vmatprep.subr.mxu0 0.0
    %137 = vmatpush1.msra.mxu0 0.0
    %138 = vmatprep.subr.mxu0 0.0
    %139 = vmatpush1.msra.mxu0 0.0
    %140 = vmatprep.subr.mxu0 0.0
    %141 = vmatpush1.msra.mxu0 0.0
    %142 = vmatprep.subr.mxu0 0.0
    %143 = vmatpush1.msra.mxu0 0.0
    %144 = vmatprep.subr.mxu0 0.0
    %145 = vmatpush1.msra.mxu0 0.0
    %146 = vmatprep.subr.mxu0 0.0
    %147 = vmatpush1.msra.mxu0 0.0
    %148 = vmatprep.subr.mxu0 0.0
    %149 = vmatpush1.msra.mxu0 0.0
    %150 = vmatprep.subr.mxu0 0.0
    %151 = vmatpush1.msra.mxu0 0.0
    %152 = vmatprep.subr.mxu0 0.0
    %153 = vmatpush1.msra.mxu0 0.0
    %154 = vmatprep.subr.mxu0 0.0
    %155 = vmatpush1.msra.mxu0 0.0
    %156 = vmatprep.subr.mxu0 0.0
    %157 = vmatpush1.msra.mxu0 0.0
    %158 = vmatprep.subr.mxu0 0.0
    %159 = vmatpush1.msra.mxu0 0.0
    %160 = vmatprep.subr.mxu0 0.0
    %161 = vmatpush1.msra.mxu0 0.0
    %162 = vmatprep.subr.mxu0 0.0
    %163 = vmatpush1.msra.mxu0 0.0
    %164 = vmatprep.subr.mxu0 0.0
    %165 = vmatpush1.msra.mxu0 0.0
    %166 = vmatprep.subr.mxu0 0.0
    %167 = vmatpush1.msra.mxu0 0.0
    %168 = vmatprep.mubr.f32.mxu0 0.0
    %169 = vmatmul.mubr.f32.gmra.mrb[0].mxu0 %v44
    %v170 = vpop.f32.mrb[0].mxu0
    %v171 = vadd.f32 %v97, %v170
    %v172 = vpop.f32.mrb[0].mxu0
    %v173 = vadd.f32 %v101, %v172
    %174 = vmatprep.mubr.f32.mxu0 0.0
    %175 = vmatmul.mubr.f32.gmra.mrb[0].mxu0 %v45
    %v176 = vpop.f32.mrb[0].mxu0
    %v177 = vadd.f32 %v97, %v176
    %v178 = vpop.f32.mrb[0].mxu0
    %v179 = vadd.f32 %v101, %v178
    %180 = vmatprep.mubr.f32.mxu0 0.0
    %181 = vmatmul.mubr.f32.gmra.mrb[0].mxu0 %v46
    %v182 = vpop.f32.mrb[0].mxu0
    %v183 = vadd.f32 %v97, %v182
    %v184 = vpop.f32.mrb[0].mxu0
    %v185 = vadd.f32 %v101, %v184
    %186 = vmatprep.mubr.f32.mxu0 0.0
    %187 = vmatmul.mubr.f32.gmra.mrb[0].mxu0 %v47
    %v188 = vpop.f32.mrb[0].mxu0
    %v189 = vadd.f32 %v97, %v188
    %v190 = vpop.f32.mrb[0].mxu0
    %v191 = vadd.f32 %v101, %v190
    %192 = vmatprep.mubr.f32.mxu0 0.0
    %193 = vmatmul.mubr.f32.gmra.mrb[0].mxu0 %v48
    %v194 = vpop.f32.mrb[0].mxu0
    %v195 = vadd.f32 %v97, %v194
    %v196 = vpop.f32.mrb[0].mxu0
    %v197 = vadd.f32 %v101, %v196
    %198 = vmatprep.mubr.f32.mxu0 0.0
    %199 = vmatmul.mubr.f32.gmra.mrb[0].mxu0 %v49
    %v200 = vpop.f32.mrb[0].mxu0
    %v201 = vadd.f32 %v97, %v200
    %v202 = vpop.f32.mrb[0].mxu0
    %v203 = vadd.f32 %v101, %v202
    %204 = vmatprep.mubr.f32.mxu0 0.0
    %205 = vmatmul.mubr.f32.gmra.mrb[0].mxu0 %v50
    %v206 = vpop.f32.mrb[0].mxu0
    %v207 = vadd.f32 %v97, %v206
    %v208 = vpop.f32.mrb[0].mxu0
    %v209 = vadd.f32 %v101, %v208
    %210 = vmatprep.mubr.f32.mxu0 0.0
    %211 = vmatmul.mubr.f32.gmra.mrb[0].mxu0 %v51
    %v212 = vpop.f32.mrb[0].mxu0
    %v213 = vadd.f32 %v97, %v212
    %v214 = vpop.f32.mrb[0].mxu0
    %v215 = vadd.f32 %v101, %v214
    %216 = vmatprep.mubr.f32.mxu0 0.0
    %217 = vmatmul.mubr.f32.gmra.mrb[0].mxu0 %v52
    %v218 = vpop.f32.mrb[0].mxu0
    %v219 = vadd.f32 %v97, %v218
    %v220 = vpop.f32.mrb[0].mxu0
    %v221 = vadd.f32 %v101, %v220
    %222 = vmatprep.mubr.f32.mxu0 0.0
    %223 = vmatmul.mubr.f32.gmra.mrb[0].mxu0 %v53
    %v224 = vpop.f32.mrb[0].mxu0
    %v225 = vadd.f32 %v97, %v224
    %v226 = vpop.f32.mrb[0].mxu0
    %v227 = vadd.f32 %v101, %v226
    %228 = vmatprep.mubr.f32.mxu0 0.0
    %229 = vmatmul.mubr.f32.gmra.mrb[0].mxu0 %v54
    %v230 = vpop.f32.mrb[0].mxu0
    %v231 = vadd.f32 %v97, %v230
    %v232 = vpop.f32.mrb[0].mxu0
    %v233 = vadd.f32 %v101, %v232
    %234 = vmatprep.mubr.f32.mxu0 0.0
    %235 = vmatmul.mubr.f32.gmra.mrb[0].mxu0 %v55
    %v236 = vpop.f32.mrb[0].mxu0
    %v237 = vadd.f32 %v97, %v236
    %v238 = vpop.f32.mrb[0].mxu0
    %v239 = vadd.f32 %v101, %v238
    %240 = vmatprep.mubr.f32.mxu0 0.0
    %241 = vmatmul.mubr.f32.gmra.mrb[0].mxu0 %v56
    %v242 = vpop.f32.mrb[0].mxu0
    %v243 = vadd.f32 %v97, %v242
    %v244 = vpop.f32.mrb[0].mxu0
    %v245 = vadd.f32 %v101, %v244
    %246 = vmatprep.mubr.f32.mxu0 0.0
    %247 = vmatmul.mubr.f32.gmra.mrb[0].mxu0 %v57
    %v248 = vpop.f32.mrb[0].mxu0
    %v249 = vadd.f32 %v97, %v248
    %v250 = vpop.f32.mrb[0].mxu0
    %v251 = vadd.f32 %v101, %v250
    %252 = vmatprep.mubr.f32.mxu0 0.0
    %253 = vmatmul.mubr.f32.gmra.mrb[0].mxu0 %v58
    %v254 = vpop.f32.mrb[0].mxu0
    %v255 = vadd.f32 %v97, %v254
    %v256 = vpop.f32.mrb[0].mxu0
    %v257 = vadd.f32 %v101, %v256
    %258 = vmatprep.mubr.f32.mxu0 0.0
    %259 = vmatmul.mubr.f32.gmra.mrb[0].mxu0 %v59
    %v260 = vpop.f32.mrb[0].mxu0
    %v261 = vadd.f32 %v97, %v260
    %v262 = vpop.f32.mrb[0].mxu0
    %v263 = vadd.f32 %v101, %v262
    %264 = vdwg.mxu0
    %265 = vst [vmem:[#allocation2] sm:$0xff] %v171
    %vm266 = vcmask 523264
    %267 = vst.msk [vmem:[#allocation2 + $0x8] sm:$0xff] %vm266, %v173
    %268 = vst [vmem:[#allocation2 + $0x10] sm:$0xff] %v177
    %269 = vst.msk [vmem:[#allocation2 + $0x18] sm:$0xff] %vm266, %v179
    %270 = vst [vmem:[#allocation2 + $0x20] sm:$0xff] %v183
    %271 = vst.msk [vmem:[#allocation2 + $0x28] sm:$0xff] %vm266, %v185
    %272 = vst [vmem:[#allocation2 + $0x30] sm:$0xff] %v189
    %273 = vst.msk [vmem:[#allocation2 + $0x38] sm:$0xff] %vm266, %v191
    %274 = vst [vmem:[#allocation2 + $0x40] sm:$0xff] %v195
    %275 = vst.msk [vmem:[#allocation2 + $0x48] sm:$0xff] %vm266, %v197
    %276 = vst [vmem:[#allocation2 + $0x50] sm:$0xff] %v201
    %277 = vst.msk [vmem:[#allocation2 + $0x58] sm:$0xff] %vm266, %v203
    %278 = vst [vmem:[#allocation2 + $0x60] sm:$0xff] %v207
    %279 = vst.msk [vmem:[#allocation2 + $0x68] sm:$0xff] %vm266, %v209
    %280 = vst [vmem:[#allocation2 + $0x70] sm:$0xff] %v213
    %281 = vst.msk [vmem:[#allocation2 + $0x78] sm:$0xff] %vm266, %v215
    %282 = vst [vmem:[#allocation2 + $0x80] sm:$0xff] %v219
    %283 = vst.msk [vmem:[#allocation2 + $0x88] sm:$0xff] %vm266, %v221
    %284 = vst [vmem:[#allocation2 + $0x90] sm:$0xff] %v225
    %285 = vst.msk [vmem:[#allocation2 + $0x98] sm:$0xff] %vm266, %v227
    %286 = vst [vmem:[#allocation2 + $0xa0] sm:$0xff] %v231
    %287 = vst.msk [vmem:[#allocation2 + $0xa8] sm:$0xff] %vm266, %v233
    %288 = vst [vmem:[#allocation2 + $0xb0] sm:$0xff] %v237
    %289 = vst.msk [vmem:[#allocation2 + $0xb8] sm:$0xff] %vm266, %v239
    %290 = vst [vmem:[#allocation2 + $0xc0] sm:$0xff] %v243
    %291 = vst.msk [vmem:[#allocation2 + $0xc8] sm:$0xff] %vm266, %v245
    %292 = vst [vmem:[#allocation2 + $0xd0] sm:$0xff] %v249
    %293 = vst.msk [vmem:[#allocation2 + $0xd8] sm:$0xff] %vm266, %v251
    %294 = vst [vmem:[#allocation2 + $0xe0] sm:$0xff] %v255
    %295 = vst.msk [vmem:[#allocation2 + $0xe8] sm:$0xff] %vm266, %v257
    %296 = vst [vmem:[#allocation2 + $0xf0] sm:$0xff] %v261
    %297 = vst.msk [vmem:[#allocation2 + $0xf8] sm:$0xff] %vm266, %v263
    %v298 = vld [vmem:[%s5] sm:$0xff]
    %v299 = vld [vmem:[%s5 + $0x8] sm:$0xff]
    %v300 = vld [vmem:[%s5 + $0x10] sm:$0xff]
    %v301 = vld [vmem:[%s5 + $0x18] sm:$0xff]
    %v302 = vld [vmem:[%s5 + $0x20] sm:$0xff]
    %v303 = vld [vmem:[%s5 + $0x28] sm:$0xff]
    %v304 = vld [vmem:[%s5 + $0x30] sm:$0xff]
    %v305 = vld [vmem:[%s5 + $0x38] sm:$0xff]
    %v306 = vld [vmem:[%s5 + $0x40] sm:$0xff]
    %v307 = vld [vmem:[%s5 + $0x48] sm:$0xff]
    %v308 = vld [vmem:[%s5 + $0x50] sm:$0xff]
    %v309 = vld [vmem:[%s5 + $0x58] sm:$0xff]
    %v310 = vld [vmem:[%s5 + $0x60] sm:$0xff]
    %v311 = vld [vmem:[%s5 + $0x68] sm:$0xff]
    %v312 = vld [vmem:[%s5 + $0x70] sm:$0xff]
    %v313 = vld [vmem:[%s5 + $0x78] sm:$0xff]
    %v314 = vld [vmem:[%s7] sm:$0x3]
    %s315 = smul.u32 0, 2
    %s316 = smul.addr %s315, 8
    %s317 = scalar_lea.vmem [#allocation2], %s316
    %v318 = vld [vmem:[%s317] sm:$0xff]
    %v319 = vld [vmem:[%s317 + $0x8] sm:$0xff]
    %v321 = vlaneseq
    %v322 = vshrl.u32 %v321, 7
    %v323 = vsub.s32 0, %v322
    %v324 = vrot.slane %v314, %v323
    %v325 = vlaneseq
    %v326 = vshrl.u32 %v325, 7
    %v327 = vsub.s32 1, %v326
    %v328 = vrot.slane %v314, %v327
    %v332 = vsel %vm266, 0.0, 0
    %334 = vmatprep.subr.mxu0 %v299
    %335 = vmatpush1.msra.mxu0 %v298
    %336 = vmatprep.subr.mxu0 %v301
    %337 = vmatpush1.msra.mxu0 %v300
    %338 = vmatprep.subr.mxu0 %v303
    %339 = vmatpush1.msra.mxu0 %v302
    %340 = vmatprep.subr.mxu0 %v305
    %341 = vmatpush1.msra.mxu0 %v304
    %342 = vmatprep.subr.mxu0 %v307
    %343 = vmatpush1.msra.mxu0 %v306
    %344 = vmatprep.subr.mxu0 %v309
    %345 = vmatpush1.msra.mxu0 %v308
    %346 = vmatprep.subr.mxu0 %v311
    %347 = vmatpush1.msra.mxu0 %v310
    %348 = vmatprep.subr.mxu0 %v313
    %349 = vmatpush1.msra.mxu0 %v312
    %350 = vmatprep.subr.mxu0 0.0
    %351 = vmatpush1.msra.mxu0 0.0
    %352 = vmatprep.subr.mxu0 0.0
    %353 = vmatpush1.msra.mxu0 0.0
    %354 = vmatprep.subr.mxu0 0.0
    %355 = vmatpush1.msra.mxu0 0.0
    %356 = vmatprep.subr.mxu0 0.0
    %357 = vmatpush1.msra.mxu0 0.0
    %358 = vmatprep.subr.mxu0 0.0
    %359 = vmatpush1.msra.mxu0 0.0
    %360 = vmatprep.subr.mxu0 0.0
    %361 = vmatpush1.msra.mxu0 0.0
    %362 = vmatprep.subr.mxu0 0.0
    %363 = vmatpush1.msra.mxu0 0.0
    %364 = vmatprep.subr.mxu0 0.0
    %365 = vmatpush1.msra.mxu0 0.0
    %366 = vmatprep.subr.mxu0 0.0
    %367 = vmatpush1.msra.mxu0 0.0
    %368 = vmatprep.subr.mxu0 0.0
    %369 = vmatpush1.msra.mxu0 0.0
    %370 = vmatprep.subr.mxu0 0.0
    %371 = vmatpush1.msra.mxu0 0.0
    %372 = vmatprep.subr.mxu0 0.0
    %373 = vmatpush1.msra.mxu0 0.0
    %374 = vmatprep.subr.mxu0 0.0
    %375 = vmatpush1.msra.mxu0 0.0
    %376 = vmatprep.subr.mxu0 0.0
    %377 = vmatpush1.msra.mxu0 0.0
    %378 = vmatprep.subr.mxu0 0.0
    %379 = vmatpush1.msra.mxu0 0.0
    %380 = vmatprep.subr.mxu0 0.0
    %381 = vmatpush1.msra.mxu0 0.0
    %382 = vmatprep.subr.mxu0 0.0
    %383 = vmatpush1.msra.mxu0 0.0
    %384 = vmatprep.subr.mxu0 0.0
    %385 = vmatpush1.msra.mxu0 0.0
    %386 = vmatprep.subr.mxu0 0.0
    %387 = vmatpush1.msra.mxu0 0.0
    %388 = vmatprep.subr.mxu0 0.0
    %389 = vmatpush1.msra.mxu0 0.0
    %390 = vmatprep.subr.mxu0 0.0
    %391 = vmatpush1.msra.mxu0 0.0
    %392 = vmatprep.subr.mxu0 0.0
    %393 = vmatpush1.msra.mxu0 0.0
    %394 = vmatprep.subr.mxu0 0.0
    %395 = vmatpush1.msra.mxu0 0.0
    %396 = vmatprep.subr.mxu0 0.0
    %397 = vmatpush1.msra.mxu0 0.0
    %398 = vmatprep.mubr.f32.mxu0 0.0
    %399 = vmatmul.mubr.f32.gmra.mrb[0].mxu0 %v332
    %v400 = vpop.f32.mrb[0].mxu0
    %v401 = vadd.f32 %v324, %v400
    %v402 = vpop.f32.mrb[0].mxu0
    %v403 = vadd.f32 %v328, %v402
    %404 = vdwg.mxu0
    %vm405 = vcmp.gt.s32.totalorder %v42, 0
    %v406 = vadd.f32 %v318, %v401
    %v407 = vxor.u32 %v406, 2147483648
    %v408 = vmul.f32 %v407, 1.442695
    %v409 = vpow.pop %v408
    %v410 = vadd.f32 %v409, 1.0
    %v411 = vrcp.pop %v410
    %v412 = vmul.f32 1.0, %v411
    %414 = vrot.lane.b32.xlu0 %v401, 64
    %v415 = vpop.permute.xlu0 %414
    %v417 = vmul.f32 %v412, %v415
    %419 = vrot.lane.b32.xlu0 %v417, 64
    %v420 = vpop.permute.xlu0 %419
    %v422 = vadd.f32 %v318, %v420
    %v423 = vtanh.pop %v422
    %v424 = vsub.f32 1.0, %v412
    %426 = vrot.lane.b32.xlu0 %v423, 96
    %v427 = vpop.permute.xlu0 %426
    %v429 = vmul.f32 %v424, %v427
    %v430 = vmul.f32 %v412, 0.0
    %v431 = vadd.f32 %v429, %v430
    %v432 = vsel %vm405, 1, 0
    %433 = vset.pattern.permute.xlu0 0
    %434 = vperm.xlu0 %433, %v432
    %v435 = vpop.permute.xlu0 %434
    %vm436 = vcmp.eq.s32.totalorder %v435, 1
    %v437 = vsel %vm436, %v431, 0.0
    %vm438 = vcmp.gt.s32.totalorder %v42, 15
    %v439 = vadd.f32 %v319, %v403
    %v440 = vxor.u32 %v439, 2147483648
    %v441 = vmul.f32 %v440, 1.442695
    %v442 = vpow.pop %v441
    %v443 = vadd.f32 %v442, 1.0
    %v444 = vrcp.pop %v443
    %v445 = vmul.f32 1.0, %v444
    %447 = vrot.lane.b32.xlu0 %v403, 64
    %v448 = vpop.permute.xlu0 %447
    %v450 = vmul.f32 %v412, %v448
    %452 = vrot.lane.b32.xlu0 %v450, 64
    %v453 = vpop.permute.xlu0 %452
    %v455 = vadd.f32 %v319, %v453
    %v456 = vtanh.pop %v455
    %v457 = vsub.f32 1.0, %v445
    %459 = vrot.lane.b32.xlu0 %v456, 96
    %v460 = vpop.permute.xlu0 %459
    %v462 = vmul.f32 %v457, %v460
    %v463 = vmul.f32 %v445, 0.0
    %v464 = vadd.f32 %v462, %v463
    %v465 = vsel %vm438, 1, 0
    %466 = vset.pattern.permute.xlu0 0
    %467 = vperm.xlu0 %466, %v465
    %v468 = vpop.permute.xlu0 %467
    %vm469 = vcmp.eq.s32.totalorder %v468, 1
    %v470 = vsel %vm469, %v464, 0.0
    %472 = vrot.lane.b32.xlu0 %v437, 96
    %v473 = vpop.permute.xlu0 %472
    %476 = vrot.lane.b32.xlu0 %v470, 32
    %v477 = vpop.permute.xlu0 %476
    %vm479 = vcmask 261120
    %v480 = vsel %vm479, %v473, %v477
    %s481 = smul.u32 1, 2
    %s482 = smul.addr %s481, 8
    %s483 = scalar_lea.vmem [#allocation2], %s482
    %v484 = vld [vmem:[%s483] sm:$0xff]
    %v485 = vld [vmem:[%s483 + $0x8] sm:$0xff]
    %v487 = vsel %vm266, %v480, 0
    %489 = vmatprep.subr.mxu0 %v299
    %490 = vmatpush1.msra.mxu0 %v298
    %491 = vmatprep.subr.mxu0 %v301
    %492 = vmatpush1.msra.mxu0 %v300
    %493 = vmatprep.subr.mxu0 %v303
    %494 = vmatpush1.msra.mxu0 %v302
    %495 = vmatprep.subr.mxu0 %v305
    %496 = vmatpush1.msra.mxu0 %v304
    %497 = vmatprep.subr.mxu0 %v307
    %498 = vmatpush1.msra.mxu0 %v306
    %499 = vmatprep.subr.mxu0 %v309
    %500 = vmatpush1.msra.mxu0 %v308
    %501 = vmatprep.subr.mxu0 %v311
    %502 = vmatpush1.msra.mxu0 %v310
    %503 = vmatprep.subr.mxu0 %v313
    %504 = vmatpush1.msra.mxu0 %v312
    %505 = vmatprep.subr.mxu0 0.0
    %506 = vmatpush1.msra.mxu0 0.0
    %507 = vmatprep.subr.mxu0 0.0
    %508 = vmatpush1.msra.mxu0 0.0
    %509 = vmatprep.subr.mxu0 0.0
    %510 = vmatpush1.msra.mxu0 0.0
    %511 = vmatprep.subr.mxu0 0.0
    %512 = vmatpush1.msra.mxu0 0.0
    %513 = vmatprep.subr.mxu0 0.0
    %514 = vmatpush1.msra.mxu0 0.0
    %515 = vmatprep.subr.mxu0 0.0
    %516 = vmatpush1.msra.mxu0 0.0
    %517 = vmatprep.subr.mxu0 0.0
    %518 = vmatpush1.msra.mxu0 0.0
    %519 = vmatprep.subr.mxu0 0.0
    %520 = vmatpush1.msra.mxu0 0.0
    %521 = vmatprep.subr.mxu0 0.0
    %522 = vmatpush1.msra.mxu0 0.0
    %523 = vmatprep.subr.mxu0 0.0
    %524 = vmatpush1.msra.mxu0 0.0
    %525 = vmatprep.subr.mxu0 0.0
    %526 = vmatpush1.msra.mxu0 0.0
    %527 = vmatprep.subr.mxu0 0.0
    %528 = vmatpush1.msra.mxu0 0.0
    %529 = vmatprep.subr.mxu0 0.0
    %530 = vmatpush1.msra.mxu0 0.0
    %531 = vmatprep.subr.mxu0 0.0
    %532 = vmatpush1.msra.mxu0 0.0
    %533 = vmatprep.subr.mxu0 0.0
    %534 = vmatpush1.msra.mxu0 0.0
    %535 = vmatprep.subr.mxu0 0.0
    %536 = vmatpush1.msra.mxu0 0.0
    %537 = vmatprep.subr.mxu0 0.0
    %538 = vmatpush1.msra.mxu0 0.0
    %539 = vmatprep.subr.mxu0 0.0
    %540 = vmatpush1.msra.mxu0 0.0
    %541 = vmatprep.subr.mxu0 0.0
    %542 = vmatpush1.msra.mxu0 0.0
    %543 = vmatprep.subr.mxu0 0.0
    %544 = vmatpush1.msra.mxu0 0.0
    %545 = vmatprep.subr.mxu0 0.0
    %546 = vmatpush1.msra.mxu0 0.0
    %547 = vmatprep.subr.mxu0 0.0
    %548 = vmatpush1.msra.mxu0 0.0
    %549 = vmatprep.subr.mxu0 0.0
    %550 = vmatpush1.msra.mxu0 0.0
    %551 = vmatprep.subr.mxu0 0.0
    %552 = vmatpush1.msra.mxu0 0.0
    %553 = vmatprep.mubr.f32.mxu0 0.0
    %554 = vmatmul.mubr.f32.gmra.mrb[0].mxu0 %v487
    %v555 = vpop.f32.mrb[0].mxu0
    %v556 = vadd.f32 %v324, %v555
    %v557 = vpop.f32.mrb[0].mxu0
    %v558 = vadd.f32 %v328, %v557
    %559 = vdwg.mxu0
    %vm560 = vcmp.gt.s32.totalorder %v42, 1
    %v561 = vadd.f32 %v484, %v556
    %v562 = vxor.u32 %v561, 2147483648
    %v563 = vmul.f32 %v562, 1.442695
    %v564 = vpow.pop %v563
    %v565 = vadd.f32 %v564, 1.0
    %v566 = vrcp.pop %v565
    %v567 = vmul.f32 1.0, %v566
    %569 = vrot.lane.b32.xlu0 %v556, 64
    %v570 = vpop.permute.xlu0 %569
    %v572 = vmul.f32 %v567, %v570
    %574 = vrot.lane.b32.xlu0 %v572, 64
    %v575 = vpop.permute.xlu0 %574
    %v577 = vadd.f32 %v484, %v575
    %v578 = vtanh.pop %v577
    %v579 = vsub.f32 1.0, %v567
    %581 = vrot.lane.b32.xlu0 %v578, 96
    %v582 = vpop.permute.xlu0 %581
    %v584 = vmul.f32 %v579, %v582
    %585 = vrot.lane.b32.xlu0 %v480, 32
    %v586 = vpop.permute.xlu0 %585
    %v588 = vmul.f32 %v567, %v586
    %v589 = vadd.f32 %v584, %v588
    %v590 = vsel %vm560, 1, 0
    %591 = vset.pattern.permute.xlu0 0
    %592 = vperm.xlu0 %591, %v590
    %v593 = vpop.permute.xlu0 %592
    %vm594 = vcmp.eq.s32.totalorder %v593, 1
    %v595 = vsel %vm594, %v589, %v586
    %vm596 = vcmp.gt.s32.totalorder %v42, 14
    %v597 = vadd.f32 %v485, %v558
    %v598 = vxor.u32 %v597, 2147483648
    %v599 = vmul.f32 %v598, 1.442695
    %v600 = vpow.pop %v599
    %v601 = vadd.f32 %v600, 1.0
    %v602 = vrcp.pop %v601
    %v603 = vmul.f32 1.0, %v602
    %605 = vrot.lane.b32.xlu0 %v558, 64
    %v606 = vpop.permute.xlu0 %605
    %v608 = vmul.f32 %v567, %v606
    %610 = vrot.lane.b32.xlu0 %v608, 64
    %v611 = vpop.permute.xlu0 %610
    %v613 = vadd.f32 %v485, %v611
    %v614 = vtanh.pop %v613
    %v615 = vsub.f32 1.0, %v603
    %617 = vrot.lane.b32.xlu0 %v614, 96
    %v618 = vpop.permute.xlu0 %617
    %v620 = vmul.f32 %v615, %v618
    %621 = vrot.lane.b32.xlu0 %v480, 96
    %v622 = vpop.permute.xlu0 %621
    %v624 = vmul.f32 %v603, %v622
    %v625 = vadd.f32 %v620, %v624
    %v626 = vsel %vm596, 1, 0
    %627 = vset.pattern.permute.xlu0 0
    %628 = vperm.xlu0 %627, %v626
    %v629 = vpop.permute.xlu0 %628
    %vm630 = vcmp.eq.s32.totalorder %v629, 1
    %v631 = vsel %vm630, %v625, %v622
    %633 = vrot.lane.b32.xlu0 %v595, 96
    %v634 = vpop.permute.xlu0 %633
    %637 = vrot.lane.b32.xlu0 %v631, 32
    %v638 = vpop.permute.xlu0 %637
    %v640 = vsel %vm479, %v634, %v638
    %s641 = smul.u32 2, 2
    %s642 = smul.addr %s641, 8
    %s643 = scalar_lea.vmem [#allocation2], %s642
    %v644 = vld [vmem:[%s643] sm:$0xff]
    %v645 = vld [vmem:[%s643 + $0x8] sm:$0xff]
    %v647 = vsel %vm266, %v640, 0
    %649 = vmatprep.subr.mxu0 %v299
    %650 = vmatpush1.msra.mxu0 %v298
    %651 = vmatprep.subr.mxu0 %v301
    %652 = vmatpush1.msra.mxu0 %v300
    %653 = vmatprep.subr.mxu0 %v303
    %654 = vmatpush1.msra.mxu0 %v302
    %655 = vmatprep.subr.mxu0 %v305
    %656 = vmatpush1.msra.mxu0 %v304
    %657 = vmatprep.subr.mxu0 %v307
    %658 = vmatpush1.msra.mxu0 %v306
    %659 = vmatprep.subr.mxu0 %v309
    %660 = vmatpush1.msra.mxu0 %v308
    %661 = vmatprep.subr.mxu0 %v311
    %662 = vmatpush1.msra.mxu0 %v310
    %663 = vmatprep.subr.mxu0 %v313
    %664 = vmatpush1.msra.mxu0 %v312
    %665 = vmatprep.subr.mxu0 0.0
    %666 = vmatpush1.msra.mxu0 0.0
    %667 = vmatprep.subr.mxu0 0.0
    %668 = vmatpush1.msra.mxu0 0.0
    %669 = vmatprep.subr.mxu0 0.0
    %670 = vmatpush1.msra.mxu0 0.0
    %671 = vmatprep.subr.mxu0 0.0
    %672 = vmatpush1.msra.mxu0 0.0
    %673 = vmatprep.subr.mxu0 0.0
    %674 = vmatpush1.msra.mxu0 0.0
    %675 = vmatprep.subr.mxu0 0.0
    %676 = vmatpush1.msra.mxu0 0.0
    %677 = vmatprep.subr.mxu0 0.0
    %678 = vmatpush1.msra.mxu0 0.0
    %679 = vmatprep.subr.mxu0 0.0
    %680 = vmatpush1.msra.mxu0 0.0
    %681 = vmatprep.subr.mxu0 0.0
    %682 = vmatpush1.msra.mxu0 0.0
    %683 = vmatprep.subr.mxu0 0.0
    %684 = vmatpush1.msra.mxu0 0.0
    %685 = vmatprep.subr.mxu0 0.0
    %686 = vmatpush1.msra.mxu0 0.0
    %687 = vmatprep.subr.mxu0 0.0
    %688 = vmatpush1.msra.mxu0 0.0
    %689 = vmatprep.subr.mxu0 0.0
    %690 = vmatpush1.msra.mxu0 0.0
    %691 = vmatprep.subr.mxu0 0.0
    %692 = vmatpush1.msra.mxu0 0.0
    %693 = vmatprep.subr.mxu0 0.0
    %694 = vmatpush1.msra.mxu0 0.0
    %695 = vmatprep.subr.mxu0 0.0
    %696 = vmatpush1.msra.mxu0 0.0
    %697 = vmatprep.subr.mxu0 0.0
    %698 = vmatpush1.msra.mxu0 0.0
    %699 = vmatprep.subr.mxu0 0.0
    %700 = vmatpush1.msra.mxu0 0.0
    %701 = vmatprep.subr.mxu0 0.0
    %702 = vmatpush1.msra.mxu0 0.0
    %703 = vmatprep.subr.mxu0 0.0
    %704 = vmatpush1.msra.mxu0 0.0
    %705 = vmatprep.subr.mxu0 0.0
    %706 = vmatpush1.msra.mxu0 0.0
    %707 = vmatprep.subr.mxu0 0.0
    %708 = vmatpush1.msra.mxu0 0.0
    %709 = vmatprep.subr.mxu0 0.0
    %710 = vmatpush1.msra.mxu0 0.0
    %711 = vmatprep.subr.mxu0 0.0
    %712 = vmatpush1.msra.mxu0 0.0
    %713 = vmatprep.mubr.f32.mxu0 0.0
    %714 = vmatmul.mubr.f32.gmra.mrb[0].mxu0 %v647
    %v715 = vpop.f32.mrb[0].mxu0
    %v716 = vadd.f32 %v324, %v715
    %v717 = vpop.f32.mrb[0].mxu0
    %v718 = vadd.f32 %v328, %v717
    %719 = vdwg.mxu0
    %vm720 = vcmp.gt.s32.totalorder %v42, 2
    %v721 = vadd.f32 %v644, %v716
    %v722 = vxor.u32 %v721, 2147483648
    %v723 = vmul.f32 %v722, 1.442695
    %v724 = vpow.pop %v723
    %v725 = vadd.f32 %v724, 1.0
    %v726 = vrcp.pop %v725
    %v727 = vmul.f32 1.0, %v726
    %729 = vrot.lane.b32.xlu0 %v716, 64
    %v730 = vpop.permute.xlu0 %729
    %v732 = vmul.f32 %v727, %v730
    %734 = vrot.lane.b32.xlu0 %v732, 64
    %v735 = vpop.permute.xlu0 %734
    %v737 = vadd.f32 %v644, %v735
    %v738 = vtanh.pop %v737
    %v739 = vsub.f32 1.0, %v727
    %741 = vrot.lane.b32.xlu0 %v738, 96
    %v742 = vpop.permute.xlu0 %741
    %v744 = vmul.f32 %v739, %v742
    %745 = vrot.lane.b32.xlu0 %v640, 32
    %v746 = vpop.permute.xlu0 %745
    %v748 = vmul.f32 %v727, %v746
    %v749 = vadd.f32 %v744, %v748
    %v750 = vsel %vm720, 1, 0
    %751 = vset.pattern.permute.xlu0 0
    %752 = vperm.xlu0 %751, %v750
    %v753 = vpop.permute.xlu0 %752
    %vm754 = vcmp.eq.s32.totalorder %v753, 1
    %v755 = vsel %vm754, %v749, %v746
    %vm756 = vcmp.gt.s32.totalorder %v42, 13
    %v757 = vadd.f32 %v645, %v718
    %v758 = vxor.u32 %v757, 2147483648
    %v759 = vmul.f32 %v758, 1.442695
    %v760 = vpow.pop %v759
    %v761 = vadd.f32 %v760, 1.0
    %v762 = vrcp.pop %v761
    %v763 = vmul.f32 1.0, %v762
    %765 = vrot.lane.b32.xlu0 %v718, 64
    %v766 = vpop.permute.xlu0 %765
    %v768 = vmul.f32 %v727, %v766
    %770 = vrot.lane.b32.xlu0 %v768, 64
    %v771 = vpop.permute.xlu0 %770
    %v773 = vadd.f32 %v645, %v771
    %v774 = vtanh.pop %v773
    %v775 = vsub.f32 1.0, %v763
    %777 = vrot.lane.b32.xlu0 %v774, 96
    %v778 = vpop.permute.xlu0 %777
    %v780 = vmul.f32 %v775, %v778
    %781 = vrot.lane.b32.xlu0 %v640, 96
    %v782 = vpop.permute.xlu0 %781
    %v784 = vmul.f32 %v763, %v782
    %v785 = vadd.f32 %v780, %v784
    %v786 = vsel %vm756, 1, 0
    %787 = vset.pattern.permute.xlu0 0
    %788 = vperm.xlu0 %787, %v786
    %v789 = vpop.permute.xlu0 %788
    %vm790 = vcmp.eq.s32.totalorder %v789, 1
    %v791 = vsel %vm790, %v785, %v782
    %793 = vrot.lane.b32.xlu0 %v755, 96
    %v794 = vpop.permute.xlu0 %793
    %797 = vrot.lane.b32.xlu0 %v791, 32
    %v798 = vpop.permute.xlu0 %797
    %v800 = vsel %vm479, %v794, %v798
    %s801 = smul.u32 3, 2
    %s802 = smul.addr %s801, 8
    %s803 = scalar_lea.vmem [#allocation2], %s802
    %v804 = vld [vmem:[%s803] sm:$0xff]
    %v805 = vld [vmem:[%s803 + $0x8] sm:$0xff]
    %v807 = vsel %vm266, %v800, 0
    %809 = vmatprep.subr.mxu0 %v299
    %810 = vmatpush1.msra.mxu0 %v298
    %811 = vmatprep.subr.mxu0 %v301
    %812 = vmatpush1.msra.mxu0 %v300
    %813 = vmatprep.subr.mxu0 %v303
    %814 = vmatpush1.msra.mxu0 %v302
    %815 = vmatprep.subr.mxu0 %v305
    %816 = vmatpush1.msra.mxu0 %v304
    %817 = vmatprep.subr.mxu0 %v307
    %818 = vmatpush1.msra.mxu0 %v306
    %819 = vmatprep.subr.mxu0 %v309
    %820 = vmatpush1.msra.mxu0 %v308
    %821 = vmatprep.subr.mxu0 %v311
    %822 = vmatpush1.msra.mxu0 %v310
    %823 = vmatprep.subr.mxu0 %v313
    %824 = vmatpush1.msra.mxu0 %v312
    %825 = vmatprep.subr.mxu0 0.0
    %826 = vmatpush1.msra.mxu0 0.0
    %827 = vmatprep.subr.mxu0 0.0
    %828 = vmatpush1.msra.mxu0 0.0
    %829 = vmatprep.subr.mxu0 0.0
    %830 = vmatpush1.msra.mxu0 0.0
    %831 = vmatprep.subr.mxu0 0.0
    %832 = vmatpush1.msra.mxu0 0.0
    %833 = vmatprep.subr.mxu0 0.0
    %834 = vmatpush1.msra.mxu0 0.0
    %835 = vmatprep.subr.mxu0 0.0
    %836 = vmatpush1.msra.mxu0 0.0
    %837 = vmatprep.subr.mxu0 0.0
    %838 = vmatpush1.msra.mxu0 0.0
    %839 = vmatprep.subr.mxu0 0.0
    %840 = vmatpush1.msra.mxu0 0.0
    %841 = vmatprep.subr.mxu0 0.0
    %842 = vmatpush1.msra.mxu0 0.0
    %843 = vmatprep.subr.mxu0 0.0
    %844 = vmatpush1.msra.mxu0 0.0
    %845 = vmatprep.subr.mxu0 0.0
    %846 = vmatpush1.msra.mxu0 0.0
    %847 = vmatprep.subr.mxu0 0.0
    %848 = vmatpush1.msra.mxu0 0.0
    %849 = vmatprep.subr.mxu0 0.0
    %850 = vmatpush1.msra.mxu0 0.0
    %851 = vmatprep.subr.mxu0 0.0
    %852 = vmatpush1.msra.mxu0 0.0
    %853 = vmatprep.subr.mxu0 0.0
    %854 = vmatpush1.msra.mxu0 0.0
    %855 = vmatprep.subr.mxu0 0.0
    %856 = vmatpush1.msra.mxu0 0.0
    %857 = vmatprep.subr.mxu0 0.0
    %858 = vmatpush1.msra.mxu0 0.0
    %859 = vmatprep.subr.mxu0 0.0
    %860 = vmatpush1.msra.mxu0 0.0
    %861 = vmatprep.subr.mxu0 0.0
    %862 = vmatpush1.msra.mxu0 0.0
    %863 = vmatprep.subr.mxu0 0.0
    %864 = vmatpush1.msra.mxu0 0.0
    %865 = vmatprep.subr.mxu0 0.0
    %866 = vmatpush1.msra.mxu0 0.0
    %867 = vmatprep.subr.mxu0 0.0
    %868 = vmatpush1.msra.mxu0 0.0
    %869 = vmatprep.subr.mxu0 0.0
    %870 = vmatpush1.msra.mxu0 0.0
    %871 = vmatprep.subr.mxu0 0.0
    %872 = vmatpush1.msra.mxu0 0.0
    %873 = vmatprep.mubr.f32.mxu0 0.0
    %874 = vmatmul.mubr.f32.gmra.mrb[0].mxu0 %v807
    %v875 = vpop.f32.mrb[0].mxu0
    %v876 = vadd.f32 %v324, %v875
    %v877 = vpop.f32.mrb[0].mxu0
    %v878 = vadd.f32 %v328, %v877
    %879 = vdwg.mxu0
    %vm880 = vcmp.gt.s32.totalorder %v42, 3
    %v881 = vadd.f32 %v804, %v876
    %v882 = vxor.u32 %v881, 2147483648
    %v883 = vmul.f32 %v882, 1.442695
    %v884 = vpow.pop %v883
    %v885 = vadd.f32 %v884, 1.0
    %v886 = vrcp.pop %v885
    %v887 = vmul.f32 1.0, %v886
    %889 = vrot.lane.b32.xlu0 %v876, 64
    %v890 = vpop.permute.xlu0 %889
    %v892 = vmul.f32 %v887, %v890
    %894 = vrot.lane.b32.xlu0 %v892, 64
    %v895 = vpop.permute.xlu0 %894
    %v897 = vadd.f32 %v804, %v895
    %v898 = vtanh.pop %v897
    %v899 = vsub.f32 1.0, %v887
    %901 = vrot.lane.b32.xlu0 %v898, 96
    %v902 = vpop.permute.xlu0 %901
    %v904 = vmul.f32 %v899, %v902
    %905 = vrot.lane.b32.xlu0 %v800, 32
    %v906 = vpop.permute.xlu0 %905
    %v908 = vmul.f32 %v887, %v906
    %v909 = vadd.f32 %v904, %v908
    %v910 = vsel %vm880, 1, 0
    %911 = vset.pattern.permute.xlu0 0
    %912 = vperm.xlu0 %911, %v910
    %v913 = vpop.permute.xlu0 %912
    %vm914 = vcmp.eq.s32.totalorder %v913, 1
    %v915 = vsel %vm914, %v909, %v906
    %vm916 = vcmp.gt.s32.totalorder %v42, 12
    %v917 = vadd.f32 %v805, %v878
    %v918 = vxor.u32 %v917, 2147483648
    %v919 = vmul.f32 %v918, 1.442695
    %v920 = vpow.pop %v919
    %v921 = vadd.f32 %v920, 1.0
    %v922 = vrcp.pop %v921
    %v923 = vmul.f32 1.0, %v922
    %925 = vrot.lane.b32.xlu0 %v878, 64
    %v926 = vpop.permute.xlu0 %925
    %v928 = vmul.f32 %v887, %v926
    %930 = vrot.lane.b32.xlu0 %v928, 64
    %v931 = vpop.permute.xlu0 %930
    %v933 = vadd.f32 %v805, %v931
    %v934 = vtanh.pop %v933
    %v935 = vsub.f32 1.0, %v923
    %937 = vrot.lane.b32.xlu0 %v934, 96
    %v938 = vpop.permute.xlu0 %937
    %v940 = vmul.f32 %v935, %v938
    %941 = vrot.lane.b32.xlu0 %v800, 96
    %v942 = vpop.permute.xlu0 %941
    %v944 = vmul.f32 %v923, %v942
    %v945 = vadd.f32 %v940, %v944
    %v946 = vsel %vm916, 1, 0
    %947 = vset.pattern.permute.xlu0 0
    %948 = vperm.xlu0 %947, %v946
    %v949 = vpop.permute.xlu0 %948
    %vm950 = vcmp.eq.s32.totalorder %v949, 1
    %v951 = vsel %vm950, %v945, %v942
    %953 = vrot.lane.b32.xlu0 %v915, 96
    %v954 = vpop.permute.xlu0 %953
    %957 = vrot.lane.b32.xlu0 %v951, 32
    %v958 = vpop.permute.xlu0 %957
    %v960 = vsel %vm479, %v954, %v958
    %s961 = smul.u32 4, 2
    %s962 = smul.addr %s961, 8
    %s963 = scalar_lea.vmem [#allocation2], %s962
    %v964 = vld [vmem:[%s963] sm:$0xff]
    %v965 = vld [vmem:[%s963 + $0x8] sm:$0xff]
    %v967 = vsel %vm266, %v960, 0
    %969 = vmatprep.subr.mxu0 %v299
    %970 = vmatpush1.msra.mxu0 %v298
    %971 = vmatprep.subr.mxu0 %v301
    %972 = vmatpush1.msra.mxu0 %v300
    %973 = vmatprep.subr.mxu0 %v303
    %974 = vmatpush1.msra.mxu0 %v302
    %975 = vmatprep.subr.mxu0 %v305
    %976 = vmatpush1.msra.mxu0 %v304
    %977 = vmatprep.subr.mxu0 %v307
    %978 = vmatpush1.msra.mxu0 %v306
    %979 = vmatprep.subr.mxu0 %v309
    %980 = vmatpush1.msra.mxu0 %v308
    %981 = vmatprep.subr.mxu0 %v311
    %982 = vmatpush1.msra.mxu0 %v310
    %983 = vmatprep.subr.mxu0 %v313
    %984 = vmatpush1.msra.mxu0 %v312
    %985 = vmatprep.subr.mxu0 0.0
    %986 = vmatpush1.msra.mxu0 0.0
    %987 = vmatprep.subr.mxu0 0.0
    %988 = vmatpush1.msra.mxu0 0.0
    %989 = vmatprep.subr.mxu0 0.0
    %990 = vmatpush1.msra.mxu0 0.0
    %991 = vmatprep.subr.mxu0 0.0
    %992 = vmatpush1.msra.mxu0 0.0
    %993 = vmatprep.subr.mxu0 0.0
    %994 = vmatpush1.msra.mxu0 0.0
    %995 = vmatprep.subr.mxu0 0.0
    %996 = vmatpush1.msra.mxu0 0.0
    %997 = vmatprep.subr.mxu0 0.0
    %998 = vmatpush1.msra.mxu0 0.0
    %999 = vmatprep.subr.mxu0 0.0
    %1000 = vmatpush1.msra.mxu0 0.0
    %1001 = vmatprep.subr.mxu0 0.0
    %1002 = vmatpush1.msra.mxu0 0.0
    %1003 = vmatprep.subr.mxu0 0.0
    %1004 = vmatpush1.msra.mxu0 0.0
    %1005 = vmatprep.subr.mxu0 0.0
    %1006 = vmatpush1.msra.mxu0 0.0
    %1007 = vmatprep.subr.mxu0 0.0
    %1008 = vmatpush1.msra.mxu0 0.0
    %1009 = vmatprep.subr.mxu0 0.0
    %1010 = vmatpush1.msra.mxu0 0.0
    %1011 = vmatprep.subr.mxu0 0.0
    %1012 = vmatpush1.msra.mxu0 0.0
    %1013 = vmatprep.subr.mxu0 0.0
    %1014 = vmatpush1.msra.mxu0 0.0
    %1015 = vmatprep.subr.mxu0 0.0
    %1016 = vmatpush1.msra.mxu0 0.0
    %1017 = vmatprep.subr.mxu0 0.0
    %1018 = vmatpush1.msra.mxu0 0.0
    %1019 = vmatprep.subr.mxu0 0.0
    %1020 = vmatpush1.msra.mxu0 0.0
    %1021 = vmatprep.subr.mxu0 0.0
    %1022 = vmatpush1.msra.mxu0 0.0
    %1023 = vmatprep.subr.mxu0 0.0
    %1024 = vmatpush1.msra.mxu0 0.0
    %1025 = vmatprep.subr.mxu0 0.0
    %1026 = vmatpush1.msra.mxu0 0.0
    %1027 = vmatprep.subr.mxu0 0.0
    %1028 = vmatpush1.msra.mxu0 0.0
    %1029 = vmatprep.subr.mxu0 0.0
    %1030 = vmatpush1.msra.mxu0 0.0
    %1031 = vmatprep.subr.mxu0 0.0
    %1032 = vmatpush1.msra.mxu0 0.0
    %1033 = vmatprep.mubr.f32.mxu0 0.0
    %1034 = vmatmul.mubr.f32.gmra.mrb[0].mxu0 %v967
    %v1035 = vpop.f32.mrb[0].mxu0
    %v1036 = vadd.f32 %v324, %v1035
    %v1037 = vpop.f32.mrb[0].mxu0
    %v1038 = vadd.f32 %v328, %v1037
    %1039 = vdwg.mxu0
    %vm1040 = vcmp.gt.s32.totalorder %v42, 4
    %v1041 = vadd.f32 %v964, %v1036
    %v1042 = vxor.u32 %v1041, 2147483648
    %v1043 = vmul.f32 %v1042, 1.442695
    %v1044 = vpow.pop %v1043
    %v1045 = vadd.f32 %v1044, 1.0
    %v1046 = vrcp.pop %v1045
    %v1047 = vmul.f32 1.0, %v1046
    %1049 = vrot.lane.b32.xlu0 %v1036, 64
    %v1050 = vpop.permute.xlu0 %1049
    %v1052 = vmul.f32 %v1047, %v1050
    %1054 = vrot.lane.b32.xlu0 %v1052, 64
    %v1055 = vpop.permute.xlu0 %1054
    %v1057 = vadd.f32 %v964, %v1055
    %v1058 = vtanh.pop %v1057
    %v1059 = vsub.f32 1.0, %v1047
    %1061 = vrot.lane.b32.xlu0 %v1058, 96
    %v1062 = vpop.permute.xlu0 %1061
    %v1064 = vmul.f32 %v1059, %v1062
    %1065 = vrot.lane.b32.xlu0 %v960, 32
    %v1066 = vpop.permute.xlu0 %1065
    %v1068 = vmul.f32 %v1047, %v1066
    %v1069 = vadd.f32 %v1064, %v1068
    %v1070 = vsel %vm1040, 1, 0
    %1071 = vset.pattern.permute.xlu0 0
    %1072 = vperm.xlu0 %1071, %v1070
    %v1073 = vpop.permute.xlu0 %1072
    %vm1074 = vcmp.eq.s32.totalorder %v1073, 1
    %v1075 = vsel %vm1074, %v1069, %v1066
    %vm1076 = vcmp.gt.s32.totalorder %v42, 11
    %v1077 = vadd.f32 %v965, %v1038
    %v1078 = vxor.u32 %v1077, 2147483648
    %v1079 = vmul.f32 %v1078, 1.442695
    %v1080 = vpow.pop %v1079
    %v1081 = vadd.f32 %v1080, 1.0
    %v1082 = vrcp.pop %v1081
    %v1083 = vmul.f32 1.0, %v1082
    %1085 = vrot.lane.b32.xlu0 %v1038, 64
    %v1086 = vpop.permute.xlu0 %1085
    %v1088 = vmul.f32 %v1047, %v1086
    %1090 = vrot.lane.b32.xlu0 %v1088, 64
    %v1091 = vpop.permute.xlu0 %1090
    %v1093 = vadd.f32 %v965, %v1091
    %v1094 = vtanh.pop %v1093
    %v1095 = vsub.f32 1.0, %v1083
    %1097 = vrot.lane.b32.xlu0 %v1094, 96
    %v1098 = vpop.permute.xlu0 %1097
    %v1100 = vmul.f32 %v1095, %v1098
    %1101 = vrot.lane.b32.xlu0 %v960, 96
    %v1102 = vpop.permute.xlu0 %1101
    %v1104 = vmul.f32 %v1083, %v1102
    %v1105 = vadd.f32 %v1100, %v1104
    %v1106 = vsel %vm1076, 1, 0
    %1107 = vset.pattern.permute.xlu0 0
    %1108 = vperm.xlu0 %1107, %v1106
    %v1109 = vpop.permute.xlu0 %1108
    %vm1110 = vcmp.eq.s32.totalorder %v1109, 1
    %v1111 = vsel %vm1110, %v1105, %v1102
    %1113 = vrot.lane.b32.xlu0 %v1075, 96
    %v1114 = vpop.permute.xlu0 %1113
    %1117 = vrot.lane.b32.xlu0 %v1111, 32
    %v1118 = vpop.permute.xlu0 %1117
    %v1120 = vsel %vm479, %v1114, %v1118
    %s1121 = smul.u32 5, 2
    %s1122 = smul.addr %s1121, 8
    %s1123 = scalar_lea.vmem [#allocation2], %s1122
    %v1124 = vld [vmem:[%s1123] sm:$0xff]
    %v1125 = vld [vmem:[%s1123 + $0x8] sm:$0xff]
    %v1127 = vsel %vm266, %v1120, 0
    %1129 = vmatprep.subr.mxu0 %v299
    %1130 = vmatpush1.msra.mxu0 %v298
    %1131 = vmatprep.subr.mxu0 %v301
    %1132 = vmatpush1.msra.mxu0 %v300
    %1133 = vmatprep.subr.mxu0 %v303
    %1134 = vmatpush1.msra.mxu0 %v302
    %1135 = vmatprep.subr.mxu0 %v305
    %1136 = vmatpush1.msra.mxu0 %v304
    %1137 = vmatprep.subr.mxu0 %v307
    %1138 = vmatpush1.msra.mxu0 %v306
    %1139 = vmatprep.subr.mxu0 %v309
    %1140 = vmatpush1.msra.mxu0 %v308
    %1141 = vmatprep.subr.mxu0 %v311
    %1142 = vmatpush1.msra.mxu0 %v310
    %1143 = vmatprep.subr.mxu0 %v313
    %1144 = vmatpush1.msra.mxu0 %v312
    %1145 = vmatprep.subr.mxu0 0.0
    %1146 = vmatpush1.msra.mxu0 0.0
    %1147 = vmatprep.subr.mxu0 0.0
    %1148 = vmatpush1.msra.mxu0 0.0
    %1149 = vmatprep.subr.mxu0 0.0
    %1150 = vmatpush1.msra.mxu0 0.0
    %1151 = vmatprep.subr.mxu0 0.0
    %1152 = vmatpush1.msra.mxu0 0.0
    %1153 = vmatprep.subr.mxu0 0.0
    %1154 = vmatpush1.msra.mxu0 0.0
    %1155 = vmatprep.subr.mxu0 0.0
    %1156 = vmatpush1.msra.mxu0 0.0
    %1157 = vmatprep.subr.mxu0 0.0
    %1158 = vmatpush1.msra.mxu0 0.0
    %1159 = vmatprep.subr.mxu0 0.0
    %1160 = vmatpush1.msra.mxu0 0.0
    %1161 = vmatprep.subr.mxu0 0.0
    %1162 = vmatpush1.msra.mxu0 0.0
    %1163 = vmatprep.subr.mxu0 0.0
    %1164 = vmatpush1.msra.mxu0 0.0
    %1165 = vmatprep.subr.mxu0 0.0
    %1166 = vmatpush1.msra.mxu0 0.0
    %1167 = vmatprep.subr.mxu0 0.0
    %1168 = vmatpush1.msra.mxu0 0.0
    %1169 = vmatprep.subr.mxu0 0.0
    %1170 = vmatpush1.msra.mxu0 0.0
    %1171 = vmatprep.subr.mxu0 0.0
    %1172 = vmatpush1.msra.mxu0 0.0
    %1173 = vmatprep.subr.mxu0 0.0
    %1174 = vmatpush1.msra.mxu0 0.0
    %1175 = vmatprep.subr.mxu0 0.0
    %1176 = vmatpush1.msra.mxu0 0.0
    %1177 = vmatprep.subr.mxu0 0.0
    %1178 = vmatpush1.msra.mxu0 0.0
    %1179 = vmatprep.subr.mxu0 0.0
    %1180 = vmatpush1.msra.mxu0 0.0
    %1181 = vmatprep.subr.mxu0 0.0
    %1182 = vmatpush1.msra.mxu0 0.0
    %1183 = vmatprep.subr.mxu0 0.0
    %1184 = vmatpush1.msra.mxu0 0.0
    %1185 = vmatprep.subr.mxu0 0.0
    %1186 = vmatpush1.msra.mxu0 0.0
    %1187 = vmatprep.subr.mxu0 0.0
    %1188 = vmatpush1.msra.mxu0 0.0
    %1189 = vmatprep.subr.mxu0 0.0
    %1190 = vmatpush1.msra.mxu0 0.0
    %1191 = vmatprep.subr.mxu0 0.0
    %1192 = vmatpush1.msra.mxu0 0.0
    %1193 = vmatprep.mubr.f32.mxu0 0.0
    %1194 = vmatmul.mubr.f32.gmra.mrb[0].mxu0 %v1127
    %v1195 = vpop.f32.mrb[0].mxu0
    %v1196 = vadd.f32 %v324, %v1195
    %v1197 = vpop.f32.mrb[0].mxu0
    %v1198 = vadd.f32 %v328, %v1197
    %1199 = vdwg.mxu0
    %vm1200 = vcmp.gt.s32.totalorder %v42, 5
    %v1201 = vadd.f32 %v1124, %v1196
    %v1202 = vxor.u32 %v1201, 2147483648
    %v1203 = vmul.f32 %v1202, 1.442695
    %v1204 = vpow.pop %v1203
    %v1205 = vadd.f32 %v1204, 1.0
    %v1206 = vrcp.pop %v1205
    %v1207 = vmul.f32 1.0, %v1206
    %1209 = vrot.lane.b32.xlu0 %v1196, 64
    %v1210 = vpop.permute.xlu0 %1209
    %v1212 = vmul.f32 %v1207, %v1210
    %1214 = vrot.lane.b32.xlu0 %v1212, 64
    %v1215 = vpop.permute.xlu0 %1214
    %v1217 = vadd.f32 %v1124, %v1215
    %v1218 = vtanh.pop %v1217
    %v1219 = vsub.f32 1.0, %v1207
    %1221 = vrot.lane.b32.xlu0 %v1218, 96
    %v1222 = vpop.permute.xlu0 %1221
    %v1224 = vmul.f32 %v1219, %v1222
    %1225 = vrot.lane.b32.xlu0 %v1120, 32
    %v1226 = vpop.permute.xlu0 %1225
    %v1228 = vmul.f32 %v1207, %v1226
    %v1229 = vadd.f32 %v1224, %v1228
    %v1230 = vsel %vm1200, 1, 0
    %1231 = vset.pattern.permute.xlu0 0
    %1232 = vperm.xlu0 %1231, %v1230
    %v1233 = vpop.permute.xlu0 %1232
    %vm1234 = vcmp.eq.s32.totalorder %v1233, 1
    %v1235 = vsel %vm1234, %v1229, %v1226
    %vm1236 = vcmp.gt.s32.totalorder %v42, 10
    %v1237 = vadd.f32 %v1125, %v1198
    %v1238 = vxor.u32 %v1237, 2147483648
    %v1239 = vmul.f32 %v1238, 1.442695
    %v1240 = vpow.pop %v1239
    %v1241 = vadd.f32 %v1240, 1.0
    %v1242 = vrcp.pop %v1241
    %v1243 = vmul.f32 1.0, %v1242
    %1245 = vrot.lane.b32.xlu0 %v1198, 64
    %v1246 = vpop.permute.xlu0 %1245
    %v1248 = vmul.f32 %v1207, %v1246
    %1250 = vrot.lane.b32.xlu0 %v1248, 64
    %v1251 = vpop.permute.xlu0 %1250
    %v1253 = vadd.f32 %v1125, %v1251
    %v1254 = vtanh.pop %v1253
    %v1255 = vsub.f32 1.0, %v1243
    %1257 = vrot.lane.b32.xlu0 %v1254, 96
    %v1258 = vpop.permute.xlu0 %1257
    %v1260 = vmul.f32 %v1255, %v1258
    %1261 = vrot.lane.b32.xlu0 %v1120, 96
    %v1262 = vpop.permute.xlu0 %1261
    %v1264 = vmul.f32 %v1243, %v1262
    %v1265 = vadd.f32 %v1260, %v1264
    %v1266 = vsel %vm1236, 1, 0
    %1267 = vset.pattern.permute.xlu0 0
    %1268 = vperm.xlu0 %1267, %v1266
    %v1269 = vpop.permute.xlu0 %1268
    %vm1270 = vcmp.eq.s32.totalorder %v1269, 1
    %v1271 = vsel %vm1270, %v1265, %v1262
    %1273 = vrot.lane.b32.xlu0 %v1235, 96
    %v1274 = vpop.permute.xlu0 %1273
    %1277 = vrot.lane.b32.xlu0 %v1271, 32
    %v1278 = vpop.permute.xlu0 %1277
    %v1280 = vsel %vm479, %v1274, %v1278
    %s1281 = smul.u32 6, 2
    %s1282 = smul.addr %s1281, 8
    %s1283 = scalar_lea.vmem [#allocation2], %s1282
    %v1284 = vld [vmem:[%s1283] sm:$0xff]
    %v1285 = vld [vmem:[%s1283 + $0x8] sm:$0xff]
    %v1287 = vsel %vm266, %v1280, 0
    %1289 = vmatprep.subr.mxu0 %v299
    %1290 = vmatpush1.msra.mxu0 %v298
    %1291 = vmatprep.subr.mxu0 %v301
    %1292 = vmatpush1.msra.mxu0 %v300
    %1293 = vmatprep.subr.mxu0 %v303
    %1294 = vmatpush1.msra.mxu0 %v302
    %1295 = vmatprep.subr.mxu0 %v305
    %1296 = vmatpush1.msra.mxu0 %v304
    %1297 = vmatprep.subr.mxu0 %v307
    %1298 = vmatpush1.msra.mxu0 %v306
    %1299 = vmatprep.subr.mxu0 %v309
    %1300 = vmatpush1.msra.mxu0 %v308
    %1301 = vmatprep.subr.mxu0 %v311
    %1302 = vmatpush1.msra.mxu0 %v310
    %1303 = vmatprep.subr.mxu0 %v313
    %1304 = vmatpush1.msra.mxu0 %v312
    %1305 = vmatprep.subr.mxu0 0.0
    %1306 = vmatpush1.msra.mxu0 0.0
    %1307 = vmatprep.subr.mxu0 0.0
    %1308 = vmatpush1.msra.mxu0 0.0
    %1309 = vmatprep.subr.mxu0 0.0
    %1310 = vmatpush1.msra.mxu0 0.0
    %1311 = vmatprep.subr.mxu0 0.0
    %1312 = vmatpush1.msra.mxu0 0.0
    %1313 = vmatprep.subr.mxu0 0.0
    %1314 = vmatpush1.msra.mxu0 0.0
    %1315 = vmatprep.subr.mxu0 0.0
    %1316 = vmatpush1.msra.mxu0 0.0
    %1317 = vmatprep.subr.mxu0 0.0
    %1318 = vmatpush1.msra.mxu0 0.0
    %1319 = vmatprep.subr.mxu0 0.0
    %1320 = vmatpush1.msra.mxu0 0.0
    %1321 = vmatprep.subr.mxu0 0.0
    %1322 = vmatpush1.msra.mxu0 0.0
    %1323 = vmatprep.subr.mxu0 0.0
    %1324 = vmatpush1.msra.mxu0 0.0
    %1325 = vmatprep.subr.mxu0 0.0
    %1326 = vmatpush1.msra.mxu0 0.0
    %1327 = vmatprep.subr.mxu0 0.0
    %1328 = vmatpush1.msra.mxu0 0.0
    %1329 = vmatprep.subr.mxu0 0.0
    %1330 = vmatpush1.msra.mxu0 0.0
    %1331 = vmatprep.subr.mxu0 0.0
    %1332 = vmatpush1.msra.mxu0 0.0
    %1333 = vmatprep.subr.mxu0 0.0
    %1334 = vmatpush1.msra.mxu0 0.0
    %1335 = vmatprep.subr.mxu0 0.0
    %1336 = vmatpush1.msra.mxu0 0.0
    %1337 = vmatprep.subr.mxu0 0.0
    %1338 = vmatpush1.msra.mxu0 0.0
    %1339 = vmatprep.subr.mxu0 0.0
    %1340 = vmatpush1.msra.mxu0 0.0
    %1341 = vmatprep.subr.mxu0 0.0
    %1342 = vmatpush1.msra.mxu0 0.0
    %1343 = vmatprep.subr.mxu0 0.0
    %1344 = vmatpush1.msra.mxu0 0.0
    %1345 = vmatprep.subr.mxu0 0.0
    %1346 = vmatpush1.msra.mxu0 0.0
    %1347 = vmatprep.subr.mxu0 0.0
    %1348 = vmatpush1.msra.mxu0 0.0
    %1349 = vmatprep.subr.mxu0 0.0
    %1350 = vmatpush1.msra.mxu0 0.0
    %1351 = vmatprep.subr.mxu0 0.0
    %1352 = vmatpush1.msra.mxu0 0.0
    %1353 = vmatprep.mubr.f32.mxu0 0.0
    %1354 = vmatmul.mubr.f32.gmra.mrb[0].mxu0 %v1287
    %v1355 = vpop.f32.mrb[0].mxu0
    %v1356 = vadd.f32 %v324, %v1355
    %v1357 = vpop.f32.mrb[0].mxu0
    %v1358 = vadd.f32 %v328, %v1357
    %1359 = vdwg.mxu0
    %vm1360 = vcmp.gt.s32.totalorder %v42, 6
    %v1361 = vadd.f32 %v1284, %v1356
    %v1362 = vxor.u32 %v1361, 2147483648
    %v1363 = vmul.f32 %v1362, 1.442695
    %v1364 = vpow.pop %v1363
    %v1365 = vadd.f32 %v1364, 1.0
    %v1366 = vrcp.pop %v1365
    %v1367 = vmul.f32 1.0, %v1366
    %1369 = vrot.lane.b32.xlu0 %v1356, 64
    %v1370 = vpop.permute.xlu0 %1369
    %v1372 = vmul.f32 %v1367, %v1370
    %1374 = vrot.lane.b32.xlu0 %v1372, 64
    %v1375 = vpop.permute.xlu0 %1374
    %v1377 = vadd.f32 %v1284, %v1375
    %v1378 = vtanh.pop %v1377
    %v1379 = vsub.f32 1.0, %v1367
    %1381 = vrot.lane.b32.xlu0 %v1378, 96
    %v1382 = vpop.permute.xlu0 %1381
    %v1384 = vmul.f32 %v1379, %v1382
    %1385 = vrot.lane.b32.xlu0 %v1280, 32
    %v1386 = vpop.permute.xlu0 %1385
    %v1388 = vmul.f32 %v1367, %v1386
    %v1389 = vadd.f32 %v1384, %v1388
    %v1390 = vsel %vm1360, 1, 0
    %1391 = vset.pattern.permute.xlu0 0
    %1392 = vperm.xlu0 %1391, %v1390
    %v1393 = vpop.permute.xlu0 %1392
    %vm1394 = vcmp.eq.s32.totalorder %v1393, 1
    %v1395 = vsel %vm1394, %v1389, %v1386
    %vm1396 = vcmp.gt.s32.totalorder %v42, 9
    %v1397 = vadd.f32 %v1285, %v1358
    %v1398 = vxor.u32 %v1397, 2147483648
    %v1399 = vmul.f32 %v1398, 1.442695
    %v1400 = vpow.pop %v1399
    %v1401 = vadd.f32 %v1400, 1.0
    %v1402 = vrcp.pop %v1401
    %v1403 = vmul.f32 1.0, %v1402
    %1405 = vrot.lane.b32.xlu0 %v1358, 64
    %v1406 = vpop.permute.xlu0 %1405
    %v1408 = vmul.f32 %v1367, %v1406
    %1410 = vrot.lane.b32.xlu0 %v1408, 64
    %v1411 = vpop.permute.xlu0 %1410
    %v1413 = vadd.f32 %v1285, %v1411
    %v1414 = vtanh.pop %v1413
    %v1415 = vsub.f32 1.0, %v1403
    %1417 = vrot.lane.b32.xlu0 %v1414, 96
    %v1418 = vpop.permute.xlu0 %1417
    %v1420 = vmul.f32 %v1415, %v1418
    %1421 = vrot.lane.b32.xlu0 %v1280, 96
    %v1422 = vpop.permute.xlu0 %1421
    %v1424 = vmul.f32 %v1403, %v1422
    %v1425 = vadd.f32 %v1420, %v1424
    %v1426 = vsel %vm1396, 1, 0
    %1427 = vset.pattern.permute.xlu0 0
    %1428 = vperm.xlu0 %1427, %v1426
    %v1429 = vpop.permute.xlu0 %1428
    %vm1430 = vcmp.eq.s32.totalorder %v1429, 1
    %v1431 = vsel %vm1430, %v1425, %v1422
    %1433 = vrot.lane.b32.xlu0 %v1395, 96
    %v1434 = vpop.permute.xlu0 %1433
    %1437 = vrot.lane.b32.xlu0 %v1431, 32
    %v1438 = vpop.permute.xlu0 %1437
    %v1440 = vsel %vm479, %v1434, %v1438
    %s1441 = smul.u32 7, 2
    %s1442 = smul.addr %s1441, 8
    %s1443 = scalar_lea.vmem [#allocation2], %s1442
    %v1444 = vld [vmem:[%s1443] sm:$0xff]
    %v1445 = vld [vmem:[%s1443 + $0x8] sm:$0xff]
    %v1447 = vsel %vm266, %v1440, 0
    %1449 = vmatprep.subr.mxu0 %v299
    %1450 = vmatpush1.msra.mxu0 %v298
    %1451 = vmatprep.subr.mxu0 %v301
    %1452 = vmatpush1.msra.mxu0 %v300
    %1453 = vmatprep.subr.mxu0 %v303
    %1454 = vmatpush1.msra.mxu0 %v302
    %1455 = vmatprep.subr.mxu0 %v305
    %1456 = vmatpush1.msra.mxu0 %v304
    %1457 = vmatprep.subr.mxu0 %v307
    %1458 = vmatpush1.msra.mxu0 %v306
    %1459 = vmatprep.subr.mxu0 %v309
    %1460 = vmatpush1.msra.mxu0 %v308
    %1461 = vmatprep.subr.mxu0 %v311
    %1462 = vmatpush1.msra.mxu0 %v310
    %1463 = vmatprep.subr.mxu0 %v313
    %1464 = vmatpush1.msra.mxu0 %v312
    %1465 = vmatprep.subr.mxu0 0.0
    %1466 = vmatpush1.msra.mxu0 0.0
    %1467 = vmatprep.subr.mxu0 0.0
    %1468 = vmatpush1.msra.mxu0 0.0
    %1469 = vmatprep.subr.mxu0 0.0
    %1470 = vmatpush1.msra.mxu0 0.0
    %1471 = vmatprep.subr.mxu0 0.0
    %1472 = vmatpush1.msra.mxu0 0.0
    %1473 = vmatprep.subr.mxu0 0.0
    %1474 = vmatpush1.msra.mxu0 0.0
    %1475 = vmatprep.subr.mxu0 0.0
    %1476 = vmatpush1.msra.mxu0 0.0
    %1477 = vmatprep.subr.mxu0 0.0
    %1478 = vmatpush1.msra.mxu0 0.0
    %1479 = vmatprep.subr.mxu0 0.0
    %1480 = vmatpush1.msra.mxu0 0.0
    %1481 = vmatprep.subr.mxu0 0.0
    %1482 = vmatpush1.msra.mxu0 0.0
    %1483 = vmatprep.subr.mxu0 0.0
    %1484 = vmatpush1.msra.mxu0 0.0
    %1485 = vmatprep.subr.mxu0 0.0
    %1486 = vmatpush1.msra.mxu0 0.0
    %1487 = vmatprep.subr.mxu0 0.0
    %1488 = vmatpush1.msra.mxu0 0.0
    %1489 = vmatprep.subr.mxu0 0.0
    %1490 = vmatpush1.msra.mxu0 0.0
    %1491 = vmatprep.subr.mxu0 0.0
    %1492 = vmatpush1.msra.mxu0 0.0
    %1493 = vmatprep.subr.mxu0 0.0
    %1494 = vmatpush1.msra.mxu0 0.0
    %1495 = vmatprep.subr.mxu0 0.0
    %1496 = vmatpush1.msra.mxu0 0.0
    %1497 = vmatprep.subr.mxu0 0.0
    %1498 = vmatpush1.msra.mxu0 0.0
    %1499 = vmatprep.subr.mxu0 0.0
    %1500 = vmatpush1.msra.mxu0 0.0
    %1501 = vmatprep.subr.mxu0 0.0
    %1502 = vmatpush1.msra.mxu0 0.0
    %1503 = vmatprep.subr.mxu0 0.0
    %1504 = vmatpush1.msra.mxu0 0.0
    %1505 = vmatprep.subr.mxu0 0.0
    %1506 = vmatpush1.msra.mxu0 0.0
    %1507 = vmatprep.subr.mxu0 0.0
    %1508 = vmatpush1.msra.mxu0 0.0
    %1509 = vmatprep.subr.mxu0 0.0
    %1510 = vmatpush1.msra.mxu0 0.0
    %1511 = vmatprep.subr.mxu0 0.0
    %1512 = vmatpush1.msra.mxu0 0.0
    %1513 = vmatprep.mubr.f32.mxu0 0.0
    %1514 = vmatmul.mubr.f32.gmra.mrb[0].mxu0 %v1447
    %v1515 = vpop.f32.mrb[0].mxu0
    %v1516 = vadd.f32 %v324, %v1515
    %v1517 = vpop.f32.mrb[0].mxu0
    %v1518 = vadd.f32 %v328, %v1517
    %1519 = vdwg.mxu0
    %vm1520 = vcmp.gt.s32.totalorder %v42, 7
    %v1521 = vadd.f32 %v1444, %v1516
    %v1522 = vxor.u32 %v1521, 2147483648
    %v1523 = vmul.f32 %v1522, 1.442695
    %v1524 = vpow.pop %v1523
    %v1525 = vadd.f32 %v1524, 1.0
    %v1526 = vrcp.pop %v1525
    %v1527 = vmul.f32 1.0, %v1526
    %1529 = vrot.lane.b32.xlu0 %v1516, 64
    %v1530 = vpop.permute.xlu0 %1529
    %v1532 = vmul.f32 %v1527, %v1530
    %1534 = vrot.lane.b32.xlu0 %v1532, 64
    %v1535 = vpop.permute.xlu0 %1534
    %v1537 = vadd.f32 %v1444, %v1535
    %v1538 = vtanh.pop %v1537
    %v1539 = vsub.f32 1.0, %v1527
    %1541 = vrot.lane.b32.xlu0 %v1538, 96
    %v1542 = vpop.permute.xlu0 %1541
    %v1544 = vmul.f32 %v1539, %v1542
    %1545 = vrot.lane.b32.xlu0 %v1440, 32
    %v1546 = vpop.permute.xlu0 %1545
    %v1548 = vmul.f32 %v1527, %v1546
    %v1549 = vadd.f32 %v1544, %v1548
    %v1550 = vsel %vm1520, 1, 0
    %1551 = vset.pattern.permute.xlu0 0
    %1552 = vperm.xlu0 %1551, %v1550
    %v1553 = vpop.permute.xlu0 %1552
    %vm1554 = vcmp.eq.s32.totalorder %v1553, 1
    %v1555 = vsel %vm1554, %v1549, %v1546
    %vm1556 = vcmp.gt.s32.totalorder %v42, 8
    %v1557 = vadd.f32 %v1445, %v1518
    %v1558 = vxor.u32 %v1557, 2147483648
    %v1559 = vmul.f32 %v1558, 1.442695
    %v1560 = vpow.pop %v1559
    %v1561 = vadd.f32 %v1560, 1.0
    %v1562 = vrcp.pop %v1561
    %v1563 = vmul.f32 1.0, %v1562
    %1565 = vrot.lane.b32.xlu0 %v1518, 64
    %v1566 = vpop.permute.xlu0 %1565
    %v1568 = vmul.f32 %v1527, %v1566
    %1570 = vrot.lane.b32.xlu0 %v1568, 64
    %v1571 = vpop.permute.xlu0 %1570
    %v1573 = vadd.f32 %v1445, %v1571
    %v1574 = vtanh.pop %v1573
    %v1575 = vsub.f32 1.0, %v1563
    %1577 = vrot.lane.b32.xlu0 %v1574, 96
    %v1578 = vpop.permute.xlu0 %1577
    %v1580 = vmul.f32 %v1575, %v1578
    %1581 = vrot.lane.b32.xlu0 %v1440, 96
    %v1582 = vpop.permute.xlu0 %1581
    %v1584 = vmul.f32 %v1563, %v1582
    %v1585 = vadd.f32 %v1580, %v1584
    %v1586 = vsel %vm1556, 1, 0
    %1587 = vset.pattern.permute.xlu0 0
    %1588 = vperm.xlu0 %1587, %v1586
    %v1589 = vpop.permute.xlu0 %1588
    %vm1590 = vcmp.eq.s32.totalorder %v1589, 1
    %v1591 = vsel %vm1590, %v1585, %v1582
    %1593 = vrot.lane.b32.xlu0 %v1555, 96
    %v1594 = vpop.permute.xlu0 %1593
    %1597 = vrot.lane.b32.xlu0 %v1591, 32
    %v1598 = vpop.permute.xlu0 %1597
    %v1600 = vsel %vm479, %v1594, %v1598
    %s1601 = smul.u32 8, 2
    %s1602 = smul.addr %s1601, 8
    %s1603 = scalar_lea.vmem [#allocation2], %s1602
    %v1604 = vld [vmem:[%s1603] sm:$0xff]
    %v1605 = vld [vmem:[%s1603 + $0x8] sm:$0xff]
    %v1607 = vsel %vm266, %v1600, 0
    %1609 = vmatprep.subr.mxu0 %v299
    %1610 = vmatpush1.msra.mxu0 %v298
    %1611 = vmatprep.subr.mxu0 %v301
    %1612 = vmatpush1.msra.mxu0 %v300
    %1613 = vmatprep.subr.mxu0 %v303
    %1614 = vmatpush1.msra.mxu0 %v302
    %1615 = vmatprep.subr.mxu0 %v305
    %1616 = vmatpush1.msra.mxu0 %v304
    %1617 = vmatprep.subr.mxu0 %v307
    %1618 = vmatpush1.msra.mxu0 %v306
    %1619 = vmatprep.subr.mxu0 %v309
    %1620 = vmatpush1.msra.mxu0 %v308
    %1621 = vmatprep.subr.mxu0 %v311
    %1622 = vmatpush1.msra.mxu0 %v310
    %1623 = vmatprep.subr.mxu0 %v313
    %1624 = vmatpush1.msra.mxu0 %v312
    %1625 = vmatprep.subr.mxu0 0.0
    %1626 = vmatpush1.msra.mxu0 0.0
    %1627 = vmatprep.subr.mxu0 0.0
    %1628 = vmatpush1.msra.mxu0 0.0
    %1629 = vmatprep.subr.mxu0 0.0
    %1630 = vmatpush1.msra.mxu0 0.0
    %1631 = vmatprep.subr.mxu0 0.0
    %1632 = vmatpush1.msra.mxu0 0.0
    %1633 = vmatprep.subr.mxu0 0.0
    %1634 = vmatpush1.msra.mxu0 0.0
    %1635 = vmatprep.subr.mxu0 0.0
    %1636 = vmatpush1.msra.mxu0 0.0
    %1637 = vmatprep.subr.mxu0 0.0
    %1638 = vmatpush1.msra.mxu0 0.0
    %1639 = vmatprep.subr.mxu0 0.0
    %1640 = vmatpush1.msra.mxu0 0.0
    %1641 = vmatprep.subr.mxu0 0.0
    %1642 = vmatpush1.msra.mxu0 0.0
    %1643 = vmatprep.subr.mxu0 0.0
    %1644 = vmatpush1.msra.mxu0 0.0
    %1645 = vmatprep.subr.mxu0 0.0
    %1646 = vmatpush1.msra.mxu0 0.0
    %1647 = vmatprep.subr.mxu0 0.0
    %1648 = vmatpush1.msra.mxu0 0.0
    %1649 = vmatprep.subr.mxu0 0.0
    %1650 = vmatpush1.msra.mxu0 0.0
    %1651 = vmatprep.subr.mxu0 0.0
    %1652 = vmatpush1.msra.mxu0 0.0
    %1653 = vmatprep.subr.mxu0 0.0
    %1654 = vmatpush1.msra.mxu0 0.0
    %1655 = vmatprep.subr.mxu0 0.0
    %1656 = vmatpush1.msra.mxu0 0.0
    %1657 = vmatprep.subr.mxu0 0.0
    %1658 = vmatpush1.msra.mxu0 0.0
    %1659 = vmatprep.subr.mxu0 0.0
    %1660 = vmatpush1.msra.mxu0 0.0
    %1661 = vmatprep.subr.mxu0 0.0
    %1662 = vmatpush1.msra.mxu0 0.0
    %1663 = vmatprep.subr.mxu0 0.0
    %1664 = vmatpush1.msra.mxu0 0.0
    %1665 = vmatprep.subr.mxu0 0.0
    %1666 = vmatpush1.msra.mxu0 0.0
    %1667 = vmatprep.subr.mxu0 0.0
    %1668 = vmatpush1.msra.mxu0 0.0
    %1669 = vmatprep.subr.mxu0 0.0
    %1670 = vmatpush1.msra.mxu0 0.0
    %1671 = vmatprep.subr.mxu0 0.0
    %1672 = vmatpush1.msra.mxu0 0.0
    %1673 = vmatprep.mubr.f32.mxu0 0.0
    %1674 = vmatmul.mubr.f32.gmra.mrb[0].mxu0 %v1607
    %v1675 = vpop.f32.mrb[0].mxu0
    %v1676 = vadd.f32 %v324, %v1675
    %v1677 = vpop.f32.mrb[0].mxu0
    %v1678 = vadd.f32 %v328, %v1677
    %1679 = vdwg.mxu0
    %v1680 = vadd.f32 %v1604, %v1676
    %v1681 = vxor.u32 %v1680, 2147483648
    %v1682 = vmul.f32 %v1681, 1.442695
    %v1683 = vpow.pop %v1682
    %v1684 = vadd.f32 %v1683, 1.0
    %v1685 = vrcp.pop %v1684
    %v1686 = vmul.f32 1.0, %v1685
    %1688 = vrot.lane.b32.xlu0 %v1676, 64
    %v1689 = vpop.permute.xlu0 %1688
    %v1691 = vmul.f32 %v1686, %v1689
    %1693 = vrot.lane.b32.xlu0 %v1691, 64
    %v1694 = vpop.permute.xlu0 %1693
    %v1696 = vadd.f32 %v1604, %v1694
    %v1697 = vtanh.pop %v1696
    %v1698 = vsub.f32 1.0, %v1686
    %1700 = vrot.lane.b32.xlu0 %v1697, 96
    %v1701 = vpop.permute.xlu0 %1700
    %v1703 = vmul.f32 %v1698, %v1701
    %1704 = vrot.lane.b32.xlu0 %v1600, 32
    %v1705 = vpop.permute.xlu0 %1704
    %v1707 = vmul.f32 %v1686, %v1705
    %v1708 = vadd.f32 %v1703, %v1707
    %v1709 = vsel %vm1590, %v1708, %v1705
    %v1710 = vadd.f32 %v1605, %v1678
    %v1711 = vxor.u32 %v1710, 2147483648
    %v1712 = vmul.f32 %v1711, 1.442695
    %v1713 = vpow.pop %v1712
    %v1714 = vadd.f32 %v1713, 1.0
    %v1715 = vrcp.pop %v1714
    %v1716 = vmul.f32 1.0, %v1715
    %1718 = vrot.lane.b32.xlu0 %v1678, 64
    %v1719 = vpop.permute.xlu0 %1718
    %v1721 = vmul.f32 %v1686, %v1719
    %1723 = vrot.lane.b32.xlu0 %v1721, 64
    %v1724 = vpop.permute.xlu0 %1723
    %v1726 = vadd.f32 %v1605, %v1724
    %v1727 = vtanh.pop %v1726
    %v1728 = vsub.f32 1.0, %v1716
    %1730 = vrot.lane.b32.xlu0 %v1727, 96
    %v1731 = vpop.permute.xlu0 %1730
    %v1733 = vmul.f32 %v1728, %v1731
    %1734 = vrot.lane.b32.xlu0 %v1600, 96
    %v1735 = vpop.permute.xlu0 %1734
    %v1737 = vmul.f32 %v1716, %v1735
    %v1738 = vadd.f32 %v1733, %v1737
    %v1739 = vsel %vm1554, %v1738, %v1735
    %1741 = vrot.lane.b32.xlu0 %v1709, 96
    %v1742 = vpop.permute.xlu0 %1741
    %1745 = vrot.lane.b32.xlu0 %v1739, 32
    %v1746 = vpop.permute.xlu0 %1745
    %v1748 = vsel %vm479, %v1742, %v1746
    %s1749 = smul.u32 9, 2
    %s1750 = smul.addr %s1749, 8
    %s1751 = scalar_lea.vmem [#allocation2], %s1750
    %v1752 = vld [vmem:[%s1751] sm:$0xff]
    %v1753 = vld [vmem:[%s1751 + $0x8] sm:$0xff]
    %v1755 = vsel %vm266, %v1748, 0
    %1757 = vmatprep.subr.mxu0 %v299
    %1758 = vmatpush1.msra.mxu0 %v298
    %1759 = vmatprep.subr.mxu0 %v301
    %1760 = vmatpush1.msra.mxu0 %v300
    %1761 = vmatprep.subr.mxu0 %v303
    %1762 = vmatpush1.msra.mxu0 %v302
    %1763 = vmatprep.subr.mxu0 %v305
    %1764 = vmatpush1.msra.mxu0 %v304
    %1765 = vmatprep.subr.mxu0 %v307
    %1766 = vmatpush1.msra.mxu0 %v306
    %1767 = vmatprep.subr.mxu0 %v309
    %1768 = vmatpush1.msra.mxu0 %v308
    %1769 = vmatprep.subr.mxu0 %v311
    %1770 = vmatpush1.msra.mxu0 %v310
    %1771 = vmatprep.subr.mxu0 %v313
    %1772 = vmatpush1.msra.mxu0 %v312
    %1773 = vmatprep.subr.mxu0 0.0
    %1774 = vmatpush1.msra.mxu0 0.0
    %1775 = vmatprep.subr.mxu0 0.0
    %1776 = vmatpush1.msra.mxu0 0.0
    %1777 = vmatprep.subr.mxu0 0.0
    %1778 = vmatpush1.msra.mxu0 0.0
    %1779 = vmatprep.subr.mxu0 0.0
    %1780 = vmatpush1.msra.mxu0 0.0
    %1781 = vmatprep.subr.mxu0 0.0
    %1782 = vmatpush1.msra.mxu0 0.0
    %1783 = vmatprep.subr.mxu0 0.0
    %1784 = vmatpush1.msra.mxu0 0.0
    %1785 = vmatprep.subr.mxu0 0.0
    %1786 = vmatpush1.msra.mxu0 0.0
    %1787 = vmatprep.subr.mxu0 0.0
    %1788 = vmatpush1.msra.mxu0 0.0
    %1789 = vmatprep.subr.mxu0 0.0
    %1790 = vmatpush1.msra.mxu0 0.0
    %1791 = vmatprep.subr.mxu0 0.0
    %1792 = vmatpush1.msra.mxu0 0.0
    %1793 = vmatprep.subr.mxu0 0.0
    %1794 = vmatpush1.msra.mxu0 0.0
    %1795 = vmatprep.subr.mxu0 0.0
    %1796 = vmatpush1.msra.mxu0 0.0
    %1797 = vmatprep.subr.mxu0 0.0
    %1798 = vmatpush1.msra.mxu0 0.0
    %1799 = vmatprep.subr.mxu0 0.0
    %1800 = vmatpush1.msra.mxu0 0.0
    %1801 = vmatprep.subr.mxu0 0.0
    %1802 = vmatpush1.msra.mxu0 0.0
    %1803 = vmatprep.subr.mxu0 0.0
    %1804 = vmatpush1.msra.mxu0 0.0
    %1805 = vmatprep.subr.mxu0 0.0
    %1806 = vmatpush1.msra.mxu0 0.0
    %1807 = vmatprep.subr.mxu0 0.0
    %1808 = vmatpush1.msra.mxu0 0.0
    %1809 = vmatprep.subr.mxu0 0.0
    %1810 = vmatpush1.msra.mxu0 0.0
    %1811 = vmatprep.subr.mxu0 0.0
    %1812 = vmatpush1.msra.mxu0 0.0
    %1813 = vmatprep.subr.mxu0 0.0
    %1814 = vmatpush1.msra.mxu0 0.0
    %1815 = vmatprep.subr.mxu0 0.0
    %1816 = vmatpush1.msra.mxu0 0.0
    %1817 = vmatprep.subr.mxu0 0.0
    %1818 = vmatpush1.msra.mxu0 0.0
    %1819 = vmatprep.subr.mxu0 0.0
    %1820 = vmatpush1.msra.mxu0 0.0
    %1821 = vmatprep.mubr.f32.mxu0 0.0
    %1822 = vmatmul.mubr.f32.gmra.mrb[0].mxu0 %v1755
    %v1823 = vpop.f32.mrb[0].mxu0
    %v1824 = vadd.f32 %v324, %v1823
    %v1825 = vpop.f32.mrb[0].mxu0
    %v1826 = vadd.f32 %v328, %v1825
    %1827 = vdwg.mxu0
    %v1828 = vadd.f32 %v1752, %v1824
    %v1829 = vxor.u32 %v1828, 2147483648
    %v1830 = vmul.f32 %v1829, 1.442695
    %v1831 = vpow.pop %v1830
    %v1832 = vadd.f32 %v1831, 1.0
    %v1833 = vrcp.pop %v1832
    %v1834 = vmul.f32 1.0, %v1833
    %1836 = vrot.lane.b32.xlu0 %v1824, 64
    %v1837 = vpop.permute.xlu0 %1836
    %v1839 = vmul.f32 %v1834, %v1837
    %1841 = vrot.lane.b32.xlu0 %v1839, 64
    %v1842 = vpop.permute.xlu0 %1841
    %v1844 = vadd.f32 %v1752, %v1842
    %v1845 = vtanh.pop %v1844
    %v1846 = vsub.f32 1.0, %v1834
    %1848 = vrot.lane.b32.xlu0 %v1845, 96
    %v1849 = vpop.permute.xlu0 %1848
    %v1851 = vmul.f32 %v1846, %v1849
    %1852 = vrot.lane.b32.xlu0 %v1748, 32
    %v1853 = vpop.permute.xlu0 %1852
    %v1855 = vmul.f32 %v1834, %v1853
    %v1856 = vadd.f32 %v1851, %v1855
    %v1857 = vsel %vm1430, %v1856, %v1853
    %v1858 = vadd.f32 %v1753, %v1826
    %v1859 = vxor.u32 %v1858, 2147483648
    %v1860 = vmul.f32 %v1859, 1.442695
    %v1861 = vpow.pop %v1860
    %v1862 = vadd.f32 %v1861, 1.0
    %v1863 = vrcp.pop %v1862
    %v1864 = vmul.f32 1.0, %v1863
    %1866 = vrot.lane.b32.xlu0 %v1826, 64
    %v1867 = vpop.permute.xlu0 %1866
    %v1869 = vmul.f32 %v1834, %v1867
    %1871 = vrot.lane.b32.xlu0 %v1869, 64
    %v1872 = vpop.permute.xlu0 %1871
    %v1874 = vadd.f32 %v1753, %v1872
    %v1875 = vtanh.pop %v1874
    %v1876 = vsub.f32 1.0, %v1864
    %1878 = vrot.lane.b32.xlu0 %v1875, 96
    %v1879 = vpop.permute.xlu0 %1878
    %v1881 = vmul.f32 %v1876, %v1879
    %1882 = vrot.lane.b32.xlu0 %v1748, 96
    %v1883 = vpop.permute.xlu0 %1882
    %v1885 = vmul.f32 %v1864, %v1883
    %v1886 = vadd.f32 %v1881, %v1885
    %v1887 = vsel %vm1394, %v1886, %v1883
    %1889 = vrot.lane.b32.xlu0 %v1857, 96
    %v1890 = vpop.permute.xlu0 %1889
    %1893 = vrot.lane.b32.xlu0 %v1887, 32
    %v1894 = vpop.permute.xlu0 %1893
    %v1896 = vsel %vm479, %v1890, %v1894
    %s1897 = smul.u32 10, 2
    %s1898 = smul.addr %s1897, 8
    %s1899 = scalar_lea.vmem [#allocation2], %s1898
    %v1900 = vld [vmem:[%s1899] sm:$0xff]
    %v1901 = vld [vmem:[%s1899 + $0x8] sm:$0xff]
    %v1903 = vsel %vm266, %v1896, 0
    %1905 = vmatprep.subr.mxu0 %v299
    %1906 = vmatpush1.msra.mxu0 %v298
    %1907 = vmatprep.subr.mxu0 %v301
    %1908 = vmatpush1.msra.mxu0 %v300
    %1909 = vmatprep.subr.mxu0 %v303
    %1910 = vmatpush1.msra.mxu0 %v302
    %1911 = vmatprep.subr.mxu0 %v305
    %1912 = vmatpush1.msra.mxu0 %v304
    %1913 = vmatprep.subr.mxu0 %v307
    %1914 = vmatpush1.msra.mxu0 %v306
    %1915 = vmatprep.subr.mxu0 %v309
    %1916 = vmatpush1.msra.mxu0 %v308
    %1917 = vmatprep.subr.mxu0 %v311
    %1918 = vmatpush1.msra.mxu0 %v310
    %1919 = vmatprep.subr.mxu0 %v313
    %1920 = vmatpush1.msra.mxu0 %v312
    %1921 = vmatprep.subr.mxu0 0.0
    %1922 = vmatpush1.msra.mxu0 0.0
    %1923 = vmatprep.subr.mxu0 0.0
    %1924 = vmatpush1.msra.mxu0 0.0
    %1925 = vmatprep.subr.mxu0 0.0
    %1926 = vmatpush1.msra.mxu0 0.0
    %1927 = vmatprep.subr.mxu0 0.0
    %1928 = vmatpush1.msra.mxu0 0.0
    %1929 = vmatprep.subr.mxu0 0.0
    %1930 = vmatpush1.msra.mxu0 0.0
    %1931 = vmatprep.subr.mxu0 0.0
    %1932 = vmatpush1.msra.mxu0 0.0
    %1933 = vmatprep.subr.mxu0 0.0
    %1934 = vmatpush1.msra.mxu0 0.0
    %1935 = vmatprep.subr.mxu0 0.0
    %1936 = vmatpush1.msra.mxu0 0.0
    %1937 = vmatprep.subr.mxu0 0.0
    %1938 = vmatpush1.msra.mxu0 0.0
    %1939 = vmatprep.subr.mxu0 0.0
    %1940 = vmatpush1.msra.mxu0 0.0
    %1941 = vmatprep.subr.mxu0 0.0
    %1942 = vmatpush1.msra.mxu0 0.0
    %1943 = vmatprep.subr.mxu0 0.0
    %1944 = vmatpush1.msra.mxu0 0.0
    %1945 = vmatprep.subr.mxu0 0.0
    %1946 = vmatpush1.msra.mxu0 0.0
    %1947 = vmatprep.subr.mxu0 0.0
    %1948 = vmatpush1.msra.mxu0 0.0
    %1949 = vmatprep.subr.mxu0 0.0
    %1950 = vmatpush1.msra.mxu0 0.0
    %1951 = vmatprep.subr.mxu0 0.0
    %1952 = vmatpush1.msra.mxu0 0.0
    %1953 = vmatprep.subr.mxu0 0.0
    %1954 = vmatpush1.msra.mxu0 0.0
    %1955 = vmatprep.subr.mxu0 0.0
    %1956 = vmatpush1.msra.mxu0 0.0
    %1957 = vmatprep.subr.mxu0 0.0
    %1958 = vmatpush1.msra.mxu0 0.0
    %1959 = vmatprep.subr.mxu0 0.0
    %1960 = vmatpush1.msra.mxu0 0.0
    %1961 = vmatprep.subr.mxu0 0.0
    %1962 = vmatpush1.msra.mxu0 0.0
    %1963 = vmatprep.subr.mxu0 0.0
    %1964 = vmatpush1.msra.mxu0 0.0
    %1965 = vmatprep.subr.mxu0 0.0
    %1966 = vmatpush1.msra.mxu0 0.0
    %1967 = vmatprep.subr.mxu0 0.0
    %1968 = vmatpush1.msra.mxu0 0.0
    %1969 = vmatprep.mubr.f32.mxu0 0.0
    %1970 = vmatmul.mubr.f32.gmra.mrb[0].mxu0 %v1903
    %v1971 = vpop.f32.mrb[0].mxu0
    %v1972 = vadd.f32 %v324, %v1971
    %v1973 = vpop.f32.mrb[0].mxu0
    %v1974 = vadd.f32 %v328, %v1973
    %1975 = vdwg.mxu0
    %v1976 = vadd.f32 %v1900, %v1972
    %v1977 = vxor.u32 %v1976, 2147483648
    %v1978 = vmul.f32 %v1977, 1.442695
    %v1979 = vpow.pop %v1978
    %v1980 = vadd.f32 %v1979, 1.0
    %v1981 = vrcp.pop %v1980
    %v1982 = vmul.f32 1.0, %v1981
    %1984 = vrot.lane.b32.xlu0 %v1972, 64
    %v1985 = vpop.permute.xlu0 %1984
    %v1987 = vmul.f32 %v1982, %v1985
    %1989 = vrot.lane.b32.xlu0 %v1987, 64
    %v1990 = vpop.permute.xlu0 %1989
    %v1992 = vadd.f32 %v1900, %v1990
    %v1993 = vtanh.pop %v1992
    %v1994 = vsub.f32 1.0, %v1982
    %1996 = vrot.lane.b32.xlu0 %v1993, 96
    %v1997 = vpop.permute.xlu0 %1996
    %v1999 = vmul.f32 %v1994, %v1997
    %2000 = vrot.lane.b32.xlu0 %v1896, 32
    %v2001 = vpop.permute.xlu0 %2000
    %v2003 = vmul.f32 %v1982, %v2001
    %v2004 = vadd.f32 %v1999, %v2003
    %v2005 = vsel %vm1270, %v2004, %v2001
    %v2006 = vadd.f32 %v1901, %v1974
    %v2007 = vxor.u32 %v2006, 2147483648
    %v2008 = vmul.f32 %v2007, 1.442695
    %v2009 = vpow.pop %v2008
    %v2010 = vadd.f32 %v2009, 1.0
    %v2011 = vrcp.pop %v2010
    %v2012 = vmul.f32 1.0, %v2011
    %2014 = vrot.lane.b32.xlu0 %v1974, 64
    %v2015 = vpop.permute.xlu0 %2014
    %v2017 = vmul.f32 %v1982, %v2015
    %2019 = vrot.lane.b32.xlu0 %v2017, 64
    %v2020 = vpop.permute.xlu0 %2019
    %v2022 = vadd.f32 %v1901, %v2020
    %v2023 = vtanh.pop %v2022
    %v2024 = vsub.f32 1.0, %v2012
    %2026 = vrot.lane.b32.xlu0 %v2023, 96
    %v2027 = vpop.permute.xlu0 %2026
    %v2029 = vmul.f32 %v2024, %v2027
    %2030 = vrot.lane.b32.xlu0 %v1896, 96
    %v2031 = vpop.permute.xlu0 %2030
    %v2033 = vmul.f32 %v2012, %v2031
    %v2034 = vadd.f32 %v2029, %v2033
    %v2035 = vsel %vm1234, %v2034, %v2031
    %2037 = vrot.lane.b32.xlu0 %v2005, 96
    %v2038 = vpop.permute.xlu0 %2037
    %2041 = vrot.lane.b32.xlu0 %v2035, 32
    %v2042 = vpop.permute.xlu0 %2041
    %v2044 = vsel %vm479, %v2038, %v2042
    %s2045 = smul.u32 11, 2
    %s2046 = smul.addr %s2045, 8
    %s2047 = scalar_lea.vmem [#allocation2], %s2046
    %v2048 = vld [vmem:[%s2047] sm:$0xff]
    %v2049 = vld [vmem:[%s2047 + $0x8] sm:$0xff]
    %v2051 = vsel %vm266, %v2044, 0
    %2053 = vmatprep.subr.mxu0 %v299
    %2054 = vmatpush1.msra.mxu0 %v298
    %2055 = vmatprep.subr.mxu0 %v301
    %2056 = vmatpush1.msra.mxu0 %v300
    %2057 = vmatprep.subr.mxu0 %v303
    %2058 = vmatpush1.msra.mxu0 %v302
    %2059 = vmatprep.subr.mxu0 %v305
    %2060 = vmatpush1.msra.mxu0 %v304
    %2061 = vmatprep.subr.mxu0 %v307
    %2062 = vmatpush1.msra.mxu0 %v306
    %2063 = vmatprep.subr.mxu0 %v309
    %2064 = vmatpush1.msra.mxu0 %v308
    %2065 = vmatprep.subr.mxu0 %v311
    %2066 = vmatpush1.msra.mxu0 %v310
    %2067 = vmatprep.subr.mxu0 %v313
    %2068 = vmatpush1.msra.mxu0 %v312
    %2069 = vmatprep.subr.mxu0 0.0
    %2070 = vmatpush1.msra.mxu0 0.0
    %2071 = vmatprep.subr.mxu0 0.0
    %2072 = vmatpush1.msra.mxu0 0.0
    %2073 = vmatprep.subr.mxu0 0.0
    %2074 = vmatpush1.msra.mxu0 0.0
    %2075 = vmatprep.subr.mxu0 0.0
    %2076 = vmatpush1.msra.mxu0 0.0
    %2077 = vmatprep.subr.mxu0 0.0
    %2078 = vmatpush1.msra.mxu0 0.0
    %2079 = vmatprep.subr.mxu0 0.0
    %2080 = vmatpush1.msra.mxu0 0.0
    %2081 = vmatprep.subr.mxu0 0.0
    %2082 = vmatpush1.msra.mxu0 0.0
    %2083 = vmatprep.subr.mxu0 0.0
    %2084 = vmatpush1.msra.mxu0 0.0
    %2085 = vmatprep.subr.mxu0 0.0
    %2086 = vmatpush1.msra.mxu0 0.0
    %2087 = vmatprep.subr.mxu0 0.0
    %2088 = vmatpush1.msra.mxu0 0.0
    %2089 = vmatprep.subr.mxu0 0.0
    %2090 = vmatpush1.msra.mxu0 0.0
    %2091 = vmatprep.subr.mxu0 0.0
    %2092 = vmatpush1.msra.mxu0 0.0
    %2093 = vmatprep.subr.mxu0 0.0
    %2094 = vmatpush1.msra.mxu0 0.0
    %2095 = vmatprep.subr.mxu0 0.0
    %2096 = vmatpush1.msra.mxu0 0.0
    %2097 = vmatprep.subr.mxu0 0.0
    %2098 = vmatpush1.msra.mxu0 0.0
    %2099 = vmatprep.subr.mxu0 0.0
    %2100 = vmatpush1.msra.mxu0 0.0
    %2101 = vmatprep.subr.mxu0 0.0
    %2102 = vmatpush1.msra.mxu0 0.0
    %2103 = vmatprep.subr.mxu0 0.0
    %2104 = vmatpush1.msra.mxu0 0.0
    %2105 = vmatprep.subr.mxu0 0.0
    %2106 = vmatpush1.msra.mxu0 0.0
    %2107 = vmatprep.subr.mxu0 0.0
    %2108 = vmatpush1.msra.mxu0 0.0
    %2109 = vmatprep.subr.mxu0 0.0
    %2110 = vmatpush1.msra.mxu0 0.0
    %2111 = vmatprep.subr.mxu0 0.0
    %2112 = vmatpush1.msra.mxu0 0.0
    %2113 = vmatprep.subr.mxu0 0.0
    %2114 = vmatpush1.msra.mxu0 0.0
    %2115 = vmatprep.subr.mxu0 0.0
    %2116 = vmatpush1.msra.mxu0 0.0
    %2117 = vmatprep.mubr.f32.mxu0 0.0
    %2118 = vmatmul.mubr.f32.gmra.mrb[0].mxu0 %v2051
    %v2119 = vpop.f32.mrb[0].mxu0
    %v2120 = vadd.f32 %v324, %v2119
    %v2121 = vpop.f32.mrb[0].mxu0
    %v2122 = vadd.f32 %v328, %v2121
    %2123 = vdwg.mxu0
    %v2124 = vadd.f32 %v2048, %v2120
    %v2125 = vxor.u32 %v2124, 2147483648
    %v2126 = vmul.f32 %v2125, 1.442695
    %v2127 = vpow.pop %v2126
    %v2128 = vadd.f32 %v2127, 1.0
    %v2129 = vrcp.pop %v2128
    %v2130 = vmul.f32 1.0, %v2129
    %2132 = vrot.lane.b32.xlu0 %v2120, 64
    %v2133 = vpop.permute.xlu0 %2132
    %v2135 = vmul.f32 %v2130, %v2133
    %2137 = vrot.lane.b32.xlu0 %v2135, 64
    %v2138 = vpop.permute.xlu0 %2137
    %v2140 = vadd.f32 %v2048, %v2138
    %v2141 = vtanh.pop %v2140
    %v2142 = vsub.f32 1.0, %v2130
    %2144 = vrot.lane.b32.xlu0 %v2141, 96
    %v2145 = vpop.permute.xlu0 %2144
    %v2147 = vmul.f32 %v2142, %v2145
    %2148 = vrot.lane.b32.xlu0 %v2044, 32
    %v2149 = vpop.permute.xlu0 %2148
    %v2151 = vmul.f32 %v2130, %v2149
    %v2152 = vadd.f32 %v2147, %v2151
    %v2153 = vsel %vm1110, %v2152, %v2149
    %v2154 = vadd.f32 %v2049, %v2122
    %v2155 = vxor.u32 %v2154, 2147483648
    %v2156 = vmul.f32 %v2155, 1.442695
    %v2157 = vpow.pop %v2156
    %v2158 = vadd.f32 %v2157, 1.0
    %v2159 = vrcp.pop %v2158
    %v2160 = vmul.f32 1.0, %v2159
    %2162 = vrot.lane.b32.xlu0 %v2122, 64
    %v2163 = vpop.permute.xlu0 %2162
    %v2165 = vmul.f32 %v2130, %v2163
    %2167 = vrot.lane.b32.xlu0 %v2165, 64
    %v2168 = vpop.permute.xlu0 %2167
    %v2170 = vadd.f32 %v2049, %v2168
    %v2171 = vtanh.pop %v2170
    %v2172 = vsub.f32 1.0, %v2160
    %2174 = vrot.lane.b32.xlu0 %v2171, 96
    %v2175 = vpop.permute.xlu0 %2174
    %v2177 = vmul.f32 %v2172, %v2175
    %2178 = vrot.lane.b32.xlu0 %v2044, 96
    %v2179 = vpop.permute.xlu0 %2178
    %v2181 = vmul.f32 %v2160, %v2179
    %v2182 = vadd.f32 %v2177, %v2181
    %v2183 = vsel %vm1074, %v2182, %v2179
    %2185 = vrot.lane.b32.xlu0 %v2153, 96
    %v2186 = vpop.permute.xlu0 %2185
    %2189 = vrot.lane.b32.xlu0 %v2183, 32
    %v2190 = vpop.permute.xlu0 %2189
    %v2192 = vsel %vm479, %v2186, %v2190
    %s2193 = smul.u32 12, 2
    %s2194 = smul.addr %s2193, 8
    %s2195 = scalar_lea.vmem [#allocation2], %s2194
    %v2196 = vld [vmem:[%s2195] sm:$0xff]
    %v2197 = vld [vmem:[%s2195 + $0x8] sm:$0xff]
    %v2199 = vsel %vm266, %v2192, 0
    %2201 = vmatprep.subr.mxu0 %v299
    %2202 = vmatpush1.msra.mxu0 %v298
    %2203 = vmatprep.subr.mxu0 %v301
    %2204 = vmatpush1.msra.mxu0 %v300
    %2205 = vmatprep.subr.mxu0 %v303
    %2206 = vmatpush1.msra.mxu0 %v302
    %2207 = vmatprep.subr.mxu0 %v305
    %2208 = vmatpush1.msra.mxu0 %v304
    %2209 = vmatprep.subr.mxu0 %v307
    %2210 = vmatpush1.msra.mxu0 %v306
    %2211 = vmatprep.subr.mxu0 %v309
    %2212 = vmatpush1.msra.mxu0 %v308
    %2213 = vmatprep.subr.mxu0 %v311
    %2214 = vmatpush1.msra.mxu0 %v310
    %2215 = vmatprep.subr.mxu0 %v313
    %2216 = vmatpush1.msra.mxu0 %v312
    %2217 = vmatprep.subr.mxu0 0.0
    %2218 = vmatpush1.msra.mxu0 0.0
    %2219 = vmatprep.subr.mxu0 0.0
    %2220 = vmatpush1.msra.mxu0 0.0
    %2221 = vmatprep.subr.mxu0 0.0
    %2222 = vmatpush1.msra.mxu0 0.0
    %2223 = vmatprep.subr.mxu0 0.0
    %2224 = vmatpush1.msra.mxu0 0.0
    %2225 = vmatprep.subr.mxu0 0.0
    %2226 = vmatpush1.msra.mxu0 0.0
    %2227 = vmatprep.subr.mxu0 0.0
    %2228 = vmatpush1.msra.mxu0 0.0
    %2229 = vmatprep.subr.mxu0 0.0
    %2230 = vmatpush1.msra.mxu0 0.0
    %2231 = vmatprep.subr.mxu0 0.0
    %2232 = vmatpush1.msra.mxu0 0.0
    %2233 = vmatprep.subr.mxu0 0.0
    %2234 = vmatpush1.msra.mxu0 0.0
    %2235 = vmatprep.subr.mxu0 0.0
    %2236 = vmatpush1.msra.mxu0 0.0
    %2237 = vmatprep.subr.mxu0 0.0
    %2238 = vmatpush1.msra.mxu0 0.0
    %2239 = vmatprep.subr.mxu0 0.0
    %2240 = vmatpush1.msra.mxu0 0.0
    %2241 = vmatprep.subr.mxu0 0.0
    %2242 = vmatpush1.msra.mxu0 0.0
    %2243 = vmatprep.subr.mxu0 0.0
    %2244 = vmatpush1.msra.mxu0 0.0
    %2245 = vmatprep.subr.mxu0 0.0
    %2246 = vmatpush1.msra.mxu0 0.0
    %2247 = vmatprep.subr.mxu0 0.0
    %2248 = vmatpush1.msra.mxu0 0.0
    %2249 = vmatprep.subr.mxu0 0.0
    %2250 = vmatpush1.msra.mxu0 0.0
    %2251 = vmatprep.subr.mxu0 0.0
    %2252 = vmatpush1.msra.mxu0 0.0
    %2253 = vmatprep.subr.mxu0 0.0
    %2254 = vmatpush1.msra.mxu0 0.0
    %2255 = vmatprep.subr.mxu0 0.0
    %2256 = vmatpush1.msra.mxu0 0.0
    %2257 = vmatprep.subr.mxu0 0.0
    %2258 = vmatpush1.msra.mxu0 0.0
    %2259 = vmatprep.subr.mxu0 0.0
    %2260 = vmatpush1.msra.mxu0 0.0
    %2261 = vmatprep.subr.mxu0 0.0
    %2262 = vmatpush1.msra.mxu0 0.0
    %2263 = vmatprep.subr.mxu0 0.0
    %2264 = vmatpush1.msra.mxu0 0.0
    %2265 = vmatprep.mubr.f32.mxu0 0.0
    %2266 = vmatmul.mubr.f32.gmra.mrb[0].mxu0 %v2199
    %v2267 = vpop.f32.mrb[0].mxu0
    %v2268 = vadd.f32 %v324, %v2267
    %v2269 = vpop.f32.mrb[0].mxu0
    %v2270 = vadd.f32 %v328, %v2269
    %2271 = vdwg.mxu0
    %v2272 = vadd.f32 %v2196, %v2268
    %v2273 = vxor.u32 %v2272, 2147483648
    %v2274 = vmul.f32 %v2273, 1.442695
    %v2275 = vpow.pop %v2274
    %v2276 = vadd.f32 %v2275, 1.0
    %v2277 = vrcp.pop %v2276
    %v2278 = vmul.f32 1.0, %v2277
    %2280 = vrot.lane.b32.xlu0 %v2268, 64
    %v2281 = vpop.permute.xlu0 %2280
    %v2283 = vmul.f32 %v2278, %v2281
    %2285 = vrot.lane.b32.xlu0 %v2283, 64
    %v2286 = vpop.permute.xlu0 %2285
    %v2288 = vadd.f32 %v2196, %v2286
    %v2289 = vtanh.pop %v2288
    %v2290 = vsub.f32 1.0, %v2278
    %2292 = vrot.lane.b32.xlu0 %v2289, 96
    %v2293 = vpop.permute.xlu0 %2292
    %v2295 = vmul.f32 %v2290, %v2293
    %2296 = vrot.lane.b32.xlu0 %v2192, 32
    %v2297 = vpop.permute.xlu0 %2296
    %v2299 = vmul.f32 %v2278, %v2297
    %v2300 = vadd.f32 %v2295, %v2299
    %v2301 = vsel %vm950, %v2300, %v2297
    %v2302 = vadd.f32 %v2197, %v2270
    %v2303 = vxor.u32 %v2302, 2147483648
    %v2304 = vmul.f32 %v2303, 1.442695
    %v2305 = vpow.pop %v2304
    %v2306 = vadd.f32 %v2305, 1.0
    %v2307 = vrcp.pop %v2306
    %v2308 = vmul.f32 1.0, %v2307
    %2310 = vrot.lane.b32.xlu0 %v2270, 64
    %v2311 = vpop.permute.xlu0 %2310
    %v2313 = vmul.f32 %v2278, %v2311
    %2315 = vrot.lane.b32.xlu0 %v2313, 64
    %v2316 = vpop.permute.xlu0 %2315
    %v2318 = vadd.f32 %v2197, %v2316
    %v2319 = vtanh.pop %v2318
    %v2320 = vsub.f32 1.0, %v2308
    %2322 = vrot.lane.b32.xlu0 %v2319, 96
    %v2323 = vpop.permute.xlu0 %2322
    %v2325 = vmul.f32 %v2320, %v2323
    %2326 = vrot.lane.b32.xlu0 %v2192, 96
    %v2327 = vpop.permute.xlu0 %2326
    %v2329 = vmul.f32 %v2308, %v2327
    %v2330 = vadd.f32 %v2325, %v2329
    %v2331 = vsel %vm914, %v2330, %v2327
    %2333 = vrot.lane.b32.xlu0 %v2301, 96
    %v2334 = vpop.permute.xlu0 %2333
    %2337 = vrot.lane.b32.xlu0 %v2331, 32
    %v2338 = vpop.permute.xlu0 %2337
    %v2340 = vsel %vm479, %v2334, %v2338
    %s2341 = smul.u32 13, 2
    %s2342 = smul.addr %s2341, 8
    %s2343 = scalar_lea.vmem [#allocation2], %s2342
    %v2344 = vld [vmem:[%s2343] sm:$0xff]
    %v2345 = vld [vmem:[%s2343 + $0x8] sm:$0xff]
    %v2347 = vsel %vm266, %v2340, 0
    %2349 = vmatprep.subr.mxu0 %v299
    %2350 = vmatpush1.msra.mxu0 %v298
    %2351 = vmatprep.subr.mxu0 %v301
    %2352 = vmatpush1.msra.mxu0 %v300
    %2353 = vmatprep.subr.mxu0 %v303
    %2354 = vmatpush1.msra.mxu0 %v302
    %2355 = vmatprep.subr.mxu0 %v305
    %2356 = vmatpush1.msra.mxu0 %v304
    %2357 = vmatprep.subr.mxu0 %v307
    %2358 = vmatpush1.msra.mxu0 %v306
    %2359 = vmatprep.subr.mxu0 %v309
    %2360 = vmatpush1.msra.mxu0 %v308
    %2361 = vmatprep.subr.mxu0 %v311
    %2362 = vmatpush1.msra.mxu0 %v310
    %2363 = vmatprep.subr.mxu0 %v313
    %2364 = vmatpush1.msra.mxu0 %v312
    %2365 = vmatprep.subr.mxu0 0.0
    %2366 = vmatpush1.msra.mxu0 0.0
    %2367 = vmatprep.subr.mxu0 0.0
    %2368 = vmatpush1.msra.mxu0 0.0
    %2369 = vmatprep.subr.mxu0 0.0
    %2370 = vmatpush1.msra.mxu0 0.0
    %2371 = vmatprep.subr.mxu0 0.0
    %2372 = vmatpush1.msra.mxu0 0.0
    %2373 = vmatprep.subr.mxu0 0.0
    %2374 = vmatpush1.msra.mxu0 0.0
    %2375 = vmatprep.subr.mxu0 0.0
    %2376 = vmatpush1.msra.mxu0 0.0
    %2377 = vmatprep.subr.mxu0 0.0
    %2378 = vmatpush1.msra.mxu0 0.0
    %2379 = vmatprep.subr.mxu0 0.0
    %2380 = vmatpush1.msra.mxu0 0.0
    %2381 = vmatprep.subr.mxu0 0.0
    %2382 = vmatpush1.msra.mxu0 0.0
    %2383 = vmatprep.subr.mxu0 0.0
    %2384 = vmatpush1.msra.mxu0 0.0
    %2385 = vmatprep.subr.mxu0 0.0
    %2386 = vmatpush1.msra.mxu0 0.0
    %2387 = vmatprep.subr.mxu0 0.0
    %2388 = vmatpush1.msra.mxu0 0.0
    %2389 = vmatprep.subr.mxu0 0.0
    %2390 = vmatpush1.msra.mxu0 0.0
    %2391 = vmatprep.subr.mxu0 0.0
    %2392 = vmatpush1.msra.mxu0 0.0
    %2393 = vmatprep.subr.mxu0 0.0
    %2394 = vmatpush1.msra.mxu0 0.0
    %2395 = vmatprep.subr.mxu0 0.0
    %2396 = vmatpush1.msra.mxu0 0.0
    %2397 = vmatprep.subr.mxu0 0.0
    %2398 = vmatpush1.msra.mxu0 0.0
    %2399 = vmatprep.subr.mxu0 0.0
    %2400 = vmatpush1.msra.mxu0 0.0
    %2401 = vmatprep.subr.mxu0 0.0
    %2402 = vmatpush1.msra.mxu0 0.0
    %2403 = vmatprep.subr.mxu0 0.0
    %2404 = vmatpush1.msra.mxu0 0.0
    %2405 = vmatprep.subr.mxu0 0.0
    %2406 = vmatpush1.msra.mxu0 0.0
    %2407 = vmatprep.subr.mxu0 0.0
    %2408 = vmatpush1.msra.mxu0 0.0
    %2409 = vmatprep.subr.mxu0 0.0
    %2410 = vmatpush1.msra.mxu0 0.0
    %2411 = vmatprep.subr.mxu0 0.0
    %2412 = vmatpush1.msra.mxu0 0.0
    %2413 = vmatprep.mubr.f32.mxu0 0.0
    %2414 = vmatmul.mubr.f32.gmra.mrb[0].mxu0 %v2347
    %v2415 = vpop.f32.mrb[0].mxu0
    %v2416 = vadd.f32 %v324, %v2415
    %v2417 = vpop.f32.mrb[0].mxu0
    %v2418 = vadd.f32 %v328, %v2417
    %2419 = vdwg.mxu0
    %v2420 = vadd.f32 %v2344, %v2416
    %v2421 = vxor.u32 %v2420, 2147483648
    %v2422 = vmul.f32 %v2421, 1.442695
    %v2423 = vpow.pop %v2422
    %v2424 = vadd.f32 %v2423, 1.0
    %v2425 = vrcp.pop %v2424
    %v2426 = vmul.f32 1.0, %v2425
    %2428 = vrot.lane.b32.xlu0 %v2416, 64
    %v2429 = vpop.permute.xlu0 %2428
    %v2431 = vmul.f32 %v2426, %v2429
    %2433 = vrot.lane.b32.xlu0 %v2431, 64
    %v2434 = vpop.permute.xlu0 %2433
    %v2436 = vadd.f32 %v2344, %v2434
    %v2437 = vtanh.pop %v2436
    %v2438 = vsub.f32 1.0, %v2426
    %2440 = vrot.lane.b32.xlu0 %v2437, 96
    %v2441 = vpop.permute.xlu0 %2440
    %v2443 = vmul.f32 %v2438, %v2441
    %2444 = vrot.lane.b32.xlu0 %v2340, 32
    %v2445 = vpop.permute.xlu0 %2444
    %v2447 = vmul.f32 %v2426, %v2445
    %v2448 = vadd.f32 %v2443, %v2447
    %v2449 = vsel %vm790, %v2448, %v2445
    %v2450 = vadd.f32 %v2345, %v2418
    %v2451 = vxor.u32 %v2450, 2147483648
    %v2452 = vmul.f32 %v2451, 1.442695
    %v2453 = vpow.pop %v2452
    %v2454 = vadd.f32 %v2453, 1.0
    %v2455 = vrcp.pop %v2454
    %v2456 = vmul.f32 1.0, %v2455
    %2458 = vrot.lane.b32.xlu0 %v2418, 64
    %v2459 = vpop.permute.xlu0 %2458
    %v2461 = vmul.f32 %v2426, %v2459
    %2463 = vrot.lane.b32.xlu0 %v2461, 64
    %v2464 = vpop.permute.xlu0 %2463
    %v2466 = vadd.f32 %v2345, %v2464
    %v2467 = vtanh.pop %v2466
    %v2468 = vsub.f32 1.0, %v2456
    %2470 = vrot.lane.b32.xlu0 %v2467, 96
    %v2471 = vpop.permute.xlu0 %2470
    %v2473 = vmul.f32 %v2468, %v2471
    %2474 = vrot.lane.b32.xlu0 %v2340, 96
    %v2475 = vpop.permute.xlu0 %2474
    %v2477 = vmul.f32 %v2456, %v2475
    %v2478 = vadd.f32 %v2473, %v2477
    %v2479 = vsel %vm754, %v2478, %v2475
    %2481 = vrot.lane.b32.xlu0 %v2449, 96
    %v2482 = vpop.permute.xlu0 %2481
    %2485 = vrot.lane.b32.xlu0 %v2479, 32
    %v2486 = vpop.permute.xlu0 %2485
    %v2488 = vsel %vm479, %v2482, %v2486
    %s2489 = smul.u32 14, 2
    %s2490 = smul.addr %s2489, 8
    %s2491 = scalar_lea.vmem [#allocation2], %s2490
    %v2492 = vld [vmem:[%s2491] sm:$0xff]
    %v2493 = vld [vmem:[%s2491 + $0x8] sm:$0xff]
    %v2495 = vsel %vm266, %v2488, 0
    %2497 = vmatprep.subr.mxu0 %v299
    %2498 = vmatpush1.msra.mxu0 %v298
    %2499 = vmatprep.subr.mxu0 %v301
    %2500 = vmatpush1.msra.mxu0 %v300
    %2501 = vmatprep.subr.mxu0 %v303
    %2502 = vmatpush1.msra.mxu0 %v302
    %2503 = vmatprep.subr.mxu0 %v305
    %2504 = vmatpush1.msra.mxu0 %v304
    %2505 = vmatprep.subr.mxu0 %v307
    %2506 = vmatpush1.msra.mxu0 %v306
    %2507 = vmatprep.subr.mxu0 %v309
    %2508 = vmatpush1.msra.mxu0 %v308
    %2509 = vmatprep.subr.mxu0 %v311
    %2510 = vmatpush1.msra.mxu0 %v310
    %2511 = vmatprep.subr.mxu0 %v313
    %2512 = vmatpush1.msra.mxu0 %v312
    %2513 = vmatprep.subr.mxu0 0.0
    %2514 = vmatpush1.msra.mxu0 0.0
    %2515 = vmatprep.subr.mxu0 0.0
    %2516 = vmatpush1.msra.mxu0 0.0
    %2517 = vmatprep.subr.mxu0 0.0
    %2518 = vmatpush1.msra.mxu0 0.0
    %2519 = vmatprep.subr.mxu0 0.0
    %2520 = vmatpush1.msra.mxu0 0.0
    %2521 = vmatprep.subr.mxu0 0.0
    %2522 = vmatpush1.msra.mxu0 0.0
    %2523 = vmatprep.subr.mxu0 0.0
    %2524 = vmatpush1.msra.mxu0 0.0
    %2525 = vmatprep.subr.mxu0 0.0
    %2526 = vmatpush1.msra.mxu0 0.0
    %2527 = vmatprep.subr.mxu0 0.0
    %2528 = vmatpush1.msra.mxu0 0.0
    %2529 = vmatprep.subr.mxu0 0.0
    %2530 = vmatpush1.msra.mxu0 0.0
    %2531 = vmatprep.subr.mxu0 0.0
    %2532 = vmatpush1.msra.mxu0 0.0
    %2533 = vmatprep.subr.mxu0 0.0
    %2534 = vmatpush1.msra.mxu0 0.0
    %2535 = vmatprep.subr.mxu0 0.0
    %2536 = vmatpush1.msra.mxu0 0.0
    %2537 = vmatprep.subr.mxu0 0.0
    %2538 = vmatpush1.msra.mxu0 0.0
    %2539 = vmatprep.subr.mxu0 0.0
    %2540 = vmatpush1.msra.mxu0 0.0
    %2541 = vmatprep.subr.mxu0 0.0
    %2542 = vmatpush1.msra.mxu0 0.0
    %2543 = vmatprep.subr.mxu0 0.0
    %2544 = vmatpush1.msra.mxu0 0.0
    %2545 = vmatprep.subr.mxu0 0.0
    %2546 = vmatpush1.msra.mxu0 0.0
    %2547 = vmatprep.subr.mxu0 0.0
    %2548 = vmatpush1.msra.mxu0 0.0
    %2549 = vmatprep.subr.mxu0 0.0
    %2550 = vmatpush1.msra.mxu0 0.0
    %2551 = vmatprep.subr.mxu0 0.0
    %2552 = vmatpush1.msra.mxu0 0.0
    %2553 = vmatprep.subr.mxu0 0.0
    %2554 = vmatpush1.msra.mxu0 0.0
    %2555 = vmatprep.subr.mxu0 0.0
    %2556 = vmatpush1.msra.mxu0 0.0
    %2557 = vmatprep.subr.mxu0 0.0
    %2558 = vmatpush1.msra.mxu0 0.0
    %2559 = vmatprep.subr.mxu0 0.0
    %2560 = vmatpush1.msra.mxu0 0.0
    %2561 = vmatprep.mubr.f32.mxu0 0.0
    %2562 = vmatmul.mubr.f32.gmra.mrb[0].mxu0 %v2495
    %v2563 = vpop.f32.mrb[0].mxu0
    %v2564 = vadd.f32 %v324, %v2563
    %v2565 = vpop.f32.mrb[0].mxu0
    %v2566 = vadd.f32 %v328, %v2565
    %2567 = vdwg.mxu0
    %v2568 = vadd.f32 %v2492, %v2564
    %v2569 = vxor.u32 %v2568, 2147483648
    %v2570 = vmul.f32 %v2569, 1.442695
    %v2571 = vpow.pop %v2570
    %v2572 = vadd.f32 %v2571, 1.0
    %v2573 = vrcp.pop %v2572
    %v2574 = vmul.f32 1.0, %v2573
    %2576 = vrot.lane.b32.xlu0 %v2564, 64
    %v2577 = vpop.permute.xlu0 %2576
    %v2579 = vmul.f32 %v2574, %v2577
    %2581 = vrot.lane.b32.xlu0 %v2579, 64
    %v2582 = vpop.permute.xlu0 %2581
    %v2584 = vadd.f32 %v2492, %v2582
    %v2585 = vtanh.pop %v2584
    %v2586 = vsub.f32 1.0, %v2574
    %2588 = vrot.lane.b32.xlu0 %v2585, 96
    %v2589 = vpop.permute.xlu0 %2588
    %v2591 = vmul.f32 %v2586, %v2589
    %2592 = vrot.lane.b32.xlu0 %v2488, 32
    %v2593 = vpop.permute.xlu0 %2592
    %v2595 = vmul.f32 %v2574, %v2593
    %v2596 = vadd.f32 %v2591, %v2595
    %v2597 = vsel %vm630, %v2596, %v2593
    %v2598 = vadd.f32 %v2493, %v2566
    %v2599 = vxor.u32 %v2598, 2147483648
    %v2600 = vmul.f32 %v2599, 1.442695
    %v2601 = vpow.pop %v2600
    %v2602 = vadd.f32 %v2601, 1.0
    %v2603 = vrcp.pop %v2602
    %v2604 = vmul.f32 1.0, %v2603
    %2606 = vrot.lane.b32.xlu0 %v2566, 64
    %v2607 = vpop.permute.xlu0 %2606
    %v2609 = vmul.f32 %v2574, %v2607
    %2611 = vrot.lane.b32.xlu0 %v2609, 64
    %v2612 = vpop.permute.xlu0 %2611
    %v2614 = vadd.f32 %v2493, %v2612
    %v2615 = vtanh.pop %v2614
    %v2616 = vsub.f32 1.0, %v2604
    %2618 = vrot.lane.b32.xlu0 %v2615, 96
    %v2619 = vpop.permute.xlu0 %2618
    %v2621 = vmul.f32 %v2616, %v2619
    %2622 = vrot.lane.b32.xlu0 %v2488, 96
    %v2623 = vpop.permute.xlu0 %2622
    %v2625 = vmul.f32 %v2604, %v2623
    %v2626 = vadd.f32 %v2621, %v2625
    %v2627 = vsel %vm594, %v2626, %v2623
    %2629 = vrot.lane.b32.xlu0 %v2597, 96
    %v2630 = vpop.permute.xlu0 %2629
    %2633 = vrot.lane.b32.xlu0 %v2627, 32
    %v2634 = vpop.permute.xlu0 %2633
    %v2636 = vsel %vm479, %v2630, %v2634
    %s2637 = smul.u32 15, 2
    %s2638 = smul.addr %s2637, 8
    %s2639 = scalar_lea.vmem [#allocation2], %s2638
    %v2640 = vld [vmem:[%s2639] sm:$0xff]
    %v2641 = vld [vmem:[%s2639 + $0x8] sm:$0xff]
    %v2643 = vsel %vm266, %v2636, 0
    %2645 = vmatprep.subr.mxu0 %v299
    %2646 = vmatpush1.msra.mxu0 %v298
    %2647 = vmatprep.subr.mxu0 %v301
    %2648 = vmatpush1.msra.mxu0 %v300
    %2649 = vmatprep.subr.mxu0 %v303
    %2650 = vmatpush1.msra.mxu0 %v302
    %2651 = vmatprep.subr.mxu0 %v305
    %2652 = vmatpush1.msra.mxu0 %v304
    %2653 = vmatprep.subr.mxu0 %v307
    %2654 = vmatpush1.msra.mxu0 %v306
    %2655 = vmatprep.subr.mxu0 %v309
    %2656 = vmatpush1.msra.mxu0 %v308
    %2657 = vmatprep.subr.mxu0 %v311
    %2658 = vmatpush1.msra.mxu0 %v310
    %2659 = vmatprep.subr.mxu0 %v313
    %2660 = vmatpush1.msra.mxu0 %v312
    %2661 = vmatprep.subr.mxu0 0.0
    %2662 = vmatpush1.msra.mxu0 0.0
    %2663 = vmatprep.subr.mxu0 0.0
    %2664 = vmatpush1.msra.mxu0 0.0
    %2665 = vmatprep.subr.mxu0 0.0
    %2666 = vmatpush1.msra.mxu0 0.0
    %2667 = vmatprep.subr.mxu0 0.0
    %2668 = vmatpush1.msra.mxu0 0.0
    %2669 = vmatprep.subr.mxu0 0.0
    %2670 = vmatpush1.msra.mxu0 0.0
    %2671 = vmatprep.subr.mxu0 0.0
    %2672 = vmatpush1.msra.mxu0 0.0
    %2673 = vmatprep.subr.mxu0 0.0
    %2674 = vmatpush1.msra.mxu0 0.0
    %2675 = vmatprep.subr.mxu0 0.0
    %2676 = vmatpush1.msra.mxu0 0.0
    %2677 = vmatprep.subr.mxu0 0.0
    %2678 = vmatpush1.msra.mxu0 0.0
    %2679 = vmatprep.subr.mxu0 0.0
    %2680 = vmatpush1.msra.mxu0 0.0
    %2681 = vmatprep.subr.mxu0 0.0
    %2682 = vmatpush1.msra.mxu0 0.0
    %2683 = vmatprep.subr.mxu0 0.0
    %2684 = vmatpush1.msra.mxu0 0.0
    %2685 = vmatprep.subr.mxu0 0.0
    %2686 = vmatpush1.msra.mxu0 0.0
    %2687 = vmatprep.subr.mxu0 0.0
    %2688 = vmatpush1.msra.mxu0 0.0
    %2689 = vmatprep.subr.mxu0 0.0
    %2690 = vmatpush1.msra.mxu0 0.0
    %2691 = vmatprep.subr.mxu0 0.0
    %2692 = vmatpush1.msra.mxu0 0.0
    %2693 = vmatprep.subr.mxu0 0.0
    %2694 = vmatpush1.msra.mxu0 0.0
    %2695 = vmatprep.subr.mxu0 0.0
    %2696 = vmatpush1.msra.mxu0 0.0
    %2697 = vmatprep.subr.mxu0 0.0
    %2698 = vmatpush1.msra.mxu0 0.0
    %2699 = vmatprep.subr.mxu0 0.0
    %2700 = vmatpush1.msra.mxu0 0.0
    %2701 = vmatprep.subr.mxu0 0.0
    %2702 = vmatpush1.msra.mxu0 0.0
    %2703 = vmatprep.subr.mxu0 0.0
    %2704 = vmatpush1.msra.mxu0 0.0
    %2705 = vmatprep.subr.mxu0 0.0
    %2706 = vmatpush1.msra.mxu0 0.0
    %2707 = vmatprep.subr.mxu0 0.0
    %2708 = vmatpush1.msra.mxu0 0.0
    %2709 = vmatprep.mubr.f32.mxu0 0.0
    %2710 = vmatmul.mubr.f32.gmra.mrb[0].mxu0 %v2643
    %v2711 = vpop.f32.mrb[0].mxu0
    %v2712 = vadd.f32 %v324, %v2711
    %v2713 = vpop.f32.mrb[0].mxu0
    %v2714 = vadd.f32 %v328, %v2713
    %2715 = vdwg.mxu0
    %v2716 = vadd.f32 %v2640, %v2712
    %v2717 = vxor.u32 %v2716, 2147483648
    %v2718 = vmul.f32 %v2717, 1.442695
    %v2719 = vpow.pop %v2718
    %v2720 = vadd.f32 %v2719, 1.0
    %v2721 = vrcp.pop %v2720
    %v2722 = vmul.f32 1.0, %v2721
    %2724 = vrot.lane.b32.xlu0 %v2712, 64
    %v2725 = vpop.permute.xlu0 %2724
    %v2727 = vmul.f32 %v2722, %v2725
    %2729 = vrot.lane.b32.xlu0 %v2727, 64
    %v2730 = vpop.permute.xlu0 %2729
    %v2732 = vadd.f32 %v2640, %v2730
    %v2733 = vtanh.pop %v2732
    %v2734 = vsub.f32 1.0, %v2722
    %2736 = vrot.lane.b32.xlu0 %v2733, 96
    %v2737 = vpop.permute.xlu0 %2736
    %v2739 = vmul.f32 %v2734, %v2737
    %2740 = vrot.lane.b32.xlu0 %v2636, 32
    %v2741 = vpop.permute.xlu0 %2740
    %v2743 = vmul.f32 %v2722, %v2741
    %v2744 = vadd.f32 %v2739, %v2743
    %v2745 = vsel %vm469, %v2744, %v2741
    %v2746 = vadd.f32 %v2641, %v2714
    %v2747 = vxor.u32 %v2746, 2147483648
    %v2748 = vmul.f32 %v2747, 1.442695
    %v2749 = vpow.pop %v2748
    %v2750 = vadd.f32 %v2749, 1.0
    %v2751 = vrcp.pop %v2750
    %v2752 = vmul.f32 1.0, %v2751
    %2754 = vrot.lane.b32.xlu0 %v2714, 64
    %v2755 = vpop.permute.xlu0 %2754
    %v2757 = vmul.f32 %v2722, %v2755
    %2759 = vrot.lane.b32.xlu0 %v2757, 64
    %v2760 = vpop.permute.xlu0 %2759
    %v2762 = vadd.f32 %v2641, %v2760
    %v2763 = vtanh.pop %v2762
    %v2764 = vsub.f32 1.0, %v2752
    %2766 = vrot.lane.b32.xlu0 %v2763, 96
    %v2767 = vpop.permute.xlu0 %2766
    %v2769 = vmul.f32 %v2764, %v2767
    %2770 = vrot.lane.b32.xlu0 %v2636, 96
    %v2771 = vpop.permute.xlu0 %2770
    %v2773 = vmul.f32 %v2752, %v2771
    %v2774 = vadd.f32 %v2769, %v2773
    %v2775 = vsel %vm436, %v2774, %v2771
    %2777 = vrot.lane.b32.xlu0 %v2745, 96
    %v2778 = vpop.permute.xlu0 %2777
    %2781 = vrot.lane.b32.xlu0 %v2775, 32
    %v2782 = vpop.permute.xlu0 %2781
    %v2784 = vsel %vm479, %v2778, %v2782
    %2786 = vrot.lane.b32.xlu0 %v2784, 96
    %v2787 = vpop.permute.xlu0 %2786
    %v2789 = vadd.f32 %v2784, %v2787
    %v2790 = vld [vmem:[%s3] sm:$0xff]
    %v2791 = vld [vmem:[%s3 + $0x8] sm:$0xff]
    %v2792 = vld [vmem:[%s3 + $0x10] sm:$0xff]
    %v2793 = vld [vmem:[%s3 + $0x18] sm:$0xff]
    %v2794 = vld [vmem:[%s3 + $0x20] sm:$0xff]
    %v2795 = vld [vmem:[%s3 + $0x28] sm:$0xff]
    %v2796 = vld [vmem:[%s3 + $0x30] sm:$0xff]
    %v2797 = vld [vmem:[%s3 + $0x38] sm:$0xff]
    %vm2798 = vcmask 64512
    %v2800 = vsel %vm2798, %v2790, 0
    %v2803 = vsel %vm2798, %v2791, 0
    %v2806 = vsel %vm2798, %v2792, 0
    %v2809 = vsel %vm2798, %v2793, 0
    %v2812 = vsel %vm2798, %v2794, 0
    %v2815 = vsel %vm2798, %v2795, 0
    %v2818 = vsel %vm2798, %v2796, 0
    %v2821 = vsel %vm2798, %v2797, 0
    %2823 = vmatprep.subr.mxu0 0.0
    %2824 = vmatpush1.msra.mxu0 %v2789
    %2825 = vmatprep.subr.mxu0 0.0
    %2826 = vmatpush1.msra.mxu0 0.0
    %2827 = vmatprep.subr.mxu0 0.0
    %2828 = vmatpush1.msra.mxu0 0.0
    %2829 = vmatprep.subr.mxu0 0.0
    %2830 = vmatpush1.msra.mxu0 0.0
    %2831 = vmatprep.subr.mxu0 0.0
    %2832 = vmatpush1.msra.mxu0 0.0
    %2833 = vmatprep.subr.mxu0 0.0
    %2834 = vmatpush1.msra.mxu0 0.0
    %2835 = vmatprep.subr.mxu0 0.0
    %2836 = vmatpush1.msra.mxu0 0.0
    %2837 = vmatprep.subr.mxu0 0.0
    %2838 = vmatpush1.msra.mxu0 0.0
    %2839 = vmatprep.subr.mxu0 0.0
    %2840 = vmatpush1.msra.mxu0 0.0
    %2841 = vmatprep.subr.mxu0 0.0
    %2842 = vmatpush1.msra.mxu0 0.0
    %2843 = vmatprep.subr.mxu0 0.0
    %2844 = vmatpush1.msra.mxu0 0.0
    %2845 = vmatprep.subr.mxu0 0.0
    %2846 = vmatpush1.msra.mxu0 0.0
    %2847 = vmatprep.subr.mxu0 0.0
    %2848 = vmatpush1.msra.mxu0 0.0
    %2849 = vmatprep.subr.mxu0 0.0
    %2850 = vmatpush1.msra.mxu0 0.0
    %2851 = vmatprep.subr.mxu0 0.0
    %2852 = vmatpush1.msra.mxu0 0.0
    %2853 = vmatprep.subr.mxu0 0.0
    %2854 = vmatpush1.msra.mxu0 0.0
    %2855 = vmatprep.subr.mxu0 0.0
    %2856 = vmatpush1.msra.mxu0 0.0
    %2857 = vmatprep.subr.mxu0 0.0
    %2858 = vmatpush1.msra.mxu0 0.0
    %2859 = vmatprep.subr.mxu0 0.0
    %2860 = vmatpush1.msra.mxu0 0.0
    %2861 = vmatprep.subr.mxu0 0.0
    %2862 = vmatpush1.msra.mxu0 0.0
    %2863 = vmatprep.subr.mxu0 0.0
    %2864 = vmatpush1.msra.mxu0 0.0
    %2865 = vmatprep.subr.mxu0 0.0
    %2866 = vmatpush1.msra.mxu0 0.0
    %2867 = vmatprep.subr.mxu0 0.0
    %2868 = vmatpush1.msra.mxu0 0.0
    %2869 = vmatprep.subr.mxu0 0.0
    %2870 = vmatpush1.msra.mxu0 0.0
    %2871 = vmatprep.subr.mxu0 0.0
    %2872 = vmatpush1.msra.mxu0 0.0
    %2873 = vmatprep.subr.mxu0 0.0
    %2874 = vmatpush1.msra.mxu0 0.0
    %2875 = vmatprep.subr.mxu0 0.0
    %2876 = vmatpush1.msra.mxu0 0.0
    %2877 = vmatprep.subr.mxu0 0.0
    %2878 = vmatpush1.msra.mxu0 0.0
    %2879 = vmatprep.subr.mxu0 0.0
    %2880 = vmatpush1.msra.mxu0 0.0
    %2881 = vmatprep.subr.mxu0 0.0
    %2882 = vmatpush1.msra.mxu0 0.0
    %2883 = vmatprep.subr.mxu0 0.0
    %2884 = vmatpush1.msra.mxu0 0.0
    %2885 = vmatprep.subr.mxu0 0.0
    %2886 = vmatpush1.msra.mxu0 0.0
    %2887 = vmatprep.mubr.f32.mxu0 0.0
    %2888 = vmatmul.mubr.f32.gmra.mrb[0].mxu0 %v2800
    %v2889 = vpop.f32.mrb[0].mxu0
    %v2890 = vadd.f32 0.0, %v2889
    %v2891 = vpop.f32.mrb[0].mxu0
    %2892 = vmatprep.mubr.f32.mxu0 0.0
    %2893 = vmatmul.mubr.f32.gmra.mrb[0].mxu0 %v2803
    %v2894 = vpop.f32.mrb[0].mxu0
    %v2895 = vadd.f32 0.0, %v2894
    %v2896 = vpop.f32.mrb[0].mxu0
    %2897 = vmatprep.mubr.f32.mxu0 0.0
    %2898 = vmatmul.mubr.f32.gmra.mrb[0].mxu0 %v2806
    %v2899 = vpop.f32.mrb[0].mxu0
    %v2900 = vadd.f32 0.0, %v2899
    %v2901 = vpop.f32.mrb[0].mxu0
    %2902 = vmatprep.mubr.f32.mxu0 0.0
    %2903 = vmatmul.mubr.f32.gmra.mrb[0].mxu0 %v2809
    %v2904 = vpop.f32.mrb[0].mxu0
    %v2905 = vadd.f32 0.0, %v2904
    %v2906 = vpop.f32.mrb[0].mxu0
    %2907 = vmatprep.mubr.f32.mxu0 0.0
    %2908 = vmatmul.mubr.f32.gmra.mrb[0].mxu0 %v2812
    %v2909 = vpop.f32.mrb[0].mxu0
    %v2910 = vadd.f32 0.0, %v2909
    %v2911 = vpop.f32.mrb[0].mxu0
    %2912 = vmatprep.mubr.f32.mxu0 0.0
    %2913 = vmatmul.mubr.f32.gmra.mrb[0].mxu0 %v2815
    %v2914 = vpop.f32.mrb[0].mxu0
    %v2915 = vadd.f32 0.0, %v2914
    %v2916 = vpop.f32.mrb[0].mxu0
    %2917 = vmatprep.mubr.f32.mxu0 0.0
    %2918 = vmatmul.mubr.f32.gmra.mrb[0].mxu0 %v2818
    %v2919 = vpop.f32.mrb[0].mxu0
    %v2920 = vadd.f32 0.0, %v2919
    %v2921 = vpop.f32.mrb[0].mxu0
    %2922 = vmatprep.mubr.f32.mxu0 0.0
    %2923 = vmatmul.mubr.f32.gmra.mrb[0].mxu0 %v2821
    %v2924 = vpop.f32.mrb[0].mxu0
    %v2925 = vadd.f32 0.0, %v2924
    %v2926 = vpop.f32.mrb[0].mxu0
    %2927 = vdwg.mxu0
    %v2928 = vld [vmem:[%s8] sm:$0xff]
    %v2929 = vld [vmem:[%s8 + $0x8] sm:$0xff]
    %v2930 = vld [vmem:[%s8 + $0x10] sm:$0xff]
    %v2931 = vld [vmem:[%s8 + $0x18] sm:$0xff]
    %v2932 = vld [vmem:[%s10] sm:$0x1]
    %v2934 = vlaneseq
    %v2935 = vshrl.u32 %v2934, 7
    %v2936 = vsub.s32 0, %v2935
    %v2937 = vrot.slane %v2932, %v2936
    %v2940 = vsel %vm479, %v2890, 0
    %v2943 = vsel %vm479, %v2895, 0
    %v2946 = vsel %vm479, %v2900, 0
    %v2949 = vsel %vm479, %v2905, 0
    %v2952 = vsel %vm479, %v2910, 0
    %v2955 = vsel %vm479, %v2915, 0
    %v2958 = vsel %vm479, %v2920, 0
    %v2961 = vsel %vm479, %v2925, 0
    %2963 = vmatprep.subr.mxu0 0.0
    %2964 = vmatpush1.msra.mxu0 %v2928
    %2965 = vmatprep.subr.mxu0 0.0
    %2966 = vmatpush1.msra.mxu0 %v2929
    %2967 = vmatprep.subr.mxu0 0.0
    %2968 = vmatpush1.msra.mxu0 %v2930
    %2969 = vmatprep.subr.mxu0 0.0
    %2970 = vmatpush1.msra.mxu0 %v2931
    %2971 = vmatprep.subr.mxu0 0.0
    %2972 = vmatpush1.msra.mxu0 0.0
    %2973 = vmatprep.subr.mxu0 0.0
    %2974 = vmatpush1.msra.mxu0 0.0
    %2975 = vmatprep.subr.mxu0 0.0
    %2976 = vmatpush1.msra.mxu0 0.0
    %2977 = vmatprep.subr.mxu0 0.0
    %2978 = vmatpush1.msra.mxu0 0.0
    %2979 = vmatprep.subr.mxu0 0.0
    %2980 = vmatpush1.msra.mxu0 0.0
    %2981 = vmatprep.subr.mxu0 0.0
    %2982 = vmatpush1.msra.mxu0 0.0
    %2983 = vmatprep.subr.mxu0 0.0
    %2984 = vmatpush1.msra.mxu0 0.0
    %2985 = vmatprep.subr.mxu0 0.0
    %2986 = vmatpush1.msra.mxu0 0.0
    %2987 = vmatprep.subr.mxu0 0.0
    %2988 = vmatpush1.msra.mxu0 0.0
    %2989 = vmatprep.subr.mxu0 0.0
    %2990 = vmatpush1.msra.mxu0 0.0
    %2991 = vmatprep.subr.mxu0 0.0
    %2992 = vmatpush1.msra.mxu0 0.0
    %2993 = vmatprep.subr.mxu0 0.0
    %2994 = vmatpush1.msra.mxu0 0.0
    %2995 = vmatprep.subr.mxu0 0.0
    %2996 = vmatpush1.msra.mxu0 0.0
    %2997 = vmatprep.subr.mxu0 0.0
    %2998 = vmatpush1.msra.mxu0 0.0
    %2999 = vmatprep.subr.mxu0 0.0
    %3000 = vmatpush1.msra.mxu0 0.0
    %3001 = vmatprep.subr.mxu0 0.0
    %3002 = vmatpush1.msra.mxu0 0.0
    %3003 = vmatprep.subr.mxu0 0.0
    %3004 = vmatpush1.msra.mxu0 0.0
    %3005 = vmatprep.subr.mxu0 0.0
    %3006 = vmatpush1.msra.mxu0 0.0
    %3007 = vmatprep.subr.mxu0 0.0
    %3008 = vmatpush1.msra.mxu0 0.0
    %3009 = vmatprep.subr.mxu0 0.0
    %3010 = vmatpush1.msra.mxu0 0.0
    %3011 = vmatprep.subr.mxu0 0.0
    %3012 = vmatpush1.msra.mxu0 0.0
    %3013 = vmatprep.subr.mxu0 0.0
    %3014 = vmatpush1.msra.mxu0 0.0
    %3015 = vmatprep.subr.mxu0 0.0
    %3016 = vmatpush1.msra.mxu0 0.0
    %3017 = vmatprep.subr.mxu0 0.0
    %3018 = vmatpush1.msra.mxu0 0.0
    %3019 = vmatprep.subr.mxu0 0.0
    %3020 = vmatpush1.msra.mxu0 0.0
    %3021 = vmatprep.subr.mxu0 0.0
    %3022 = vmatpush1.msra.mxu0 0.0
    %3023 = vmatprep.subr.mxu0 0.0
    %3024 = vmatpush1.msra.mxu0 0.0
    %3025 = vmatprep.subr.mxu0 0.0
    %3026 = vmatpush1.msra.mxu0 0.0
    %3027 = vmatprep.mubr.f32.mxu0 0.0
    %3028 = vmatmul.mubr.f32.gmra.mrb[0].mxu0 %v2940
    %v3029 = vpop.f32.mrb[0].mxu0
    %v3030 = vadd.f32 %v2937, %v3029
    %v3031 = vpop.f32.mrb[0].mxu0
    %3032 = vmatprep.mubr.f32.mxu0 0.0
    %3033 = vmatmul.mubr.f32.gmra.mrb[0].mxu0 %v2943
    %v3034 = vpop.f32.mrb[0].mxu0
    %v3035 = vadd.f32 %v2937, %v3034
    %v3036 = vpop.f32.mrb[0].mxu0
    %3037 = vmatprep.mubr.f32.mxu0 0.0
    %3038 = vmatmul.mubr.f32.gmra.mrb[0].mxu0 %v2946
    %v3039 = vpop.f32.mrb[0].mxu0
    %v3040 = vadd.f32 %v2937, %v3039
    %v3041 = vpop.f32.mrb[0].mxu0
    %3042 = vmatprep.mubr.f32.mxu0 0.0
    %3043 = vmatmul.mubr.f32.gmra.mrb[0].mxu0 %v2949
    %v3044 = vpop.f32.mrb[0].mxu0
    %v3045 = vadd.f32 %v2937, %v3044
    %v3046 = vpop.f32.mrb[0].mxu0
    %3047 = vmatprep.mubr.f32.mxu0 0.0
    %3048 = vmatmul.mubr.f32.gmra.mrb[0].mxu0 %v2952
    %v3049 = vpop.f32.mrb[0].mxu0
    %v3050 = vadd.f32 %v2937, %v3049
    %v3051 = vpop.f32.mrb[0].mxu0
    %3052 = vmatprep.mubr.f32.mxu0 0.0
    %3053 = vmatmul.mubr.f32.gmra.mrb[0].mxu0 %v2955
    %v3054 = vpop.f32.mrb[0].mxu0
    %v3055 = vadd.f32 %v2937, %v3054
    %v3056 = vpop.f32.mrb[0].mxu0
    %3057 = vmatprep.mubr.f32.mxu0 0.0
    %3058 = vmatmul.mubr.f32.gmra.mrb[0].mxu0 %v2958
    %v3059 = vpop.f32.mrb[0].mxu0
    %v3060 = vadd.f32 %v2937, %v3059
    %v3061 = vpop.f32.mrb[0].mxu0
    %3062 = vmatprep.mubr.f32.mxu0 0.0
    %3063 = vmatmul.mubr.f32.gmra.mrb[0].mxu0 %v2961
    %v3064 = vpop.f32.mrb[0].mxu0
    %v3065 = vadd.f32 %v2937, %v3064
    %v3066 = vpop.f32.mrb[0].mxu0
    %3067 = vdwg.mxu0
    %vm3068 = vcmask 785408
    %3069 = vst.msk [vmem:[#allocation3] sm:$0xff] %vm3068, %v3030
    %3070 = vst.msk [vmem:[#allocation3 + $0x8] sm:$0xff] %vm3068, %v3035
    %3071 = vst.msk [vmem:[#allocation3 + $0x10] sm:$0xff] %vm3068, %v3040
    %3072 = vst.msk [vmem:[#allocation3 + $0x18] sm:$0xff] %vm3068, %v3045
    %3073 = vst.msk [vmem:[#allocation3 + $0x20] sm:$0xff] %vm3068, %v3050
    %3074 = vst.msk [vmem:[#allocation3 + $0x28] sm:$0xff] %vm3068, %v3055
    %3075 = vst.msk [vmem:[#allocation3 + $0x30] sm:$0xff] %vm3068, %v3060
    %3076 = vst.msk [vmem:[#allocation3 + $0x38] sm:$0xff] %vm3068, %v3065
    %v3077 = vld [vmem:[%s9] sm:$0xff]
    %v3078 = vld [vmem:[%s9 + $0x8] sm:$0xff]
    %v3079 = vld [vmem:[%s9 + $0x10] sm:$0xff]
    %v3080 = vld [vmem:[%s9 + $0x18] sm:$0xff]
    %v3081 = vld [vmem:[%s11] sm:$0x1]
    %v3082 = vld [vmem:[#allocation3] sm:$0xff]
    %v3084 = vlaneseq
    %v3085 = vshrl.u32 %v3084, 7
    %v3086 = vsub.s32 0, %v3085
    %v3087 = vrot.slane %v3081, %v3086
    %v3089 = vsel %vm479, 0.0, 0
    %3091 = vmatprep.subr.mxu0 0.0
    %3092 = vmatpush1.msra.mxu0 %v3077
    %3093 = vmatprep.subr.mxu0 0.0
    %3094 = vmatpush1.msra.mxu0 %v3078
    %3095 = vmatprep.subr.mxu0 0.0
    %3096 = vmatpush1.msra.mxu0 %v3079
    %3097 = vmatprep.subr.mxu0 0.0
    %3098 = vmatpush1.msra.mxu0 %v3080
    %3099 = vmatprep.subr.mxu0 0.0
    %3100 = vmatpush1.msra.mxu0 0.0
    %3101 = vmatprep.subr.mxu0 0.0
    %3102 = vmatpush1.msra.mxu0 0.0
    %3103 = vmatprep.subr.mxu0 0.0
    %3104 = vmatpush1.msra.mxu0 0.0
    %3105 = vmatprep.subr.mxu0 0.0
    %3106 = vmatpush1.msra.mxu0 0.0
    %3107 = vmatprep.subr.mxu0 0.0
    %3108 = vmatpush1.msra.mxu0 0.0
    %3109 = vmatprep.subr.mxu0 0.0
    %3110 = vmatpush1.msra.mxu0 0.0
    %3111 = vmatprep.subr.mxu0 0.0
    %3112 = vmatpush1.msra.mxu0 0.0
    %3113 = vmatprep.subr.mxu0 0.0
    %3114 = vmatpush1.msra.mxu0 0.0
    %3115 = vmatprep.subr.mxu0 0.0
    %3116 = vmatpush1.msra.mxu0 0.0
    %3117 = vmatprep.subr.mxu0 0.0
    %3118 = vmatpush1.msra.mxu0 0.0
    %3119 = vmatprep.subr.mxu0 0.0
    %3120 = vmatpush1.msra.mxu0 0.0
    %3121 = vmatprep.subr.mxu0 0.0
    %3122 = vmatpush1.msra.mxu0 0.0
    %3123 = vmatprep.subr.mxu0 0.0
    %3124 = vmatpush1.msra.mxu0 0.0
    %3125 = vmatprep.subr.mxu0 0.0
    %3126 = vmatpush1.msra.mxu0 0.0
    %3127 = vmatprep.subr.mxu0 0.0
    %3128 = vmatpush1.msra.mxu0 0.0
    %3129 = vmatprep.subr.mxu0 0.0
    %3130 = vmatpush1.msra.mxu0 0.0
    %3131 = vmatprep.subr.mxu0 0.0
    %3132 = vmatpush1.msra.mxu0 0.0
    %3133 = vmatprep.subr.mxu0 0.0
    %3134 = vmatpush1.msra.mxu0 0.0
    %3135 = vmatprep.subr.mxu0 0.0
    %3136 = vmatpush1.msra.mxu0 0.0
    %3137 = vmatprep.subr.mxu0 0.0
    %3138 = vmatpush1.msra.mxu0 0.0
    %3139 = vmatprep.subr.mxu0 0.0
    %3140 = vmatpush1.msra.mxu0 0.0
    %3141 = vmatprep.subr.mxu0 0.0
    %3142 = vmatpush1.msra.mxu0 0.0
    %3143 = vmatprep.subr.mxu0 0.0
    %3144 = vmatpush1.msra.mxu0 0.0
    %3145 = vmatprep.subr.mxu0 0.0
    %3146 = vmatpush1.msra.mxu0 0.0
    %3147 = vmatprep.subr.mxu0 0.0
    %3148 = vmatpush1.msra.mxu0 0.0
    %3149 = vmatprep.subr.mxu0 0.0
    %3150 = vmatpush1.msra.mxu0 0.0
    %3151 = vmatprep.subr.mxu0 0.0
    %3152 = vmatpush1.msra.mxu0 0.0
    %3153 = vmatprep.subr.mxu0 0.0
    %3154 = vmatpush1.msra.mxu0 0.0
    %3155 = vmatprep.mubr.f32.mxu0 0.0
    %3156 = vmatmul.mubr.f32.gmra.mrb[0].mxu0 %v3089
    %v3157 = vpop.f32.mrb[0].mxu0
    %v3158 = vadd.f32 %v3087, %v3157
    %v3159 = vpop.f32.mrb[0].mxu0
    %3160 = vdwg.mxu0
    %vm3161 = vcmp.gt.s32.totalorder %v43, 0
    %v3162 = vadd.f32 %v3082, %v3158
    %v3163 = vxor.u32 %v3162, 2147483648
    %v3164 = vmul.f32 %v3163, 1.442695
    %v3165 = vpow.pop %v3164
    %v3166 = vadd.f32 %v3165, 1.0
    %v3167 = vrcp.pop %v3166
    %v3168 = vmul.f32 1.0, %v3167
    %3170 = vrot.lane.b32.xlu0 %v3158, 64
    %v3171 = vpop.permute.xlu0 %3170
    %v3173 = vmul.f32 %v3168, %v3171
    %3175 = vrot.lane.b32.xlu0 %v3173, 64
    %v3176 = vpop.permute.xlu0 %3175
    %v3178 = vadd.f32 %v3082, %v3176
    %v3179 = vtanh.pop %v3178
    %v3180 = vsub.f32 1.0, %v3168
    %3182 = vrot.lane.b32.xlu0 %v3179, 96
    %v3183 = vpop.permute.xlu0 %3182
    %v3185 = vmul.f32 %v3180, %v3183
    %v3186 = vmul.f32 %v3168, 0.0
    %v3187 = vadd.f32 %v3185, %v3186
    %v3188 = vsel %vm3161, 1, 0
    %3189 = vset.pattern.permute.xlu0 0
    %3190 = vperm.xlu0 %3189, %v3188
    %v3191 = vpop.permute.xlu0 %3190
    %vm3192 = vcmp.eq.s32.totalorder %v3191, 1
    %v3193 = vsel %vm3192, %v3187, 0.0
    %s3194 = scalar_lea.vmem [#allocation3], 8
    %v3195 = vld [vmem:[%s3194] sm:$0xff]
    %3197 = vrot.lane.b32.xlu0 %v3193, 96
    %v3198 = vpop.permute.xlu0 %3197
    %v3199 = vsel %vm479, %v3198, 0
    %3201 = vmatprep.subr.mxu0 0.0
    %3202 = vmatpush1.msra.mxu0 %v3077
    %3203 = vmatprep.subr.mxu0 0.0
    %3204 = vmatpush1.msra.mxu0 %v3078
    %3205 = vmatprep.subr.mxu0 0.0
    %3206 = vmatpush1.msra.mxu0 %v3079
    %3207 = vmatprep.subr.mxu0 0.0
    %3208 = vmatpush1.msra.mxu0 %v3080
    %3209 = vmatprep.subr.mxu0 0.0
    %3210 = vmatpush1.msra.mxu0 0.0
    %3211 = vmatprep.subr.mxu0 0.0
    %3212 = vmatpush1.msra.mxu0 0.0
    %3213 = vmatprep.subr.mxu0 0.0
    %3214 = vmatpush1.msra.mxu0 0.0
    %3215 = vmatprep.subr.mxu0 0.0
    %3216 = vmatpush1.msra.mxu0 0.0
    %3217 = vmatprep.subr.mxu0 0.0
    %3218 = vmatpush1.msra.mxu0 0.0
    %3219 = vmatprep.subr.mxu0 0.0
    %3220 = vmatpush1.msra.mxu0 0.0
    %3221 = vmatprep.subr.mxu0 0.0
    %3222 = vmatpush1.msra.mxu0 0.0
    %3223 = vmatprep.subr.mxu0 0.0
    %3224 = vmatpush1.msra.mxu0 0.0
    %3225 = vmatprep.subr.mxu0 0.0
    %3226 = vmatpush1.msra.mxu0 0.0
    %3227 = vmatprep.subr.mxu0 0.0
    %3228 = vmatpush1.msra.mxu0 0.0
    %3229 = vmatprep.subr.mxu0 0.0
    %3230 = vmatpush1.msra.mxu0 0.0
    %3231 = vmatprep.subr.mxu0 0.0
    %3232 = vmatpush1.msra.mxu0 0.0
    %3233 = vmatprep.subr.mxu0 0.0
    %3234 = vmatpush1.msra.mxu0 0.0
    %3235 = vmatprep.subr.mxu0 0.0
    %3236 = vmatpush1.msra.mxu0 0.0
    %3237 = vmatprep.subr.mxu0 0.0
    %3238 = vmatpush1.msra.mxu0 0.0
    %3239 = vmatprep.subr.mxu0 0.0
    %3240 = vmatpush1.msra.mxu0 0.0
    %3241 = vmatprep.subr.mxu0 0.0
    %3242 = vmatpush1.msra.mxu0 0.0
    %3243 = vmatprep.subr.mxu0 0.0
    %3244 = vmatpush1.msra.mxu0 0.0
    %3245 = vmatprep.subr.mxu0 0.0
    %3246 = vmatpush1.msra.mxu0 0.0
    %3247 = vmatprep.subr.mxu0 0.0
    %3248 = vmatpush1.msra.mxu0 0.0
    %3249 = vmatprep.subr.mxu0 0.0
    %3250 = vmatpush1.msra.mxu0 0.0
    %3251 = vmatprep.subr.mxu0 0.0
    %3252 = vmatpush1.msra.mxu0 0.0
    %3253 = vmatprep.subr.mxu0 0.0
    %3254 = vmatpush1.msra.mxu0 0.0
    %3255 = vmatprep.subr.mxu0 0.0
    %3256 = vmatpush1.msra.mxu0 0.0
    %3257 = vmatprep.subr.mxu0 0.0
    %3258 = vmatpush1.msra.mxu0 0.0
    %3259 = vmatprep.subr.mxu0 0.0
    %3260 = vmatpush1.msra.mxu0 0.0
    %3261 = vmatprep.subr.mxu0 0.0
    %3262 = vmatpush1.msra.mxu0 0.0
    %3263 = vmatprep.subr.mxu0 0.0
    %3264 = vmatpush1.msra.mxu0 0.0
    %3265 = vmatprep.mubr.f32.mxu0 0.0
    %3266 = vmatmul.mubr.f32.gmra.mrb[0].mxu0 %v3199
    %v3267 = vpop.f32.mrb[0].mxu0
    %v3268 = vadd.f32 %v3087, %v3267
    %v3269 = vpop.f32.mrb[0].mxu0
    %3270 = vdwg.mxu0
    %vm3271 = vcmp.gt.s32.totalorder %v43, 1
    %v3272 = vadd.f32 %v3195, %v3268
    %v3273 = vxor.u32 %v3272, 2147483648
    %v3274 = vmul.f32 %v3273, 1.442695
    %v3275 = vpow.pop %v3274
    %v3276 = vadd.f32 %v3275, 1.0
    %v3277 = vrcp.pop %v3276
    %v3278 = vmul.f32 1.0, %v3277
    %3280 = vrot.lane.b32.xlu0 %v3268, 64
    %v3281 = vpop.permute.xlu0 %3280
    %v3283 = vmul.f32 %v3278, %v3281
    %3285 = vrot.lane.b32.xlu0 %v3283, 64
    %v3286 = vpop.permute.xlu0 %3285
    %v3288 = vadd.f32 %v3195, %v3286
    %v3289 = vtanh.pop %v3288
    %v3290 = vsub.f32 1.0, %v3278
    %3292 = vrot.lane.b32.xlu0 %v3289, 96
    %v3293 = vpop.permute.xlu0 %3292
    %v3295 = vmul.f32 %v3290, %v3293
    %v3296 = vmul.f32 %v3278, %v3193
    %v3297 = vadd.f32 %v3295, %v3296
    %v3298 = vsel %vm3271, 1, 0
    %3299 = vset.pattern.permute.xlu0 0
    %3300 = vperm.xlu0 %3299, %v3298
    %v3301 = vpop.permute.xlu0 %3300
    %vm3302 = vcmp.eq.s32.totalorder %v3301, 1
    %v3303 = vsel %vm3302, %v3297, %v3193
    %s3304 = scalar_lea.vmem [#allocation3], 16
    %v3305 = vld [vmem:[%s3304] sm:$0xff]
    %3307 = vrot.lane.b32.xlu0 %v3303, 96
    %v3308 = vpop.permute.xlu0 %3307
    %v3309 = vsel %vm479, %v3308, 0
    %3311 = vmatprep.subr.mxu0 0.0
    %3312 = vmatpush1.msra.mxu0 %v3077
    %3313 = vmatprep.subr.mxu0 0.0
    %3314 = vmatpush1.msra.mxu0 %v3078
    %3315 = vmatprep.subr.mxu0 0.0
    %3316 = vmatpush1.msra.mxu0 %v3079
    %3317 = vmatprep.subr.mxu0 0.0
    %3318 = vmatpush1.msra.mxu0 %v3080
    %3319 = vmatprep.subr.mxu0 0.0
    %3320 = vmatpush1.msra.mxu0 0.0
    %3321 = vmatprep.subr.mxu0 0.0
    %3322 = vmatpush1.msra.mxu0 0.0
    %3323 = vmatprep.subr.mxu0 0.0
    %3324 = vmatpush1.msra.mxu0 0.0
    %3325 = vmatprep.subr.mxu0 0.0
    %3326 = vmatpush1.msra.mxu0 0.0
    %3327 = vmatprep.subr.mxu0 0.0
    %3328 = vmatpush1.msra.mxu0 0.0
    %3329 = vmatprep.subr.mxu0 0.0
    %3330 = vmatpush1.msra.mxu0 0.0
    %3331 = vmatprep.subr.mxu0 0.0
    %3332 = vmatpush1.msra.mxu0 0.0
    %3333 = vmatprep.subr.mxu0 0.0
    %3334 = vmatpush1.msra.mxu0 0.0
    %3335 = vmatprep.subr.mxu0 0.0
    %3336 = vmatpush1.msra.mxu0 0.0
    %3337 = vmatprep.subr.mxu0 0.0
    %3338 = vmatpush1.msra.mxu0 0.0
    %3339 = vmatprep.subr.mxu0 0.0
    %3340 = vmatpush1.msra.mxu0 0.0
    %3341 = vmatprep.subr.mxu0 0.0
    %3342 = vmatpush1.msra.mxu0 0.0
    %3343 = vmatprep.subr.mxu0 0.0
    %3344 = vmatpush1.msra.mxu0 0.0
    %3345 = vmatprep.subr.mxu0 0.0
    %3346 = vmatpush1.msra.mxu0 0.0
    %3347 = vmatprep.subr.mxu0 0.0
    %3348 = vmatpush1.msra.mxu0 0.0
    %3349 = vmatprep.subr.mxu0 0.0
    %3350 = vmatpush1.msra.mxu0 0.0
    %3351 = vmatprep.subr.mxu0 0.0
    %3352 = vmatpush1.msra.mxu0 0.0
    %3353 = vmatprep.subr.mxu0 0.0
    %3354 = vmatpush1.msra.mxu0 0.0
    %3355 = vmatprep.subr.mxu0 0.0
    %3356 = vmatpush1.msra.mxu0 0.0
    %3357 = vmatprep.subr.mxu0 0.0
    %3358 = vmatpush1.msra.mxu0 0.0
    %3359 = vmatprep.subr.mxu0 0.0
    %3360 = vmatpush1.msra.mxu0 0.0
    %3361 = vmatprep.subr.mxu0 0.0
    %3362 = vmatpush1.msra.mxu0 0.0
    %3363 = vmatprep.subr.mxu0 0.0
    %3364 = vmatpush1.msra.mxu0 0.0
    %3365 = vmatprep.subr.mxu0 0.0
    %3366 = vmatpush1.msra.mxu0 0.0
    %3367 = vmatprep.subr.mxu0 0.0
    %3368 = vmatpush1.msra.mxu0 0.0
    %3369 = vmatprep.subr.mxu0 0.0
    %3370 = vmatpush1.msra.mxu0 0.0
    %3371 = vmatprep.subr.mxu0 0.0
    %3372 = vmatpush1.msra.mxu0 0.0
    %3373 = vmatprep.subr.mxu0 0.0
    %3374 = vmatpush1.msra.mxu0 0.0
    %3375 = vmatprep.mubr.f32.mxu0 0.0
    %3376 = vmatmul.mubr.f32.gmra.mrb[0].mxu0 %v3309
    %v3377 = vpop.f32.mrb[0].mxu0
    %v3378 = vadd.f32 %v3087, %v3377
    %v3379 = vpop.f32.mrb[0].mxu0
    %3380 = vdwg.mxu0
    %vm3381 = vcmp.gt.s32.totalorder %v43, 2
    %v3382 = vadd.f32 %v3305, %v3378
    %v3383 = vxor.u32 %v3382, 2147483648
    %v3384 = vmul.f32 %v3383, 1.442695
    %v3385 = vpow.pop %v3384
    %v3386 = vadd.f32 %v3385, 1.0
    %v3387 = vrcp.pop %v3386
    %v3388 = vmul.f32 1.0, %v3387
    %3390 = vrot.lane.b32.xlu0 %v3378, 64
    %v3391 = vpop.permute.xlu0 %3390
    %v3393 = vmul.f32 %v3388, %v3391
    %3395 = vrot.lane.b32.xlu0 %v3393, 64
    %v3396 = vpop.permute.xlu0 %3395
    %v3398 = vadd.f32 %v3305, %v3396
    %v3399 = vtanh.pop %v3398
    %v3400 = vsub.f32 1.0, %v3388
    %3402 = vrot.lane.b32.xlu0 %v3399, 96
    %v3403 = vpop.permute.xlu0 %3402
    %v3405 = vmul.f32 %v3400, %v3403
    %v3406 = vmul.f32 %v3388, %v3303
    %v3407 = vadd.f32 %v3405, %v3406
    %v3408 = vsel %vm3381, 1, 0
    %3409 = vset.pattern.permute.xlu0 0
    %3410 = vperm.xlu0 %3409, %v3408
    %v3411 = vpop.permute.xlu0 %3410
    %vm3412 = vcmp.eq.s32.totalorder %v3411, 1
    %v3413 = vsel %vm3412, %v3407, %v3303
    %s3414 = scalar_lea.vmem [#allocation3], 24
    %v3415 = vld [vmem:[%s3414] sm:$0xff]
    %3417 = vrot.lane.b32.xlu0 %v3413, 96
    %v3418 = vpop.permute.xlu0 %3417
    %v3419 = vsel %vm479, %v3418, 0
    %3421 = vmatprep.subr.mxu0 0.0
    %3422 = vmatpush1.msra.mxu0 %v3077
    %3423 = vmatprep.subr.mxu0 0.0
    %3424 = vmatpush1.msra.mxu0 %v3078
    %3425 = vmatprep.subr.mxu0 0.0
    %3426 = vmatpush1.msra.mxu0 %v3079
    %3427 = vmatprep.subr.mxu0 0.0
    %3428 = vmatpush1.msra.mxu0 %v3080
    %3429 = vmatprep.subr.mxu0 0.0
    %3430 = vmatpush1.msra.mxu0 0.0
    %3431 = vmatprep.subr.mxu0 0.0
    %3432 = vmatpush1.msra.mxu0 0.0
    %3433 = vmatprep.subr.mxu0 0.0
    %3434 = vmatpush1.msra.mxu0 0.0
    %3435 = vmatprep.subr.mxu0 0.0
    %3436 = vmatpush1.msra.mxu0 0.0
    %3437 = vmatprep.subr.mxu0 0.0
    %3438 = vmatpush1.msra.mxu0 0.0
    %3439 = vmatprep.subr.mxu0 0.0
    %3440 = vmatpush1.msra.mxu0 0.0
    %3441 = vmatprep.subr.mxu0 0.0
    %3442 = vmatpush1.msra.mxu0 0.0
    %3443 = vmatprep.subr.mxu0 0.0
    %3444 = vmatpush1.msra.mxu0 0.0
    %3445 = vmatprep.subr.mxu0 0.0
    %3446 = vmatpush1.msra.mxu0 0.0
    %3447 = vmatprep.subr.mxu0 0.0
    %3448 = vmatpush1.msra.mxu0 0.0
    %3449 = vmatprep.subr.mxu0 0.0
    %3450 = vmatpush1.msra.mxu0 0.0
    %3451 = vmatprep.subr.mxu0 0.0
    %3452 = vmatpush1.msra.mxu0 0.0
    %3453 = vmatprep.subr.mxu0 0.0
    %3454 = vmatpush1.msra.mxu0 0.0
    %3455 = vmatprep.subr.mxu0 0.0
    %3456 = vmatpush1.msra.mxu0 0.0
    %3457 = vmatprep.subr.mxu0 0.0
    %3458 = vmatpush1.msra.mxu0 0.0
    %3459 = vmatprep.subr.mxu0 0.0
    %3460 = vmatpush1.msra.mxu0 0.0
    %3461 = vmatprep.subr.mxu0 0.0
    %3462 = vmatpush1.msra.mxu0 0.0
    %3463 = vmatprep.subr.mxu0 0.0
    %3464 = vmatpush1.msra.mxu0 0.0
    %3465 = vmatprep.subr.mxu0 0.0
    %3466 = vmatpush1.msra.mxu0 0.0
    %3467 = vmatprep.subr.mxu0 0.0
    %3468 = vmatpush1.msra.mxu0 0.0
    %3469 = vmatprep.subr.mxu0 0.0
    %3470 = vmatpush1.msra.mxu0 0.0
    %3471 = vmatprep.subr.mxu0 0.0
    %3472 = vmatpush1.msra.mxu0 0.0
    %3473 = vmatprep.subr.mxu0 0.0
    %3474 = vmatpush1.msra.mxu0 0.0
    %3475 = vmatprep.subr.mxu0 0.0
    %3476 = vmatpush1.msra.mxu0 0.0
    %3477 = vmatprep.subr.mxu0 0.0
    %3478 = vmatpush1.msra.mxu0 0.0
    %3479 = vmatprep.subr.mxu0 0.0
    %3480 = vmatpush1.msra.mxu0 0.0
    %3481 = vmatprep.subr.mxu0 0.0
    %3482 = vmatpush1.msra.mxu0 0.0
    %3483 = vmatprep.subr.mxu0 0.0
    %3484 = vmatpush1.msra.mxu0 0.0
    %3485 = vmatprep.mubr.f32.mxu0 0.0
    %3486 = vmatmul.mubr.f32.gmra.mrb[0].mxu0 %v3419
    %v3487 = vpop.f32.mrb[0].mxu0
    %v3488 = vadd.f32 %v3087, %v3487
    %v3489 = vpop.f32.mrb[0].mxu0
    %3490 = vdwg.mxu0
    %vm3491 = vcmp.gt.s32.totalorder %v43, 3
    %v3492 = vadd.f32 %v3415, %v3488
    %v3493 = vxor.u32 %v3492, 2147483648
    %v3494 = vmul.f32 %v3493, 1.442695
    %v3495 = vpow.pop %v3494
    %v3496 = vadd.f32 %v3495, 1.0
    %v3497 = vrcp.pop %v3496
    %v3498 = vmul.f32 1.0, %v3497
    %3500 = vrot.lane.b32.xlu0 %v3488, 64
    %v3501 = vpop.permute.xlu0 %3500
    %v3503 = vmul.f32 %v3498, %v3501
    %3505 = vrot.lane.b32.xlu0 %v3503, 64
    %v3506 = vpop.permute.xlu0 %3505
    %v3508 = vadd.f32 %v3415, %v3506
    %v3509 = vtanh.pop %v3508
    %v3510 = vsub.f32 1.0, %v3498
    %3512 = vrot.lane.b32.xlu0 %v3509, 96
    %v3513 = vpop.permute.xlu0 %3512
    %v3515 = vmul.f32 %v3510, %v3513
    %v3516 = vmul.f32 %v3498, %v3413
    %v3517 = vadd.f32 %v3515, %v3516
    %v3518 = vsel %vm3491, 1, 0
    %3519 = vset.pattern.permute.xlu0 0
    %3520 = vperm.xlu0 %3519, %v3518
    %v3521 = vpop.permute.xlu0 %3520
    %vm3522 = vcmp.eq.s32.totalorder %v3521, 1
    %v3523 = vsel %vm3522, %v3517, %v3413
    %s3524 = scalar_lea.vmem [#allocation3], 32
    %v3525 = vld [vmem:[%s3524] sm:$0xff]
    %3527 = vrot.lane.b32.xlu0 %v3523, 96
    %v3528 = vpop.permute.xlu0 %3527
    %v3529 = vsel %vm479, %v3528, 0
    %3531 = vmatprep.subr.mxu0 0.0
    %3532 = vmatpush1.msra.mxu0 %v3077
    %3533 = vmatprep.subr.mxu0 0.0
    %3534 = vmatpush1.msra.mxu0 %v3078
    %3535 = vmatprep.subr.mxu0 0.0
    %3536 = vmatpush1.msra.mxu0 %v3079
    %3537 = vmatprep.subr.mxu0 0.0
    %3538 = vmatpush1.msra.mxu0 %v3080
    %3539 = vmatprep.subr.mxu0 0.0
    %3540 = vmatpush1.msra.mxu0 0.0
    %3541 = vmatprep.subr.mxu0 0.0
    %3542 = vmatpush1.msra.mxu0 0.0
    %3543 = vmatprep.subr.mxu0 0.0
    %3544 = vmatpush1.msra.mxu0 0.0
    %3545 = vmatprep.subr.mxu0 0.0
    %3546 = vmatpush1.msra.mxu0 0.0
    %3547 = vmatprep.subr.mxu0 0.0
    %3548 = vmatpush1.msra.mxu0 0.0
    %3549 = vmatprep.subr.mxu0 0.0
    %3550 = vmatpush1.msra.mxu0 0.0
    %3551 = vmatprep.subr.mxu0 0.0
    %3552 = vmatpush1.msra.mxu0 0.0
    %3553 = vmatprep.subr.mxu0 0.0
    %3554 = vmatpush1.msra.mxu0 0.0
    %3555 = vmatprep.subr.mxu0 0.0
    %3556 = vmatpush1.msra.mxu0 0.0
    %3557 = vmatprep.subr.mxu0 0.0
    %3558 = vmatpush1.msra.mxu0 0.0
    %3559 = vmatprep.subr.mxu0 0.0
    %3560 = vmatpush1.msra.mxu0 0.0
    %3561 = vmatprep.subr.mxu0 0.0
    %3562 = vmatpush1.msra.mxu0 0.0
    %3563 = vmatprep.subr.mxu0 0.0
    %3564 = vmatpush1.msra.mxu0 0.0
    %3565 = vmatprep.subr.mxu0 0.0
    %3566 = vmatpush1.msra.mxu0 0.0
    %3567 = vmatprep.subr.mxu0 0.0
    %3568 = vmatpush1.msra.mxu0 0.0
    %3569 = vmatprep.subr.mxu0 0.0
    %3570 = vmatpush1.msra.mxu0 0.0
    %3571 = vmatprep.subr.mxu0 0.0
    %3572 = vmatpush1.msra.mxu0 0.0
    %3573 = vmatprep.subr.mxu0 0.0
    %3574 = vmatpush1.msra.mxu0 0.0
    %3575 = vmatprep.subr.mxu0 0.0
    %3576 = vmatpush1.msra.mxu0 0.0
    %3577 = vmatprep.subr.mxu0 0.0
    %3578 = vmatpush1.msra.mxu0 0.0
    %3579 = vmatprep.subr.mxu0 0.0
    %3580 = vmatpush1.msra.mxu0 0.0
    %3581 = vmatprep.subr.mxu0 0.0
    %3582 = vmatpush1.msra.mxu0 0.0
    %3583 = vmatprep.subr.mxu0 0.0
    %3584 = vmatpush1.msra.mxu0 0.0
    %3585 = vmatprep.subr.mxu0 0.0
    %3586 = vmatpush1.msra.mxu0 0.0
    %3587 = vmatprep.subr.mxu0 0.0
    %3588 = vmatpush1.msra.mxu0 0.0
    %3589 = vmatprep.subr.mxu0 0.0
    %3590 = vmatpush1.msra.mxu0 0.0
    %3591 = vmatprep.subr.mxu0 0.0
    %3592 = vmatpush1.msra.mxu0 0.0
    %3593 = vmatprep.subr.mxu0 0.0
    %3594 = vmatpush1.msra.mxu0 0.0
    %3595 = vmatprep.mubr.f32.mxu0 0.0
    %3596 = vmatmul.mubr.f32.gmra.mrb[0].mxu0 %v3529
    %v3597 = vpop.f32.mrb[0].mxu0
    %v3598 = vadd.f32 %v3087, %v3597
    %v3599 = vpop.f32.mrb[0].mxu0
    %3600 = vdwg.mxu0
    %vm3601 = vcmp.gt.s32.totalorder %v43, 4
    %v3602 = vadd.f32 %v3525, %v3598
    %v3603 = vxor.u32 %v3602, 2147483648
    %v3604 = vmul.f32 %v3603, 1.442695
    %v3605 = vpow.pop %v3604
    %v3606 = vadd.f32 %v3605, 1.0
    %v3607 = vrcp.pop %v3606
    %v3608 = vmul.f32 1.0, %v3607
    %3610 = vrot.lane.b32.xlu0 %v3598, 64
    %v3611 = vpop.permute.xlu0 %3610
    %v3613 = vmul.f32 %v3608, %v3611
    %3615 = vrot.lane.b32.xlu0 %v3613, 64
    %v3616 = vpop.permute.xlu0 %3615
    %v3618 = vadd.f32 %v3525, %v3616
    %v3619 = vtanh.pop %v3618
    %v3620 = vsub.f32 1.0, %v3608
    %3622 = vrot.lane.b32.xlu0 %v3619, 96
    %v3623 = vpop.permute.xlu0 %3622
    %v3625 = vmul.f32 %v3620, %v3623
    %v3626 = vmul.f32 %v3608, %v3523
    %v3627 = vadd.f32 %v3625, %v3626
    %v3628 = vsel %vm3601, 1, 0
    %3629 = vset.pattern.permute.xlu0 0
    %3630 = vperm.xlu0 %3629, %v3628
    %v3631 = vpop.permute.xlu0 %3630
    %vm3632 = vcmp.eq.s32.totalorder %v3631, 1
    %v3633 = vsel %vm3632, %v3627, %v3523
    %s3634 = scalar_lea.vmem [#allocation3], 40
    %v3635 = vld [vmem:[%s3634] sm:$0xff]
    %3637 = vrot.lane.b32.xlu0 %v3633, 96
    %v3638 = vpop.permute.xlu0 %3637
    %v3639 = vsel %vm479, %v3638, 0
    %3641 = vmatprep.subr.mxu0 0.0
    %3642 = vmatpush1.msra.mxu0 %v3077
    %3643 = vmatprep.subr.mxu0 0.0
    %3644 = vmatpush1.msra.mxu0 %v3078
    %3645 = vmatprep.subr.mxu0 0.0
    %3646 = vmatpush1.msra.mxu0 %v3079
    %3647 = vmatprep.subr.mxu0 0.0
    %3648 = vmatpush1.msra.mxu0 %v3080
    %3649 = vmatprep.subr.mxu0 0.0
    %3650 = vmatpush1.msra.mxu0 0.0
    %3651 = vmatprep.subr.mxu0 0.0
    %3652 = vmatpush1.msra.mxu0 0.0
    %3653 = vmatprep.subr.mxu0 0.0
    %3654 = vmatpush1.msra.mxu0 0.0
    %3655 = vmatprep.subr.mxu0 0.0
    %3656 = vmatpush1.msra.mxu0 0.0
    %3657 = vmatprep.subr.mxu0 0.0
    %3658 = vmatpush1.msra.mxu0 0.0
    %3659 = vmatprep.subr.mxu0 0.0
    %3660 = vmatpush1.msra.mxu0 0.0
    %3661 = vmatprep.subr.mxu0 0.0
    %3662 = vmatpush1.msra.mxu0 0.0
    %3663 = vmatprep.subr.mxu0 0.0
    %3664 = vmatpush1.msra.mxu0 0.0
    %3665 = vmatprep.subr.mxu0 0.0
    %3666 = vmatpush1.msra.mxu0 0.0
    %3667 = vmatprep.subr.mxu0 0.0
    %3668 = vmatpush1.msra.mxu0 0.0
    %3669 = vmatprep.subr.mxu0 0.0
    %3670 = vmatpush1.msra.mxu0 0.0
    %3671 = vmatprep.subr.mxu0 0.0
    %3672 = vmatpush1.msra.mxu0 0.0
    %3673 = vmatprep.subr.mxu0 0.0
    %3674 = vmatpush1.msra.mxu0 0.0
    %3675 = vmatprep.subr.mxu0 0.0
    %3676 = vmatpush1.msra.mxu0 0.0
    %3677 = vmatprep.subr.mxu0 0.0
    %3678 = vmatpush1.msra.mxu0 0.0
    %3679 = vmatprep.subr.mxu0 0.0
    %3680 = vmatpush1.msra.mxu0 0.0
    %3681 = vmatprep.subr.mxu0 0.0
    %3682 = vmatpush1.msra.mxu0 0.0
    %3683 = vmatprep.subr.mxu0 0.0
    %3684 = vmatpush1.msra.mxu0 0.0
    %3685 = vmatprep.subr.mxu0 0.0
    %3686 = vmatpush1.msra.mxu0 0.0
    %3687 = vmatprep.subr.mxu0 0.0
    %3688 = vmatpush1.msra.mxu0 0.0
    %3689 = vmatprep.subr.mxu0 0.0
    %3690 = vmatpush1.msra.mxu0 0.0
    %3691 = vmatprep.subr.mxu0 0.0
    %3692 = vmatpush1.msra.mxu0 0.0
    %3693 = vmatprep.subr.mxu0 0.0
    %3694 = vmatpush1.msra.mxu0 0.0
    %3695 = vmatprep.subr.mxu0 0.0
    %3696 = vmatpush1.msra.mxu0 0.0
    %3697 = vmatprep.subr.mxu0 0.0
    %3698 = vmatpush1.msra.mxu0 0.0
    %3699 = vmatprep.subr.mxu0 0.0
    %3700 = vmatpush1.msra.mxu0 0.0
    %3701 = vmatprep.subr.mxu0 0.0
    %3702 = vmatpush1.msra.mxu0 0.0
    %3703 = vmatprep.subr.mxu0 0.0
    %3704 = vmatpush1.msra.mxu0 0.0
    %3705 = vmatprep.mubr.f32.mxu0 0.0
    %3706 = vmatmul.mubr.f32.gmra.mrb[0].mxu0 %v3639
    %v3707 = vpop.f32.mrb[0].mxu0
    %v3708 = vadd.f32 %v3087, %v3707
    %v3709 = vpop.f32.mrb[0].mxu0
    %3710 = vdwg.mxu0
    %vm3711 = vcmp.gt.s32.totalorder %v43, 5
    %v3712 = vadd.f32 %v3635, %v3708
    %v3713 = vxor.u32 %v3712, 2147483648
    %v3714 = vmul.f32 %v3713, 1.442695
    %v3715 = vpow.pop %v3714
    %v3716 = vadd.f32 %v3715, 1.0
    %v3717 = vrcp.pop %v3716
    %v3718 = vmul.f32 1.0, %v3717
    %3720 = vrot.lane.b32.xlu0 %v3708, 64
    %v3721 = vpop.permute.xlu0 %3720
    %v3723 = vmul.f32 %v3718, %v3721
    %3725 = vrot.lane.b32.xlu0 %v3723, 64
    %v3726 = vpop.permute.xlu0 %3725
    %v3728 = vadd.f32 %v3635, %v3726
    %v3729 = vtanh.pop %v3728
    %v3730 = vsub.f32 1.0, %v3718
    %3732 = vrot.lane.b32.xlu0 %v3729, 96
    %v3733 = vpop.permute.xlu0 %3732
    %v3735 = vmul.f32 %v3730, %v3733
    %v3736 = vmul.f32 %v3718, %v3633
    %v3737 = vadd.f32 %v3735, %v3736
    %v3738 = vsel %vm3711, 1, 0
    %3739 = vset.pattern.permute.xlu0 0
    %3740 = vperm.xlu0 %3739, %v3738
    %v3741 = vpop.permute.xlu0 %3740
    %vm3742 = vcmp.eq.s32.totalorder %v3741, 1
    %v3743 = vsel %vm3742, %v3737, %v3633
    %s3744 = scalar_lea.vmem [#allocation3], 48
    %v3745 = vld [vmem:[%s3744] sm:$0xff]
    %3747 = vrot.lane.b32.xlu0 %v3743, 96
    %v3748 = vpop.permute.xlu0 %3747
    %v3749 = vsel %vm479, %v3748, 0
    %3751 = vmatprep.subr.mxu0 0.0
    %3752 = vmatpush1.msra.mxu0 %v3077
    %3753 = vmatprep.subr.mxu0 0.0
    %3754 = vmatpush1.msra.mxu0 %v3078
    %3755 = vmatprep.subr.mxu0 0.0
    %3756 = vmatpush1.msra.mxu0 %v3079
    %3757 = vmatprep.subr.mxu0 0.0
    %3758 = vmatpush1.msra.mxu0 %v3080
    %3759 = vmatprep.subr.mxu0 0.0
    %3760 = vmatpush1.msra.mxu0 0.0
    %3761 = vmatprep.subr.mxu0 0.0
    %3762 = vmatpush1.msra.mxu0 0.0
    %3763 = vmatprep.subr.mxu0 0.0
    %3764 = vmatpush1.msra.mxu0 0.0
    %3765 = vmatprep.subr.mxu0 0.0
    %3766 = vmatpush1.msra.mxu0 0.0
    %3767 = vmatprep.subr.mxu0 0.0
    %3768 = vmatpush1.msra.mxu0 0.0
    %3769 = vmatprep.subr.mxu0 0.0
    %3770 = vmatpush1.msra.mxu0 0.0
    %3771 = vmatprep.subr.mxu0 0.0
    %3772 = vmatpush1.msra.mxu0 0.0
    %3773 = vmatprep.subr.mxu0 0.0
    %3774 = vmatpush1.msra.mxu0 0.0
    %3775 = vmatprep.subr.mxu0 0.0
    %3776 = vmatpush1.msra.mxu0 0.0
    %3777 = vmatprep.subr.mxu0 0.0
    %3778 = vmatpush1.msra.mxu0 0.0
    %3779 = vmatprep.subr.mxu0 0.0
    %3780 = vmatpush1.msra.mxu0 0.0
    %3781 = vmatprep.subr.mxu0 0.0
    %3782 = vmatpush1.msra.mxu0 0.0
    %3783 = vmatprep.subr.mxu0 0.0
    %3784 = vmatpush1.msra.mxu0 0.0
    %3785 = vmatprep.subr.mxu0 0.0
    %3786 = vmatpush1.msra.mxu0 0.0
    %3787 = vmatprep.subr.mxu0 0.0
    %3788 = vmatpush1.msra.mxu0 0.0
    %3789 = vmatprep.subr.mxu0 0.0
    %3790 = vmatpush1.msra.mxu0 0.0
    %3791 = vmatprep.subr.mxu0 0.0
    %3792 = vmatpush1.msra.mxu0 0.0
    %3793 = vmatprep.subr.mxu0 0.0
    %3794 = vmatpush1.msra.mxu0 0.0
    %3795 = vmatprep.subr.mxu0 0.0
    %3796 = vmatpush1.msra.mxu0 0.0
    %3797 = vmatprep.subr.mxu0 0.0
    %3798 = vmatpush1.msra.mxu0 0.0
    %3799 = vmatprep.subr.mxu0 0.0
    %3800 = vmatpush1.msra.mxu0 0.0
    %3801 = vmatprep.subr.mxu0 0.0
    %3802 = vmatpush1.msra.mxu0 0.0
    %3803 = vmatprep.subr.mxu0 0.0
    %3804 = vmatpush1.msra.mxu0 0.0
    %3805 = vmatprep.subr.mxu0 0.0
    %3806 = vmatpush1.msra.mxu0 0.0
    %3807 = vmatprep.subr.mxu0 0.0
    %3808 = vmatpush1.msra.mxu0 0.0
    %3809 = vmatprep.subr.mxu0 0.0
    %3810 = vmatpush1.msra.mxu0 0.0
    %3811 = vmatprep.subr.mxu0 0.0
    %3812 = vmatpush1.msra.mxu0 0.0
    %3813 = vmatprep.subr.mxu0 0.0
    %3814 = vmatpush1.msra.mxu0 0.0
    %3815 = vmatprep.mubr.f32.mxu0 0.0
    %3816 = vmatmul.mubr.f32.gmra.mrb[0].mxu0 %v3749
    %v3817 = vpop.f32.mrb[0].mxu0
    %v3818 = vadd.f32 %v3087, %v3817
    %v3819 = vpop.f32.mrb[0].mxu0
    %3820 = vdwg.mxu0
    %vm3821 = vcmp.gt.s32.totalorder %v43, 6
    %v3822 = vadd.f32 %v3745, %v3818
    %v3823 = vxor.u32 %v3822, 2147483648
    %v3824 = vmul.f32 %v3823, 1.442695
    %v3825 = vpow.pop %v3824
    %v3826 = vadd.f32 %v3825, 1.0
    %v3827 = vrcp.pop %v3826
    %v3828 = vmul.f32 1.0, %v3827
    %3830 = vrot.lane.b32.xlu0 %v3818, 64
    %v3831 = vpop.permute.xlu0 %3830
    %v3833 = vmul.f32 %v3828, %v3831
    %3835 = vrot.lane.b32.xlu0 %v3833, 64
    %v3836 = vpop.permute.xlu0 %3835
    %v3838 = vadd.f32 %v3745, %v3836
    %v3839 = vtanh.pop %v3838
    %v3840 = vsub.f32 1.0, %v3828
    %3842 = vrot.lane.b32.xlu0 %v3839, 96
    %v3843 = vpop.permute.xlu0 %3842
    %v3845 = vmul.f32 %v3840, %v3843
    %v3846 = vmul.f32 %v3828, %v3743
    %v3847 = vadd.f32 %v3845, %v3846
    %v3848 = vsel %vm3821, 1, 0
    %3849 = vset.pattern.permute.xlu0 0
    %3850 = vperm.xlu0 %3849, %v3848
    %v3851 = vpop.permute.xlu0 %3850
    %vm3852 = vcmp.eq.s32.totalorder %v3851, 1
    %v3853 = vsel %vm3852, %v3847, %v3743
    %s3854 = scalar_lea.vmem [#allocation3], 56
    %v3855 = vld [vmem:[%s3854] sm:$0xff]
    %3857 = vrot.lane.b32.xlu0 %v3853, 96
    %v3858 = vpop.permute.xlu0 %3857
    %v3859 = vsel %vm479, %v3858, 0
    %3861 = vmatprep.subr.mxu0 0.0
    %3862 = vmatpush1.msra.mxu0 %v3077
    %3863 = vmatprep.subr.mxu0 0.0
    %3864 = vmatpush1.msra.mxu0 %v3078
    %3865 = vmatprep.subr.mxu0 0.0
    %3866 = vmatpush1.msra.mxu0 %v3079
    %3867 = vmatprep.subr.mxu0 0.0
    %3868 = vmatpush1.msra.mxu0 %v3080
    %3869 = vmatprep.subr.mxu0 0.0
    %3870 = vmatpush1.msra.mxu0 0.0
    %3871 = vmatprep.subr.mxu0 0.0
    %3872 = vmatpush1.msra.mxu0 0.0
    %3873 = vmatprep.subr.mxu0 0.0
    %3874 = vmatpush1.msra.mxu0 0.0
    %3875 = vmatprep.subr.mxu0 0.0
    %3876 = vmatpush1.msra.mxu0 0.0
    %3877 = vmatprep.subr.mxu0 0.0
    %3878 = vmatpush1.msra.mxu0 0.0
    %3879 = vmatprep.subr.mxu0 0.0
    %3880 = vmatpush1.msra.mxu0 0.0
    %3881 = vmatprep.subr.mxu0 0.0
    %3882 = vmatpush1.msra.mxu0 0.0
    %3883 = vmatprep.subr.mxu0 0.0
    %3884 = vmatpush1.msra.mxu0 0.0
    %3885 = vmatprep.subr.mxu0 0.0
    %3886 = vmatpush1.msra.mxu0 0.0
    %3887 = vmatprep.subr.mxu0 0.0
    %3888 = vmatpush1.msra.mxu0 0.0
    %3889 = vmatprep.subr.mxu0 0.0
    %3890 = vmatpush1.msra.mxu0 0.0
    %3891 = vmatprep.subr.mxu0 0.0
    %3892 = vmatpush1.msra.mxu0 0.0
    %3893 = vmatprep.subr.mxu0 0.0
    %3894 = vmatpush1.msra.mxu0 0.0
    %3895 = vmatprep.subr.mxu0 0.0
    %3896 = vmatpush1.msra.mxu0 0.0
    %3897 = vmatprep.subr.mxu0 0.0
    %3898 = vmatpush1.msra.mxu0 0.0
    %3899 = vmatprep.subr.mxu0 0.0
    %3900 = vmatpush1.msra.mxu0 0.0
    %3901 = vmatprep.subr.mxu0 0.0
    %3902 = vmatpush1.msra.mxu0 0.0
    %3903 = vmatprep.subr.mxu0 0.0
    %3904 = vmatpush1.msra.mxu0 0.0
    %3905 = vmatprep.subr.mxu0 0.0
    %3906 = vmatpush1.msra.mxu0 0.0
    %3907 = vmatprep.subr.mxu0 0.0
    %3908 = vmatpush1.msra.mxu0 0.0
    %3909 = vmatprep.subr.mxu0 0.0
    %3910 = vmatpush1.msra.mxu0 0.0
    %3911 = vmatprep.subr.mxu0 0.0
    %3912 = vmatpush1.msra.mxu0 0.0
    %3913 = vmatprep.subr.mxu0 0.0
    %3914 = vmatpush1.msra.mxu0 0.0
    %3915 = vmatprep.subr.mxu0 0.0
    %3916 = vmatpush1.msra.mxu0 0.0
    %3917 = vmatprep.subr.mxu0 0.0
    %3918 = vmatpush1.msra.mxu0 0.0
    %3919 = vmatprep.subr.mxu0 0.0
    %3920 = vmatpush1.msra.mxu0 0.0
    %3921 = vmatprep.subr.mxu0 0.0
    %3922 = vmatpush1.msra.mxu0 0.0
    %3923 = vmatprep.subr.mxu0 0.0
    %3924 = vmatpush1.msra.mxu0 0.0
    %3925 = vmatprep.mubr.f32.mxu0 0.0
    %3926 = vmatmul.mubr.f32.gmra.mrb[0].mxu0 %v3859
    %v3927 = vpop.f32.mrb[0].mxu0
    %v3928 = vadd.f32 %v3087, %v3927
    %v3929 = vpop.f32.mrb[0].mxu0
    %3930 = vdwg.mxu0
    %vm3931 = vcmp.gt.s32.totalorder %v43, 7
    %v3932 = vadd.f32 %v3855, %v3928
    %v3933 = vxor.u32 %v3932, 2147483648
    %v3934 = vmul.f32 %v3933, 1.442695
    %v3935 = vpow.pop %v3934
    %v3936 = vadd.f32 %v3935, 1.0
    %v3937 = vrcp.pop %v3936
    %v3938 = vmul.f32 1.0, %v3937
    %3940 = vrot.lane.b32.xlu0 %v3928, 64
    %v3941 = vpop.permute.xlu0 %3940
    %v3943 = vmul.f32 %v3938, %v3941
    %3945 = vrot.lane.b32.xlu0 %v3943, 64
    %v3946 = vpop.permute.xlu0 %3945
    %v3948 = vadd.f32 %v3855, %v3946
    %v3949 = vtanh.pop %v3948
    %v3950 = vsub.f32 1.0, %v3938
    %3952 = vrot.lane.b32.xlu0 %v3949, 96
    %v3953 = vpop.permute.xlu0 %3952
    %v3955 = vmul.f32 %v3950, %v3953
    %v3956 = vmul.f32 %v3938, %v3853
    %v3957 = vadd.f32 %v3955, %v3956
    %v3958 = vsel %vm3931, 1, 0
    %3959 = vset.pattern.permute.xlu0 0
    %3960 = vperm.xlu0 %3959, %v3958
    %v3961 = vpop.permute.xlu0 %3960
    %vm3962 = vcmp.eq.s32.totalorder %v3961, 1
    %v3963 = vsel %vm3962, %v3957, %v3853
    %3965 = vrot.lane.b32.xlu0 %v3963, 96
    %v3966 = vpop.permute.xlu0 %3965
    %3968 = vst.msk [vmem:[#allocation4] sm:$0xff] %vm479, %v3966
    // Predicated region
    $region50: #{_encode_batch.1} parent=1 // pred_check
      _
    $region51: #{_encode_batch.1} parent=1 // pred_check_branch
      %3970 = sbr.rel (0) target = $region53
    $region52: #{_encode_batch.1} parent=1 // pred_region
      %s3972 = ssub.s32 128, 128
      %3973 = vsyncadd [#allocation5], %s3972
      %s3975 = sshll.u32 [#allocation4], 4
      %s3976 = int_to_ptr.vmem [resolvable:$true] %s3975
      %3978 = dma.vmem_to_hbm [thread:$0]  %s3976, 128, %s12, [#allocation5]
    $region53: #{_encode_batch.1} parent=1 // pred_fallthru
      _
    // Predicated region
    $region54: #{_encode_batch.1} parent=1 // pred_check
      _
    $region55: #{_encode_batch.1} parent=1 // pred_check_branch
      %3980 = sbr.rel (0) target = $region57
    $region56: #{_encode_batch.1} parent=1 // pred_region
      %3981 = dma.done [#allocation5], 128
    $region57: #{_encode_batch.1} parent=1 // pred_fallthru
      _
    %3982 = vsyncpa [#allocation5], 1

</llo_original>
